<compile_context>
chip_gen: v7x
topology: tpu7x:2x2x1
jax: 0.10.0
libtpu: 0.0.40
codegen_flags: <defaults>
</compile_context>

<pallas_src>
import math
import numpy as np
import jax
import jax.numpy as jnp
from jax import lax
from jax.experimental import pallas as pl
from jax.experimental.pallas import tpu as pltpu

W_DIM = 32            # G.synthesis.w_dim
IMG_RESOLUTION = 16
IMG_CHANNELS = 3
CH = 32               # feature channels at every resolution (small synthetic G)
NUM_WS = 6            # ws indices shared between convs and torgb layers
CONV_CLAMP = 256.0
ACT_GAIN = math.sqrt(2.0)
ACT_CLAMP = CONV_CLAMP * ACT_GAIN     # StyleGAN2-ADA: act_clamp = conv_clamp * gain
RGB_PAD = 8                           # output channel padding (was 128): 16x less writeback
HW4, HW8, HW16 = 16, 64, 256


# ----------------------------------------------------------------------- fused kernel
def _synthesis_kernel(x0_ref, u48_ref, u816_ref, wc_ref, wrgb_ref,
                      bc_ref, brgb_ref, out_ref):
    f32, bf16 = jnp.float32, jnp.bfloat16

    def edge_masks(H, W):
        # Per-pixel validity of the four 3x3-conv border directions, built from
        # an in-kernel iota (no constant tables, no HBM traffic).
        HW = H * W
        log2w = {4: 2, 8: 3, 16: 4}[W]
        pix = lax.broadcasted_iota(jnp.int32, (HW, CH), 0)   # flattened pixel id
        col = pix & (W - 1)
        row = pix >> log2w
        return col >= 1, col <= W - 2, row >= 1, row <= H - 2

    def conv3x3(x, H, W, masks, layer):
        # x: (HW, CH) f32.  3x3 "same" modulated conv with per-sample folded
        # weights.  Shift-gather = pltpu.roll (sublane axis) + masks; the MXU
        # only does the real (HW,CH)x(CH,CH) tap contractions.
        HW = H * W
        left_ok, right_ok, up_ok, down_ok = masks
        # Column-shifted copies (dx = -1, 0, +1): shifted[p] = x[p + dx].
        # The column mask is applied once here; it is invariant under the row
        # shifts (multiples of W) applied below.
        xm = jnp.where(left_ok, pltpu.roll(x, 1, axis=0), 0.0)         # x[p-1]
        xp = jnp.where(right_ok, pltpu.roll(x, HW - 1, axis=0), 0.0)   # x[p+1]
        cols = (xm, x, xp)
        acc = None
        for dy in (-1, 0, 1):
            rshift = (-dy * W) % HW      # shifted[p] = v[p + dy*W]
            part = None
            for j, dx in enumerate((-1, 0, 1)):
                v = cols[j]
                if rshift:
                    v = pltpu.roll(v, rshift, axis=0)
                tap = (dy + 1) * 3 + (dx + 1)
                d = jnp.dot(v.astype(bf16), wc_ref[layer * 9 + tap],
                            preferred_element_type=f32)
                part = d if part is None else part + d
            # A per-row mask commutes with the channel matmul, so one select
            # covers all 3 taps of this kernel row.
            if dy == -1:
                part = jnp.where(up_ok, part, 0.0)
            elif dy == 1:
                part = jnp.where(down_ok, part, 0.0)
            acc = part if acc is None else acc + part
        # noise_strength is initialised to 0 in StyleGAN2-ADA -> noise add is a no-op.
        y = acc + bc_ref[layer]                    # (1, CH) broadcast
        y = jnp.maximum(y, 0.2 * y)                # lrelu; sqrt(2) gain folded into W & b
        return jnp.clip(y, -ACT_CLAMP, ACT_CLAMP)

    def torgb(x_bf, layer):
        y = jnp.dot(x_bf, wrgb_ref[layer], preferred_element_type=f32) + brgb_ref[layer]
        return jnp.clip(y, -CONV_CLAMP, CONV_CLAMP)

    def up2x(v_bf, u):      # nearest-neighbour 2x upsample as a small matmul
        return jnp.dot(u, v_bf, preferred_element_type=f32)

    u48, u816 = u48_ref[...], u816_ref[...]
    m4, m8, m16 = edge_masks(4, 4), edge_masks(8, 8), edge_masks(16, 16)

    # ---- block 4x4 ----
    x = conv3x3(x0_ref[...], 4, 4, m4, 0)                 # conv1   (w index 0)
    x_bf = x.astype(bf16)
    img = torgb(x_bf, 0)                                  # torgb   (w index 1)
    # ---- block 8x8 ----
    x = conv3x3(up2x(x_bf, u48), 8, 8, m8, 1)             # conv0   (w index 1)
    x = conv3x3(x, 8, 8, m8, 2)                           # conv1   (w index 2)
    x_bf = x.astype(bf16)
    img = up2x(img.astype(bf16), u48) + torgb(x_bf, 1)    # torgb   (w index 3)
    # ---- block 16x16 ----
    x = conv3x3(up2x(x_bf, u816), 16, 16, m16, 3)         # conv0   (w index 3)
    x = conv3x3(x, 16, 16, m16, 4)                        # conv1   (w index 4)
    x_bf = x.astype(bf16)
    img = up2x(img.astype(bf16), u816) + torgb(x_bf, 2)   # torgb   (w index 5)

    out_ref[...] = img.astype(out_ref.dtype)              # (256, 8): 3 RGB lanes + pad


# ------------------------------------------------------------------ constant matrices
def _upsample_mat(H, W):
    """(4*H*W, H*W) 0/1 nearest-neighbour 2x upsample matrix."""
    Ho, Wo = 2 * H, 2 * W
    po = np.arange(Ho * Wo)
    src = (po // Wo // 2) * W + (po % Wo) // 2
    u = np.zeros((Ho * Wo, H * W), np.float32)
    u[po, src] = 1.0
    return jnp.asarray(u, jnp.bfloat16)


def _build_consts(params):
    # TODO(synk): StyleGAN2-ADA uses FIR ([1,3,3,1]) upfirdn2d resampling; a
    # nearest-neighbour upsample (expressed as a matmul) is used here instead.
    return {
        'x0': params['const'].reshape(HW4, CH).astype(jnp.float32),
        'u48': _upsample_mat(4, 4),
        'u816': _upsample_mat(8, 8),
    }


# -------------------------------------------------------------------------- params
def init_params(key):
    def init_layer(k, cin, cout, K):
        k1, k2 = jax.random.split(k)
        return {
            'affine_w': jax.random.normal(k1, (W_DIM, cin), jnp.float32),
            'affine_b': jnp.ones((1, cin), jnp.float32),           # bias_init = 1
            'weight': jax.random.normal(k2, (K, K, cin, cout), jnp.float32),
            'bias': jnp.zeros((1, cout), jnp.float32),
        }

    key, kc = jax.random.split(key)
    params = {'const': jax.random.normal(kc, (4, 4, CH), jnp.float32), 'blocks': []}
    for res in (4, 8, 16):
        blk = {}
        if res > 4:
            key, sub = jax.random.split(key)
            blk['conv0'] = init_layer(sub, CH, CH, 3)
        key, sub = jax.random.split(key)
        blk['conv1'] = init_layer(sub, CH, CH, 3)
        key, sub = jax.random.split(key)
        blk['torgb'] = init_layer(sub, CH, IMG_CHANNELS, 1)
        params['blocks'].append(blk)
    return params


# ---------------------------------------------------------- style folding (tiny XLA)
_CONV_DEFS = ((0, 'conv1', 0), (1, 'conv0', 1), (1, 'conv1', 2),
              (2, 'conv0', 3), (2, 'conv1', 4))
_RGB_DEFS = ((0, 1), (1, 3), (2, 5))      # (block idx, w idx)
_AFFINE_GAIN = 1.0 / math.sqrt(W_DIM)     # FullyConnectedLayer weight gain
_TORGB_GAIN = 1.0 / math.sqrt(CH)         # ToRGB weight_gain (1x1 kernel)


def _fold_params(params, ws):
    """Fold style modulation (+ demodulation) and the lrelu gain into per-sample
    effective weights so the pixel kernel sees plain matmul weights."""
    wc, bc = [], []
    for bi, name, wi in _CONV_DEFS:
        lyr = params['blocks'][bi][name]
        s = ws[:, wi] @ lyr['affine_w'] * _AFFINE_GAIN + lyr['affine_b']     # (B, CH)
        wk = lyr['weight']                                                    # (3,3,CH,CH)
        wsq = jnp.sum(wk * wk, axis=(0, 1))                                   # (CH, CH)
        d = jax.lax.rsqrt((s * s) @ wsq + 1e-8)                               # (B, CH)
        wt = wk.reshape(9, CH, CH)                                            # tap = ky*3+kx
        wc.append((s[:, None, :, None] * wt[None] * d[:, None, None, :]) * ACT_GAIN)
        bc.append(lyr['bias'].reshape(1, CH) * ACT_GAIN)
    wrgb, brgb = [], []
    for bi, wi in _RGB_DEFS:
        lyr = params['blocks'][bi]['torgb']
        s = (ws[:, wi] @ lyr['affine_w'] * _AFFINE_GAIN + lyr['affine_b']) * _TORGB_GAIN
        we = s[:, :, None] * lyr['weight'][0, 0][None]                        # (B, CH, 3)
        wrgb.append(jnp.pad(we, ((0, 0), (0, 0), (0, RGB_PAD - IMG_CHANNELS))))
        brgb.append(jnp.pad(lyr['bias'].reshape(1, IMG_CHANNELS),
                            ((0, 0), (0, RGB_PAD - IMG_CHANNELS))))
    Wc = jnp.concatenate(wc, axis=1).astype(jnp.bfloat16)        # (B, 45, CH, CH)
    Wrgb = jnp.stack(wrgb, axis=1).astype(jnp.bfloat16)          # (B, 3, CH, RGB_PAD)
    Bc = jnp.stack(bc, axis=0).astype(jnp.float32)               # (5, 1, CH)
    Brgb = jnp.stack(brgb, axis=0).astype(jnp.float32)           # (3, 1, RGB_PAD)
    return Wc, Wrgb, Bc, Brgb


# ------------------------------------------------------------------------ synthesis
def synthesis(params, consts, ws):
    # ws: [B, num_ws, w_dim]
    B = ws.shape[0]
    Wc, Wrgb, Bc, Brgb = _fold_params(params, ws)
    out = pl.pallas_call(
        _synthesis_kernel,
        out_shape=jax.ShapeDtypeStruct((B, HW16, RGB_PAD), jnp.float32),
        grid_spec=pltpu.PrefetchScalarGridSpec(
            num_scalar_prefetch=0,
            grid=(B,),
            in_specs=[
                pl.BlockSpec((HW4, CH), lambda b: (0, 0)),               # const input x0
                pl.BlockSpec((HW8, HW4), lambda b: (0, 0)),              # upsample 4->8
                pl.BlockSpec((HW16, HW8), lambda b: (0, 0)),             # upsample 8->16
                pl.BlockSpec((None, 45, CH, CH), lambda b: (b, 0, 0, 0)),       # folded conv W
                pl.BlockSpec((None, 3, CH, RGB_PAD), lambda b: (b, 0, 0, 0)),   # folded torgb W
                pl.BlockSpec((5, 1, CH), lambda b: (0, 0, 0)),                  # conv biases
                pl.BlockSpec((3, 1, RGB_PAD), lambda b: (0, 0, 0)),             # torgb biases
            ],
            out_specs=pl.BlockSpec((None, HW16, RGB_PAD), lambda b: (b, 0, 0)),
        ),
        compiler_params=pltpu.CompilerParams(dimension_semantics=("parallel",)),
    )(consts['x0'], consts['u48'], consts['u816'], Wc, Wrgb, Bc, Brgb)
    img = out[:, :, :IMG_CHANNELS]                       # (B, HW, 3)
    img = jnp.transpose(img, (0, 2, 1))                  # (B, 3, HW)
    return img.reshape(B, IMG_CHANNELS, IMG_RESOLUTION, IMG_RESOLUTION)   # NCHW


class GeneratorWrapper:
    """JAX/Pallas port: takes w (not z) as input, mirroring the PyTorch wrapper."""

    def __init__(self, params, num_classes=None):
        self.params = params
        self.consts = _build_consts(params)
        self.dim_z = W_DIM
        self.conditional = num_classes is not None
        self.num_classes = num_classes
        self.num_ws = NUM_WS
        # Stored for parity with the PyTorch wrapper; like the reference,
        # forward() does NOT apply truncation (only sample_latent would).
        self.truncation_psi = 0.5
        self.truncation_cutoff = 8
        self._synthesis = jax.jit(lambda ws: synthesis(self.params, self.consts, ws))

    def forward(self, z):
        if z.ndim == 2:
            z = jnp.repeat(z[:, None, :], self.num_ws, axis=1)   # unsqueeze(1).repeat
        return self._synthesis(z)

    __call__ = forward


if __name__ == "__main__":
    params = init_params(jax.random.PRNGKey(1))
    G = GeneratorWrapper(params)
    # deterministic example input: the wrapper expects w-latents [B, w_dim]
    z = jax.random.normal(jax.random.PRNGKey(0), (2, W_DIM), jnp.float32)
    img = G(z)
    jax.block_until_ready(img)
    assert img.shape == (2, IMG_CHANNELS, IMG_RESOLUTION, IMG_RESOLUTION)
    assert img.dtype == jnp.float32
    print("KERNEL_OK")
</pallas_src>

<mosaic_0001>
module attributes {stable_mosaic.version = 11 : i64} {
  func.func @_synthesis_kernel(%arg0: i32, %arg1: memref<16x32xf32, #tpu.memory_space<vmem>>, %arg2: memref<64x16xbf16, #tpu.memory_space<vmem>>, %arg3: memref<256x64xbf16, #tpu.memory_space<vmem>>, %arg4: memref<1x45x32x32xbf16, #tpu.memory_space<vmem>>, %arg5: memref<1x3x32x8xbf16, #tpu.memory_space<vmem>>, %arg6: memref<5x1x32xf32, #tpu.memory_space<vmem>>, %arg7: memref<3x1x8xf32, #tpu.memory_space<vmem>>, %arg8: memref<1x256x8xf32, #tpu.memory_space<vmem>>) attributes {dimension_semantics = [#tpu.dimension_semantics<parallel>], iteration_bounds = array<i64: 2>, scalar_prefetch = 0 : i64, scratch_operands = 0 : i64, tpu.core_type = #tpu.core_type<tc>, window_params = [{pipeline_mode = #tpu.pipeline_mode<synchronous>, transform_indices = @transform_0, window_bounds = array<i64: 16, 32>}, {pipeline_mode = #tpu.pipeline_mode<synchronous>, transform_indices = @transform_1, window_bounds = array<i64: 64, 16>}, {pipeline_mode = #tpu.pipeline_mode<synchronous>, transform_indices = @transform_2, window_bounds = array<i64: 256, 64>}, {transform_indices = @transform_3, window_bounds = array<i64: 1, 45, 32, 32>}, {transform_indices = @transform_4, window_bounds = array<i64: 1, 3, 32, 8>}, {pipeline_mode = #tpu.pipeline_mode<synchronous>, transform_indices = @transform_5, window_bounds = array<i64: 5, 1, 32>}, {pipeline_mode = #tpu.pipeline_mode<synchronous>, transform_indices = @transform_6, window_bounds = array<i64: 3, 1, 8>}, {transform_indices = @transform_7, window_bounds = array<i64: 1, 256, 8>}]} {
    %c0 = arith.constant 0 : index
    %c0_0 = arith.constant 0 : index
    %0 = vector.load %arg2[%c0, %c0_0] : memref<64x16xbf16, #tpu.memory_space<vmem>>, vector<64x16xbf16>
    %c0_1 = arith.constant 0 : index
    %c0_2 = arith.constant 0 : index
    %1 = vector.load %arg3[%c0_1, %c0_2] : memref<256x64xbf16, #tpu.memory_space<vmem>>, vector<256x64xbf16>
    %2 = tpu.iota {dimensions = array<i32: 0>} : vector<16x32xi32>
    %c3_i32 = arith.constant 3 : i32
    %3 = vector.broadcast %c3_i32 : i32 to vector<16x32xi32>
    %4 = arith.andi %2, %3 : vector<16x32xi32>
    %c2_i32 = arith.constant 2 : i32
    %5 = vector.broadcast %c2_i32 : i32 to vector<16x32xi32>
    %6 = arith.shrsi %2, %5 : vector<16x32xi32>
    %c1_i32 = arith.constant 1 : i32
    %7 = vector.broadcast %c1_i32 : i32 to vector<16x32xi32>
    %8 = arith.cmpi sge, %4, %7 : vector<16x32xi32>
    %c2_i32_3 = arith.constant 2 : i32
    %9 = vector.broadcast %c2_i32_3 : i32 to vector<16x32xi32>
    %10 = arith.cmpi sle, %4, %9 : vector<16x32xi32>
    %c1_i32_4 = arith.constant 1 : i32
    %11 = vector.broadcast %c1_i32_4 : i32 to vector<16x32xi32>
    %12 = arith.cmpi sge, %6, %11 : vector<16x32xi32>
    %c2_i32_5 = arith.constant 2 : i32
    %13 = vector.broadcast %c2_i32_5 : i32 to vector<16x32xi32>
    %14 = arith.cmpi sle, %6, %13 : vector<16x32xi32>
    %15 = tpu.iota {dimensions = array<i32: 0>} : vector<64x32xi32>
    %c7_i32 = arith.constant 7 : i32
    %16 = vector.broadcast %c7_i32 : i32 to vector<64x32xi32>
    %17 = arith.andi %15, %16 : vector<64x32xi32>
    %c3_i32_6 = arith.constant 3 : i32
    %18 = vector.broadcast %c3_i32_6 : i32 to vector<64x32xi32>
    %19 = arith.shrsi %15, %18 : vector<64x32xi32>
    %c1_i32_7 = arith.constant 1 : i32
    %20 = vector.broadcast %c1_i32_7 : i32 to vector<64x32xi32>
    %21 = arith.cmpi sge, %17, %20 : vector<64x32xi32>
    %c6_i32 = arith.constant 6 : i32
    %22 = vector.broadcast %c6_i32 : i32 to vector<64x32xi32>
    %23 = arith.cmpi sle, %17, %22 : vector<64x32xi32>
    %c1_i32_8 = arith.constant 1 : i32
    %24 = vector.broadcast %c1_i32_8 : i32 to vector<64x32xi32>
    %25 = arith.cmpi sge, %19, %24 : vector<64x32xi32>
    %c6_i32_9 = arith.constant 6 : i32
    %26 = vector.broadcast %c6_i32_9 : i32 to vector<64x32xi32>
    %27 = arith.cmpi sle, %19, %26 : vector<64x32xi32>
    %28 = tpu.iota {dimensions = array<i32: 0>} : vector<256x32xi32>
    %c15_i32 = arith.constant 15 : i32
    %29 = vector.broadcast %c15_i32 : i32 to vector<256x32xi32>
    %30 = arith.andi %28, %29 : vector<256x32xi32>
    %c4_i32 = arith.constant 4 : i32
    %31 = vector.broadcast %c4_i32 : i32 to vector<256x32xi32>
    %32 = arith.shrsi %28, %31 : vector<256x32xi32>
    %c1_i32_10 = arith.constant 1 : i32
    %33 = vector.broadcast %c1_i32_10 : i32 to vector<256x32xi32>
    %34 = arith.cmpi sge, %30, %33 : vector<256x32xi32>
    %c14_i32 = arith.constant 14 : i32
    %35 = vector.broadcast %c14_i32 : i32 to vector<256x32xi32>
    %36 = arith.cmpi sle, %30, %35 : vector<256x32xi32>
    %c1_i32_11 = arith.constant 1 : i32
    %37 = vector.broadcast %c1_i32_11 : i32 to vector<256x32xi32>
    %38 = arith.cmpi sge, %32, %37 : vector<256x32xi32>
    %c14_i32_12 = arith.constant 14 : i32
    %39 = vector.broadcast %c14_i32_12 : i32 to vector<256x32xi32>
    %40 = arith.cmpi sle, %32, %39 : vector<256x32xi32>
    %c0_13 = arith.constant 0 : index
    %c0_14 = arith.constant 0 : index
    %41 = vector.load %arg1[%c0_13, %c0_14] : memref<16x32xf32, #tpu.memory_space<vmem>>, vector<16x32xf32>
    %c1_i32_15 = arith.constant 1 : i32
    %42 = tpu.dynamic_rotate %41 by %c1_i32_15 dim 0 : vector<16x32xf32>, i32 -> vector<16x32xf32>
    %cst = arith.constant 0.000000e+00 : f32
    %43 = vector.broadcast %cst : f32 to vector<16x32xf32>
    %44 = arith.select %8, %42, %43 : vector<16x32xi1>, vector<16x32xf32>
    %c15_i32_16 = arith.constant 15 : i32
    %45 = tpu.dynamic_rotate %41 by %c15_i32_16 dim 0 : vector<16x32xf32>, i32 -> vector<16x32xf32>
    %cst_17 = arith.constant 0.000000e+00 : f32
    %46 = vector.broadcast %cst_17 : f32 to vector<16x32xf32>
    %47 = arith.select %10, %45, %46 : vector<16x32xi1>, vector<16x32xf32>
    %c4_i32_18 = arith.constant 4 : i32
    %48 = tpu.dynamic_rotate %44 by %c4_i32_18 dim 0 : vector<16x32xf32>, i32 -> vector<16x32xf32>
    %49 = arith.truncf %48 : vector<16x32xf32> to vector<16x32xbf16>
    %c0_19 = arith.constant 0 : index
    %c0_20 = arith.constant 0 : index
    %c0_21 = arith.constant 0 : index
    %c0_22 = arith.constant 0 : index
    %50 = vector.load %arg4[%c0_19, %c0_20, %c0_21, %c0_22] : memref<1x45x32x32xbf16, #tpu.memory_space<vmem>>, vector<1x1x32x32xbf16>
    %51 = vector.shape_cast %50 : vector<1x1x32x32xbf16> to vector<32x32xbf16>
    %cst_23 = arith.constant dense<0.000000e+00> : vector<16x32xf32>
    %52 = tpu.matmul %49, %51, %cst_23 {dimension_numbers = #tpu.dot_dimension_numbers<[1], [0], [0], [1], [0, 0, 1, 1], [], []>} : vector<16x32xbf16>, vector<32x32xbf16>, vector<16x32xf32> -> vector<16x32xf32>
    %c4_i32_24 = arith.constant 4 : i32
    %53 = tpu.dynamic_rotate %41 by %c4_i32_24 dim 0 : vector<16x32xf32>, i32 -> vector<16x32xf32>
    %54 = arith.truncf %53 : vector<16x32xf32> to vector<16x32xbf16>
    %c0_25 = arith.constant 0 : index
    %c1 = arith.constant 1 : index
    %c0_26 = arith.constant 0 : index
    %c0_27 = arith.constant 0 : index
    %55 = vector.load %arg4[%c0_25, %c1, %c0_26, %c0_27] : memref<1x45x32x32xbf16, #tpu.memory_space<vmem>>, vector<1x1x32x32xbf16>
    %56 = vector.shape_cast %55 : vector<1x1x32x32xbf16> to vector<32x32xbf16>
    %cst_28 = arith.constant dense<0.000000e+00> : vector<16x32xf32>
    %57 = tpu.matmul %54, %56, %cst_28 {dimension_numbers = #tpu.dot_dimension_numbers<[1], [0], [0], [1], [0, 0, 1, 1], [], []>} : vector<16x32xbf16>, vector<32x32xbf16>, vector<16x32xf32> -> vector<16x32xf32>
    %58 = arith.addf %52, %57 : vector<16x32xf32>
    %c4_i32_29 = arith.constant 4 : i32
    %59 = tpu.dynamic_rotate %47 by %c4_i32_29 dim 0 : vector<16x32xf32>, i32 -> vector<16x32xf32>
    %60 = arith.truncf %59 : vector<16x32xf32> to vector<16x32xbf16>
    %c0_30 = arith.constant 0 : index
    %c2 = arith.constant 2 : index
    %c0_31 = arith.constant 0 : index
    %c0_32 = arith.constant 0 : index
    %61 = vector.load %arg4[%c0_30, %c2, %c0_31, %c0_32] : memref<1x45x32x32xbf16, #tpu.memory_space<vmem>>, vector<1x1x32x32xbf16>
    %62 = vector.shape_cast %61 : vector<1x1x32x32xbf16> to vector<32x32xbf16>
    %cst_33 = arith.constant dense<0.000000e+00> : vector<16x32xf32>
    %63 = tpu.matmul %60, %62, %cst_33 {dimension_numbers = #tpu.dot_dimension_numbers<[1], [0], [0], [1], [0, 0, 1, 1], [], []>} : vector<16x32xbf16>, vector<32x32xbf16>, vector<16x32xf32> -> vector<16x32xf32>
    %64 = arith.addf %58, %63 : vector<16x32xf32>
    %cst_34 = arith.constant 0.000000e+00 : f32
    %65 = vector.broadcast %cst_34 : f32 to vector<16x32xf32>
    %66 = arith.select %12, %64, %65 : vector<16x32xi1>, vector<16x32xf32>
    %67 = arith.truncf %44 : vector<16x32xf32> to vector<16x32xbf16>
    %c0_35 = arith.constant 0 : index
    %c3 = arith.constant 3 : index
    %c0_36 = arith.constant 0 : index
    %c0_37 = arith.constant 0 : index
    %68 = vector.load %arg4[%c0_35, %c3, %c0_36, %c0_37] : memref<1x45x32x32xbf16, #tpu.memory_space<vmem>>, vector<1x1x32x32xbf16>
    %69 = vector.shape_cast %68 : vector<1x1x32x32xbf16> to vector<32x32xbf16>
    %cst_38 = arith.constant dense<0.000000e+00> : vector<16x32xf32>
    %70 = tpu.matmul %67, %69, %cst_38 {dimension_numbers = #tpu.dot_dimension_numbers<[1], [0], [0], [1], [0, 0, 1, 1], [], []>} : vector<16x32xbf16>, vector<32x32xbf16>, vector<16x32xf32> -> vector<16x32xf32>
    %71 = arith.truncf %41 : vector<16x32xf32> to vector<16x32xbf16>
    %c0_39 = arith.constant 0 : index
    %c4 = arith.constant 4 : index
    %c0_40 = arith.constant 0 : index
    %c0_41 = arith.constant 0 : index
    %72 = vector.load %arg4[%c0_39, %c4, %c0_40, %c0_41] : memref<1x45x32x32xbf16, #tpu.memory_space<vmem>>, vector<1x1x32x32xbf16>
    %73 = vector.shape_cast %72 : vector<1x1x32x32xbf16> to vector<32x32xbf16>
    %cst_42 = arith.constant dense<0.000000e+00> : vector<16x32xf32>
    %74 = tpu.matmul %71, %73, %cst_42 {dimension_numbers = #tpu.dot_dimension_numbers<[1], [0], [0], [1], [0, 0, 1, 1], [], []>} : vector<16x32xbf16>, vector<32x32xbf16>, vector<16x32xf32> -> vector<16x32xf32>
    %75 = arith.addf %70, %74 : vector<16x32xf32>
    %76 = arith.truncf %47 : vector<16x32xf32> to vector<16x32xbf16>
    %c0_43 = arith.constant 0 : index
    %c5 = arith.constant 5 : index
    %c0_44 = arith.constant 0 : index
    %c0_45 = arith.constant 0 : index
    %77 = vector.load %arg4[%c0_43, %c5, %c0_44, %c0_45] : memref<1x45x32x32xbf16, #tpu.memory_space<vmem>>, vector<1x1x32x32xbf16>
    %78 = vector.shape_cast %77 : vector<1x1x32x32xbf16> to vector<32x32xbf16>
    %cst_46 = arith.constant dense<0.000000e+00> : vector<16x32xf32>
    %79 = tpu.matmul %76, %78, %cst_46 {dimension_numbers = #tpu.dot_dimension_numbers<[1], [0], [0], [1], [0, 0, 1, 1], [], []>} : vector<16x32xbf16>, vector<32x32xbf16>, vector<16x32xf32> -> vector<16x32xf32>
    %80 = arith.addf %75, %79 : vector<16x32xf32>
    %81 = arith.addf %66, %80 : vector<16x32xf32>
    %c12_i32 = arith.constant 12 : i32
    %82 = tpu.dynamic_rotate %44 by %c12_i32 dim 0 : vector<16x32xf32>, i32 -> vector<16x32xf32>
    %83 = arith.truncf %82 : vector<16x32xf32> to vector<16x32xbf16>
    %c0_47 = arith.constant 0 : index
    %c6 = arith.constant 6 : index
    %c0_48 = arith.constant 0 : index
    %c0_49 = arith.constant 0 : index
    %84 = vector.load %arg4[%c0_47, %c6, %c0_48, %c0_49] : memref<1x45x32x32xbf16, #tpu.memory_space<vmem>>, vector<1x1x32x32xbf16>
    %85 = vector.shape_cast %84 : vector<1x1x32x32xbf16> to vector<32x32xbf16>
    %cst_50 = arith.constant dense<0.000000e+00> : vector<16x32xf32>
    %86 = tpu.matmul %83, %85, %cst_50 {dimension_numbers = #tpu.dot_dimension_numbers<[1], [0], [0], [1], [0, 0, 1, 1], [], []>} : vector<16x32xbf16>, vector<32x32xbf16>, vector<16x32xf32> -> vector<16x32xf32>
    %c12_i32_51 = arith.constant 12 : i32
    %87 = tpu.dynamic_rotate %41 by %c12_i32_51 dim 0 : vector<16x32xf32>, i32 -> vector<16x32xf32>
    %88 = arith.truncf %87 : vector<16x32xf32> to vector<16x32xbf16>
    %c0_52 = arith.constant 0 : index
    %c7 = arith.constant 7 : index
    %c0_53 = arith.constant 0 : index
    %c0_54 = arith.constant 0 : index
    %89 = vector.load %arg4[%c0_52, %c7, %c0_53, %c0_54] : memref<1x45x32x32xbf16, #tpu.memory_space<vmem>>, vector<1x1x32x32xbf16>
    %90 = vector.shape_cast %89 : vector<1x1x32x32xbf16> to vector<32x32xbf16>
    %cst_55 = arith.constant dense<0.000000e+00> : vector<16x32xf32>
    %91 = tpu.matmul %88, %90, %cst_55 {dimension_numbers = #tpu.dot_dimension_numbers<[1], [0], [0], [1], [0, 0, 1, 1], [], []>} : vector<16x32xbf16>, vector<32x32xbf16>, vector<16x32xf32> -> vector<16x32xf32>
    %92 = arith.addf %86, %91 : vector<16x32xf32>
    %c12_i32_56 = arith.constant 12 : i32
    %93 = tpu.dynamic_rotate %47 by %c12_i32_56 dim 0 : vector<16x32xf32>, i32 -> vector<16x32xf32>
    %94 = arith.truncf %93 : vector<16x32xf32> to vector<16x32xbf16>
    %c0_57 = arith.constant 0 : index
    %c8 = arith.constant 8 : index
    %c0_58 = arith.constant 0 : index
    %c0_59 = arith.constant 0 : index
    %95 = vector.load %arg4[%c0_57, %c8, %c0_58, %c0_59] : memref<1x45x32x32xbf16, #tpu.memory_space<vmem>>, vector<1x1x32x32xbf16>
    %96 = vector.shape_cast %95 : vector<1x1x32x32xbf16> to vector<32x32xbf16>
    %cst_60 = arith.constant dense<0.000000e+00> : vector<16x32xf32>
    %97 = tpu.matmul %94, %96, %cst_60 {dimension_numbers = #tpu.dot_dimension_numbers<[1], [0], [0], [1], [0, 0, 1, 1], [], []>} : vector<16x32xbf16>, vector<32x32xbf16>, vector<16x32xf32> -> vector<16x32xf32>
    %98 = arith.addf %92, %97 : vector<16x32xf32>
    %cst_61 = arith.constant 0.000000e+00 : f32
    %99 = vector.broadcast %cst_61 : f32 to vector<16x32xf32>
    %100 = arith.select %14, %98, %99 : vector<16x32xi1>, vector<16x32xf32>
    %101 = arith.addf %81, %100 : vector<16x32xf32>
    %c0_62 = arith.constant 0 : index
    %c0_63 = arith.constant 0 : index
    %c0_64 = arith.constant 0 : index
    %102 = vector.load %arg6[%c0_62, %c0_63, %c0_64] : memref<5x1x32xf32, #tpu.memory_space<vmem>>, vector<1x1x32xf32>
    %103 = vector.shape_cast %102 : vector<1x1x32xf32> to vector<1x32xf32>
    %104 = vector.broadcast %103 : vector<1x32xf32> to vector<16x32xf32>
    %105 = arith.addf %101, %104 : vector<16x32xf32>
    %cst_65 = arith.constant 2.000000e-01 : f32
    %106 = vector.broadcast %cst_65 : f32 to vector<16x32xf32>
    %107 = arith.mulf %106, %105 : vector<16x32xf32>
    %108 = arith.maximumf %105, %107 : vector<16x32xf32>
    %cst_66 = arith.constant -362.038666 : f32
    %cst_67 = arith.constant 362.038666 : f32
    %109 = vector.broadcast %cst_66 : f32 to vector<16x32xf32>
    %110 = arith.maximumf %109, %108 : vector<16x32xf32>
    %111 = vector.broadcast %cst_67 : f32 to vector<16x32xf32>
    %112 = arith.minimumf %111, %110 : vector<16x32xf32>
    %113 = arith.truncf %112 : vector<16x32xf32> to vector<16x32xbf16>
    %c0_68 = arith.constant 0 : index
    %c0_69 = arith.constant 0 : index
    %c0_70 = arith.constant 0 : index
    %c0_71 = arith.constant 0 : index
    %114 = vector.load %arg5[%c0_68, %c0_69, %c0_70, %c0_71] : memref<1x3x32x8xbf16, #tpu.memory_space<vmem>>, vector<1x1x32x8xbf16>
    %115 = vector.shape_cast %114 : vector<1x1x32x8xbf16> to vector<32x8xbf16>
    %cst_72 = arith.constant dense<0.000000e+00> : vector<16x8xf32>
    %116 = tpu.matmul %113, %115, %cst_72 {dimension_numbers = #tpu.dot_dimension_numbers<[1], [0], [0], [1], [0, 0, 1, 1], [], []>} : vector<16x32xbf16>, vector<32x8xbf16>, vector<16x8xf32> -> vector<16x8xf32>
    %c0_73 = arith.constant 0 : index
    %c0_74 = arith.constant 0 : index
    %c0_75 = arith.constant 0 : index
    %117 = vector.load %arg7[%c0_73, %c0_74, %c0_75] : memref<3x1x8xf32, #tpu.memory_space<vmem>>, vector<1x1x8xf32>
    %118 = vector.shape_cast %117 : vector<1x1x8xf32> to vector<1x8xf32>
    %119 = vector.broadcast %118 : vector<1x8xf32> to vector<16x8xf32>
    %120 = arith.addf %116, %119 : vector<16x8xf32>
    %cst_76 = arith.constant -2.560000e+02 : f32
    %cst_77 = arith.constant 2.560000e+02 : f32
    %121 = vector.broadcast %cst_76 : f32 to vector<16x8xf32>
    %122 = arith.maximumf %121, %120 : vector<16x8xf32>
    %123 = vector.broadcast %cst_77 : f32 to vector<16x8xf32>
    %124 = arith.minimumf %123, %122 : vector<16x8xf32>
    %cst_78 = arith.constant dense<0.000000e+00> : vector<64x32xf32>
    %125 = tpu.matmul %0, %113, %cst_78 {dimension_numbers = #tpu.dot_dimension_numbers<[1], [0], [0], [1], [0, 0, 1, 1], [], []>} : vector<64x16xbf16>, vector<16x32xbf16>, vector<64x32xf32> -> vector<64x32xf32>
    %c1_i32_79 = arith.constant 1 : i32
    %126 = tpu.dynamic_rotate %125 by %c1_i32_79 dim 0 : vector<64x32xf32>, i32 -> vector<64x32xf32>
    %cst_80 = arith.constant 0.000000e+00 : f32
    %127 = vector.broadcast %cst_80 : f32 to vector<64x32xf32>
    %128 = arith.select %21, %126, %127 : vector<64x32xi1>, vector<64x32xf32>
    %c63_i32 = arith.constant 63 : i32
    %129 = tpu.dynamic_rotate %125 by %c63_i32 dim 0 : vector<64x32xf32>, i32 -> vector<64x32xf32>
    %cst_81 = arith.constant 0.000000e+00 : f32
    %130 = vector.broadcast %cst_81 : f32 to vector<64x32xf32>
    %131 = arith.select %23, %129, %130 : vector<64x32xi1>, vector<64x32xf32>
    %c8_i32 = arith.constant 8 : i32
    %132 = tpu.dynamic_rotate %128 by %c8_i32 dim 0 : vector<64x32xf32>, i32 -> vector<64x32xf32>
    %133 = arith.truncf %132 : vector<64x32xf32> to vector<64x32xbf16>
    %c0_82 = arith.constant 0 : index
    %c9 = arith.constant 9 : index
    %c0_83 = arith.constant 0 : index
    %c0_84 = arith.constant 0 : index
    %134 = vector.load %arg4[%c0_82, %c9, %c0_83, %c0_84] : memref<1x45x32x32xbf16, #tpu.memory_space<vmem>>, vector<1x1x32x32xbf16>
    %135 = vector.shape_cast %134 : vector<1x1x32x32xbf16> to vector<32x32xbf16>
    %cst_85 = arith.constant dense<0.000000e+00> : vector<64x32xf32>
    %136 = tpu.matmul %133, %135, %cst_85 {dimension_numbers = #tpu.dot_dimension_numbers<[1], [0], [0], [1], [0, 0, 1, 1], [], []>} : vector<64x32xbf16>, vector<32x32xbf16>, vector<64x32xf32> -> vector<64x32xf32>
    %c8_i32_86 = arith.constant 8 : i32
    %137 = tpu.dynamic_rotate %125 by %c8_i32_86 dim 0 : vector<64x32xf32>, i32 -> vector<64x32xf32>
    %138 = arith.truncf %137 : vector<64x32xf32> to vector<64x32xbf16>
    %c0_87 = arith.constant 0 : index
    %c10 = arith.constant 10 : index
    %c0_88 = arith.constant 0 : index
    %c0_89 = arith.constant 0 : index
    %139 = vector.load %arg4[%c0_87, %c10, %c0_88, %c0_89] : memref<1x45x32x32xbf16, #tpu.memory_space<vmem>>, vector<1x1x32x32xbf16>
    %140 = vector.shape_cast %139 : vector<1x1x32x32xbf16> to vector<32x32xbf16>
    %cst_90 = arith.constant dense<0.000000e+00> : vector<64x32xf32>
    %141 = tpu.matmul %138, %140, %cst_90 {dimension_numbers = #tpu.dot_dimension_numbers<[1], [0], [0], [1], [0, 0, 1, 1], [], []>} : vector<64x32xbf16>, vector<32x32xbf16>, vector<64x32xf32> -> vector<64x32xf32>
    %142 = arith.addf %136, %141 : vector<64x32xf32>
    %c8_i32_91 = arith.constant 8 : i32
    %143 = tpu.dynamic_rotate %131 by %c8_i32_91 dim 0 : vector<64x32xf32>, i32 -> vector<64x32xf32>
    %144 = arith.truncf %143 : vector<64x32xf32> to vector<64x32xbf16>
    %c0_92 = arith.constant 0 : index
    %c11 = arith.constant 11 : index
    %c0_93 = arith.constant 0 : index
    %c0_94 = arith.constant 0 : index
    %145 = vector.load %arg4[%c0_92, %c11, %c0_93, %c0_94] : memref<1x45x32x32xbf16, #tpu.memory_space<vmem>>, vector<1x1x32x32xbf16>
    %146 = vector.shape_cast %145 : vector<1x1x32x32xbf16> to vector<32x32xbf16>
    %cst_95 = arith.constant dense<0.000000e+00> : vector<64x32xf32>
    %147 = tpu.matmul %144, %146, %cst_95 {dimension_numbers = #tpu.dot_dimension_numbers<[1], [0], [0], [1], [0, 0, 1, 1], [], []>} : vector<64x32xbf16>, vector<32x32xbf16>, vector<64x32xf32> -> vector<64x32xf32>
    %148 = arith.addf %142, %147 : vector<64x32xf32>
    %cst_96 = arith.constant 0.000000e+00 : f32
    %149 = vector.broadcast %cst_96 : f32 to vector<64x32xf32>
    %150 = arith.select %25, %148, %149 : vector<64x32xi1>, vector<64x32xf32>
    %151 = arith.truncf %128 : vector<64x32xf32> to vector<64x32xbf16>
    %c0_97 = arith.constant 0 : index
    %c12 = arith.constant 12 : index
    %c0_98 = arith.constant 0 : index
    %c0_99 = arith.constant 0 : index
    %152 = vector.load %arg4[%c0_97, %c12, %c0_98, %c0_99] : memref<1x45x32x32xbf16, #tpu.memory_space<vmem>>, vector<1x1x32x32xbf16>
    %153 = vector.shape_cast %152 : vector<1x1x32x32xbf16> to vector<32x32xbf16>
    %cst_100 = arith.constant dense<0.000000e+00> : vector<64x32xf32>
    %154 = tpu.matmul %151, %153, %cst_100 {dimension_numbers = #tpu.dot_dimension_numbers<[1], [0], [0], [1], [0, 0, 1, 1], [], []>} : vector<64x32xbf16>, vector<32x32xbf16>, vector<64x32xf32> -> vector<64x32xf32>
    %155 = arith.truncf %125 : vector<64x32xf32> to vector<64x32xbf16>
    %c0_101 = arith.constant 0 : index
    %c13 = arith.constant 13 : index
    %c0_102 = arith.constant 0 : index
    %c0_103 = arith.constant 0 : index
    %156 = vector.load %arg4[%c0_101, %c13, %c0_102, %c0_103] : memref<1x45x32x32xbf16, #tpu.memory_space<vmem>>, vector<1x1x32x32xbf16>
    %157 = vector.shape_cast %156 : vector<1x1x32x32xbf16> to vector<32x32xbf16>
    %cst_104 = arith.constant dense<0.000000e+00> : vector<64x32xf32>
    %158 = tpu.matmul %155, %157, %cst_104 {dimension_numbers = #tpu.dot_dimension_numbers<[1], [0], [0], [1], [0, 0, 1, 1], [], []>} : vector<64x32xbf16>, vector<32x32xbf16>, vector<64x32xf32> -> vector<64x32xf32>
    %159 = arith.addf %154, %158 : vector<64x32xf32>
    %160 = arith.truncf %131 : vector<64x32xf32> to vector<64x32xbf16>
    %c0_105 = arith.constant 0 : index
    %c14 = arith.constant 14 : index
    %c0_106 = arith.constant 0 : index
    %c0_107 = arith.constant 0 : index
    %161 = vector.load %arg4[%c0_105, %c14, %c0_106, %c0_107] : memref<1x45x32x32xbf16, #tpu.memory_space<vmem>>, vector<1x1x32x32xbf16>
    %162 = vector.shape_cast %161 : vector<1x1x32x32xbf16> to vector<32x32xbf16>
    %cst_108 = arith.constant dense<0.000000e+00> : vector<64x32xf32>
    %163 = tpu.matmul %160, %162, %cst_108 {dimension_numbers = #tpu.dot_dimension_numbers<[1], [0], [0], [1], [0, 0, 1, 1], [], []>} : vector<64x32xbf16>, vector<32x32xbf16>, vector<64x32xf32> -> vector<64x32xf32>
    %164 = arith.addf %159, %163 : vector<64x32xf32>
    %165 = arith.addf %150, %164 : vector<64x32xf32>
    %c56_i32 = arith.constant 56 : i32
    %166 = tpu.dynamic_rotate %128 by %c56_i32 dim 0 : vector<64x32xf32>, i32 -> vector<64x32xf32>
    %167 = arith.truncf %166 : vector<64x32xf32> to vector<64x32xbf16>
    %c0_109 = arith.constant 0 : index
    %c15 = arith.constant 15 : index
    %c0_110 = arith.constant 0 : index
    %c0_111 = arith.constant 0 : index
    %168 = vector.load %arg4[%c0_109, %c15, %c0_110, %c0_111] : memref<1x45x32x32xbf16, #tpu.memory_space<vmem>>, vector<1x1x32x32xbf16>
    %169 = vector.shape_cast %168 : vector<1x1x32x32xbf16> to vector<32x32xbf16>
    %cst_112 = arith.constant dense<0.000000e+00> : vector<64x32xf32>
    %170 = tpu.matmul %167, %169, %cst_112 {dimension_numbers = #tpu.dot_dimension_numbers<[1], [0], [0], [1], [0, 0, 1, 1], [], []>} : vector<64x32xbf16>, vector<32x32xbf16>, vector<64x32xf32> -> vector<64x32xf32>
    %c56_i32_113 = arith.constant 56 : i32
    %171 = tpu.dynamic_rotate %125 by %c56_i32_113 dim 0 : vector<64x32xf32>, i32 -> vector<64x32xf32>
    %172 = arith.truncf %171 : vector<64x32xf32> to vector<64x32xbf16>
    %c0_114 = arith.constant 0 : index
    %c16 = arith.constant 16 : index
    %c0_115 = arith.constant 0 : index
    %c0_116 = arith.constant 0 : index
    %173 = vector.load %arg4[%c0_114, %c16, %c0_115, %c0_116] : memref<1x45x32x32xbf16, #tpu.memory_space<vmem>>, vector<1x1x32x32xbf16>
    %174 = vector.shape_cast %173 : vector<1x1x32x32xbf16> to vector<32x32xbf16>
    %cst_117 = arith.constant dense<0.000000e+00> : vector<64x32xf32>
    %175 = tpu.matmul %172, %174, %cst_117 {dimension_numbers = #tpu.dot_dimension_numbers<[1], [0], [0], [1], [0, 0, 1, 1], [], []>} : vector<64x32xbf16>, vector<32x32xbf16>, vector<64x32xf32> -> vector<64x32xf32>
    %176 = arith.addf %170, %175 : vector<64x32xf32>
    %c56_i32_118 = arith.constant 56 : i32
    %177 = tpu.dynamic_rotate %131 by %c56_i32_118 dim 0 : vector<64x32xf32>, i32 -> vector<64x32xf32>
    %178 = arith.truncf %177 : vector<64x32xf32> to vector<64x32xbf16>
    %c0_119 = arith.constant 0 : index
    %c17 = arith.constant 17 : index
    %c0_120 = arith.constant 0 : index
    %c0_121 = arith.constant 0 : index
    %179 = vector.load %arg4[%c0_119, %c17, %c0_120, %c0_121] : memref<1x45x32x32xbf16, #tpu.memory_space<vmem>>, vector<1x1x32x32xbf16>
    %180 = vector.shape_cast %179 : vector<1x1x32x32xbf16> to vector<32x32xbf16>
    %cst_122 = arith.constant dense<0.000000e+00> : vector<64x32xf32>
    %181 = tpu.matmul %178, %180, %cst_122 {dimension_numbers = #tpu.dot_dimension_numbers<[1], [0], [0], [1], [0, 0, 1, 1], [], []>} : vector<64x32xbf16>, vector<32x32xbf16>, vector<64x32xf32> -> vector<64x32xf32>
    %182 = arith.addf %176, %181 : vector<64x32xf32>
    %cst_123 = arith.constant 0.000000e+00 : f32
    %183 = vector.broadcast %cst_123 : f32 to vector<64x32xf32>
    %184 = arith.select %27, %182, %183 : vector<64x32xi1>, vector<64x32xf32>
    %185 = arith.addf %165, %184 : vector<64x32xf32>
    %c1_124 = arith.constant 1 : index
    %c0_125 = arith.constant 0 : index
    %c0_126 = arith.constant 0 : index
    %186 = vector.load %arg6[%c1_124, %c0_125, %c0_126] : memref<5x1x32xf32, #tpu.memory_space<vmem>>, vector<1x1x32xf32>
    %187 = vector.shape_cast %186 : vector<1x1x32xf32> to vector<1x32xf32>
    %188 = vector.broadcast %187 : vector<1x32xf32> to vector<64x32xf32>
    %189 = arith.addf %185, %188 : vector<64x32xf32>
    %cst_127 = arith.constant 2.000000e-01 : f32
    %190 = vector.broadcast %cst_127 : f32 to vector<64x32xf32>
    %191 = arith.mulf %190, %189 : vector<64x32xf32>
    %192 = arith.maximumf %189, %191 : vector<64x32xf32>
    %cst_128 = arith.constant -362.038666 : f32
    %cst_129 = arith.constant 362.038666 : f32
    %193 = vector.broadcast %cst_128 : f32 to vector<64x32xf32>
    %194 = arith.maximumf %193, %192 : vector<64x32xf32>
    %195 = vector.broadcast %cst_129 : f32 to vector<64x32xf32>
    %196 = arith.minimumf %195, %194 : vector<64x32xf32>
    %c1_i32_130 = arith.constant 1 : i32
    %197 = tpu.dynamic_rotate %196 by %c1_i32_130 dim 0 : vector<64x32xf32>, i32 -> vector<64x32xf32>
    %cst_131 = arith.constant 0.000000e+00 : f32
    %198 = vector.broadcast %cst_131 : f32 to vector<64x32xf32>
    %199 = arith.select %21, %197, %198 : vector<64x32xi1>, vector<64x32xf32>
    %c63_i32_132 = arith.constant 63 : i32
    %200 = tpu.dynamic_rotate %196 by %c63_i32_132 dim 0 : vector<64x32xf32>, i32 -> vector<64x32xf32>
    %cst_133 = arith.constant 0.000000e+00 : f32
    %201 = vector.broadcast %cst_133 : f32 to vector<64x32xf32>
    %202 = arith.select %23, %200, %201 : vector<64x32xi1>, vector<64x32xf32>
    %c8_i32_134 = arith.constant 8 : i32
    %203 = tpu.dynamic_rotate %199 by %c8_i32_134 dim 0 : vector<64x32xf32>, i32 -> vector<64x32xf32>
    %204 = arith.truncf %203 : vector<64x32xf32> to vector<64x32xbf16>
    %c0_135 = arith.constant 0 : index
    %c18 = arith.constant 18 : index
    %c0_136 = arith.constant 0 : index
    %c0_137 = arith.constant 0 : index
    %205 = vector.load %arg4[%c0_135, %c18, %c0_136, %c0_137] : memref<1x45x32x32xbf16, #tpu.memory_space<vmem>>, vector<1x1x32x32xbf16>
    %206 = vector.shape_cast %205 : vector<1x1x32x32xbf16> to vector<32x32xbf16>
    %cst_138 = arith.constant dense<0.000000e+00> : vector<64x32xf32>
    %207 = tpu.matmul %204, %206, %cst_138 {dimension_numbers = #tpu.dot_dimension_numbers<[1], [0], [0], [1], [0, 0, 1, 1], [], []>} : vector<64x32xbf16>, vector<32x32xbf16>, vector<64x32xf32> -> vector<64x32xf32>
    %c8_i32_139 = arith.constant 8 : i32
    %208 = tpu.dynamic_rotate %196 by %c8_i32_139 dim 0 : vector<64x32xf32>, i32 -> vector<64x32xf32>
    %209 = arith.truncf %208 : vector<64x32xf32> to vector<64x32xbf16>
    %c0_140 = arith.constant 0 : index
    %c19 = arith.constant 19 : index
    %c0_141 = arith.constant 0 : index
    %c0_142 = arith.constant 0 : index
    %210 = vector.load %arg4[%c0_140, %c19, %c0_141, %c0_142] : memref<1x45x32x32xbf16, #tpu.memory_space<vmem>>, vector<1x1x32x32xbf16>
    %211 = vector.shape_cast %210 : vector<1x1x32x32xbf16> to vector<32x32xbf16>
    %cst_143 = arith.constant dense<0.000000e+00> : vector<64x32xf32>
    %212 = tpu.matmul %209, %211, %cst_143 {dimension_numbers = #tpu.dot_dimension_numbers<[1], [0], [0], [1], [0, 0, 1, 1], [], []>} : vector<64x32xbf16>, vector<32x32xbf16>, vector<64x32xf32> -> vector<64x32xf32>
    %213 = arith.addf %207, %212 : vector<64x32xf32>
    %c8_i32_144 = arith.constant 8 : i32
    %214 = tpu.dynamic_rotate %202 by %c8_i32_144 dim 0 : vector<64x32xf32>, i32 -> vector<64x32xf32>
    %215 = arith.truncf %214 : vector<64x32xf32> to vector<64x32xbf16>
    %c0_145 = arith.constant 0 : index
    %c20 = arith.constant 20 : index
    %c0_146 = arith.constant 0 : index
    %c0_147 = arith.constant 0 : index
    %216 = vector.load %arg4[%c0_145, %c20, %c0_146, %c0_147] : memref<1x45x32x32xbf16, #tpu.memory_space<vmem>>, vector<1x1x32x32xbf16>
    %217 = vector.shape_cast %216 : vector<1x1x32x32xbf16> to vector<32x32xbf16>
    %cst_148 = arith.constant dense<0.000000e+00> : vector<64x32xf32>
    %218 = tpu.matmul %215, %217, %cst_148 {dimension_numbers = #tpu.dot_dimension_numbers<[1], [0], [0], [1], [0, 0, 1, 1], [], []>} : vector<64x32xbf16>, vector<32x32xbf16>, vector<64x32xf32> -> vector<64x32xf32>
    %219 = arith.addf %213, %218 : vector<64x32xf32>
    %cst_149 = arith.constant 0.000000e+00 : f32
    %220 = vector.broadcast %cst_149 : f32 to vector<64x32xf32>
    %221 = arith.select %25, %219, %220 : vector<64x32xi1>, vector<64x32xf32>
    %222 = arith.truncf %199 : vector<64x32xf32> to vector<64x32xbf16>
    %c0_150 = arith.constant 0 : index
    %c21 = arith.constant 21 : index
    %c0_151 = arith.constant 0 : index
    %c0_152 = arith.constant 0 : index
    %223 = vector.load %arg4[%c0_150, %c21, %c0_151, %c0_152] : memref<1x45x32x32xbf16, #tpu.memory_space<vmem>>, vector<1x1x32x32xbf16>
    %224 = vector.shape_cast %223 : vector<1x1x32x32xbf16> to vector<32x32xbf16>
    %cst_153 = arith.constant dense<0.000000e+00> : vector<64x32xf32>
    %225 = tpu.matmul %222, %224, %cst_153 {dimension_numbers = #tpu.dot_dimension_numbers<[1], [0], [0], [1], [0, 0, 1, 1], [], []>} : vector<64x32xbf16>, vector<32x32xbf16>, vector<64x32xf32> -> vector<64x32xf32>
    %226 = arith.truncf %196 : vector<64x32xf32> to vector<64x32xbf16>
    %c0_154 = arith.constant 0 : index
    %c22 = arith.constant 22 : index
    %c0_155 = arith.constant 0 : index
    %c0_156 = arith.constant 0 : index
    %227 = vector.load %arg4[%c0_154, %c22, %c0_155, %c0_156] : memref<1x45x32x32xbf16, #tpu.memory_space<vmem>>, vector<1x1x32x32xbf16>
    %228 = vector.shape_cast %227 : vector<1x1x32x32xbf16> to vector<32x32xbf16>
    %cst_157 = arith.constant dense<0.000000e+00> : vector<64x32xf32>
    %229 = tpu.matmul %226, %228, %cst_157 {dimension_numbers = #tpu.dot_dimension_numbers<[1], [0], [0], [1], [0, 0, 1, 1], [], []>} : vector<64x32xbf16>, vector<32x32xbf16>, vector<64x32xf32> -> vector<64x32xf32>
    %230 = arith.addf %225, %229 : vector<64x32xf32>
    %231 = arith.truncf %202 : vector<64x32xf32> to vector<64x32xbf16>
    %c0_158 = arith.constant 0 : index
    %c23 = arith.constant 23 : index
    %c0_159 = arith.constant 0 : index
    %c0_160 = arith.constant 0 : index
    %232 = vector.load %arg4[%c0_158, %c23, %c0_159, %c0_160] : memref<1x45x32x32xbf16, #tpu.memory_space<vmem>>, vector<1x1x32x32xbf16>
    %233 = vector.shape_cast %232 : vector<1x1x32x32xbf16> to vector<32x32xbf16>
    %cst_161 = arith.constant dense<0.000000e+00> : vector<64x32xf32>
    %234 = tpu.matmul %231, %233, %cst_161 {dimension_numbers = #tpu.dot_dimension_numbers<[1], [0], [0], [1], [0, 0, 1, 1], [], []>} : vector<64x32xbf16>, vector<32x32xbf16>, vector<64x32xf32> -> vector<64x32xf32>
    %235 = arith.addf %230, %234 : vector<64x32xf32>
    %236 = arith.addf %221, %235 : vector<64x32xf32>
    %c56_i32_162 = arith.constant 56 : i32
    %237 = tpu.dynamic_rotate %199 by %c56_i32_162 dim 0 : vector<64x32xf32>, i32 -> vector<64x32xf32>
    %238 = arith.truncf %237 : vector<64x32xf32> to vector<64x32xbf16>
    %c0_163 = arith.constant 0 : index
    %c24 = arith.constant 24 : index
    %c0_164 = arith.constant 0 : index
    %c0_165 = arith.constant 0 : index
    %239 = vector.load %arg4[%c0_163, %c24, %c0_164, %c0_165] : memref<1x45x32x32xbf16, #tpu.memory_space<vmem>>, vector<1x1x32x32xbf16>
    %240 = vector.shape_cast %239 : vector<1x1x32x32xbf16> to vector<32x32xbf16>
    %cst_166 = arith.constant dense<0.000000e+00> : vector<64x32xf32>
    %241 = tpu.matmul %238, %240, %cst_166 {dimension_numbers = #tpu.dot_dimension_numbers<[1], [0], [0], [1], [0, 0, 1, 1], [], []>} : vector<64x32xbf16>, vector<32x32xbf16>, vector<64x32xf32> -> vector<64x32xf32>
    %c56_i32_167 = arith.constant 56 : i32
    %242 = tpu.dynamic_rotate %196 by %c56_i32_167 dim 0 : vector<64x32xf32>, i32 -> vector<64x32xf32>
    %243 = arith.truncf %242 : vector<64x32xf32> to vector<64x32xbf16>
    %c0_168 = arith.constant 0 : index
    %c25 = arith.constant 25 : index
    %c0_169 = arith.constant 0 : index
    %c0_170 = arith.constant 0 : index
    %244 = vector.load %arg4[%c0_168, %c25, %c0_169, %c0_170] : memref<1x45x32x32xbf16, #tpu.memory_space<vmem>>, vector<1x1x32x32xbf16>
    %245 = vector.shape_cast %244 : vector<1x1x32x32xbf16> to vector<32x32xbf16>
    %cst_171 = arith.constant dense<0.000000e+00> : vector<64x32xf32>
    %246 = tpu.matmul %243, %245, %cst_171 {dimension_numbers = #tpu.dot_dimension_numbers<[1], [0], [0], [1], [0, 0, 1, 1], [], []>} : vector<64x32xbf16>, vector<32x32xbf16>, vector<64x32xf32> -> vector<64x32xf32>
    %247 = arith.addf %241, %246 : vector<64x32xf32>
    %c56_i32_172 = arith.constant 56 : i32
    %248 = tpu.dynamic_rotate %202 by %c56_i32_172 dim 0 : vector<64x32xf32>, i32 -> vector<64x32xf32>
    %249 = arith.truncf %248 : vector<64x32xf32> to vector<64x32xbf16>
    %c0_173 = arith.constant 0 : index
    %c26 = arith.constant 26 : index
    %c0_174 = arith.constant 0 : index
    %c0_175 = arith.constant 0 : index
    %250 = vector.load %arg4[%c0_173, %c26, %c0_174, %c0_175] : memref<1x45x32x32xbf16, #tpu.memory_space<vmem>>, vector<1x1x32x32xbf16>
    %251 = vector.shape_cast %250 : vector<1x1x32x32xbf16> to vector<32x32xbf16>
    %cst_176 = arith.constant dense<0.000000e+00> : vector<64x32xf32>
    %252 = tpu.matmul %249, %251, %cst_176 {dimension_numbers = #tpu.dot_dimension_numbers<[1], [0], [0], [1], [0, 0, 1, 1], [], []>} : vector<64x32xbf16>, vector<32x32xbf16>, vector<64x32xf32> -> vector<64x32xf32>
    %253 = arith.addf %247, %252 : vector<64x32xf32>
    %cst_177 = arith.constant 0.000000e+00 : f32
    %254 = vector.broadcast %cst_177 : f32 to vector<64x32xf32>
    %255 = arith.select %27, %253, %254 : vector<64x32xi1>, vector<64x32xf32>
    %256 = arith.addf %236, %255 : vector<64x32xf32>
    %c2_178 = arith.constant 2 : index
    %c0_179 = arith.constant 0 : index
    %c0_180 = arith.constant 0 : index
    %257 = vector.load %arg6[%c2_178, %c0_179, %c0_180] : memref<5x1x32xf32, #tpu.memory_space<vmem>>, vector<1x1x32xf32>
    %258 = vector.shape_cast %257 : vector<1x1x32xf32> to vector<1x32xf32>
    %259 = vector.broadcast %258 : vector<1x32xf32> to vector<64x32xf32>
    %260 = arith.addf %256, %259 : vector<64x32xf32>
    %cst_181 = arith.constant 2.000000e-01 : f32
    %261 = vector.broadcast %cst_181 : f32 to vector<64x32xf32>
    %262 = arith.mulf %261, %260 : vector<64x32xf32>
    %263 = arith.maximumf %260, %262 : vector<64x32xf32>
    %cst_182 = arith.constant -362.038666 : f32
    %cst_183 = arith.constant 362.038666 : f32
    %264 = vector.broadcast %cst_182 : f32 to vector<64x32xf32>
    %265 = arith.maximumf %264, %263 : vector<64x32xf32>
    %266 = vector.broadcast %cst_183 : f32 to vector<64x32xf32>
    %267 = arith.minimumf %266, %265 : vector<64x32xf32>
    %268 = arith.truncf %267 : vector<64x32xf32> to vector<64x32xbf16>
    %269 = arith.truncf %124 : vector<16x8xf32> to vector<16x8xbf16>
    %cst_184 = arith.constant dense<0.000000e+00> : vector<64x8xf32>
    %270 = tpu.matmul %0, %269, %cst_184 {dimension_numbers = #tpu.dot_dimension_numbers<[1], [0], [0], [1], [0, 0, 1, 1], [], []>} : vector<64x16xbf16>, vector<16x8xbf16>, vector<64x8xf32> -> vector<64x8xf32>
    %c0_185 = arith.constant 0 : index
    %c1_186 = arith.constant 1 : index
    %c0_187 = arith.constant 0 : index
    %c0_188 = arith.constant 0 : index
    %271 = vector.load %arg5[%c0_185, %c1_186, %c0_187, %c0_188] : memref<1x3x32x8xbf16, #tpu.memory_space<vmem>>, vector<1x1x32x8xbf16>
    %272 = vector.shape_cast %271 : vector<1x1x32x8xbf16> to vector<32x8xbf16>
    %cst_189 = arith.constant dense<0.000000e+00> : vector<64x8xf32>
    %273 = tpu.matmul %268, %272, %cst_189 {dimension_numbers = #tpu.dot_dimension_numbers<[1], [0], [0], [1], [0, 0, 1, 1], [], []>} : vector<64x32xbf16>, vector<32x8xbf16>, vector<64x8xf32> -> vector<64x8xf32>
    %c1_190 = arith.constant 1 : index
    %c0_191 = arith.constant 0 : index
    %c0_192 = arith.constant 0 : index
    %274 = vector.load %arg7[%c1_190, %c0_191, %c0_192] : memref<3x1x8xf32, #tpu.memory_space<vmem>>, vector<1x1x8xf32>
    %275 = vector.shape_cast %274 : vector<1x1x8xf32> to vector<1x8xf32>
    %276 = vector.broadcast %275 : vector<1x8xf32> to vector<64x8xf32>
    %277 = arith.addf %273, %276 : vector<64x8xf32>
    %cst_193 = arith.constant -2.560000e+02 : f32
    %cst_194 = arith.constant 2.560000e+02 : f32
    %278 = vector.broadcast %cst_193 : f32 to vector<64x8xf32>
    %279 = arith.maximumf %278, %277 : vector<64x8xf32>
    %280 = vector.broadcast %cst_194 : f32 to vector<64x8xf32>
    %281 = arith.minimumf %280, %279 : vector<64x8xf32>
    %282 = arith.addf %270, %281 : vector<64x8xf32>
    %cst_195 = arith.constant dense<0.000000e+00> : vector<256x32xf32>
    %283 = tpu.matmul %1, %268, %cst_195 {dimension_numbers = #tpu.dot_dimension_numbers<[1], [0], [0], [1], [0, 0, 1, 1], [], []>} : vector<256x64xbf16>, vector<64x32xbf16>, vector<256x32xf32> -> vector<256x32xf32>
    %c1_i32_196 = arith.constant 1 : i32
    %284 = tpu.dynamic_rotate %283 by %c1_i32_196 dim 0 : vector<256x32xf32>, i32 -> vector<256x32xf32>
    %cst_197 = arith.constant 0.000000e+00 : f32
    %285 = vector.broadcast %cst_197 : f32 to vector<256x32xf32>
    %286 = arith.select %34, %284, %285 : vector<256x32xi1>, vector<256x32xf32>
    %c255_i32 = arith.constant 255 : i32
    %287 = tpu.dynamic_rotate %283 by %c255_i32 dim 0 : vector<256x32xf32>, i32 -> vector<256x32xf32>
    %cst_198 = arith.constant 0.000000e+00 : f32
    %288 = vector.broadcast %cst_198 : f32 to vector<256x32xf32>
    %289 = arith.select %36, %287, %288 : vector<256x32xi1>, vector<256x32xf32>
    %c16_i32 = arith.constant 16 : i32
    %290 = tpu.dynamic_rotate %286 by %c16_i32 dim 0 : vector<256x32xf32>, i32 -> vector<256x32xf32>
    %291 = arith.truncf %290 : vector<256x32xf32> to vector<256x32xbf16>
    %c0_199 = arith.constant 0 : index
    %c27 = arith.constant 27 : index
    %c0_200 = arith.constant 0 : index
    %c0_201 = arith.constant 0 : index
    %292 = vector.load %arg4[%c0_199, %c27, %c0_200, %c0_201] : memref<1x45x32x32xbf16, #tpu.memory_space<vmem>>, vector<1x1x32x32xbf16>
    %293 = vector.shape_cast %292 : vector<1x1x32x32xbf16> to vector<32x32xbf16>
    %cst_202 = arith.constant dense<0.000000e+00> : vector<256x32xf32>
    %294 = tpu.matmul %291, %293, %cst_202 {dimension_numbers = #tpu.dot_dimension_numbers<[1], [0], [0], [1], [0, 0, 1, 1], [], []>} : vector<256x32xbf16>, vector<32x32xbf16>, vector<256x32xf32> -> vector<256x32xf32>
    %c16_i32_203 = arith.constant 16 : i32
    %295 = tpu.dynamic_rotate %283 by %c16_i32_203 dim 0 : vector<256x32xf32>, i32 -> vector<256x32xf32>
    %296 = arith.truncf %295 : vector<256x32xf32> to vector<256x32xbf16>
    %c0_204 = arith.constant 0 : index
    %c28 = arith.constant 28 : index
    %c0_205 = arith.constant 0 : index
    %c0_206 = arith.constant 0 : index
    %297 = vector.load %arg4[%c0_204, %c28, %c0_205, %c0_206] : memref<1x45x32x32xbf16, #tpu.memory_space<vmem>>, vector<1x1x32x32xbf16>
    %298 = vector.shape_cast %297 : vector<1x1x32x32xbf16> to vector<32x32xbf16>
    %cst_207 = arith.constant dense<0.000000e+00> : vector<256x32xf32>
    %299 = tpu.matmul %296, %298, %cst_207 {dimension_numbers = #tpu.dot_dimension_numbers<[1], [0], [0], [1], [0, 0, 1, 1], [], []>} : vector<256x32xbf16>, vector<32x32xbf16>, vector<256x32xf32> -> vector<256x32xf32>
    %300 = arith.addf %294, %299 : vector<256x32xf32>
    %c16_i32_208 = arith.constant 16 : i32
    %301 = tpu.dynamic_rotate %289 by %c16_i32_208 dim 0 : vector<256x32xf32>, i32 -> vector<256x32xf32>
    %302 = arith.truncf %301 : vector<256x32xf32> to vector<256x32xbf16>
    %c0_209 = arith.constant 0 : index
    %c29 = arith.constant 29 : index
    %c0_210 = arith.constant 0 : index
    %c0_211 = arith.constant 0 : index
    %303 = vector.load %arg4[%c0_209, %c29, %c0_210, %c0_211] : memref<1x45x32x32xbf16, #tpu.memory_space<vmem>>, vector<1x1x32x32xbf16>
    %304 = vector.shape_cast %303 : vector<1x1x32x32xbf16> to vector<32x32xbf16>
    %cst_212 = arith.constant dense<0.000000e+00> : vector<256x32xf32>
    %305 = tpu.matmul %302, %304, %cst_212 {dimension_numbers = #tpu.dot_dimension_numbers<[1], [0], [0], [1], [0, 0, 1, 1], [], []>} : vector<256x32xbf16>, vector<32x32xbf16>, vector<256x32xf32> -> vector<256x32xf32>
    %306 = arith.addf %300, %305 : vector<256x32xf32>
    %cst_213 = arith.constant 0.000000e+00 : f32
    %307 = vector.broadcast %cst_213 : f32 to vector<256x32xf32>
    %308 = arith.select %38, %306, %307 : vector<256x32xi1>, vector<256x32xf32>
    %309 = arith.truncf %286 : vector<256x32xf32> to vector<256x32xbf16>
    %c0_214 = arith.constant 0 : index
    %c30 = arith.constant 30 : index
    %c0_215 = arith.constant 0 : index
    %c0_216 = arith.constant 0 : index
    %310 = vector.load %arg4[%c0_214, %c30, %c0_215, %c0_216] : memref<1x45x32x32xbf16, #tpu.memory_space<vmem>>, vector<1x1x32x32xbf16>
    %311 = vector.shape_cast %310 : vector<1x1x32x32xbf16> to vector<32x32xbf16>
    %cst_217 = arith.constant dense<0.000000e+00> : vector<256x32xf32>
    %312 = tpu.matmul %309, %311, %cst_217 {dimension_numbers = #tpu.dot_dimension_numbers<[1], [0], [0], [1], [0, 0, 1, 1], [], []>} : vector<256x32xbf16>, vector<32x32xbf16>, vector<256x32xf32> -> vector<256x32xf32>
    %313 = arith.truncf %283 : vector<256x32xf32> to vector<256x32xbf16>
    %c0_218 = arith.constant 0 : index
    %c31 = arith.constant 31 : index
    %c0_219 = arith.constant 0 : index
    %c0_220 = arith.constant 0 : index
    %314 = vector.load %arg4[%c0_218, %c31, %c0_219, %c0_220] : memref<1x45x32x32xbf16, #tpu.memory_space<vmem>>, vector<1x1x32x32xbf16>
    %315 = vector.shape_cast %314 : vector<1x1x32x32xbf16> to vector<32x32xbf16>
    %cst_221 = arith.constant dense<0.000000e+00> : vector<256x32xf32>
    %316 = tpu.matmul %313, %315, %cst_221 {dimension_numbers = #tpu.dot_dimension_numbers<[1], [0], [0], [1], [0, 0, 1, 1], [], []>} : vector<256x32xbf16>, vector<32x32xbf16>, vector<256x32xf32> -> vector<256x32xf32>
    %317 = arith.addf %312, %316 : vector<256x32xf32>
    %318 = arith.truncf %289 : vector<256x32xf32> to vector<256x32xbf16>
    %c0_222 = arith.constant 0 : index
    %c32 = arith.constant 32 : index
    %c0_223 = arith.constant 0 : index
    %c0_224 = arith.constant 0 : index
    %319 = vector.load %arg4[%c0_222, %c32, %c0_223, %c0_224] : memref<1x45x32x32xbf16, #tpu.memory_space<vmem>>, vector<1x1x32x32xbf16>
    %320 = vector.shape_cast %319 : vector<1x1x32x32xbf16> to vector<32x32xbf16>
    %cst_225 = arith.constant dense<0.000000e+00> : vector<256x32xf32>
    %321 = tpu.matmul %318, %320, %cst_225 {dimension_numbers = #tpu.dot_dimension_numbers<[1], [0], [0], [1], [0, 0, 1, 1], [], []>} : vector<256x32xbf16>, vector<32x32xbf16>, vector<256x32xf32> -> vector<256x32xf32>
    %322 = arith.addf %317, %321 : vector<256x32xf32>
    %323 = arith.addf %308, %322 : vector<256x32xf32>
    %c240_i32 = arith.constant 240 : i32
    %324 = tpu.dynamic_rotate %286 by %c240_i32 dim 0 : vector<256x32xf32>, i32 -> vector<256x32xf32>
    %325 = arith.truncf %324 : vector<256x32xf32> to vector<256x32xbf16>
    %c0_226 = arith.constant 0 : index
    %c33 = arith.constant 33 : index
    %c0_227 = arith.constant 0 : index
    %c0_228 = arith.constant 0 : index
    %326 = vector.load %arg4[%c0_226, %c33, %c0_227, %c0_228] : memref<1x45x32x32xbf16, #tpu.memory_space<vmem>>, vector<1x1x32x32xbf16>
    %327 = vector.shape_cast %326 : vector<1x1x32x32xbf16> to vector<32x32xbf16>
    %cst_229 = arith.constant dense<0.000000e+00> : vector<256x32xf32>
    %328 = tpu.matmul %325, %327, %cst_229 {dimension_numbers = #tpu.dot_dimension_numbers<[1], [0], [0], [1], [0, 0, 1, 1], [], []>} : vector<256x32xbf16>, vector<32x32xbf16>, vector<256x32xf32> -> vector<256x32xf32>
    %c240_i32_230 = arith.constant 240 : i32
    %329 = tpu.dynamic_rotate %283 by %c240_i32_230 dim 0 : vector<256x32xf32>, i32 -> vector<256x32xf32>
    %330 = arith.truncf %329 : vector<256x32xf32> to vector<256x32xbf16>
    %c0_231 = arith.constant 0 : index
    %c34 = arith.constant 34 : index
    %c0_232 = arith.constant 0 : index
    %c0_233 = arith.constant 0 : index
    %331 = vector.load %arg4[%c0_231, %c34, %c0_232, %c0_233] : memref<1x45x32x32xbf16, #tpu.memory_space<vmem>>, vector<1x1x32x32xbf16>
    %332 = vector.shape_cast %331 : vector<1x1x32x32xbf16> to vector<32x32xbf16>
    %cst_234 = arith.constant dense<0.000000e+00> : vector<256x32xf32>
    %333 = tpu.matmul %330, %332, %cst_234 {dimension_numbers = #tpu.dot_dimension_numbers<[1], [0], [0], [1], [0, 0, 1, 1], [], []>} : vector<256x32xbf16>, vector<32x32xbf16>, vector<256x32xf32> -> vector<256x32xf32>
    %334 = arith.addf %328, %333 : vector<256x32xf32>
    %c240_i32_235 = arith.constant 240 : i32
    %335 = tpu.dynamic_rotate %289 by %c240_i32_235 dim 0 : vector<256x32xf32>, i32 -> vector<256x32xf32>
    %336 = arith.truncf %335 : vector<256x32xf32> to vector<256x32xbf16>
    %c0_236 = arith.constant 0 : index
    %c35 = arith.constant 35 : index
    %c0_237 = arith.constant 0 : index
    %c0_238 = arith.constant 0 : index
    %337 = vector.load %arg4[%c0_236, %c35, %c0_237, %c0_238] : memref<1x45x32x32xbf16, #tpu.memory_space<vmem>>, vector<1x1x32x32xbf16>
    %338 = vector.shape_cast %337 : vector<1x1x32x32xbf16> to vector<32x32xbf16>
    %cst_239 = arith.constant dense<0.000000e+00> : vector<256x32xf32>
    %339 = tpu.matmul %336, %338, %cst_239 {dimension_numbers = #tpu.dot_dimension_numbers<[1], [0], [0], [1], [0, 0, 1, 1], [], []>} : vector<256x32xbf16>, vector<32x32xbf16>, vector<256x32xf32> -> vector<256x32xf32>
    %340 = arith.addf %334, %339 : vector<256x32xf32>
    %cst_240 = arith.constant 0.000000e+00 : f32
    %341 = vector.broadcast %cst_240 : f32 to vector<256x32xf32>
    %342 = arith.select %40, %340, %341 : vector<256x32xi1>, vector<256x32xf32>
    %343 = arith.addf %323, %342 : vector<256x32xf32>
    %c3_241 = arith.constant 3 : index
    %c0_242 = arith.constant 0 : index
    %c0_243 = arith.constant 0 : index
    %344 = vector.load %arg6[%c3_241, %c0_242, %c0_243] : memref<5x1x32xf32, #tpu.memory_space<vmem>>, vector<1x1x32xf32>
    %345 = vector.shape_cast %344 : vector<1x1x32xf32> to vector<1x32xf32>
    %346 = vector.broadcast %345 : vector<1x32xf32> to vector<256x32xf32>
    %347 = arith.addf %343, %346 : vector<256x32xf32>
    %cst_244 = arith.constant 2.000000e-01 : f32
    %348 = vector.broadcast %cst_244 : f32 to vector<256x32xf32>
    %349 = arith.mulf %348, %347 : vector<256x32xf32>
    %350 = arith.maximumf %347, %349 : vector<256x32xf32>
    %cst_245 = arith.constant -362.038666 : f32
    %cst_246 = arith.constant 362.038666 : f32
    %351 = vector.broadcast %cst_245 : f32 to vector<256x32xf32>
    %352 = arith.maximumf %351, %350 : vector<256x32xf32>
    %353 = vector.broadcast %cst_246 : f32 to vector<256x32xf32>
    %354 = arith.minimumf %353, %352 : vector<256x32xf32>
    %c1_i32_247 = arith.constant 1 : i32
    %355 = tpu.dynamic_rotate %354 by %c1_i32_247 dim 0 : vector<256x32xf32>, i32 -> vector<256x32xf32>
    %cst_248 = arith.constant 0.000000e+00 : f32
    %356 = vector.broadcast %cst_248 : f32 to vector<256x32xf32>
    %357 = arith.select %34, %355, %356 : vector<256x32xi1>, vector<256x32xf32>
    %c255_i32_249 = arith.constant 255 : i32
    %358 = tpu.dynamic_rotate %354 by %c255_i32_249 dim 0 : vector<256x32xf32>, i32 -> vector<256x32xf32>
    %cst_250 = arith.constant 0.000000e+00 : f32
    %359 = vector.broadcast %cst_250 : f32 to vector<256x32xf32>
    %360 = arith.select %36, %358, %359 : vector<256x32xi1>, vector<256x32xf32>
    %c16_i32_251 = arith.constant 16 : i32
    %361 = tpu.dynamic_rotate %357 by %c16_i32_251 dim 0 : vector<256x32xf32>, i32 -> vector<256x32xf32>
    %362 = arith.truncf %361 : vector<256x32xf32> to vector<256x32xbf16>
    %c0_252 = arith.constant 0 : index
    %c36 = arith.constant 36 : index
    %c0_253 = arith.constant 0 : index
    %c0_254 = arith.constant 0 : index
    %363 = vector.load %arg4[%c0_252, %c36, %c0_253, %c0_254] : memref<1x45x32x32xbf16, #tpu.memory_space<vmem>>, vector<1x1x32x32xbf16>
    %364 = vector.shape_cast %363 : vector<1x1x32x32xbf16> to vector<32x32xbf16>
    %cst_255 = arith.constant dense<0.000000e+00> : vector<256x32xf32>
    %365 = tpu.matmul %362, %364, %cst_255 {dimension_numbers = #tpu.dot_dimension_numbers<[1], [0], [0], [1], [0, 0, 1, 1], [], []>} : vector<256x32xbf16>, vector<32x32xbf16>, vector<256x32xf32> -> vector<256x32xf32>
    %c16_i32_256 = arith.constant 16 : i32
    %366 = tpu.dynamic_rotate %354 by %c16_i32_256 dim 0 : vector<256x32xf32>, i32 -> vector<256x32xf32>
    %367 = arith.truncf %366 : vector<256x32xf32> to vector<256x32xbf16>
    %c0_257 = arith.constant 0 : index
    %c37 = arith.constant 37 : index
    %c0_258 = arith.constant 0 : index
    %c0_259 = arith.constant 0 : index
    %368 = vector.load %arg4[%c0_257, %c37, %c0_258, %c0_259] : memref<1x45x32x32xbf16, #tpu.memory_space<vmem>>, vector<1x1x32x32xbf16>
    %369 = vector.shape_cast %368 : vector<1x1x32x32xbf16> to vector<32x32xbf16>
    %cst_260 = arith.constant dense<0.000000e+00> : vector<256x32xf32>
    %370 = tpu.matmul %367, %369, %cst_260 {dimension_numbers = #tpu.dot_dimension_numbers<[1], [0], [0], [1], [0, 0, 1, 1], [], []>} : vector<256x32xbf16>, vector<32x32xbf16>, vector<256x32xf32> -> vector<256x32xf32>
    %371 = arith.addf %365, %370 : vector<256x32xf32>
    %c16_i32_261 = arith.constant 16 : i32
    %372 = tpu.dynamic_rotate %360 by %c16_i32_261 dim 0 : vector<256x32xf32>, i32 -> vector<256x32xf32>
    %373 = arith.truncf %372 : vector<256x32xf32> to vector<256x32xbf16>
    %c0_262 = arith.constant 0 : index
    %c38 = arith.constant 38 : index
    %c0_263 = arith.constant 0 : index
    %c0_264 = arith.constant 0 : index
    %374 = vector.load %arg4[%c0_262, %c38, %c0_263, %c0_264] : memref<1x45x32x32xbf16, #tpu.memory_space<vmem>>, vector<1x1x32x32xbf16>
    %375 = vector.shape_cast %374 : vector<1x1x32x32xbf16> to vector<32x32xbf16>
    %cst_265 = arith.constant dense<0.000000e+00> : vector<256x32xf32>
    %376 = tpu.matmul %373, %375, %cst_265 {dimension_numbers = #tpu.dot_dimension_numbers<[1], [0], [0], [1], [0, 0, 1, 1], [], []>} : vector<256x32xbf16>, vector<32x32xbf16>, vector<256x32xf32> -> vector<256x32xf32>
    %377 = arith.addf %371, %376 : vector<256x32xf32>
    %cst_266 = arith.constant 0.000000e+00 : f32
    %378 = vector.broadcast %cst_266 : f32 to vector<256x32xf32>
    %379 = arith.select %38, %377, %378 : vector<256x32xi1>, vector<256x32xf32>
    %380 = arith.truncf %357 : vector<256x32xf32> to vector<256x32xbf16>
    %c0_267 = arith.constant 0 : index
    %c39 = arith.constant 39 : index
    %c0_268 = arith.constant 0 : index
    %c0_269 = arith.constant 0 : index
    %381 = vector.load %arg4[%c0_267, %c39, %c0_268, %c0_269] : memref<1x45x32x32xbf16, #tpu.memory_space<vmem>>, vector<1x1x32x32xbf16>
    %382 = vector.shape_cast %381 : vector<1x1x32x32xbf16> to vector<32x32xbf16>
    %cst_270 = arith.constant dense<0.000000e+00> : vector<256x32xf32>
    %383 = tpu.matmul %380, %382, %cst_270 {dimension_numbers = #tpu.dot_dimension_numbers<[1], [0], [0], [1], [0, 0, 1, 1], [], []>} : vector<256x32xbf16>, vector<32x32xbf16>, vector<256x32xf32> -> vector<256x32xf32>
    %384 = arith.truncf %354 : vector<256x32xf32> to vector<256x32xbf16>
    %c0_271 = arith.constant 0 : index
    %c40 = arith.constant 40 : index
    %c0_272 = arith.constant 0 : index
    %c0_273 = arith.constant 0 : index
    %385 = vector.load %arg4[%c0_271, %c40, %c0_272, %c0_273] : memref<1x45x32x32xbf16, #tpu.memory_space<vmem>>, vector<1x1x32x32xbf16>
    %386 = vector.shape_cast %385 : vector<1x1x32x32xbf16> to vector<32x32xbf16>
    %cst_274 = arith.constant dense<0.000000e+00> : vector<256x32xf32>
    %387 = tpu.matmul %384, %386, %cst_274 {dimension_numbers = #tpu.dot_dimension_numbers<[1], [0], [0], [1], [0, 0, 1, 1], [], []>} : vector<256x32xbf16>, vector<32x32xbf16>, vector<256x32xf32> -> vector<256x32xf32>
    %388 = arith.addf %383, %387 : vector<256x32xf32>
    %389 = arith.truncf %360 : vector<256x32xf32> to vector<256x32xbf16>
    %c0_275 = arith.constant 0 : index
    %c41 = arith.constant 41 : index
    %c0_276 = arith.constant 0 : index
    %c0_277 = arith.constant 0 : index
    %390 = vector.load %arg4[%c0_275, %c41, %c0_276, %c0_277] : memref<1x45x32x32xbf16, #tpu.memory_space<vmem>>, vector<1x1x32x32xbf16>
    %391 = vector.shape_cast %390 : vector<1x1x32x32xbf16> to vector<32x32xbf16>
    %cst_278 = arith.constant dense<0.000000e+00> : vector<256x32xf32>
    %392 = tpu.matmul %389, %391, %cst_278 {dimension_numbers = #tpu.dot_dimension_numbers<[1], [0], [0], [1], [0, 0, 1, 1], [], []>} : vector<256x32xbf16>, vector<32x32xbf16>, vector<256x32xf32> -> vector<256x32xf32>
    %393 = arith.addf %388, %392 : vector<256x32xf32>
    %394 = arith.addf %379, %393 : vector<256x32xf32>
    %c240_i32_279 = arith.constant 240 : i32
    %395 = tpu.dynamic_rotate %357 by %c240_i32_279 dim 0 : vector<256x32xf32>, i32 -> vector<256x32xf32>
    %396 = arith.truncf %395 : vector<256x32xf32> to vector<256x32xbf16>
    %c0_280 = arith.constant 0 : index
    %c42 = arith.constant 42 : index
    %c0_281 = arith.constant 0 : index
    %c0_282 = arith.constant 0 : index
    %397 = vector.load %arg4[%c0_280, %c42, %c0_281, %c0_282] : memref<1x45x32x32xbf16, #tpu.memory_space<vmem>>, vector<1x1x32x32xbf16>
    %398 = vector.shape_cast %397 : vector<1x1x32x32xbf16> to vector<32x32xbf16>
    %cst_283 = arith.constant dense<0.000000e+00> : vector<256x32xf32>
    %399 = tpu.matmul %396, %398, %cst_283 {dimension_numbers = #tpu.dot_dimension_numbers<[1], [0], [0], [1], [0, 0, 1, 1], [], []>} : vector<256x32xbf16>, vector<32x32xbf16>, vector<256x32xf32> -> vector<256x32xf32>
    %c240_i32_284 = arith.constant 240 : i32
    %400 = tpu.dynamic_rotate %354 by %c240_i32_284 dim 0 : vector<256x32xf32>, i32 -> vector<256x32xf32>
    %401 = arith.truncf %400 : vector<256x32xf32> to vector<256x32xbf16>
    %c0_285 = arith.constant 0 : index
    %c43 = arith.constant 43 : index
    %c0_286 = arith.constant 0 : index
    %c0_287 = arith.constant 0 : index
    %402 = vector.load %arg4[%c0_285, %c43, %c0_286, %c0_287] : memref<1x45x32x32xbf16, #tpu.memory_space<vmem>>, vector<1x1x32x32xbf16>
    %403 = vector.shape_cast %402 : vector<1x1x32x32xbf16> to vector<32x32xbf16>
    %cst_288 = arith.constant dense<0.000000e+00> : vector<256x32xf32>
    %404 = tpu.matmul %401, %403, %cst_288 {dimension_numbers = #tpu.dot_dimension_numbers<[1], [0], [0], [1], [0, 0, 1, 1], [], []>} : vector<256x32xbf16>, vector<32x32xbf16>, vector<256x32xf32> -> vector<256x32xf32>
    %405 = arith.addf %399, %404 : vector<256x32xf32>
    %c240_i32_289 = arith.constant 240 : i32
    %406 = tpu.dynamic_rotate %360 by %c240_i32_289 dim 0 : vector<256x32xf32>, i32 -> vector<256x32xf32>
    %407 = arith.truncf %406 : vector<256x32xf32> to vector<256x32xbf16>
    %c0_290 = arith.constant 0 : index
    %c44 = arith.constant 44 : index
    %c0_291 = arith.constant 0 : index
    %c0_292 = arith.constant 0 : index
    %408 = vector.load %arg4[%c0_290, %c44, %c0_291, %c0_292] : memref<1x45x32x32xbf16, #tpu.memory_space<vmem>>, vector<1x1x32x32xbf16>
    %409 = vector.shape_cast %408 : vector<1x1x32x32xbf16> to vector<32x32xbf16>
    %cst_293 = arith.constant dense<0.000000e+00> : vector<256x32xf32>
    %410 = tpu.matmul %407, %409, %cst_293 {dimension_numbers = #tpu.dot_dimension_numbers<[1], [0], [0], [1], [0, 0, 1, 1], [], []>} : vector<256x32xbf16>, vector<32x32xbf16>, vector<256x32xf32> -> vector<256x32xf32>
    %411 = arith.addf %405, %410 : vector<256x32xf32>
    %cst_294 = arith.constant 0.000000e+00 : f32
    %412 = vector.broadcast %cst_294 : f32 to vector<256x32xf32>
    %413 = arith.select %40, %411, %412 : vector<256x32xi1>, vector<256x32xf32>
    %414 = arith.addf %394, %413 : vector<256x32xf32>
    %c4_295 = arith.constant 4 : index
    %c0_296 = arith.constant 0 : index
    %c0_297 = arith.constant 0 : index
    %415 = vector.load %arg6[%c4_295, %c0_296, %c0_297] : memref<5x1x32xf32, #tpu.memory_space<vmem>>, vector<1x1x32xf32>
    %416 = vector.shape_cast %415 : vector<1x1x32xf32> to vector<1x32xf32>
    %417 = vector.broadcast %416 : vector<1x32xf32> to vector<256x32xf32>
    %418 = arith.addf %414, %417 : vector<256x32xf32>
    %cst_298 = arith.constant 2.000000e-01 : f32
    %419 = vector.broadcast %cst_298 : f32 to vector<256x32xf32>
    %420 = arith.mulf %419, %418 : vector<256x32xf32>
    %421 = arith.maximumf %418, %420 : vector<256x32xf32>
    %cst_299 = arith.constant -362.038666 : f32
    %cst_300 = arith.constant 362.038666 : f32
    %422 = vector.broadcast %cst_299 : f32 to vector<256x32xf32>
    %423 = arith.maximumf %422, %421 : vector<256x32xf32>
    %424 = vector.broadcast %cst_300 : f32 to vector<256x32xf32>
    %425 = arith.minimumf %424, %423 : vector<256x32xf32>
    %426 = arith.truncf %425 : vector<256x32xf32> to vector<256x32xbf16>
    %427 = arith.truncf %282 : vector<64x8xf32> to vector<64x8xbf16>
    %cst_301 = arith.constant dense<0.000000e+00> : vector<256x8xf32>
    %428 = tpu.matmul %1, %427, %cst_301 {dimension_numbers = #tpu.dot_dimension_numbers<[1], [0], [0], [1], [0, 0, 1, 1], [], []>} : vector<256x64xbf16>, vector<64x8xbf16>, vector<256x8xf32> -> vector<256x8xf32>
    %c0_302 = arith.constant 0 : index
    %c2_303 = arith.constant 2 : index
    %c0_304 = arith.constant 0 : index
    %c0_305 = arith.constant 0 : index
    %429 = vector.load %arg5[%c0_302, %c2_303, %c0_304, %c0_305] : memref<1x3x32x8xbf16, #tpu.memory_space<vmem>>, vector<1x1x32x8xbf16>
    %430 = vector.shape_cast %429 : vector<1x1x32x8xbf16> to vector<32x8xbf16>
    %cst_306 = arith.constant dense<0.000000e+00> : vector<256x8xf32>
    %431 = tpu.matmul %426, %430, %cst_306 {dimension_numbers = #tpu.dot_dimension_numbers<[1], [0], [0], [1], [0, 0, 1, 1], [], []>} : vector<256x32xbf16>, vector<32x8xbf16>, vector<256x8xf32> -> vector<256x8xf32>
    %c2_307 = arith.constant 2 : index
    %c0_308 = arith.constant 0 : index
    %c0_309 = arith.constant 0 : index
    %432 = vector.load %arg7[%c2_307, %c0_308, %c0_309] : memref<3x1x8xf32, #tpu.memory_space<vmem>>, vector<1x1x8xf32>
    %433 = vector.shape_cast %432 : vector<1x1x8xf32> to vector<1x8xf32>
    %434 = vector.broadcast %433 : vector<1x8xf32> to vector<256x8xf32>
    %435 = arith.addf %431, %434 : vector<256x8xf32>
    %cst_310 = arith.constant -2.560000e+02 : f32
    %cst_311 = arith.constant 2.560000e+02 : f32
    %436 = vector.broadcast %cst_310 : f32 to vector<256x8xf32>
    %437 = arith.maximumf %436, %435 : vector<256x8xf32>
    %438 = vector.broadcast %cst_311 : f32 to vector<256x8xf32>
    %439 = arith.minimumf %438, %437 : vector<256x8xf32>
    %440 = arith.addf %428, %439 : vector<256x8xf32>
    %c0_312 = arith.constant 0 : index
    %c0_313 = arith.constant 0 : index
    %c0_314 = arith.constant 0 : index
    %441 = vector.load %arg8[%c0_312, %c0_313, %c0_314] : memref<1x256x8xf32, #tpu.memory_space<vmem>>, vector<1x256x8xf32>
    %442 = vector.shape_cast %441 : vector<1x256x8xf32> to vector<256x8xf32>
    %443 = vector.shape_cast %440 : vector<256x8xf32> to vector<1x256x8xf32>
    tpu.vector_store %arg8[%c0_312, %c0_313, %c0_314], %443 {strides = array<i32>} : memref<1x256x8xf32, #tpu.memory_space<vmem>>, vector<1x256x8xf32>,
    return
  }
  func.func @transform_0(%arg0: i32) -> (i32, i32) {
    %c0_i32 = arith.constant 0 : i32
    %c0_i32_0 = arith.constant 0 : i32
    %c0_i32_1 = arith.constant 0 : i32
    return %c0_i32, %c0_i32_0 : i32, i32
  }
  func.func @transform_1(%arg0: i32) -> (i32, i32) {
    %c0_i32 = arith.constant 0 : i32
    %c0_i32_0 = arith.constant 0 : i32
    %c0_i32_1 = arith.constant 0 : i32
    return %c0_i32, %c0_i32_0 : i32, i32
  }
  func.func @transform_2(%arg0: i32) -> (i32, i32) {
    %c0_i32 = arith.constant 0 : i32
    %c0_i32_0 = arith.constant 0 : i32
    %c0_i32_1 = arith.constant 0 : i32
    return %c0_i32, %c0_i32_0 : i32, i32
  }
  func.func @transform_3(%arg0: i32) -> (i32, i32, i32, i32) {
    %c0_i32 = arith.constant 0 : i32
    %c0_i32_0 = arith.constant 0 : i32
    %c0_i32_1 = arith.constant 0 : i32
    %c0_i32_2 = arith.constant 0 : i32
    return %arg0, %c0_i32, %c0_i32_0, %c0_i32_1 : i32, i32, i32, i32
  }
  func.func @transform_4(%arg0: i32) -> (i32, i32, i32, i32) {
    %c0_i32 = arith.constant 0 : i32
    %c0_i32_0 = arith.constant 0 : i32
    %c0_i32_1 = arith.constant 0 : i32
    %c0_i32_2 = arith.constant 0 : i32
    return %arg0, %c0_i32, %c0_i32_0, %c0_i32_1 : i32, i32, i32, i32
  }
  func.func @transform_5(%arg0: i32) -> (i32, i32, i32) {
    %c0_i32 = arith.constant 0 : i32
    %c0_i32_0 = arith.constant 0 : i32
    %c0_i32_1 = arith.constant 0 : i32
    %c0_i32_2 = arith.constant 0 : i32
    return %c0_i32, %c0_i32_0, %c0_i32_1 : i32, i32, i32
  }
  func.func @transform_6(%arg0: i32) -> (i32, i32, i32) {
    %c0_i32 = arith.constant 0 : i32
    %c0_i32_0 = arith.constant 0 : i32
    %c0_i32_1 = arith.constant 0 : i32
    %c0_i32_2 = arith.constant 0 : i32
    return %c0_i32, %c0_i32_0, %c0_i32_1 : i32, i32, i32
  }
  func.func @transform_7(%arg0: i32) -> (i32, i32, i32) {
    %c0_i32 = arith.constant 0 : i32
    %c0_i32_0 = arith.constant 0 : i32
    %c0_i32_1 = arith.constant 0 : i32
    return %arg0, %c0_i32, %c0_i32_0 : i32, i32, i32
  }
}

</mosaic_0001>

<llo_original>
// kernel: _lambda_.1
$region0: #{_lambda_.1}
  #allocation0 [shape = 'u32[]', space=smem, size = 0x4, offset = 0x4, fixed_abs, tag = 'smem constant byte address 0x4 - core index']
  #allocation1 [shape = 'u32[144,128]{1,0:T(1,128)}', space=vmem, size = 0x12000, scoped, tag = 'internal scratch']
  %s0 = inlined_call_operand.vmem [shape: f32[16,32], index: 0, kind: input, shape index: {}]
  %s1 = inlined_call_operand.vmem [shape: bf16[64,16], index: 1, kind: input, shape index: {}]
  %s2 = inlined_call_operand.vmem [shape: bf16[256,64], index: 2, kind: input, shape index: {}]
  %s3 = inlined_call_operand.vmem [shape: bf16[2,45,32,32], index: 3, kind: input, shape index: {}]
  %s4 = inlined_call_operand.vmem [shape: bf16[2,3,32,8], index: 4, kind: input, shape index: {}]
  %s5 = inlined_call_operand.vmem [shape: f32[5,1,32], index: 5, kind: input, shape index: {}]
  %s6 = inlined_call_operand.vmem [shape: f32[3,1,8], index: 6, kind: input, shape index: {}]
  %s7 = inlined_call_operand.vmem [shape: f32[2,256,8], index: 7, kind: output, shape index: {}]
  %s8 = sld [smem:[#allocation0]]
  $region61: #{_lambda_.1} parent=0
    _
  %s10 = ssub.s32 1, %s8
  %s11 = scalar_select 0, %s10, %s8
  loop: start=0, step=1, limit=4
  $region2: #{_lambda_.1} parent=0 // loop_pre_header
    _
  $region3: #{_lambda_.1} parent=0 // loop_header
    %s13 = sphi 0, %s17
    %p14 = scmp.ge.s32.totalorder %s13, 4
    %s21 = sphi 0, %s21
    %s23 = sphi 0, %s21
    %s24 = sphi 0, %s23
    %s38 = sphi 0, %s24
    %s42 = sphi 0, %s42
    %s44 = sphi 0, %s42
    %s45 = sphi 0, %s44
    %s59 = sphi 0, %s45
    %s63 = sphi 0, %s63
    %s65 = sphi 0, %s63
    %s66 = sphi 0, %s65
    %s80 = sphi 0, %s66
    %s86 = sphi 0, %s88
    %s89 = sphi 0, %s86
    %s90 = sphi 0, %s89
    %s106 = sphi 0, %s90
    %s112 = sphi 0, %s114
    %s115 = sphi 0, %s112
    %s116 = sphi 0, %s115
    %s132 = sphi 0, %s116
    %s136 = sphi 0, %s136
    %s138 = sphi 0, %s136
    %s139 = sphi 0, %s138
    %s153 = sphi 0, %s139
    %s157 = sphi 0, %s157
    %s159 = sphi 0, %s157
    %s160 = sphi 0, %s159
    %s174 = sphi 0, %s160
    %s180 = sphi 0, %s182
    %s183 = sphi 0, %s180
    %s184 = sphi 0, %s183
    %s200 = sphi 0, %s184
  $region4: #{_lambda_.1} parent=0 // loop_header_branch
    %16 = sbr.rel (%p14) target = $region8
  $region5: #{_lambda_.1} parent=0 // loop_body
    %s18 = ssub.s32 %s13, 1
    %s19 = ssub.s32 %s13, 2
    %s20 = sadd.s32 %s13, 1
    %s22 = sadd.s32 %s21, 1
    %p25 = scmp.eq.s32.totalorder %s13, 1
    %p26 = scmp.ne.s32.totalorder %s21, %s23
    %p27 = scmp.eq.s32.totalorder %s13, 0
    %p28 = por %p26, %p27
    %p29 = scmp.ne.s32.totalorder %s21, %s23
    %p30 = scmp.eq.s32.totalorder %s18, 1
    %p31 = por %p29, %p30
    %p32 = scmp.ne.s32.totalorder %s23, %s24
    %p33 = scmp.eq.s32.totalorder %s18, 0
    %p34 = por %p32, %p33
    %p35 = scmp.ne.s32.totalorder %s23, %s24
    %p36 = scmp.eq.s32.totalorder %s19, 1
    %p37 = por %p35, %p36
    %p39 = scmp.ne.s32.totalorder %s24, %s38
    %p40 = scmp.eq.s32.totalorder %s19, 0
    %p41 = por %p39, %p40
    %s43 = sadd.s32 %s42, 1
    %p46 = scmp.eq.s32.totalorder %s13, 1
    %p47 = scmp.ne.s32.totalorder %s42, %s44
    %p48 = scmp.eq.s32.totalorder %s13, 0
    %p49 = por %p47, %p48
    %p50 = scmp.ne.s32.totalorder %s42, %s44
    %p51 = scmp.eq.s32.totalorder %s18, 1
    %p52 = por %p50, %p51
    %p53 = scmp.ne.s32.totalorder %s44, %s45
    %p54 = scmp.eq.s32.totalorder %s18, 0
    %p55 = por %p53, %p54
    %p56 = scmp.ne.s32.totalorder %s44, %s45
    %p57 = scmp.eq.s32.totalorder %s19, 1
    %p58 = por %p56, %p57
    %p60 = scmp.ne.s32.totalorder %s45, %s59
    %p61 = scmp.eq.s32.totalorder %s19, 0
    %p62 = por %p60, %p61
    %s64 = sadd.s32 %s63, 1
    %p67 = scmp.eq.s32.totalorder %s13, 1
    %p68 = scmp.ne.s32.totalorder %s63, %s65
    %p69 = scmp.eq.s32.totalorder %s13, 0
    %p70 = por %p68, %p69
    %p71 = scmp.ne.s32.totalorder %s63, %s65
    %p72 = scmp.eq.s32.totalorder %s18, 1
    %p73 = por %p71, %p72
    %p74 = scmp.ne.s32.totalorder %s65, %s66
    %p75 = scmp.eq.s32.totalorder %s18, 0
    %p76 = por %p74, %p75
    %p77 = scmp.ne.s32.totalorder %s65, %s66
    %p78 = scmp.eq.s32.totalorder %s19, 1
    %p79 = por %p77, %p78
    %p81 = scmp.ne.s32.totalorder %s66, %s80
    %p82 = scmp.eq.s32.totalorder %s19, 0
    %p83 = por %p81, %p82
    %s84 = ssub.s32 %s13, %s20
    %p85 = scmp.eq.s32.totalorder %s84, 0
    %s87 = sadd.s32 %s86, 1
    %s88 = scalar_select %p85, %s86, %s87
    %p91 = pneg %p85
    %p92 = scmp.eq.s32.totalorder %s13, 1
    %p93 = por %p91, %p92
    %p94 = scmp.ne.s32.totalorder %s86, %s89
    %p95 = scmp.eq.s32.totalorder %s13, 0
    %p96 = por %p94, %p95
    %p97 = scmp.ne.s32.totalorder %s86, %s89
    %p98 = scmp.eq.s32.totalorder %s18, 1
    %p99 = por %p97, %p98
    %p100 = scmp.ne.s32.totalorder %s89, %s90
    %p101 = scmp.eq.s32.totalorder %s18, 0
    %p102 = por %p100, %p101
    %p103 = scmp.ne.s32.totalorder %s89, %s90
    %p104 = scmp.eq.s32.totalorder %s19, 1
    %p105 = por %p103, %p104
    %p107 = scmp.ne.s32.totalorder %s90, %s106
    %p108 = scmp.eq.s32.totalorder %s19, 0
    %p109 = por %p107, %p108
    %s110 = ssub.s32 %s13, %s20
    %p111 = scmp.eq.s32.totalorder %s110, 0
    %s113 = sadd.s32 %s112, 1
    %s114 = scalar_select %p111, %s112, %s113
    %p117 = pneg %p111
    %p118 = scmp.eq.s32.totalorder %s13, 1
    %p119 = por %p117, %p118
    %p120 = scmp.ne.s32.totalorder %s112, %s115
    %p121 = scmp.eq.s32.totalorder %s13, 0
    %p122 = por %p120, %p121
    %p123 = scmp.ne.s32.totalorder %s112, %s115
    %p124 = scmp.eq.s32.totalorder %s18, 1
    %p125 = por %p123, %p124
    %p126 = scmp.ne.s32.totalorder %s115, %s116
    %p127 = scmp.eq.s32.totalorder %s18, 0
    %p128 = por %p126, %p127
    %p129 = scmp.ne.s32.totalorder %s115, %s116
    %p130 = scmp.eq.s32.totalorder %s19, 1
    %p131 = por %p129, %p130
    %p133 = scmp.ne.s32.totalorder %s116, %s132
    %p134 = scmp.eq.s32.totalorder %s19, 0
    %p135 = por %p133, %p134
    %s137 = sadd.s32 %s136, 1
    %p140 = scmp.eq.s32.totalorder %s13, 1
    %p141 = scmp.ne.s32.totalorder %s136, %s138
    %p142 = scmp.eq.s32.totalorder %s13, 0
    %p143 = por %p141, %p142
    %p144 = scmp.ne.s32.totalorder %s136, %s138
    %p145 = scmp.eq.s32.totalorder %s18, 1
    %p146 = por %p144, %p145
    %p147 = scmp.ne.s32.totalorder %s138, %s139
    %p148 = scmp.eq.s32.totalorder %s18, 0
    %p149 = por %p147, %p148
    %p150 = scmp.ne.s32.totalorder %s138, %s139
    %p151 = scmp.eq.s32.totalorder %s19, 1
    %p152 = por %p150, %p151
    %p154 = scmp.ne.s32.totalorder %s139, %s153
    %p155 = scmp.eq.s32.totalorder %s19, 0
    %p156 = por %p154, %p155
    %s158 = sadd.s32 %s157, 1
    %p161 = scmp.eq.s32.totalorder %s13, 1
    %p162 = scmp.ne.s32.totalorder %s157, %s159
    %p163 = scmp.eq.s32.totalorder %s13, 0
    %p164 = por %p162, %p163
    %p165 = scmp.ne.s32.totalorder %s157, %s159
    %p166 = scmp.eq.s32.totalorder %s18, 1
    %p167 = por %p165, %p166
    %p168 = scmp.ne.s32.totalorder %s159, %s160
    %p169 = scmp.eq.s32.totalorder %s18, 0
    %p170 = por %p168, %p169
    %p171 = scmp.ne.s32.totalorder %s159, %s160
    %p172 = scmp.eq.s32.totalorder %s19, 1
    %p173 = por %p171, %p172
    %p175 = scmp.ne.s32.totalorder %s160, %s174
    %p176 = scmp.eq.s32.totalorder %s19, 0
    %p177 = por %p175, %p176
    %s178 = ssub.s32 %s13, %s20
    %p179 = scmp.eq.s32.totalorder %s178, 0
    %s181 = sadd.s32 %s180, 1
    %s182 = scalar_select %p179, %s180, %s181
    %p185 = pneg %p179
    %p186 = scmp.eq.s32.totalorder %s13, 1
    %p187 = por %p185, %p186
    %p188 = scmp.ne.s32.totalorder %s180, %s183
    %p189 = scmp.eq.s32.totalorder %s13, 0
    %p190 = por %p188, %p189
    %p191 = scmp.ne.s32.totalorder %s180, %s183
    %p192 = scmp.eq.s32.totalorder %s18, 1
    %p193 = por %p191, %p192
    %p194 = scmp.ne.s32.totalorder %s183, %s184
    %p195 = scmp.eq.s32.totalorder %s18, 0
    %p196 = por %p194, %p195
    %p197 = scmp.ne.s32.totalorder %s183, %s184
    %p198 = scmp.eq.s32.totalorder %s19, 1
    %p199 = por %p197, %p198
    %p201 = scmp.ne.s32.totalorder %s184, %s200
    %p202 = scmp.eq.s32.totalorder %s19, 0
    %p203 = por %p201, %p202
    %p204 = scmp.le.s32.totalorder 1, %s13
    %p205 = scmp.lt.s32.totalorder %s13, 3
    %p206 = pnand %p204, %p205
    %p207 = pneg %p206
    // Predicated region
    $region9: #{_lambda_.1} parent=5 // pred_check
      _
    $region10: #{_lambda_.1} parent=5 // pred_check_branch
      %209 = sbr.rel (%p206) target = $region12
    $region11: #{_lambda_.1} parent=5 // pred_region
      %s210 = ssub.s32 %s13, 1
      // Predicated region
      $region13: #{_lambda_.1} parent=11 // pred_check
        %p211 = pneg %p34
      $region14: #{_lambda_.1} parent=11 // pred_check_branch
        %213 = sbr.rel (%p211) target = $region16
      $region15: #{_lambda_.1} parent=11 // pred_region
        _
      $region16: #{_lambda_.1} parent=11 // pred_fallthru
        _
      // Predicated region
      $region17: #{_lambda_.1} parent=11 // pred_check
        %p214 = pneg %p55
      $region18: #{_lambda_.1} parent=11 // pred_check_branch
        %216 = sbr.rel (%p214) target = $region20
      $region19: #{_lambda_.1} parent=11 // pred_region
        _
      $region20: #{_lambda_.1} parent=11 // pred_fallthru
        _
      // Predicated region
      $region21: #{_lambda_.1} parent=11 // pred_check
        %p217 = pneg %p76
      $region22: #{_lambda_.1} parent=11 // pred_check_branch
        %219 = sbr.rel (%p217) target = $region24
      $region23: #{_lambda_.1} parent=11 // pred_region
        _
      $region24: #{_lambda_.1} parent=11 // pred_fallthru
        _
      // Predicated region
      $region25: #{_lambda_.1} parent=11 // pred_check
        %p220 = pneg %p149
      $region26: #{_lambda_.1} parent=11 // pred_check_branch
        %222 = sbr.rel (%p220) target = $region28
      $region27: #{_lambda_.1} parent=11 // pred_region
        _
      $region28: #{_lambda_.1} parent=11 // pred_fallthru
        _
      // Predicated region
      $region29: #{_lambda_.1} parent=11 // pred_check
        %p223 = pneg %p170
      $region30: #{_lambda_.1} parent=11 // pred_check_branch
        %225 = sbr.rel (%p223) target = $region32
      $region31: #{_lambda_.1} parent=11 // pred_region
        _
      $region32: #{_lambda_.1} parent=11 // pred_fallthru
        _
    $region12: #{_lambda_.1} parent=5 // pred_fallthru
      _
    %p226 = scmp.lt.s32.totalorder %s13, 2
    // Predicated region
    $region33: #{_lambda_.1} parent=5 // pred_check
      %p227 = pneg %p226
    $region34: #{_lambda_.1} parent=5 // pred_check_branch
      %229 = sbr.rel (%p227) target = $region36
    $region35: #{_lambda_.1} parent=5 // pred_region
      // Predicated region
      $region37: #{_lambda_.1} parent=35 // pred_check
        %p230 = pneg %p96
      $region38: #{_lambda_.1} parent=35 // pred_check_branch
        %232 = sbr.rel (%p230) target = $region40
      $region39: #{_lambda_.1} parent=35 // pred_region
        %p233 = scmp.lt.s32.totalorder %s13, 1
        %s234 = scalar_select %p233, %s13, 1
        %s235 = smul.addr %s234, 180
        %s236 = smul.addr %s235, 4
        %s237 = scalar_lea.vmem %s3, %s236
      $region40: #{_lambda_.1} parent=35 // pred_fallthru
        _
      // Predicated region
      $region41: #{_lambda_.1} parent=35 // pred_check
        %p238 = pneg %p122
      $region42: #{_lambda_.1} parent=35 // pred_check_branch
        %240 = sbr.rel (%p238) target = $region44
      $region43: #{_lambda_.1} parent=35 // pred_region
        %p241 = scmp.lt.s32.totalorder %s13, 1
        %s242 = scalar_select %p241, %s13, 1
        %s243 = smul.addr %s242, 12
        %s244 = smul.addr %s243, 4
        %s245 = scalar_lea.vmem %s4, %s244
      $region44: #{_lambda_.1} parent=35 // pred_fallthru
        _
    $region36: #{_lambda_.1} parent=5 // pred_fallthru
      _
    %p246 = scmp.le.s32.totalorder 1, %s13
    %p247 = scmp.lt.s32.totalorder %s13, 3
    %p248 = pnand %p246, %p247
    %p249 = pneg %p248
    // Predicated region
    $region45: #{_lambda_.1} parent=5 // pred_check
      _
    $region46: #{_lambda_.1} parent=5 // pred_check_branch
      %251 = sbr.rel (%p248) target = $region48
    $region47: #{_lambda_.1} parent=5 // pred_region
      %s252 = ssub.s32 %s13, 1
      %p253 = pneg %p34
      %p254 = pneg %p31
      %p255 = pneg %p55
      %p256 = pneg %p52
      %p257 = pneg %p76
      %p258 = pneg %p73
      %p259 = scmp.lt.s32.totalorder %s18, 1
      %s260 = scalar_select %p259, %s18, 1
      %s261 = smul.addr %s260, 180
      %s262 = smul.addr %s261, 4
      %s263 = scalar_lea.vmem %s3, %s262
      %p264 = pneg %p102
      %p265 = pneg %p99
      %p266 = scmp.lt.s32.totalorder %s18, 1
      %s267 = scalar_select %p266, %s18, 1
      %s268 = smul.addr %s267, 12
      %s269 = smul.addr %s268, 4
      %s270 = scalar_lea.vmem %s4, %s269
      %p271 = pneg %p128
      %p272 = pneg %p125
      %p273 = pneg %p149
      %p274 = pneg %p146
      %p275 = pneg %p170
      %p276 = pneg %p167
      %p277 = pneg %p196
      %p278 = pneg %p193
      %p279 = scmp.lt.s32.totalorder %s18, 1
      %s280 = scalar_select %p279, %s18, 1
      %s281 = smul.addr %s280, 32
      %s282 = smul.addr %s281, 8
      %s283 = scalar_lea.vmem %s7, %s282
      %p284 = scmp.lt.s32.totalorder %s18, 1
      %s285 = scalar_select %p284, %s18, 1
      %s286 = smul.addr %s285, 180
      %s287 = smul.addr %s286, 4
      %s288 = scalar_lea.vmem %s3, %s287
      %p289 = scmp.lt.s32.totalorder %s18, 1
      %s290 = scalar_select %p289, %s18, 1
      %s291 = smul.addr %s290, 12
      %s292 = smul.addr %s291, 4
      %s293 = scalar_lea.vmem %s4, %s292
      %p294 = scmp.lt.s32.totalorder %s18, 1
      %s295 = scalar_select %p294, %s18, 1
      %s296 = smul.addr %s295, 32
      %s297 = smul.addr %s296, 8
      %s298 = scalar_lea.vmem %s7, %s297
      %v300 = vld [vmem:[%s1] sm:$0xf]
      %v301 = vld [vmem:[%s1 + $0x4] sm:$0xf]
      %v302 = vld [vmem:[%s1 + $0x8] sm:$0xf]
      %v303 = vld [vmem:[%s1 + $0xc] sm:$0xf]
      %v304 = vld [vmem:[%s1 + $0x10] sm:$0xf]
      %v305 = vld [vmem:[%s1 + $0x14] sm:$0xf]
      %v306 = vld [vmem:[%s1 + $0x18] sm:$0xf]
      %v307 = vld [vmem:[%s1 + $0x1c] sm:$0xf]
      %v308 = vld [vmem:[%s2] sm:$0xf]
      %v309 = vld [vmem:[%s2 + $0x4] sm:$0xf]
      %v310 = vld [vmem:[%s2 + $0x8] sm:$0xf]
      %v311 = vld [vmem:[%s2 + $0xc] sm:$0xf]
      %v312 = vld [vmem:[%s2 + $0x10] sm:$0xf]
      %v313 = vld [vmem:[%s2 + $0x14] sm:$0xf]
      %v314 = vld [vmem:[%s2 + $0x18] sm:$0xf]
      %v315 = vld [vmem:[%s2 + $0x1c] sm:$0xf]
      %v316 = vld [vmem:[%s2 + $0x20] sm:$0xf]
      %v317 = vld [vmem:[%s2 + $0x24] sm:$0xf]
      %v318 = vld [vmem:[%s2 + $0x28] sm:$0xf]
      %v319 = vld [vmem:[%s2 + $0x2c] sm:$0xf]
      %v320 = vld [vmem:[%s2 + $0x30] sm:$0xf]
      %v321 = vld [vmem:[%s2 + $0x34] sm:$0xf]
      %v322 = vld [vmem:[%s2 + $0x38] sm:$0xf]
      %v323 = vld [vmem:[%s2 + $0x3c] sm:$0xf]
      %v324 = vld [vmem:[%s2 + $0x40] sm:$0xf]
      %v325 = vld [vmem:[%s2 + $0x44] sm:$0xf]
      %v326 = vld [vmem:[%s2 + $0x48] sm:$0xf]
      %v327 = vld [vmem:[%s2 + $0x4c] sm:$0xf]
      %v328 = vld [vmem:[%s2 + $0x50] sm:$0xf]
      %v329 = vld [vmem:[%s2 + $0x54] sm:$0xf]
      %v330 = vld [vmem:[%s2 + $0x58] sm:$0xf]
      %v331 = vld [vmem:[%s2 + $0x5c] sm:$0xf]
      %v332 = vld [vmem:[%s2 + $0x60] sm:$0xf]
      %v333 = vld [vmem:[%s2 + $0x64] sm:$0xf]
      %v334 = vld [vmem:[%s2 + $0x68] sm:$0xf]
      %v335 = vld [vmem:[%s2 + $0x6c] sm:$0xf]
      %v336 = vld [vmem:[%s2 + $0x70] sm:$0xf]
      %v337 = vld [vmem:[%s2 + $0x74] sm:$0xf]
      %v338 = vld [vmem:[%s2 + $0x78] sm:$0xf]
      %v339 = vld [vmem:[%s2 + $0x7c] sm:$0xf]
      %v340 = vlaneseq
      %v341 = vshrl.u32 %v340, 7
      %v342 = vadd.s32 %v341, 8
      %v343 = vand.u32 %v341, 3
      %v344 = vand.u32 %v342, 3
      %v345 = vshra.s32 %v341, 2
      %v346 = vshra.s32 %v342, 2
      %vm347 = vcmp.ge.s32.totalorder %v343, 1
      %vm348 = vcmp.ge.s32.totalorder %v344, 1
      %vm349 = vcmp.le.s32.totalorder %v343, 2
      %vm350 = vcmp.le.s32.totalorder %v344, 2
      %vm351 = vcmp.ge.s32.totalorder %v345, 1
      %vm352 = vcmp.ge.s32.totalorder %v346, 1
      %vm353 = vcmp.le.s32.totalorder %v345, 2
      %vm354 = vcmp.le.s32.totalorder %v346, 2
      %v355 = vadd.s32 %v341, 16
      %v356 = vadd.s32 %v341, 24
      %v357 = vadd.s32 %v341, 32
      %v358 = vadd.s32 %v341, 40
      %v359 = vadd.s32 %v341, 48
      %v360 = vadd.s32 %v341, 56
      %v361 = vand.u32 %v341, 7
      %v362 = vand.u32 %v342, 7
      %v363 = vand.u32 %v355, 7
      %v364 = vand.u32 %v356, 7
      %v365 = vand.u32 %v357, 7
      %v366 = vand.u32 %v358, 7
      %v367 = vand.u32 %v359, 7
      %v368 = vand.u32 %v360, 7
      %v369 = vshra.s32 %v341, 3
      %v370 = vshra.s32 %v342, 3
      %v371 = vshra.s32 %v355, 3
      %v372 = vshra.s32 %v356, 3
      %v373 = vshra.s32 %v357, 3
      %v374 = vshra.s32 %v358, 3
      %v375 = vshra.s32 %v359, 3
      %v376 = vshra.s32 %v360, 3
      %vm377 = vcmp.ge.s32.totalorder %v361, 1
      %vm378 = vcmp.ge.s32.totalorder %v362, 1
      %vm379 = vcmp.ge.s32.totalorder %v363, 1
      %vm380 = vcmp.ge.s32.totalorder %v364, 1
      %vm381 = vcmp.ge.s32.totalorder %v365, 1
      %vm382 = vcmp.ge.s32.totalorder %v366, 1
      %vm383 = vcmp.ge.s32.totalorder %v367, 1
      %vm384 = vcmp.ge.s32.totalorder %v368, 1
      %vm385 = vcmp.le.s32.totalorder %v361, 6
      %vm386 = vcmp.le.s32.totalorder %v362, 6
      %vm387 = vcmp.le.s32.totalorder %v363, 6
      %vm388 = vcmp.le.s32.totalorder %v364, 6
      %vm389 = vcmp.le.s32.totalorder %v365, 6
      %vm390 = vcmp.le.s32.totalorder %v366, 6
      %vm391 = vcmp.le.s32.totalorder %v367, 6
      %vm392 = vcmp.le.s32.totalorder %v368, 6
      %vm393 = vcmp.ge.s32.totalorder %v369, 1
      %vm394 = vcmp.ge.s32.totalorder %v370, 1
      %vm395 = vcmp.ge.s32.totalorder %v371, 1
      %vm396 = vcmp.ge.s32.totalorder %v372, 1
      %vm397 = vcmp.ge.s32.totalorder %v373, 1
      %vm398 = vcmp.ge.s32.totalorder %v374, 1
      %vm399 = vcmp.ge.s32.totalorder %v375, 1
      %vm400 = vcmp.ge.s32.totalorder %v376, 1
      %vm401 = vcmp.le.s32.totalorder %v369, 6
      %vm402 = vcmp.le.s32.totalorder %v370, 6
      %vm403 = vcmp.le.s32.totalorder %v371, 6
      %vm404 = vcmp.le.s32.totalorder %v372, 6
      %vm405 = vcmp.le.s32.totalorder %v373, 6
      %vm406 = vcmp.le.s32.totalorder %v374, 6
      %vm407 = vcmp.le.s32.totalorder %v375, 6
      %vm408 = vcmp.le.s32.totalorder %v376, 6
      %v409 = vadd.s32 %v341, 64
      %v410 = vadd.s32 %v341, 72
      %v411 = vadd.s32 %v341, 80
      %v412 = vadd.s32 %v341, 88
      %v413 = vadd.s32 %v341, 96
      %v414 = vadd.s32 %v341, 104
      %v415 = vadd.s32 %v341, 112
      %v416 = vadd.s32 %v341, 120
      %v417 = vadd.s32 %v341, 128
      %v418 = vadd.s32 %v341, 136
      %v419 = vadd.s32 %v341, 144
      %v420 = vadd.s32 %v341, 152
      %v421 = vadd.s32 %v341, 160
      %v422 = vadd.s32 %v341, 168
      %v423 = vadd.s32 %v341, 176
      %v424 = vadd.s32 %v341, 184
      %v425 = vadd.s32 %v341, 192
      %v426 = vadd.s32 %v341, 200
      %v427 = vadd.s32 %v341, 208
      %v428 = vadd.s32 %v341, 216
      %v429 = vadd.s32 %v341, 224
      %v430 = vadd.s32 %v341, 232
      %v431 = vadd.s32 %v341, 240
      %v432 = vadd.s32 %v341, 248
      %v433 = vand.u32 %v341, 15
      %v434 = vand.u32 %v342, 15
      %v435 = vand.u32 %v355, 15
      %v436 = vand.u32 %v356, 15
      %v437 = vand.u32 %v357, 15
      %v438 = vand.u32 %v358, 15
      %v439 = vand.u32 %v359, 15
      %v440 = vand.u32 %v360, 15
      %v441 = vand.u32 %v409, 15
      %v442 = vand.u32 %v410, 15
      %v443 = vand.u32 %v411, 15
      %v444 = vand.u32 %v412, 15
      %v445 = vand.u32 %v413, 15
      %v446 = vand.u32 %v414, 15
      %v447 = vand.u32 %v415, 15
      %v448 = vand.u32 %v416, 15
      %v449 = vand.u32 %v417, 15
      %v450 = vand.u32 %v418, 15
      %v451 = vand.u32 %v419, 15
      %v452 = vand.u32 %v420, 15
      %v453 = vand.u32 %v421, 15
      %v454 = vand.u32 %v422, 15
      %v455 = vand.u32 %v423, 15
      %v456 = vand.u32 %v424, 15
      %v457 = vand.u32 %v425, 15
      %v458 = vand.u32 %v426, 15
      %v459 = vand.u32 %v427, 15
      %v460 = vand.u32 %v428, 15
      %v461 = vand.u32 %v429, 15
      %v462 = vand.u32 %v430, 15
      %v463 = vand.u32 %v431, 15
      %v464 = vand.u32 %v432, 15
      %v465 = vshra.s32 %v341, 4
      %v466 = vshra.s32 %v342, 4
      %v467 = vshra.s32 %v355, 4
      %v468 = vshra.s32 %v356, 4
      %v469 = vshra.s32 %v357, 4
      %v470 = vshra.s32 %v358, 4
      %v471 = vshra.s32 %v359, 4
      %v472 = vshra.s32 %v360, 4
      %v473 = vshra.s32 %v409, 4
      %v474 = vshra.s32 %v410, 4
      %v475 = vshra.s32 %v411, 4
      %v476 = vshra.s32 %v412, 4
      %v477 = vshra.s32 %v413, 4
      %v478 = vshra.s32 %v414, 4
      %v479 = vshra.s32 %v415, 4
      %v480 = vshra.s32 %v416, 4
      %v481 = vshra.s32 %v417, 4
      %v482 = vshra.s32 %v418, 4
      %v483 = vshra.s32 %v419, 4
      %v484 = vshra.s32 %v420, 4
      %v485 = vshra.s32 %v421, 4
      %v486 = vshra.s32 %v422, 4
      %v487 = vshra.s32 %v423, 4
      %v488 = vshra.s32 %v424, 4
      %v489 = vshra.s32 %v425, 4
      %v490 = vshra.s32 %v426, 4
      %v491 = vshra.s32 %v427, 4
      %v492 = vshra.s32 %v428, 4
      %v493 = vshra.s32 %v429, 4
      %v494 = vshra.s32 %v430, 4
      %v495 = vshra.s32 %v431, 4
      %v496 = vshra.s32 %v432, 4
      %vm497 = vcmp.ge.s32.totalorder %v433, 1
      %vm498 = vcmp.ge.s32.totalorder %v434, 1
      %vm499 = vcmp.ge.s32.totalorder %v435, 1
      %vm500 = vcmp.ge.s32.totalorder %v436, 1
      %vm501 = vcmp.ge.s32.totalorder %v437, 1
      %vm502 = vcmp.ge.s32.totalorder %v438, 1
      %vm503 = vcmp.ge.s32.totalorder %v439, 1
      %vm504 = vcmp.ge.s32.totalorder %v440, 1
      %vm505 = vcmp.ge.s32.totalorder %v441, 1
      %vm506 = vcmp.ge.s32.totalorder %v442, 1
      %vm507 = vcmp.ge.s32.totalorder %v443, 1
      %vm508 = vcmp.ge.s32.totalorder %v444, 1
      %vm509 = vcmp.ge.s32.totalorder %v445, 1
      %vm510 = vcmp.ge.s32.totalorder %v446, 1
      %vm511 = vcmp.ge.s32.totalorder %v447, 1
      %vm512 = vcmp.ge.s32.totalorder %v448, 1
      %vm513 = vcmp.ge.s32.totalorder %v449, 1
      %vm514 = vcmp.ge.s32.totalorder %v450, 1
      %vm515 = vcmp.ge.s32.totalorder %v451, 1
      %vm516 = vcmp.ge.s32.totalorder %v452, 1
      %vm517 = vcmp.ge.s32.totalorder %v453, 1
      %vm518 = vcmp.ge.s32.totalorder %v454, 1
      %vm519 = vcmp.ge.s32.totalorder %v455, 1
      %vm520 = vcmp.ge.s32.totalorder %v456, 1
      %vm521 = vcmp.ge.s32.totalorder %v457, 1
      %vm522 = vcmp.ge.s32.totalorder %v458, 1
      %vm523 = vcmp.ge.s32.totalorder %v459, 1
      %vm524 = vcmp.ge.s32.totalorder %v460, 1
      %vm525 = vcmp.ge.s32.totalorder %v461, 1
      %vm526 = vcmp.ge.s32.totalorder %v462, 1
      %vm527 = vcmp.ge.s32.totalorder %v463, 1
      %vm528 = vcmp.ge.s32.totalorder %v464, 1
      %vm529 = vcmp.le.s32.totalorder %v433, 14
      %vm530 = vcmp.le.s32.totalorder %v434, 14
      %vm531 = vcmp.le.s32.totalorder %v435, 14
      %vm532 = vcmp.le.s32.totalorder %v436, 14
      %vm533 = vcmp.le.s32.totalorder %v437, 14
      %vm534 = vcmp.le.s32.totalorder %v438, 14
      %vm535 = vcmp.le.s32.totalorder %v439, 14
      %vm536 = vcmp.le.s32.totalorder %v440, 14
      %vm537 = vcmp.le.s32.totalorder %v441, 14
      %vm538 = vcmp.le.s32.totalorder %v442, 14
      %vm539 = vcmp.le.s32.totalorder %v443, 14
      %vm540 = vcmp.le.s32.totalorder %v444, 14
      %vm541 = vcmp.le.s32.totalorder %v445, 14
      %vm542 = vcmp.le.s32.totalorder %v446, 14
      %vm543 = vcmp.le.s32.totalorder %v447, 14
      %vm544 = vcmp.le.s32.totalorder %v448, 14
      %vm545 = vcmp.le.s32.totalorder %v449, 14
      %vm546 = vcmp.le.s32.totalorder %v450, 14
      %vm547 = vcmp.le.s32.totalorder %v451, 14
      %vm548 = vcmp.le.s32.totalorder %v452, 14
      %vm549 = vcmp.le.s32.totalorder %v453, 14
      %vm550 = vcmp.le.s32.totalorder %v454, 14
      %vm551 = vcmp.le.s32.totalorder %v455, 14
      %vm552 = vcmp.le.s32.totalorder %v456, 14
      %vm553 = vcmp.le.s32.totalorder %v457, 14
      %vm554 = vcmp.le.s32.totalorder %v458, 14
      %vm555 = vcmp.le.s32.totalorder %v459, 14
      %vm556 = vcmp.le.s32.totalorder %v460, 14
      %vm557 = vcmp.le.s32.totalorder %v461, 14
      %vm558 = vcmp.le.s32.totalorder %v462, 14
      %vm559 = vcmp.le.s32.totalorder %v463, 14
      %vm560 = vcmp.le.s32.totalorder %v464, 14
      %vm561 = vcmp.ge.s32.totalorder %v465, 1
      %vm562 = vcmp.ge.s32.totalorder %v466, 1
      %vm563 = vcmp.ge.s32.totalorder %v467, 1
      %vm564 = vcmp.ge.s32.totalorder %v468, 1
      %vm565 = vcmp.ge.s32.totalorder %v469, 1
      %vm566 = vcmp.ge.s32.totalorder %v470, 1
      %vm567 = vcmp.ge.s32.totalorder %v471, 1
      %vm568 = vcmp.ge.s32.totalorder %v472, 1
      %vm569 = vcmp.ge.s32.totalorder %v473, 1
      %vm570 = vcmp.ge.s32.totalorder %v474, 1
      %vm571 = vcmp.ge.s32.totalorder %v475, 1
      %vm572 = vcmp.ge.s32.totalorder %v476, 1
      %vm573 = vcmp.ge.s32.totalorder %v477, 1
      %vm574 = vcmp.ge.s32.totalorder %v478, 1
      %vm575 = vcmp.ge.s32.totalorder %v479, 1
      %vm576 = vcmp.ge.s32.totalorder %v480, 1
      %vm577 = vcmp.ge.s32.totalorder %v481, 1
      %vm578 = vcmp.ge.s32.totalorder %v482, 1
      %vm579 = vcmp.ge.s32.totalorder %v483, 1
      %vm580 = vcmp.ge.s32.totalorder %v484, 1
      %vm581 = vcmp.ge.s32.totalorder %v485, 1
      %vm582 = vcmp.ge.s32.totalorder %v486, 1
      %vm583 = vcmp.ge.s32.totalorder %v487, 1
      %vm584 = vcmp.ge.s32.totalorder %v488, 1
      %vm585 = vcmp.ge.s32.totalorder %v489, 1
      %vm586 = vcmp.ge.s32.totalorder %v490, 1
      %vm587 = vcmp.ge.s32.totalorder %v491, 1
      %vm588 = vcmp.ge.s32.totalorder %v492, 1
      %vm589 = vcmp.ge.s32.totalorder %v493, 1
      %vm590 = vcmp.ge.s32.totalorder %v494, 1
      %vm591 = vcmp.ge.s32.totalorder %v495, 1
      %vm592 = vcmp.ge.s32.totalorder %v496, 1
      %vm593 = vcmp.le.s32.totalorder %v465, 14
      %vm594 = vcmp.le.s32.totalorder %v466, 14
      %vm595 = vcmp.le.s32.totalorder %v467, 14
      %vm596 = vcmp.le.s32.totalorder %v468, 14
      %vm597 = vcmp.le.s32.totalorder %v469, 14
      %vm598 = vcmp.le.s32.totalorder %v470, 14
      %vm599 = vcmp.le.s32.totalorder %v471, 14
      %vm600 = vcmp.le.s32.totalorder %v472, 14
      %vm601 = vcmp.le.s32.totalorder %v473, 14
      %vm602 = vcmp.le.s32.totalorder %v474, 14
      %vm603 = vcmp.le.s32.totalorder %v475, 14
      %vm604 = vcmp.le.s32.totalorder %v476, 14
      %vm605 = vcmp.le.s32.totalorder %v477, 14
      %vm606 = vcmp.le.s32.totalorder %v478, 14
      %vm607 = vcmp.le.s32.totalorder %v479, 14
      %vm608 = vcmp.le.s32.totalorder %v480, 14
      %vm609 = vcmp.le.s32.totalorder %v481, 14
      %vm610 = vcmp.le.s32.totalorder %v482, 14
      %vm611 = vcmp.le.s32.totalorder %v483, 14
      %vm612 = vcmp.le.s32.totalorder %v484, 14
      %vm613 = vcmp.le.s32.totalorder %v485, 14
      %vm614 = vcmp.le.s32.totalorder %v486, 14
      %vm615 = vcmp.le.s32.totalorder %v487, 14
      %vm616 = vcmp.le.s32.totalorder %v488, 14
      %vm617 = vcmp.le.s32.totalorder %v489, 14
      %vm618 = vcmp.le.s32.totalorder %v490, 14
      %vm619 = vcmp.le.s32.totalorder %v491, 14
      %vm620 = vcmp.le.s32.totalorder %v492, 14
      %vm621 = vcmp.le.s32.totalorder %v493, 14
      %vm622 = vcmp.le.s32.totalorder %v494, 14
      %vm623 = vcmp.le.s32.totalorder %v495, 14
      %vm624 = vcmp.le.s32.totalorder %v496, 14
      %v625 = vld [vmem:[%s0] sm:$0xff]
      %v626 = vld [vmem:[%s0 + $0x8] sm:$0xff]
      %v627 = vrot.slane %v625, 7
      %v628 = vrot.slane %v626, 7
      %vm629 = vcmp.lt.s32.totalorder %v341, 1
      %v630 = vsel %vm629, %v627, %v628
      %v631 = vsel %vm629, %v628, %v627
      %v632 = vsel %vm347, %v631, 0.0
      %v633 = vsel %vm348, %v630, 0.0
      %v634 = vrot.slane %v625, 1
      %v635 = vrot.slane %v626, 1
      %vm636 = vcmp.lt.s32.totalorder %v341, 7
      %v637 = vsel %vm636, %v634, %v635
      %v638 = vsel %vm636, %v635, %v634
      %v639 = vsel %vm349, %v637, 0.0
      %v640 = vsel %vm350, %v638, 0.0
      %v641 = vrot.slane %v632, 4
      %v642 = vrot.slane %v633, 4
      %vm643 = vcmp.lt.s32.totalorder %v341, 4
      %v644 = vsel %vm643, %v641, %v642
      %v645 = vsel %vm643, %v642, %v641
      %v646 = vpack.c.bf16 %v644, %v645
      %v647 = vld [vmem:[%s288] sm:$0xf]
      %v648 = vld [vmem:[%s288 + $0x4] sm:$0xf]
      %v649 = vld [vmem:[%s288 + $0x8] sm:$0xf]
      %v650 = vld [vmem:[%s288 + $0xc] sm:$0xf]
      %v651 = vrot.slane %v625, 4
      %v652 = vrot.slane %v626, 4
      %v653 = vsel %vm643, %v651, %v652
      %v654 = vsel %vm643, %v652, %v651
      %v655 = vpack.c.bf16 %v653, %v654
      %s656 = scalar_lea.vmem %s288, 16
      %v657 = vld [vmem:[%s656] sm:$0xf]
      %v658 = vld [vmem:[%s656 + $0x4] sm:$0xf]
      %v659 = vld [vmem:[%s656 + $0x8] sm:$0xf]
      %v660 = vld [vmem:[%s656 + $0xc] sm:$0xf]
      %v665 = vunpack.c.l.b16 %v657
      %v666 = vunpack.c.l.b16 %v658
      %v667 = vunpack.c.l.b16 %v659
      %v668 = vunpack.c.l.b16 %v660
      %v669 = vpack.c.b16 %v666, %v665
      %v670 = vpack.c.b16 %v668, %v667
      %vm673 = vcmask 261120
      %v675 = vsel %vm673, %v655, 0
      %677 = vmatprep.subr.bf16.mxu0 0
      %678 = vmatpush1.bf16.msra.mxu0 %v669
      %679 = vmatprep.subr.bf16.mxu0 0
      %680 = vmatpush1.bf16.msra.mxu0 %v670
      %681 = vmatprep.subr.bf16.mxu0 0
      %682 = vmatpush1.bf16.msra.mxu0 0
      %683 = vmatprep.subr.bf16.mxu0 0
      %684 = vmatpush1.bf16.msra.mxu0 0
      %685 = vmatprep.subr.bf16.mxu0 0
      %686 = vmatpush1.bf16.msra.mxu0 0
      %687 = vmatprep.subr.bf16.mxu0 0
      %688 = vmatpush1.bf16.msra.mxu0 0
      %689 = vmatprep.subr.bf16.mxu0 0
      %690 = vmatpush1.bf16.msra.mxu0 0
      %691 = vmatprep.subr.bf16.mxu0 0
      %692 = vmatpush1.bf16.msra.mxu0 0
      %693 = vmatprep.subr.bf16.mxu0 0
      %694 = vmatpush1.bf16.msra.mxu0 0
      %695 = vmatprep.subr.bf16.mxu0 0
      %696 = vmatpush1.bf16.msra.mxu0 0
      %697 = vmatprep.subr.bf16.mxu0 0
      %698 = vmatpush1.bf16.msra.mxu0 0
      %699 = vmatprep.subr.bf16.mxu0 0
      %700 = vmatpush1.bf16.msra.mxu0 0
      %701 = vmatprep.subr.bf16.mxu0 0
      %702 = vmatpush1.bf16.msra.mxu0 0
      %703 = vmatprep.subr.bf16.mxu0 0
      %704 = vmatpush1.bf16.msra.mxu0 0
      %705 = vmatprep.subr.bf16.mxu0 0
      %706 = vmatpush1.bf16.msra.mxu0 0
      %707 = vmatprep.subr.bf16.mxu0 0
      %708 = vmatpush1.bf16.msra.mxu0 0
      %709 = vmatprep.mubr.bf16.mxu0 0
      %710 = vmatmul.mubr.bf16.gmra.mrb[0].mxu0 %v675
      %v711 = vpop.f32.mrb[0].mxu0
      %v712 = vadd.f32 0.0, %v711
      %v713 = vpop.f32.mrb[0].mxu0
      %v714 = vpop.f32.mrb[0].mxu0
      %v715 = vadd.f32 0.0, %v714
      %v716 = vpop.f32.mrb[0].mxu0
      %717 = vdwg.mxu0
      %v722 = vunpack.c.l.b16 %v647
      %v723 = vunpack.c.l.b16 %v648
      %v724 = vunpack.c.l.b16 %v649
      %v725 = vunpack.c.l.b16 %v650
      %v726 = vpack.c.b16 %v723, %v722
      %v727 = vpack.c.b16 %v725, %v724
      %v731 = vsel %vm673, %v646, 0
      %733 = vmatprep.subr.bf16.mxu0 0
      %734 = vmatpush1.bf16.msra.mxu0 %v726
      %735 = vmatprep.subr.bf16.mxu0 0
      %736 = vmatpush1.bf16.msra.mxu0 %v727
      %737 = vmatprep.subr.bf16.mxu0 0
      %738 = vmatpush1.bf16.msra.mxu0 0
      %739 = vmatprep.subr.bf16.mxu0 0
      %740 = vmatpush1.bf16.msra.mxu0 0
      %741 = vmatprep.subr.bf16.mxu0 0
      %742 = vmatpush1.bf16.msra.mxu0 0
      %743 = vmatprep.subr.bf16.mxu0 0
      %744 = vmatpush1.bf16.msra.mxu0 0
      %745 = vmatprep.subr.bf16.mxu0 0
      %746 = vmatpush1.bf16.msra.mxu0 0
      %747 = vmatprep.subr.bf16.mxu0 0
      %748 = vmatpush1.bf16.msra.mxu0 0
      %749 = vmatprep.subr.bf16.mxu0 0
      %750 = vmatpush1.bf16.msra.mxu0 0
      %751 = vmatprep.subr.bf16.mxu0 0
      %752 = vmatpush1.bf16.msra.mxu0 0
      %753 = vmatprep.subr.bf16.mxu0 0
      %754 = vmatpush1.bf16.msra.mxu0 0
      %755 = vmatprep.subr.bf16.mxu0 0
      %756 = vmatpush1.bf16.msra.mxu0 0
      %757 = vmatprep.subr.bf16.mxu0 0
      %758 = vmatpush1.bf16.msra.mxu0 0
      %759 = vmatprep.subr.bf16.mxu0 0
      %760 = vmatpush1.bf16.msra.mxu0 0
      %761 = vmatprep.subr.bf16.mxu0 0
      %762 = vmatpush1.bf16.msra.mxu0 0
      %763 = vmatprep.subr.bf16.mxu0 0
      %764 = vmatpush1.bf16.msra.mxu0 0
      %765 = vmatprep.mubr.bf16.mxu0 0
      %766 = vmatmul.mubr.bf16.gmra.mrb[0].mxu0 %v731
      %v767 = vpop.f32.mrb[0].mxu0
      %v768 = vadd.f32 %v712, %v767
      %v769 = vpop.f32.mrb[0].mxu0
      %v770 = vpop.f32.mrb[0].mxu0
      %v771 = vadd.f32 %v715, %v770
      %v772 = vpop.f32.mrb[0].mxu0
      %773 = vdwg.mxu0
      %v774 = vrot.slane %v639, 4
      %v775 = vrot.slane %v640, 4
      %v776 = vsel %vm643, %v774, %v775
      %v777 = vsel %vm643, %v775, %v774
      %v778 = vpack.c.bf16 %v776, %v777
      %s779 = scalar_lea.vmem %s288, 32
      %v780 = vld [vmem:[%s779] sm:$0xf]
      %v781 = vld [vmem:[%s779 + $0x4] sm:$0xf]
      %v782 = vld [vmem:[%s779 + $0x8] sm:$0xf]
      %v783 = vld [vmem:[%s779 + $0xc] sm:$0xf]
      %v788 = vunpack.c.l.b16 %v780
      %v789 = vunpack.c.l.b16 %v781
      %v790 = vunpack.c.l.b16 %v782
      %v791 = vunpack.c.l.b16 %v783
      %v792 = vpack.c.b16 %v789, %v788
      %v793 = vpack.c.b16 %v791, %v790
      %v797 = vsel %vm673, %v778, 0
      %799 = vmatprep.subr.bf16.mxu0 0
      %800 = vmatpush1.bf16.msra.mxu0 %v792
      %801 = vmatprep.subr.bf16.mxu0 0
      %802 = vmatpush1.bf16.msra.mxu0 %v793
      %803 = vmatprep.subr.bf16.mxu0 0
      %804 = vmatpush1.bf16.msra.mxu0 0
      %805 = vmatprep.subr.bf16.mxu0 0
      %806 = vmatpush1.bf16.msra.mxu0 0
      %807 = vmatprep.subr.bf16.mxu0 0
      %808 = vmatpush1.bf16.msra.mxu0 0
      %809 = vmatprep.subr.bf16.mxu0 0
      %810 = vmatpush1.bf16.msra.mxu0 0
      %811 = vmatprep.subr.bf16.mxu0 0
      %812 = vmatpush1.bf16.msra.mxu0 0
      %813 = vmatprep.subr.bf16.mxu0 0
      %814 = vmatpush1.bf16.msra.mxu0 0
      %815 = vmatprep.subr.bf16.mxu0 0
      %816 = vmatpush1.bf16.msra.mxu0 0
      %817 = vmatprep.subr.bf16.mxu0 0
      %818 = vmatpush1.bf16.msra.mxu0 0
      %819 = vmatprep.subr.bf16.mxu0 0
      %820 = vmatpush1.bf16.msra.mxu0 0
      %821 = vmatprep.subr.bf16.mxu0 0
      %822 = vmatpush1.bf16.msra.mxu0 0
      %823 = vmatprep.subr.bf16.mxu0 0
      %824 = vmatpush1.bf16.msra.mxu0 0
      %825 = vmatprep.subr.bf16.mxu0 0
      %826 = vmatpush1.bf16.msra.mxu0 0
      %827 = vmatprep.subr.bf16.mxu0 0
      %828 = vmatpush1.bf16.msra.mxu0 0
      %829 = vmatprep.subr.bf16.mxu0 0
      %830 = vmatpush1.bf16.msra.mxu0 0
      %831 = vmatprep.mubr.bf16.mxu0 0
      %832 = vmatmul.mubr.bf16.gmra.mrb[0].mxu0 %v797
      %v833 = vpop.f32.mrb[0].mxu0
      %v834 = vadd.f32 0.0, %v833
      %v835 = vpop.f32.mrb[0].mxu0
      %v836 = vpop.f32.mrb[0].mxu0
      %v837 = vadd.f32 0.0, %v836
      %v838 = vpop.f32.mrb[0].mxu0
      %839 = vdwg.mxu0
      %v840 = vadd.f32 %v768, %v834
      %v841 = vadd.f32 %v771, %v837
      %v842 = vsel %vm351, %v840, 0.0
      %v843 = vsel %vm352, %v841, 0.0
      %v844 = vpack.c.bf16 %v633, %v632
      %s845 = scalar_lea.vmem %s288, 48
      %v846 = vld [vmem:[%s845] sm:$0xf]
      %v847 = vld [vmem:[%s845 + $0x4] sm:$0xf]
      %v848 = vld [vmem:[%s845 + $0x8] sm:$0xf]
      %v849 = vld [vmem:[%s845 + $0xc] sm:$0xf]
      %v850 = vpack.c.bf16 %v626, %v625
      %s851 = scalar_lea.vmem %s288, 64
      %v852 = vld [vmem:[%s851] sm:$0xf]
      %v853 = vld [vmem:[%s851 + $0x4] sm:$0xf]
      %v854 = vld [vmem:[%s851 + $0x8] sm:$0xf]
      %v855 = vld [vmem:[%s851 + $0xc] sm:$0xf]
      %v860 = vunpack.c.l.b16 %v852
      %v861 = vunpack.c.l.b16 %v853
      %v862 = vunpack.c.l.b16 %v854
      %v863 = vunpack.c.l.b16 %v855
      %v864 = vpack.c.b16 %v861, %v860
      %v865 = vpack.c.b16 %v863, %v862
      %v869 = vsel %vm673, %v850, 0
      %871 = vmatprep.subr.bf16.mxu0 0
      %872 = vmatpush1.bf16.msra.mxu0 %v864
      %873 = vmatprep.subr.bf16.mxu0 0
      %874 = vmatpush1.bf16.msra.mxu0 %v865
      %875 = vmatprep.subr.bf16.mxu0 0
      %876 = vmatpush1.bf16.msra.mxu0 0
      %877 = vmatprep.subr.bf16.mxu0 0
      %878 = vmatpush1.bf16.msra.mxu0 0
      %879 = vmatprep.subr.bf16.mxu0 0
      %880 = vmatpush1.bf16.msra.mxu0 0
      %881 = vmatprep.subr.bf16.mxu0 0
      %882 = vmatpush1.bf16.msra.mxu0 0
      %883 = vmatprep.subr.bf16.mxu0 0
      %884 = vmatpush1.bf16.msra.mxu0 0
      %885 = vmatprep.subr.bf16.mxu0 0
      %886 = vmatpush1.bf16.msra.mxu0 0
      %887 = vmatprep.subr.bf16.mxu0 0
      %888 = vmatpush1.bf16.msra.mxu0 0
      %889 = vmatprep.subr.bf16.mxu0 0
      %890 = vmatpush1.bf16.msra.mxu0 0
      %891 = vmatprep.subr.bf16.mxu0 0
      %892 = vmatpush1.bf16.msra.mxu0 0
      %893 = vmatprep.subr.bf16.mxu0 0
      %894 = vmatpush1.bf16.msra.mxu0 0
      %895 = vmatprep.subr.bf16.mxu0 0
      %896 = vmatpush1.bf16.msra.mxu0 0
      %897 = vmatprep.subr.bf16.mxu0 0
      %898 = vmatpush1.bf16.msra.mxu0 0
      %899 = vmatprep.subr.bf16.mxu0 0
      %900 = vmatpush1.bf16.msra.mxu0 0
      %901 = vmatprep.subr.bf16.mxu0 0
      %902 = vmatpush1.bf16.msra.mxu0 0
      %903 = vmatprep.mubr.bf16.mxu0 0
      %904 = vmatmul.mubr.bf16.gmra.mrb[0].mxu0 %v869
      %v905 = vpop.f32.mrb[0].mxu0
      %v906 = vadd.f32 0.0, %v905
      %v907 = vpop.f32.mrb[0].mxu0
      %v908 = vpop.f32.mrb[0].mxu0
      %v909 = vadd.f32 0.0, %v908
      %v910 = vpop.f32.mrb[0].mxu0
      %911 = vdwg.mxu0
      %v916 = vunpack.c.l.b16 %v846
      %v917 = vunpack.c.l.b16 %v847
      %v918 = vunpack.c.l.b16 %v848
      %v919 = vunpack.c.l.b16 %v849
      %v920 = vpack.c.b16 %v917, %v916
      %v921 = vpack.c.b16 %v919, %v918
      %v925 = vsel %vm673, %v844, 0
      %927 = vmatprep.subr.bf16.mxu0 0
      %928 = vmatpush1.bf16.msra.mxu0 %v920
      %929 = vmatprep.subr.bf16.mxu0 0
      %930 = vmatpush1.bf16.msra.mxu0 %v921
      %931 = vmatprep.subr.bf16.mxu0 0
      %932 = vmatpush1.bf16.msra.mxu0 0
      %933 = vmatprep.subr.bf16.mxu0 0
      %934 = vmatpush1.bf16.msra.mxu0 0
      %935 = vmatprep.subr.bf16.mxu0 0
      %936 = vmatpush1.bf16.msra.mxu0 0
      %937 = vmatprep.subr.bf16.mxu0 0
      %938 = vmatpush1.bf16.msra.mxu0 0
      %939 = vmatprep.subr.bf16.mxu0 0
      %940 = vmatpush1.bf16.msra.mxu0 0
      %941 = vmatprep.subr.bf16.mxu0 0
      %942 = vmatpush1.bf16.msra.mxu0 0
      %943 = vmatprep.subr.bf16.mxu0 0
      %944 = vmatpush1.bf16.msra.mxu0 0
      %945 = vmatprep.subr.bf16.mxu0 0
      %946 = vmatpush1.bf16.msra.mxu0 0
      %947 = vmatprep.subr.bf16.mxu0 0
      %948 = vmatpush1.bf16.msra.mxu0 0
      %949 = vmatprep.subr.bf16.mxu0 0
      %950 = vmatpush1.bf16.msra.mxu0 0
      %951 = vmatprep.subr.bf16.mxu0 0
      %952 = vmatpush1.bf16.msra.mxu0 0
      %953 = vmatprep.subr.bf16.mxu0 0
      %954 = vmatpush1.bf16.msra.mxu0 0
      %955 = vmatprep.subr.bf16.mxu0 0
      %956 = vmatpush1.bf16.msra.mxu0 0
      %957 = vmatprep.subr.bf16.mxu0 0
      %958 = vmatpush1.bf16.msra.mxu0 0
      %959 = vmatprep.mubr.bf16.mxu0 0
      %960 = vmatmul.mubr.bf16.gmra.mrb[0].mxu0 %v925
      %v961 = vpop.f32.mrb[0].mxu0
      %v962 = vadd.f32 %v906, %v961
      %v963 = vpop.f32.mrb[0].mxu0
      %v964 = vpop.f32.mrb[0].mxu0
      %v965 = vadd.f32 %v909, %v964
      %v966 = vpop.f32.mrb[0].mxu0
      %967 = vdwg.mxu0
      %v968 = vpack.c.bf16 %v640, %v639
      %s969 = scalar_lea.vmem %s288, 80
      %v970 = vld [vmem:[%s969] sm:$0xf]
      %v971 = vld [vmem:[%s969 + $0x4] sm:$0xf]
      %v972 = vld [vmem:[%s969 + $0x8] sm:$0xf]
      %v973 = vld [vmem:[%s969 + $0xc] sm:$0xf]
      %v978 = vunpack.c.l.b16 %v970
      %v979 = vunpack.c.l.b16 %v971
      %v980 = vunpack.c.l.b16 %v972
      %v981 = vunpack.c.l.b16 %v973
      %v982 = vpack.c.b16 %v979, %v978
      %v983 = vpack.c.b16 %v981, %v980
      %v987 = vsel %vm673, %v968, 0
      %989 = vmatprep.subr.bf16.mxu0 0
      %990 = vmatpush1.bf16.msra.mxu0 %v982
      %991 = vmatprep.subr.bf16.mxu0 0
      %992 = vmatpush1.bf16.msra.mxu0 %v983
      %993 = vmatprep.subr.bf16.mxu0 0
      %994 = vmatpush1.bf16.msra.mxu0 0
      %995 = vmatprep.subr.bf16.mxu0 0
      %996 = vmatpush1.bf16.msra.mxu0 0
      %997 = vmatprep.subr.bf16.mxu0 0
      %998 = vmatpush1.bf16.msra.mxu0 0
      %999 = vmatprep.subr.bf16.mxu0 0
      %1000 = vmatpush1.bf16.msra.mxu0 0
      %1001 = vmatprep.subr.bf16.mxu0 0
      %1002 = vmatpush1.bf16.msra.mxu0 0
      %1003 = vmatprep.subr.bf16.mxu0 0
      %1004 = vmatpush1.bf16.msra.mxu0 0
      %1005 = vmatprep.subr.bf16.mxu0 0
      %1006 = vmatpush1.bf16.msra.mxu0 0
      %1007 = vmatprep.subr.bf16.mxu0 0
      %1008 = vmatpush1.bf16.msra.mxu0 0
      %1009 = vmatprep.subr.bf16.mxu0 0
      %1010 = vmatpush1.bf16.msra.mxu0 0
      %1011 = vmatprep.subr.bf16.mxu0 0
      %1012 = vmatpush1.bf16.msra.mxu0 0
      %1013 = vmatprep.subr.bf16.mxu0 0
      %1014 = vmatpush1.bf16.msra.mxu0 0
      %1015 = vmatprep.subr.bf16.mxu0 0
      %1016 = vmatpush1.bf16.msra.mxu0 0
      %1017 = vmatprep.subr.bf16.mxu0 0
      %1018 = vmatpush1.bf16.msra.mxu0 0
      %1019 = vmatprep.subr.bf16.mxu0 0
      %1020 = vmatpush1.bf16.msra.mxu0 0
      %1021 = vmatprep.mubr.bf16.mxu0 0
      %1022 = vmatmul.mubr.bf16.gmra.mrb[0].mxu0 %v987
      %v1023 = vpop.f32.mrb[0].mxu0
      %v1024 = vadd.f32 0.0, %v1023
      %v1025 = vpop.f32.mrb[0].mxu0
      %v1026 = vpop.f32.mrb[0].mxu0
      %v1027 = vadd.f32 0.0, %v1026
      %v1028 = vpop.f32.mrb[0].mxu0
      %1029 = vdwg.mxu0
      %v1030 = vadd.f32 %v962, %v1024
      %v1031 = vadd.f32 %v965, %v1027
      %v1032 = vadd.f32 %v842, %v1030
      %v1033 = vadd.f32 %v843, %v1031
      %v1034 = vpack.c.bf16 %v645, %v644
      %s1035 = scalar_lea.vmem %s288, 96
      %v1036 = vld [vmem:[%s1035] sm:$0xf]
      %v1037 = vld [vmem:[%s1035 + $0x4] sm:$0xf]
      %v1038 = vld [vmem:[%s1035 + $0x8] sm:$0xf]
      %v1039 = vld [vmem:[%s1035 + $0xc] sm:$0xf]
      %v1040 = vpack.c.bf16 %v654, %v653
      %s1041 = scalar_lea.vmem %s288, 112
      %v1042 = vld [vmem:[%s1041] sm:$0xf]
      %v1043 = vld [vmem:[%s1041 + $0x4] sm:$0xf]
      %v1044 = vld [vmem:[%s1041 + $0x8] sm:$0xf]
      %v1045 = vld [vmem:[%s1041 + $0xc] sm:$0xf]
      %v1050 = vunpack.c.l.b16 %v1042
      %v1051 = vunpack.c.l.b16 %v1043
      %v1052 = vunpack.c.l.b16 %v1044
      %v1053 = vunpack.c.l.b16 %v1045
      %v1054 = vpack.c.b16 %v1051, %v1050
      %v1055 = vpack.c.b16 %v1053, %v1052
      %v1059 = vsel %vm673, %v1040, 0
      %1061 = vmatprep.subr.bf16.mxu0 0
      %1062 = vmatpush1.bf16.msra.mxu0 %v1054
      %1063 = vmatprep.subr.bf16.mxu0 0
      %1064 = vmatpush1.bf16.msra.mxu0 %v1055
      %1065 = vmatprep.subr.bf16.mxu0 0
      %1066 = vmatpush1.bf16.msra.mxu0 0
      %1067 = vmatprep.subr.bf16.mxu0 0
      %1068 = vmatpush1.bf16.msra.mxu0 0
      %1069 = vmatprep.subr.bf16.mxu0 0
      %1070 = vmatpush1.bf16.msra.mxu0 0
      %1071 = vmatprep.subr.bf16.mxu0 0
      %1072 = vmatpush1.bf16.msra.mxu0 0
      %1073 = vmatprep.subr.bf16.mxu0 0
      %1074 = vmatpush1.bf16.msra.mxu0 0
      %1075 = vmatprep.subr.bf16.mxu0 0
      %1076 = vmatpush1.bf16.msra.mxu0 0
      %1077 = vmatprep.subr.bf16.mxu0 0
      %1078 = vmatpush1.bf16.msra.mxu0 0
      %1079 = vmatprep.subr.bf16.mxu0 0
      %1080 = vmatpush1.bf16.msra.mxu0 0
      %1081 = vmatprep.subr.bf16.mxu0 0
      %1082 = vmatpush1.bf16.msra.mxu0 0
      %1083 = vmatprep.subr.bf16.mxu0 0
      %1084 = vmatpush1.bf16.msra.mxu0 0
      %1085 = vmatprep.subr.bf16.mxu0 0
      %1086 = vmatpush1.bf16.msra.mxu0 0
      %1087 = vmatprep.subr.bf16.mxu0 0
      %1088 = vmatpush1.bf16.msra.mxu0 0
      %1089 = vmatprep.subr.bf16.mxu0 0
      %1090 = vmatpush1.bf16.msra.mxu0 0
      %1091 = vmatprep.subr.bf16.mxu0 0
      %1092 = vmatpush1.bf16.msra.mxu0 0
      %1093 = vmatprep.mubr.bf16.mxu0 0
      %1094 = vmatmul.mubr.bf16.gmra.mrb[0].mxu0 %v1059
      %v1095 = vpop.f32.mrb[0].mxu0
      %v1096 = vadd.f32 0.0, %v1095
      %v1097 = vpop.f32.mrb[0].mxu0
      %v1098 = vpop.f32.mrb[0].mxu0
      %v1099 = vadd.f32 0.0, %v1098
      %v1100 = vpop.f32.mrb[0].mxu0
      %1101 = vdwg.mxu0
      %v1106 = vunpack.c.l.b16 %v1036
      %v1107 = vunpack.c.l.b16 %v1037
      %v1108 = vunpack.c.l.b16 %v1038
      %v1109 = vunpack.c.l.b16 %v1039
      %v1110 = vpack.c.b16 %v1107, %v1106
      %v1111 = vpack.c.b16 %v1109, %v1108
      %v1115 = vsel %vm673, %v1034, 0
      %1117 = vmatprep.subr.bf16.mxu0 0
      %1118 = vmatpush1.bf16.msra.mxu0 %v1110
      %1119 = vmatprep.subr.bf16.mxu0 0
      %1120 = vmatpush1.bf16.msra.mxu0 %v1111
      %1121 = vmatprep.subr.bf16.mxu0 0
      %1122 = vmatpush1.bf16.msra.mxu0 0
      %1123 = vmatprep.subr.bf16.mxu0 0
      %1124 = vmatpush1.bf16.msra.mxu0 0
      %1125 = vmatprep.subr.bf16.mxu0 0
      %1126 = vmatpush1.bf16.msra.mxu0 0
      %1127 = vmatprep.subr.bf16.mxu0 0
      %1128 = vmatpush1.bf16.msra.mxu0 0
      %1129 = vmatprep.subr.bf16.mxu0 0
      %1130 = vmatpush1.bf16.msra.mxu0 0
      %1131 = vmatprep.subr.bf16.mxu0 0
      %1132 = vmatpush1.bf16.msra.mxu0 0
      %1133 = vmatprep.subr.bf16.mxu0 0
      %1134 = vmatpush1.bf16.msra.mxu0 0
      %1135 = vmatprep.subr.bf16.mxu0 0
      %1136 = vmatpush1.bf16.msra.mxu0 0
      %1137 = vmatprep.subr.bf16.mxu0 0
      %1138 = vmatpush1.bf16.msra.mxu0 0
      %1139 = vmatprep.subr.bf16.mxu0 0
      %1140 = vmatpush1.bf16.msra.mxu0 0
      %1141 = vmatprep.subr.bf16.mxu0 0
      %1142 = vmatpush1.bf16.msra.mxu0 0
      %1143 = vmatprep.subr.bf16.mxu0 0
      %1144 = vmatpush1.bf16.msra.mxu0 0
      %1145 = vmatprep.subr.bf16.mxu0 0
      %1146 = vmatpush1.bf16.msra.mxu0 0
      %1147 = vmatprep.subr.bf16.mxu0 0
      %1148 = vmatpush1.bf16.msra.mxu0 0
      %1149 = vmatprep.mubr.bf16.mxu0 0
      %1150 = vmatmul.mubr.bf16.gmra.mrb[0].mxu0 %v1115
      %v1151 = vpop.f32.mrb[0].mxu0
      %v1152 = vadd.f32 %v1096, %v1151
      %v1153 = vpop.f32.mrb[0].mxu0
      %v1154 = vpop.f32.mrb[0].mxu0
      %v1155 = vadd.f32 %v1099, %v1154
      %v1156 = vpop.f32.mrb[0].mxu0
      %1157 = vdwg.mxu0
      %v1158 = vpack.c.bf16 %v777, %v776
      %s1159 = scalar_lea.vmem %s288, 128
      %v1160 = vld [vmem:[%s1159] sm:$0xf]
      %v1161 = vld [vmem:[%s1159 + $0x4] sm:$0xf]
      %v1162 = vld [vmem:[%s1159 + $0x8] sm:$0xf]
      %v1163 = vld [vmem:[%s1159 + $0xc] sm:$0xf]
      %v1168 = vunpack.c.l.b16 %v1160
      %v1169 = vunpack.c.l.b16 %v1161
      %v1170 = vunpack.c.l.b16 %v1162
      %v1171 = vunpack.c.l.b16 %v1163
      %v1172 = vpack.c.b16 %v1169, %v1168
      %v1173 = vpack.c.b16 %v1171, %v1170
      %v1177 = vsel %vm673, %v1158, 0
      %1179 = vmatprep.subr.bf16.mxu0 0
      %1180 = vmatpush1.bf16.msra.mxu0 %v1172
      %1181 = vmatprep.subr.bf16.mxu0 0
      %1182 = vmatpush1.bf16.msra.mxu0 %v1173
      %1183 = vmatprep.subr.bf16.mxu0 0
      %1184 = vmatpush1.bf16.msra.mxu0 0
      %1185 = vmatprep.subr.bf16.mxu0 0
      %1186 = vmatpush1.bf16.msra.mxu0 0
      %1187 = vmatprep.subr.bf16.mxu0 0
      %1188 = vmatpush1.bf16.msra.mxu0 0
      %1189 = vmatprep.subr.bf16.mxu0 0
      %1190 = vmatpush1.bf16.msra.mxu0 0
      %1191 = vmatprep.subr.bf16.mxu0 0
      %1192 = vmatpush1.bf16.msra.mxu0 0
      %1193 = vmatprep.subr.bf16.mxu0 0
      %1194 = vmatpush1.bf16.msra.mxu0 0
      %1195 = vmatprep.subr.bf16.mxu0 0
      %1196 = vmatpush1.bf16.msra.mxu0 0
      %1197 = vmatprep.subr.bf16.mxu0 0
      %1198 = vmatpush1.bf16.msra.mxu0 0
      %1199 = vmatprep.subr.bf16.mxu0 0
      %1200 = vmatpush1.bf16.msra.mxu0 0
      %1201 = vmatprep.subr.bf16.mxu0 0
      %1202 = vmatpush1.bf16.msra.mxu0 0
      %1203 = vmatprep.subr.bf16.mxu0 0
      %1204 = vmatpush1.bf16.msra.mxu0 0
      %1205 = vmatprep.subr.bf16.mxu0 0
      %1206 = vmatpush1.bf16.msra.mxu0 0
      %1207 = vmatprep.subr.bf16.mxu0 0
      %1208 = vmatpush1.bf16.msra.mxu0 0
      %1209 = vmatprep.subr.bf16.mxu0 0
      %1210 = vmatpush1.bf16.msra.mxu0 0
      %1211 = vmatprep.mubr.bf16.mxu0 0
      %1212 = vmatmul.mubr.bf16.gmra.mrb[0].mxu0 %v1177
      %v1213 = vpop.f32.mrb[0].mxu0
      %v1214 = vadd.f32 0.0, %v1213
      %v1215 = vpop.f32.mrb[0].mxu0
      %v1216 = vpop.f32.mrb[0].mxu0
      %v1217 = vadd.f32 0.0, %v1216
      %v1218 = vpop.f32.mrb[0].mxu0
      %1219 = vdwg.mxu0
      %v1220 = vadd.f32 %v1152, %v1214
      %v1221 = vadd.f32 %v1155, %v1217
      %v1222 = vsel %vm353, %v1220, 0.0
      %v1223 = vsel %vm354, %v1221, 0.0
      %v1224 = vadd.f32 %v1032, %v1222
      %v1225 = vadd.f32 %v1033, %v1223
      %v1226 = vld [vmem:[%s5] sm:$0x1]
      %v1228 = vlaneseq
      %v1229 = vshrl.u32 %v1228, 7
      %v1230 = vsub.s32 0, %v1229
      %v1231 = vrot.slane %v1226, %v1230
      %v1233 = vadd.f32 %v1224, %v1231
      %v1234 = vadd.f32 %v1225, %v1231
      %v1235 = vmul.f32 %v1233, 0.2
      %v1236 = vmul.f32 %v1234, 0.2
      %v1237 = vmax.f32 %v1233, %v1235
      %v1238 = vmax.f32 %v1234, %v1236
      %v1239 = vmax.f32 %v1237, -362.03867
      %v1240 = vmax.f32 %v1238, -362.03867
      %v1241 = vmin.f32 %v1239, 362.03867
      %v1242 = vmin.f32 %v1240, 362.03867
      %v1243 = vpack.c.bf16 %v1242, %v1241
      %v1244 = vld [vmem:[%s293] sm:$0xf]
      %v1245 = vld [vmem:[%s293 + $0x4] sm:$0xf]
      %v1246 = vld [vmem:[%s293 + $0x8] sm:$0xf]
      %v1247 = vld [vmem:[%s293 + $0xc] sm:$0xf]
      %v1248 = vld [vmem:[%s6] sm:$0x1]
      %v1250 = vlaneseq
      %v1251 = vshrl.u32 %v1250, 7
      %v1252 = vsub.s32 0, %v1251
      %v1253 = vrot.slane %v1248, %v1252
      %v1259 = vunpack.c.l.b16 %v1244
      %v1260 = vunpack.c.l.b16 %v1245
      %v1261 = vunpack.c.l.b16 %v1246
      %v1262 = vunpack.c.l.b16 %v1247
      %v1263 = vpack.c.b16 %v1260, %v1259
      %v1264 = vpack.c.b16 %v1262, %v1261
      %v1268 = vsel %vm673, %v1243, 0
      %1270 = vmatprep.subr.bf16.mxu0 0
      %1271 = vmatpush1.bf16.msra.mxu0 %v1263
      %1272 = vmatprep.subr.bf16.mxu0 0
      %1273 = vmatpush1.bf16.msra.mxu0 %v1264
      %1274 = vmatprep.subr.bf16.mxu0 0
      %1275 = vmatpush1.bf16.msra.mxu0 0
      %1276 = vmatprep.subr.bf16.mxu0 0
      %1277 = vmatpush1.bf16.msra.mxu0 0
      %1278 = vmatprep.subr.bf16.mxu0 0
      %1279 = vmatpush1.bf16.msra.mxu0 0
      %1280 = vmatprep.subr.bf16.mxu0 0
      %1281 = vmatpush1.bf16.msra.mxu0 0
      %1282 = vmatprep.subr.bf16.mxu0 0
      %1283 = vmatpush1.bf16.msra.mxu0 0
      %1284 = vmatprep.subr.bf16.mxu0 0
      %1285 = vmatpush1.bf16.msra.mxu0 0
      %1286 = vmatprep.subr.bf16.mxu0 0
      %1287 = vmatpush1.bf16.msra.mxu0 0
      %1288 = vmatprep.subr.bf16.mxu0 0
      %1289 = vmatpush1.bf16.msra.mxu0 0
      %1290 = vmatprep.subr.bf16.mxu0 0
      %1291 = vmatpush1.bf16.msra.mxu0 0
      %1292 = vmatprep.subr.bf16.mxu0 0
      %1293 = vmatpush1.bf16.msra.mxu0 0
      %1294 = vmatprep.subr.bf16.mxu0 0
      %1295 = vmatpush1.bf16.msra.mxu0 0
      %1296 = vmatprep.subr.bf16.mxu0 0
      %1297 = vmatpush1.bf16.msra.mxu0 0
      %1298 = vmatprep.subr.bf16.mxu0 0
      %1299 = vmatpush1.bf16.msra.mxu0 0
      %1300 = vmatprep.subr.bf16.mxu0 0
      %1301 = vmatpush1.bf16.msra.mxu0 0
      %1302 = vmatprep.mubr.bf16.mxu0 0
      %1303 = vmatmul.mubr.bf16.gmra.mrb[0].mxu0 %v1268
      %v1304 = vpop.f32.mrb[0].mxu0
      %v1305 = vadd.f32 %v1253, %v1304
      %v1306 = vpop.f32.mrb[0].mxu0
      %v1307 = vpop.f32.mrb[0].mxu0
      %v1308 = vadd.f32 %v1253, %v1307
      %v1309 = vpop.f32.mrb[0].mxu0
      %1310 = vdwg.mxu0
      %v1311 = vmax.f32 %v1305, -256.0
      %v1312 = vmax.f32 %v1308, -256.0
      %v1313 = vmin.f32 %v1311, 256.0
      %v1314 = vmin.f32 %v1312, 256.0
      %v1323 = vunpack.c.l.b16 %v300
      %v1324 = vunpack.c.l.b16 %v301
      %v1325 = vunpack.c.l.b16 %v302
      %v1326 = vunpack.c.l.b16 %v303
      %v1327 = vunpack.c.l.b16 %v304
      %v1328 = vunpack.c.l.b16 %v305
      %v1329 = vunpack.c.l.b16 %v306
      %v1330 = vunpack.c.l.b16 %v307
      %v1331 = vpack.c.b16 %v1324, %v1323
      %v1332 = vpack.c.b16 %v1326, %v1325
      %v1333 = vpack.c.b16 %v1328, %v1327
      %v1334 = vpack.c.b16 %v1330, %v1329
      %vm1335 = vcmask 130048
      %v1337 = vsel %vm1335, %v1331, 0
      %v1340 = vsel %vm1335, %v1332, 0
      %v1343 = vsel %vm1335, %v1333, 0
      %v1346 = vsel %vm1335, %v1334, 0
      %1348 = vmatprep.subr.bf16.mxu0 0
      %1349 = vmatpush1.bf16.msra.mxu0 %v1243
      %1350 = vmatprep.subr.bf16.mxu0 0
      %1351 = vmatpush1.bf16.msra.mxu0 0
      %1352 = vmatprep.subr.bf16.mxu0 0
      %1353 = vmatpush1.bf16.msra.mxu0 0
      %1354 = vmatprep.subr.bf16.mxu0 0
      %1355 = vmatpush1.bf16.msra.mxu0 0
      %1356 = vmatprep.subr.bf16.mxu0 0
      %1357 = vmatpush1.bf16.msra.mxu0 0
      %1358 = vmatprep.subr.bf16.mxu0 0
      %1359 = vmatpush1.bf16.msra.mxu0 0
      %1360 = vmatprep.subr.bf16.mxu0 0
      %1361 = vmatpush1.bf16.msra.mxu0 0
      %1362 = vmatprep.subr.bf16.mxu0 0
      %1363 = vmatpush1.bf16.msra.mxu0 0
      %1364 = vmatprep.subr.bf16.mxu0 0
      %1365 = vmatpush1.bf16.msra.mxu0 0
      %1366 = vmatprep.subr.bf16.mxu0 0
      %1367 = vmatpush1.bf16.msra.mxu0 0
      %1368 = vmatprep.subr.bf16.mxu0 0
      %1369 = vmatpush1.bf16.msra.mxu0 0
      %1370 = vmatprep.subr.bf16.mxu0 0
      %1371 = vmatpush1.bf16.msra.mxu0 0
      %1372 = vmatprep.subr.bf16.mxu0 0
      %1373 = vmatpush1.bf16.msra.mxu0 0
      %1374 = vmatprep.subr.bf16.mxu0 0
      %1375 = vmatpush1.bf16.msra.mxu0 0
      %1376 = vmatprep.subr.bf16.mxu0 0
      %1377 = vmatpush1.bf16.msra.mxu0 0
      %1378 = vmatprep.subr.bf16.mxu0 0
      %1379 = vmatpush1.bf16.msra.mxu0 0
      %1380 = vmatprep.mubr.bf16.mxu0 0
      %1381 = vmatmul.mubr.bf16.gmra.mrb[0].mxu0 %v1337
      %v1382 = vpop.f32.mrb[0].mxu0
      %v1383 = vadd.f32 0.0, %v1382
      %v1384 = vpop.f32.mrb[0].mxu0
      %v1385 = vpop.f32.mrb[0].mxu0
      %v1386 = vadd.f32 0.0, %v1385
      %v1387 = vpop.f32.mrb[0].mxu0
      %1388 = vmatprep.mubr.bf16.mxu0 0
      %1389 = vmatmul.mubr.bf16.gmra.mrb[0].mxu0 %v1340
      %v1390 = vpop.f32.mrb[0].mxu0
      %v1391 = vadd.f32 0.0, %v1390
      %v1392 = vpop.f32.mrb[0].mxu0
      %v1393 = vpop.f32.mrb[0].mxu0
      %v1394 = vadd.f32 0.0, %v1393
      %v1395 = vpop.f32.mrb[0].mxu0
      %1396 = vmatprep.mubr.bf16.mxu0 0
      %1397 = vmatmul.mubr.bf16.gmra.mrb[0].mxu0 %v1343
      %v1398 = vpop.f32.mrb[0].mxu0
      %v1399 = vadd.f32 0.0, %v1398
      %v1400 = vpop.f32.mrb[0].mxu0
      %v1401 = vpop.f32.mrb[0].mxu0
      %v1402 = vadd.f32 0.0, %v1401
      %v1403 = vpop.f32.mrb[0].mxu0
      %1404 = vmatprep.mubr.bf16.mxu0 0
      %1405 = vmatmul.mubr.bf16.gmra.mrb[0].mxu0 %v1346
      %v1406 = vpop.f32.mrb[0].mxu0
      %v1407 = vadd.f32 0.0, %v1406
      %v1408 = vpop.f32.mrb[0].mxu0
      %v1409 = vpop.f32.mrb[0].mxu0
      %v1410 = vadd.f32 0.0, %v1409
      %v1411 = vpop.f32.mrb[0].mxu0
      %1412 = vdwg.mxu0
      %v1413 = vrot.slane %v1383, 7
      %v1414 = vrot.slane %v1386, 7
      %v1415 = vrot.slane %v1391, 7
      %v1416 = vrot.slane %v1394, 7
      %v1417 = vrot.slane %v1399, 7
      %v1418 = vrot.slane %v1402, 7
      %v1419 = vrot.slane %v1407, 7
      %v1420 = vrot.slane %v1410, 7
      %v1421 = vsel %vm629, %v1419, %v1420
      %v1422 = vsel %vm629, %v1418, %v1419
      %v1423 = vsel %vm629, %v1417, %v1418
      %v1424 = vsel %vm629, %v1416, %v1417
      %v1425 = vsel %vm629, %v1415, %v1416
      %v1426 = vsel %vm629, %v1414, %v1415
      %v1427 = vsel %vm629, %v1413, %v1414
      %v1428 = vsel %vm629, %v1420, %v1413
      %v1429 = vsel %vm377, %v1428, 0.0
      %v1430 = vsel %vm378, %v1427, 0.0
      %v1431 = vsel %vm379, %v1426, 0.0
      %v1432 = vsel %vm380, %v1425, 0.0
      %v1433 = vsel %vm381, %v1424, 0.0
      %v1434 = vsel %vm382, %v1423, 0.0
      %v1435 = vsel %vm383, %v1422, 0.0
      %v1436 = vsel %vm384, %v1421, 0.0
      %v1437 = vrot.slane %v1383, 1
      %v1438 = vrot.slane %v1386, 1
      %v1439 = vrot.slane %v1391, 1
      %v1440 = vrot.slane %v1394, 1
      %v1441 = vrot.slane %v1399, 1
      %v1442 = vrot.slane %v1402, 1
      %v1443 = vrot.slane %v1407, 1
      %v1444 = vrot.slane %v1410, 1
      %v1445 = vsel %vm636, %v1443, %v1444
      %v1446 = vsel %vm636, %v1442, %v1443
      %v1447 = vsel %vm636, %v1441, %v1442
      %v1448 = vsel %vm636, %v1440, %v1441
      %v1449 = vsel %vm636, %v1439, %v1440
      %v1450 = vsel %vm636, %v1438, %v1439
      %v1451 = vsel %vm636, %v1437, %v1438
      %v1452 = vsel %vm636, %v1444, %v1437
      %v1453 = vsel %vm385, %v1451, 0.0
      %v1454 = vsel %vm386, %v1450, 0.0
      %v1455 = vsel %vm387, %v1449, 0.0
      %v1456 = vsel %vm388, %v1448, 0.0
      %v1457 = vsel %vm389, %v1447, 0.0
      %v1458 = vsel %vm390, %v1446, 0.0
      %v1459 = vsel %vm391, %v1445, 0.0
      %v1460 = vsel %vm392, %v1452, 0.0
      %v1461 = vpack.c.bf16 %v1429, %v1436
      %v1462 = vpack.c.bf16 %v1431, %v1430
      %v1463 = vpack.c.bf16 %v1433, %v1432
      %v1464 = vpack.c.bf16 %v1435, %v1434
      %s1465 = scalar_lea.vmem %s288, 144
      %v1466 = vld [vmem:[%s1465] sm:$0xf]
      %v1467 = vld [vmem:[%s1465 + $0x4] sm:$0xf]
      %v1468 = vld [vmem:[%s1465 + $0x8] sm:$0xf]
      %v1469 = vld [vmem:[%s1465 + $0xc] sm:$0xf]
      %v1470 = vpack.c.bf16 %v1383, %v1410
      %v1471 = vpack.c.bf16 %v1391, %v1386
      %v1472 = vpack.c.bf16 %v1399, %v1394
      %v1473 = vpack.c.bf16 %v1407, %v1402
      %s1474 = scalar_lea.vmem %s288, 160
      %v1475 = vld [vmem:[%s1474] sm:$0xf]
      %v1476 = vld [vmem:[%s1474 + $0x4] sm:$0xf]
      %v1477 = vld [vmem:[%s1474 + $0x8] sm:$0xf]
      %v1478 = vld [vmem:[%s1474 + $0xc] sm:$0xf]
      %v1483 = vunpack.c.l.b16 %v1475
      %v1484 = vunpack.c.l.b16 %v1476
      %v1485 = vunpack.c.l.b16 %v1477
      %v1486 = vunpack.c.l.b16 %v1478
      %v1487 = vpack.c.b16 %v1484, %v1483
      %v1488 = vpack.c.b16 %v1486, %v1485
      %v1492 = vsel %vm673, %v1470, 0
      %v1495 = vsel %vm673, %v1471, 0
      %v1498 = vsel %vm673, %v1472, 0
      %v1501 = vsel %vm673, %v1473, 0
      %1503 = vmatprep.subr.bf16.mxu0 0
      %1504 = vmatpush1.bf16.msra.mxu0 %v1487
      %1505 = vmatprep.subr.bf16.mxu0 0
      %1506 = vmatpush1.bf16.msra.mxu0 %v1488
      %1507 = vmatprep.subr.bf16.mxu0 0
      %1508 = vmatpush1.bf16.msra.mxu0 0
      %1509 = vmatprep.subr.bf16.mxu0 0
      %1510 = vmatpush1.bf16.msra.mxu0 0
      %1511 = vmatprep.subr.bf16.mxu0 0
      %1512 = vmatpush1.bf16.msra.mxu0 0
      %1513 = vmatprep.subr.bf16.mxu0 0
      %1514 = vmatpush1.bf16.msra.mxu0 0
      %1515 = vmatprep.subr.bf16.mxu0 0
      %1516 = vmatpush1.bf16.msra.mxu0 0
      %1517 = vmatprep.subr.bf16.mxu0 0
      %1518 = vmatpush1.bf16.msra.mxu0 0
      %1519 = vmatprep.subr.bf16.mxu0 0
      %1520 = vmatpush1.bf16.msra.mxu0 0
      %1521 = vmatprep.subr.bf16.mxu0 0
      %1522 = vmatpush1.bf16.msra.mxu0 0
      %1523 = vmatprep.subr.bf16.mxu0 0
      %1524 = vmatpush1.bf16.msra.mxu0 0
      %1525 = vmatprep.subr.bf16.mxu0 0
      %1526 = vmatpush1.bf16.msra.mxu0 0
      %1527 = vmatprep.subr.bf16.mxu0 0
      %1528 = vmatpush1.bf16.msra.mxu0 0
      %1529 = vmatprep.subr.bf16.mxu0 0
      %1530 = vmatpush1.bf16.msra.mxu0 0
      %1531 = vmatprep.subr.bf16.mxu0 0
      %1532 = vmatpush1.bf16.msra.mxu0 0
      %1533 = vmatprep.subr.bf16.mxu0 0
      %1534 = vmatpush1.bf16.msra.mxu0 0
      %1535 = vmatprep.mubr.bf16.mxu0 0
      %1536 = vmatmul.mubr.bf16.gmra.mrb[0].mxu0 %v1492
      %v1537 = vpop.f32.mrb[0].mxu0
      %v1538 = vadd.f32 0.0, %v1537
      %v1539 = vpop.f32.mrb[0].mxu0
      %v1540 = vpop.f32.mrb[0].mxu0
      %v1541 = vadd.f32 0.0, %v1540
      %v1542 = vpop.f32.mrb[0].mxu0
      %1543 = vmatprep.mubr.bf16.mxu0 0
      %1544 = vmatmul.mubr.bf16.gmra.mrb[0].mxu0 %v1495
      %v1545 = vpop.f32.mrb[0].mxu0
      %v1546 = vadd.f32 0.0, %v1545
      %v1547 = vpop.f32.mrb[0].mxu0
      %v1548 = vpop.f32.mrb[0].mxu0
      %v1549 = vadd.f32 0.0, %v1548
      %v1550 = vpop.f32.mrb[0].mxu0
      %1551 = vmatprep.mubr.bf16.mxu0 0
      %1552 = vmatmul.mubr.bf16.gmra.mrb[0].mxu0 %v1498
      %v1553 = vpop.f32.mrb[0].mxu0
      %v1554 = vadd.f32 0.0, %v1553
      %v1555 = vpop.f32.mrb[0].mxu0
      %v1556 = vpop.f32.mrb[0].mxu0
      %v1557 = vadd.f32 0.0, %v1556
      %v1558 = vpop.f32.mrb[0].mxu0
      %1559 = vmatprep.mubr.bf16.mxu0 0
      %1560 = vmatmul.mubr.bf16.gmra.mrb[0].mxu0 %v1501
      %v1561 = vpop.f32.mrb[0].mxu0
      %v1562 = vadd.f32 0.0, %v1561
      %v1563 = vpop.f32.mrb[0].mxu0
      %v1564 = vpop.f32.mrb[0].mxu0
      %v1565 = vadd.f32 0.0, %v1564
      %v1566 = vpop.f32.mrb[0].mxu0
      %1567 = vdwg.mxu0
      %v1572 = vunpack.c.l.b16 %v1466
      %v1573 = vunpack.c.l.b16 %v1467
      %v1574 = vunpack.c.l.b16 %v1468
      %v1575 = vunpack.c.l.b16 %v1469
      %v1576 = vpack.c.b16 %v1573, %v1572
      %v1577 = vpack.c.b16 %v1575, %v1574
      %v1581 = vsel %vm673, %v1461, 0
      %v1584 = vsel %vm673, %v1462, 0
      %v1587 = vsel %vm673, %v1463, 0
      %v1590 = vsel %vm673, %v1464, 0
      %1592 = vmatprep.subr.bf16.mxu0 0
      %1593 = vmatpush1.bf16.msra.mxu0 %v1576
      %1594 = vmatprep.subr.bf16.mxu0 0
      %1595 = vmatpush1.bf16.msra.mxu0 %v1577
      %1596 = vmatprep.subr.bf16.mxu0 0
      %1597 = vmatpush1.bf16.msra.mxu0 0
      %1598 = vmatprep.subr.bf16.mxu0 0
      %1599 = vmatpush1.bf16.msra.mxu0 0
      %1600 = vmatprep.subr.bf16.mxu0 0
      %1601 = vmatpush1.bf16.msra.mxu0 0
      %1602 = vmatprep.subr.bf16.mxu0 0
      %1603 = vmatpush1.bf16.msra.mxu0 0
      %1604 = vmatprep.subr.bf16.mxu0 0
      %1605 = vmatpush1.bf16.msra.mxu0 0
      %1606 = vmatprep.subr.bf16.mxu0 0
      %1607 = vmatpush1.bf16.msra.mxu0 0
      %1608 = vmatprep.subr.bf16.mxu0 0
      %1609 = vmatpush1.bf16.msra.mxu0 0
      %1610 = vmatprep.subr.bf16.mxu0 0
      %1611 = vmatpush1.bf16.msra.mxu0 0
      %1612 = vmatprep.subr.bf16.mxu0 0
      %1613 = vmatpush1.bf16.msra.mxu0 0
      %1614 = vmatprep.subr.bf16.mxu0 0
      %1615 = vmatpush1.bf16.msra.mxu0 0
      %1616 = vmatprep.subr.bf16.mxu0 0
      %1617 = vmatpush1.bf16.msra.mxu0 0
      %1618 = vmatprep.subr.bf16.mxu0 0
      %1619 = vmatpush1.bf16.msra.mxu0 0
      %1620 = vmatprep.subr.bf16.mxu0 0
      %1621 = vmatpush1.bf16.msra.mxu0 0
      %1622 = vmatprep.subr.bf16.mxu0 0
      %1623 = vmatpush1.bf16.msra.mxu0 0
      %1624 = vmatprep.mubr.bf16.mxu0 0
      %1625 = vmatmul.mubr.bf16.gmra.mrb[0].mxu0 %v1581
      %v1626 = vpop.f32.mrb[0].mxu0
      %v1627 = vadd.f32 %v1538, %v1626
      %v1628 = vpop.f32.mrb[0].mxu0
      %v1629 = vpop.f32.mrb[0].mxu0
      %v1630 = vadd.f32 %v1541, %v1629
      %v1631 = vpop.f32.mrb[0].mxu0
      %1632 = vmatprep.mubr.bf16.mxu0 0
      %1633 = vmatmul.mubr.bf16.gmra.mrb[0].mxu0 %v1584
      %v1634 = vpop.f32.mrb[0].mxu0
      %v1635 = vadd.f32 %v1546, %v1634
      %v1636 = vpop.f32.mrb[0].mxu0
      %v1637 = vpop.f32.mrb[0].mxu0
      %v1638 = vadd.f32 %v1549, %v1637
      %v1639 = vpop.f32.mrb[0].mxu0
      %1640 = vmatprep.mubr.bf16.mxu0 0
      %1641 = vmatmul.mubr.bf16.gmra.mrb[0].mxu0 %v1587
      %v1642 = vpop.f32.mrb[0].mxu0
      %v1643 = vadd.f32 %v1554, %v1642
      %v1644 = vpop.f32.mrb[0].mxu0
      %v1645 = vpop.f32.mrb[0].mxu0
      %v1646 = vadd.f32 %v1557, %v1645
      %v1647 = vpop.f32.mrb[0].mxu0
      %1648 = vmatprep.mubr.bf16.mxu0 0
      %1649 = vmatmul.mubr.bf16.gmra.mrb[0].mxu0 %v1590
      %v1650 = vpop.f32.mrb[0].mxu0
      %v1651 = vadd.f32 %v1562, %v1650
      %v1652 = vpop.f32.mrb[0].mxu0
      %v1653 = vpop.f32.mrb[0].mxu0
      %v1654 = vadd.f32 %v1565, %v1653
      %v1655 = vpop.f32.mrb[0].mxu0
      %1656 = vdwg.mxu0
      %v1657 = vpack.c.bf16 %v1453, %v1460
      %v1658 = vpack.c.bf16 %v1455, %v1454
      %v1659 = vpack.c.bf16 %v1457, %v1456
      %v1660 = vpack.c.bf16 %v1459, %v1458
      %s1661 = scalar_lea.vmem %s288, 176
      %v1662 = vld [vmem:[%s1661] sm:$0xf]
      %v1663 = vld [vmem:[%s1661 + $0x4] sm:$0xf]
      %v1664 = vld [vmem:[%s1661 + $0x8] sm:$0xf]
      %v1665 = vld [vmem:[%s1661 + $0xc] sm:$0xf]
      %v1670 = vunpack.c.l.b16 %v1662
      %v1671 = vunpack.c.l.b16 %v1663
      %v1672 = vunpack.c.l.b16 %v1664
      %v1673 = vunpack.c.l.b16 %v1665
      %v1674 = vpack.c.b16 %v1671, %v1670
      %v1675 = vpack.c.b16 %v1673, %v1672
      %v1679 = vsel %vm673, %v1657, 0
      %v1682 = vsel %vm673, %v1658, 0
      %v1685 = vsel %vm673, %v1659, 0
      %v1688 = vsel %vm673, %v1660, 0
      %1690 = vmatprep.subr.bf16.mxu0 0
      %1691 = vmatpush1.bf16.msra.mxu0 %v1674
      %1692 = vmatprep.subr.bf16.mxu0 0
      %1693 = vmatpush1.bf16.msra.mxu0 %v1675
      %1694 = vmatprep.subr.bf16.mxu0 0
      %1695 = vmatpush1.bf16.msra.mxu0 0
      %1696 = vmatprep.subr.bf16.mxu0 0
      %1697 = vmatpush1.bf16.msra.mxu0 0
      %1698 = vmatprep.subr.bf16.mxu0 0
      %1699 = vmatpush1.bf16.msra.mxu0 0
      %1700 = vmatprep.subr.bf16.mxu0 0
      %1701 = vmatpush1.bf16.msra.mxu0 0
      %1702 = vmatprep.subr.bf16.mxu0 0
      %1703 = vmatpush1.bf16.msra.mxu0 0
      %1704 = vmatprep.subr.bf16.mxu0 0
      %1705 = vmatpush1.bf16.msra.mxu0 0
      %1706 = vmatprep.subr.bf16.mxu0 0
      %1707 = vmatpush1.bf16.msra.mxu0 0
      %1708 = vmatprep.subr.bf16.mxu0 0
      %1709 = vmatpush1.bf16.msra.mxu0 0
      %1710 = vmatprep.subr.bf16.mxu0 0
      %1711 = vmatpush1.bf16.msra.mxu0 0
      %1712 = vmatprep.subr.bf16.mxu0 0
      %1713 = vmatpush1.bf16.msra.mxu0 0
      %1714 = vmatprep.subr.bf16.mxu0 0
      %1715 = vmatpush1.bf16.msra.mxu0 0
      %1716 = vmatprep.subr.bf16.mxu0 0
      %1717 = vmatpush1.bf16.msra.mxu0 0
      %1718 = vmatprep.subr.bf16.mxu0 0
      %1719 = vmatpush1.bf16.msra.mxu0 0
      %1720 = vmatprep.subr.bf16.mxu0 0
      %1721 = vmatpush1.bf16.msra.mxu0 0
      %1722 = vmatprep.mubr.bf16.mxu0 0
      %1723 = vmatmul.mubr.bf16.gmra.mrb[0].mxu0 %v1679
      %v1724 = vpop.f32.mrb[0].mxu0
      %v1725 = vadd.f32 0.0, %v1724
      %v1726 = vpop.f32.mrb[0].mxu0
      %v1727 = vpop.f32.mrb[0].mxu0
      %v1728 = vadd.f32 0.0, %v1727
      %v1729 = vpop.f32.mrb[0].mxu0
      %1730 = vmatprep.mubr.bf16.mxu0 0
      %1731 = vmatmul.mubr.bf16.gmra.mrb[0].mxu0 %v1682
      %v1732 = vpop.f32.mrb[0].mxu0
      %v1733 = vadd.f32 0.0, %v1732
      %v1734 = vpop.f32.mrb[0].mxu0
      %v1735 = vpop.f32.mrb[0].mxu0
      %v1736 = vadd.f32 0.0, %v1735
      %v1737 = vpop.f32.mrb[0].mxu0
      %1738 = vmatprep.mubr.bf16.mxu0 0
      %1739 = vmatmul.mubr.bf16.gmra.mrb[0].mxu0 %v1685
      %v1740 = vpop.f32.mrb[0].mxu0
      %v1741 = vadd.f32 0.0, %v1740
      %v1742 = vpop.f32.mrb[0].mxu0
      %v1743 = vpop.f32.mrb[0].mxu0
      %v1744 = vadd.f32 0.0, %v1743
      %v1745 = vpop.f32.mrb[0].mxu0
      %1746 = vmatprep.mubr.bf16.mxu0 0
      %1747 = vmatmul.mubr.bf16.gmra.mrb[0].mxu0 %v1688
      %v1748 = vpop.f32.mrb[0].mxu0
      %v1749 = vadd.f32 0.0, %v1748
      %v1750 = vpop.f32.mrb[0].mxu0
      %v1751 = vpop.f32.mrb[0].mxu0
      %v1752 = vadd.f32 0.0, %v1751
      %v1753 = vpop.f32.mrb[0].mxu0
      %1754 = vdwg.mxu0
      %v1755 = vadd.f32 %v1627, %v1725
      %v1756 = vadd.f32 %v1630, %v1728
      %v1757 = vadd.f32 %v1635, %v1733
      %v1758 = vadd.f32 %v1638, %v1736
      %v1759 = vadd.f32 %v1643, %v1741
      %v1760 = vadd.f32 %v1646, %v1744
      %v1761 = vadd.f32 %v1651, %v1749
      %v1762 = vadd.f32 %v1654, %v1752
      %v1763 = vsel %vm393, %v1755, 0.0
      %v1764 = vsel %vm394, %v1756, 0.0
      %v1765 = vsel %vm395, %v1757, 0.0
      %v1766 = vsel %vm396, %v1758, 0.0
      %v1767 = vsel %vm397, %v1759, 0.0
      %v1768 = vsel %vm398, %v1760, 0.0
      %v1769 = vsel %vm399, %v1761, 0.0
      %v1770 = vsel %vm400, %v1762, 0.0
      %v1771 = vpack.c.bf16 %v1430, %v1429
      %v1772 = vpack.c.bf16 %v1432, %v1431
      %v1773 = vpack.c.bf16 %v1434, %v1433
      %v1774 = vpack.c.bf16 %v1436, %v1435
      %s1775 = scalar_lea.vmem %s288, 192
      %v1776 = vld [vmem:[%s1775] sm:$0xf]
      %v1777 = vld [vmem:[%s1775 + $0x4] sm:$0xf]
      %v1778 = vld [vmem:[%s1775 + $0x8] sm:$0xf]
      %v1779 = vld [vmem:[%s1775 + $0xc] sm:$0xf]
      %v1780 = vpack.c.bf16 %v1386, %v1383
      %v1781 = vpack.c.bf16 %v1394, %v1391
      %v1782 = vpack.c.bf16 %v1402, %v1399
      %v1783 = vpack.c.bf16 %v1410, %v1407
      %s1784 = scalar_lea.vmem %s288, 208
      %v1785 = vld [vmem:[%s1784] sm:$0xf]
      %v1786 = vld [vmem:[%s1784 + $0x4] sm:$0xf]
      %v1787 = vld [vmem:[%s1784 + $0x8] sm:$0xf]
      %v1788 = vld [vmem:[%s1784 + $0xc] sm:$0xf]
      %v1793 = vunpack.c.l.b16 %v1785
      %v1794 = vunpack.c.l.b16 %v1786
      %v1795 = vunpack.c.l.b16 %v1787
      %v1796 = vunpack.c.l.b16 %v1788
      %v1797 = vpack.c.b16 %v1794, %v1793
      %v1798 = vpack.c.b16 %v1796, %v1795
      %v1802 = vsel %vm673, %v1780, 0
      %v1805 = vsel %vm673, %v1781, 0
      %v1808 = vsel %vm673, %v1782, 0
      %v1811 = vsel %vm673, %v1783, 0
      %1813 = vmatprep.subr.bf16.mxu0 0
      %1814 = vmatpush1.bf16.msra.mxu0 %v1797
      %1815 = vmatprep.subr.bf16.mxu0 0
      %1816 = vmatpush1.bf16.msra.mxu0 %v1798
      %1817 = vmatprep.subr.bf16.mxu0 0
      %1818 = vmatpush1.bf16.msra.mxu0 0
      %1819 = vmatprep.subr.bf16.mxu0 0
      %1820 = vmatpush1.bf16.msra.mxu0 0
      %1821 = vmatprep.subr.bf16.mxu0 0
      %1822 = vmatpush1.bf16.msra.mxu0 0
      %1823 = vmatprep.subr.bf16.mxu0 0
      %1824 = vmatpush1.bf16.msra.mxu0 0
      %1825 = vmatprep.subr.bf16.mxu0 0
      %1826 = vmatpush1.bf16.msra.mxu0 0
      %1827 = vmatprep.subr.bf16.mxu0 0
      %1828 = vmatpush1.bf16.msra.mxu0 0
      %1829 = vmatprep.subr.bf16.mxu0 0
      %1830 = vmatpush1.bf16.msra.mxu0 0
      %1831 = vmatprep.subr.bf16.mxu0 0
      %1832 = vmatpush1.bf16.msra.mxu0 0
      %1833 = vmatprep.subr.bf16.mxu0 0
      %1834 = vmatpush1.bf16.msra.mxu0 0
      %1835 = vmatprep.subr.bf16.mxu0 0
      %1836 = vmatpush1.bf16.msra.mxu0 0
      %1837 = vmatprep.subr.bf16.mxu0 0
      %1838 = vmatpush1.bf16.msra.mxu0 0
      %1839 = vmatprep.subr.bf16.mxu0 0
      %1840 = vmatpush1.bf16.msra.mxu0 0
      %1841 = vmatprep.subr.bf16.mxu0 0
      %1842 = vmatpush1.bf16.msra.mxu0 0
      %1843 = vmatprep.subr.bf16.mxu0 0
      %1844 = vmatpush1.bf16.msra.mxu0 0
      %1845 = vmatprep.mubr.bf16.mxu0 0
      %1846 = vmatmul.mubr.bf16.gmra.mrb[0].mxu0 %v1802
      %v1847 = vpop.f32.mrb[0].mxu0
      %v1848 = vadd.f32 0.0, %v1847
      %v1849 = vpop.f32.mrb[0].mxu0
      %v1850 = vpop.f32.mrb[0].mxu0
      %v1851 = vadd.f32 0.0, %v1850
      %v1852 = vpop.f32.mrb[0].mxu0
      %1853 = vmatprep.mubr.bf16.mxu0 0
      %1854 = vmatmul.mubr.bf16.gmra.mrb[0].mxu0 %v1805
      %v1855 = vpop.f32.mrb[0].mxu0
      %v1856 = vadd.f32 0.0, %v1855
      %v1857 = vpop.f32.mrb[0].mxu0
      %v1858 = vpop.f32.mrb[0].mxu0
      %v1859 = vadd.f32 0.0, %v1858
      %v1860 = vpop.f32.mrb[0].mxu0
      %1861 = vmatprep.mubr.bf16.mxu0 0
      %1862 = vmatmul.mubr.bf16.gmra.mrb[0].mxu0 %v1808
      %v1863 = vpop.f32.mrb[0].mxu0
      %v1864 = vadd.f32 0.0, %v1863
      %v1865 = vpop.f32.mrb[0].mxu0
      %v1866 = vpop.f32.mrb[0].mxu0
      %v1867 = vadd.f32 0.0, %v1866
      %v1868 = vpop.f32.mrb[0].mxu0
      %1869 = vmatprep.mubr.bf16.mxu0 0
      %1870 = vmatmul.mubr.bf16.gmra.mrb[0].mxu0 %v1811
      %v1871 = vpop.f32.mrb[0].mxu0
      %v1872 = vadd.f32 0.0, %v1871
      %v1873 = vpop.f32.mrb[0].mxu0
      %v1874 = vpop.f32.mrb[0].mxu0
      %v1875 = vadd.f32 0.0, %v1874
      %v1876 = vpop.f32.mrb[0].mxu0
      %1877 = vdwg.mxu0
      %v1882 = vunpack.c.l.b16 %v1776
      %v1883 = vunpack.c.l.b16 %v1777
      %v1884 = vunpack.c.l.b16 %v1778
      %v1885 = vunpack.c.l.b16 %v1779
      %v1886 = vpack.c.b16 %v1883, %v1882
      %v1887 = vpack.c.b16 %v1885, %v1884
      %v1891 = vsel %vm673, %v1771, 0
      %v1894 = vsel %vm673, %v1772, 0
      %v1897 = vsel %vm673, %v1773, 0
      %v1900 = vsel %vm673, %v1774, 0
      %1902 = vmatprep.subr.bf16.mxu0 0
      %1903 = vmatpush1.bf16.msra.mxu0 %v1886
      %1904 = vmatprep.subr.bf16.mxu0 0
      %1905 = vmatpush1.bf16.msra.mxu0 %v1887
      %1906 = vmatprep.subr.bf16.mxu0 0
      %1907 = vmatpush1.bf16.msra.mxu0 0
      %1908 = vmatprep.subr.bf16.mxu0 0
      %1909 = vmatpush1.bf16.msra.mxu0 0
      %1910 = vmatprep.subr.bf16.mxu0 0
      %1911 = vmatpush1.bf16.msra.mxu0 0
      %1912 = vmatprep.subr.bf16.mxu0 0
      %1913 = vmatpush1.bf16.msra.mxu0 0
      %1914 = vmatprep.subr.bf16.mxu0 0
      %1915 = vmatpush1.bf16.msra.mxu0 0
      %1916 = vmatprep.subr.bf16.mxu0 0
      %1917 = vmatpush1.bf16.msra.mxu0 0
      %1918 = vmatprep.subr.bf16.mxu0 0
      %1919 = vmatpush1.bf16.msra.mxu0 0
      %1920 = vmatprep.subr.bf16.mxu0 0
      %1921 = vmatpush1.bf16.msra.mxu0 0
      %1922 = vmatprep.subr.bf16.mxu0 0
      %1923 = vmatpush1.bf16.msra.mxu0 0
      %1924 = vmatprep.subr.bf16.mxu0 0
      %1925 = vmatpush1.bf16.msra.mxu0 0
      %1926 = vmatprep.subr.bf16.mxu0 0
      %1927 = vmatpush1.bf16.msra.mxu0 0
      %1928 = vmatprep.subr.bf16.mxu0 0
      %1929 = vmatpush1.bf16.msra.mxu0 0
      %1930 = vmatprep.subr.bf16.mxu0 0
      %1931 = vmatpush1.bf16.msra.mxu0 0
      %1932 = vmatprep.subr.bf16.mxu0 0
      %1933 = vmatpush1.bf16.msra.mxu0 0
      %1934 = vmatprep.mubr.bf16.mxu0 0
      %1935 = vmatmul.mubr.bf16.gmra.mrb[0].mxu0 %v1891
      %v1936 = vpop.f32.mrb[0].mxu0
      %v1937 = vadd.f32 %v1848, %v1936
      %v1938 = vpop.f32.mrb[0].mxu0
      %v1939 = vpop.f32.mrb[0].mxu0
      %v1940 = vadd.f32 %v1851, %v1939
      %v1941 = vpop.f32.mrb[0].mxu0
      %1942 = vmatprep.mubr.bf16.mxu0 0
      %1943 = vmatmul.mubr.bf16.gmra.mrb[0].mxu0 %v1894
      %v1944 = vpop.f32.mrb[0].mxu0
      %v1945 = vadd.f32 %v1856, %v1944
      %v1946 = vpop.f32.mrb[0].mxu0
      %v1947 = vpop.f32.mrb[0].mxu0
      %v1948 = vadd.f32 %v1859, %v1947
      %v1949 = vpop.f32.mrb[0].mxu0
      %1950 = vmatprep.mubr.bf16.mxu0 0
      %1951 = vmatmul.mubr.bf16.gmra.mrb[0].mxu0 %v1897
      %v1952 = vpop.f32.mrb[0].mxu0
      %v1953 = vadd.f32 %v1864, %v1952
      %v1954 = vpop.f32.mrb[0].mxu0
      %v1955 = vpop.f32.mrb[0].mxu0
      %v1956 = vadd.f32 %v1867, %v1955
      %v1957 = vpop.f32.mrb[0].mxu0
      %1958 = vmatprep.mubr.bf16.mxu0 0
      %1959 = vmatmul.mubr.bf16.gmra.mrb[0].mxu0 %v1900
      %v1960 = vpop.f32.mrb[0].mxu0
      %v1961 = vadd.f32 %v1872, %v1960
      %v1962 = vpop.f32.mrb[0].mxu0
      %v1963 = vpop.f32.mrb[0].mxu0
      %v1964 = vadd.f32 %v1875, %v1963
      %v1965 = vpop.f32.mrb[0].mxu0
      %1966 = vdwg.mxu0
      %v1967 = vpack.c.bf16 %v1454, %v1453
      %v1968 = vpack.c.bf16 %v1456, %v1455
      %v1969 = vpack.c.bf16 %v1458, %v1457
      %v1970 = vpack.c.bf16 %v1460, %v1459
      %s1971 = scalar_lea.vmem %s288, 224
      %v1972 = vld [vmem:[%s1971] sm:$0xf]
      %v1973 = vld [vmem:[%s1971 + $0x4] sm:$0xf]
      %v1974 = vld [vmem:[%s1971 + $0x8] sm:$0xf]
      %v1975 = vld [vmem:[%s1971 + $0xc] sm:$0xf]
      %v1980 = vunpack.c.l.b16 %v1972
      %v1981 = vunpack.c.l.b16 %v1973
      %v1982 = vunpack.c.l.b16 %v1974
      %v1983 = vunpack.c.l.b16 %v1975
      %v1984 = vpack.c.b16 %v1981, %v1980
      %v1985 = vpack.c.b16 %v1983, %v1982
      %v1989 = vsel %vm673, %v1967, 0
      %v1992 = vsel %vm673, %v1968, 0
      %v1995 = vsel %vm673, %v1969, 0
      %v1998 = vsel %vm673, %v1970, 0
      %2000 = vmatprep.subr.bf16.mxu0 0
      %2001 = vmatpush1.bf16.msra.mxu0 %v1984
      %2002 = vmatprep.subr.bf16.mxu0 0
      %2003 = vmatpush1.bf16.msra.mxu0 %v1985
      %2004 = vmatprep.subr.bf16.mxu0 0
      %2005 = vmatpush1.bf16.msra.mxu0 0
      %2006 = vmatprep.subr.bf16.mxu0 0
      %2007 = vmatpush1.bf16.msra.mxu0 0
      %2008 = vmatprep.subr.bf16.mxu0 0
      %2009 = vmatpush1.bf16.msra.mxu0 0
      %2010 = vmatprep.subr.bf16.mxu0 0
      %2011 = vmatpush1.bf16.msra.mxu0 0
      %2012 = vmatprep.subr.bf16.mxu0 0
      %2013 = vmatpush1.bf16.msra.mxu0 0
      %2014 = vmatprep.subr.bf16.mxu0 0
      %2015 = vmatpush1.bf16.msra.mxu0 0
      %2016 = vmatprep.subr.bf16.mxu0 0
      %2017 = vmatpush1.bf16.msra.mxu0 0
      %2018 = vmatprep.subr.bf16.mxu0 0
      %2019 = vmatpush1.bf16.msra.mxu0 0
      %2020 = vmatprep.subr.bf16.mxu0 0
      %2021 = vmatpush1.bf16.msra.mxu0 0
      %2022 = vmatprep.subr.bf16.mxu0 0
      %2023 = vmatpush1.bf16.msra.mxu0 0
      %2024 = vmatprep.subr.bf16.mxu0 0
      %2025 = vmatpush1.bf16.msra.mxu0 0
      %2026 = vmatprep.subr.bf16.mxu0 0
      %2027 = vmatpush1.bf16.msra.mxu0 0
      %2028 = vmatprep.subr.bf16.mxu0 0
      %2029 = vmatpush1.bf16.msra.mxu0 0
      %2030 = vmatprep.subr.bf16.mxu0 0
      %2031 = vmatpush1.bf16.msra.mxu0 0
      %2032 = vmatprep.mubr.bf16.mxu0 0
      %2033 = vmatmul.mubr.bf16.gmra.mrb[0].mxu0 %v1989
      %v2034 = vpop.f32.mrb[0].mxu0
      %v2035 = vadd.f32 0.0, %v2034
      %v2036 = vpop.f32.mrb[0].mxu0
      %v2037 = vpop.f32.mrb[0].mxu0
      %v2038 = vadd.f32 0.0, %v2037
      %v2039 = vpop.f32.mrb[0].mxu0
      %2040 = vmatprep.mubr.bf16.mxu0 0
      %2041 = vmatmul.mubr.bf16.gmra.mrb[0].mxu0 %v1992
      %v2042 = vpop.f32.mrb[0].mxu0
      %v2043 = vadd.f32 0.0, %v2042
      %v2044 = vpop.f32.mrb[0].mxu0
      %v2045 = vpop.f32.mrb[0].mxu0
      %v2046 = vadd.f32 0.0, %v2045
      %v2047 = vpop.f32.mrb[0].mxu0
      %2048 = vmatprep.mubr.bf16.mxu0 0
      %2049 = vmatmul.mubr.bf16.gmra.mrb[0].mxu0 %v1995
      %v2050 = vpop.f32.mrb[0].mxu0
      %v2051 = vadd.f32 0.0, %v2050
      %v2052 = vpop.f32.mrb[0].mxu0
      %v2053 = vpop.f32.mrb[0].mxu0
      %v2054 = vadd.f32 0.0, %v2053
      %v2055 = vpop.f32.mrb[0].mxu0
      %2056 = vmatprep.mubr.bf16.mxu0 0
      %2057 = vmatmul.mubr.bf16.gmra.mrb[0].mxu0 %v1998
      %v2058 = vpop.f32.mrb[0].mxu0
      %v2059 = vadd.f32 0.0, %v2058
      %v2060 = vpop.f32.mrb[0].mxu0
      %v2061 = vpop.f32.mrb[0].mxu0
      %v2062 = vadd.f32 0.0, %v2061
      %v2063 = vpop.f32.mrb[0].mxu0
      %2064 = vdwg.mxu0
      %v2065 = vadd.f32 %v1937, %v2035
      %v2066 = vadd.f32 %v1940, %v2038
      %v2067 = vadd.f32 %v1945, %v2043
      %v2068 = vadd.f32 %v1948, %v2046
      %v2069 = vadd.f32 %v1953, %v2051
      %v2070 = vadd.f32 %v1956, %v2054
      %v2071 = vadd.f32 %v1961, %v2059
      %v2072 = vadd.f32 %v1964, %v2062
      %v2073 = vadd.f32 %v1763, %v2065
      %v2074 = vadd.f32 %v1764, %v2066
      %v2075 = vadd.f32 %v1765, %v2067
      %v2076 = vadd.f32 %v1766, %v2068
      %v2077 = vadd.f32 %v1767, %v2069
      %v2078 = vadd.f32 %v1768, %v2070
      %v2079 = vadd.f32 %v1769, %v2071
      %v2080 = vadd.f32 %v1770, %v2072
      %s2081 = scalar_lea.vmem %s288, 240
      %v2082 = vld [vmem:[%s2081] sm:$0xf]
      %v2083 = vld [vmem:[%s2081 + $0x4] sm:$0xf]
      %v2084 = vld [vmem:[%s2081 + $0x8] sm:$0xf]
      %v2085 = vld [vmem:[%s2081 + $0xc] sm:$0xf]
      %s2086 = scalar_lea.vmem %s288, 256
      %v2087 = vld [vmem:[%s2086] sm:$0xf]
      %v2088 = vld [vmem:[%s2086 + $0x4] sm:$0xf]
      %v2089 = vld [vmem:[%s2086 + $0x8] sm:$0xf]
      %v2090 = vld [vmem:[%s2086 + $0xc] sm:$0xf]
      %v2095 = vunpack.c.l.b16 %v2087
      %v2096 = vunpack.c.l.b16 %v2088
      %v2097 = vunpack.c.l.b16 %v2089
      %v2098 = vunpack.c.l.b16 %v2090
      %v2099 = vpack.c.b16 %v2096, %v2095
      %v2100 = vpack.c.b16 %v2098, %v2097
      %2103 = vmatprep.subr.bf16.mxu0 0
      %2104 = vmatpush1.bf16.msra.mxu0 %v2099
      %2105 = vmatprep.subr.bf16.mxu0 0
      %2106 = vmatpush1.bf16.msra.mxu0 %v2100
      %2107 = vmatprep.subr.bf16.mxu0 0
      %2108 = vmatpush1.bf16.msra.mxu0 0
      %2109 = vmatprep.subr.bf16.mxu0 0
      %2110 = vmatpush1.bf16.msra.mxu0 0
      %2111 = vmatprep.subr.bf16.mxu0 0
      %2112 = vmatpush1.bf16.msra.mxu0 0
      %2113 = vmatprep.subr.bf16.mxu0 0
      %2114 = vmatpush1.bf16.msra.mxu0 0
      %2115 = vmatprep.subr.bf16.mxu0 0
      %2116 = vmatpush1.bf16.msra.mxu0 0
      %2117 = vmatprep.subr.bf16.mxu0 0
      %2118 = vmatpush1.bf16.msra.mxu0 0
      %2119 = vmatprep.subr.bf16.mxu0 0
      %2120 = vmatpush1.bf16.msra.mxu0 0
      %2121 = vmatprep.subr.bf16.mxu0 0
      %2122 = vmatpush1.bf16.msra.mxu0 0
      %2123 = vmatprep.subr.bf16.mxu0 0
      %2124 = vmatpush1.bf16.msra.mxu0 0
      %2125 = vmatprep.subr.bf16.mxu0 0
      %2126 = vmatpush1.bf16.msra.mxu0 0
      %2127 = vmatprep.subr.bf16.mxu0 0
      %2128 = vmatpush1.bf16.msra.mxu0 0
      %2129 = vmatprep.subr.bf16.mxu0 0
      %2130 = vmatpush1.bf16.msra.mxu0 0
      %2131 = vmatprep.subr.bf16.mxu0 0
      %2132 = vmatpush1.bf16.msra.mxu0 0
      %2133 = vmatprep.subr.bf16.mxu0 0
      %2134 = vmatpush1.bf16.msra.mxu0 0
      %2135 = vmatprep.mubr.bf16.mxu0 0
      %2136 = vmatmul.mubr.bf16.gmra.mrb[0].mxu0 %v1495
      %v2137 = vpop.f32.mrb[0].mxu0
      %v2138 = vadd.f32 0.0, %v2137
      %v2139 = vpop.f32.mrb[0].mxu0
      %v2140 = vpop.f32.mrb[0].mxu0
      %v2141 = vadd.f32 0.0, %v2140
      %v2142 = vpop.f32.mrb[0].mxu0
      %2143 = vmatprep.mubr.bf16.mxu0 0
      %2144 = vmatmul.mubr.bf16.gmra.mrb[0].mxu0 %v1498
      %v2145 = vpop.f32.mrb[0].mxu0
      %v2146 = vadd.f32 0.0, %v2145
      %v2147 = vpop.f32.mrb[0].mxu0
      %v2148 = vpop.f32.mrb[0].mxu0
      %v2149 = vadd.f32 0.0, %v2148
      %v2150 = vpop.f32.mrb[0].mxu0
      %2151 = vmatprep.mubr.bf16.mxu0 0
      %2152 = vmatmul.mubr.bf16.gmra.mrb[0].mxu0 %v1501
      %v2153 = vpop.f32.mrb[0].mxu0
      %v2154 = vadd.f32 0.0, %v2153
      %v2155 = vpop.f32.mrb[0].mxu0
      %v2156 = vpop.f32.mrb[0].mxu0
      %v2157 = vadd.f32 0.0, %v2156
      %v2158 = vpop.f32.mrb[0].mxu0
      %2159 = vmatprep.mubr.bf16.mxu0 0
      %2160 = vmatmul.mubr.bf16.gmra.mrb[0].mxu0 %v1492
      %v2161 = vpop.f32.mrb[0].mxu0
      %v2162 = vadd.f32 0.0, %v2161
      %v2163 = vpop.f32.mrb[0].mxu0
      %v2164 = vpop.f32.mrb[0].mxu0
      %v2165 = vadd.f32 0.0, %v2164
      %v2166 = vpop.f32.mrb[0].mxu0
      %2167 = vdwg.mxu0
      %v2172 = vunpack.c.l.b16 %v2082
      %v2173 = vunpack.c.l.b16 %v2083
      %v2174 = vunpack.c.l.b16 %v2084
      %v2175 = vunpack.c.l.b16 %v2085
      %v2176 = vpack.c.b16 %v2173, %v2172
      %v2177 = vpack.c.b16 %v2175, %v2174
      %2180 = vmatprep.subr.bf16.mxu0 0
      %2181 = vmatpush1.bf16.msra.mxu0 %v2176
      %2182 = vmatprep.subr.bf16.mxu0 0
      %2183 = vmatpush1.bf16.msra.mxu0 %v2177
      %2184 = vmatprep.subr.bf16.mxu0 0
      %2185 = vmatpush1.bf16.msra.mxu0 0
      %2186 = vmatprep.subr.bf16.mxu0 0
      %2187 = vmatpush1.bf16.msra.mxu0 0
      %2188 = vmatprep.subr.bf16.mxu0 0
      %2189 = vmatpush1.bf16.msra.mxu0 0
      %2190 = vmatprep.subr.bf16.mxu0 0
      %2191 = vmatpush1.bf16.msra.mxu0 0
      %2192 = vmatprep.subr.bf16.mxu0 0
      %2193 = vmatpush1.bf16.msra.mxu0 0
      %2194 = vmatprep.subr.bf16.mxu0 0
      %2195 = vmatpush1.bf16.msra.mxu0 0
      %2196 = vmatprep.subr.bf16.mxu0 0
      %2197 = vmatpush1.bf16.msra.mxu0 0
      %2198 = vmatprep.subr.bf16.mxu0 0
      %2199 = vmatpush1.bf16.msra.mxu0 0
      %2200 = vmatprep.subr.bf16.mxu0 0
      %2201 = vmatpush1.bf16.msra.mxu0 0
      %2202 = vmatprep.subr.bf16.mxu0 0
      %2203 = vmatpush1.bf16.msra.mxu0 0
      %2204 = vmatprep.subr.bf16.mxu0 0
      %2205 = vmatpush1.bf16.msra.mxu0 0
      %2206 = vmatprep.subr.bf16.mxu0 0
      %2207 = vmatpush1.bf16.msra.mxu0 0
      %2208 = vmatprep.subr.bf16.mxu0 0
      %2209 = vmatpush1.bf16.msra.mxu0 0
      %2210 = vmatprep.subr.bf16.mxu0 0
      %2211 = vmatpush1.bf16.msra.mxu0 0
      %2212 = vmatprep.mubr.bf16.mxu0 0
      %2213 = vmatmul.mubr.bf16.gmra.mrb[0].mxu0 %v1584
      %v2214 = vpop.f32.mrb[0].mxu0
      %v2215 = vadd.f32 %v2138, %v2214
      %v2216 = vpop.f32.mrb[0].mxu0
      %v2217 = vpop.f32.mrb[0].mxu0
      %v2218 = vadd.f32 %v2141, %v2217
      %v2219 = vpop.f32.mrb[0].mxu0
      %2220 = vmatprep.mubr.bf16.mxu0 0
      %2221 = vmatmul.mubr.bf16.gmra.mrb[0].mxu0 %v1587
      %v2222 = vpop.f32.mrb[0].mxu0
      %v2223 = vadd.f32 %v2146, %v2222
      %v2224 = vpop.f32.mrb[0].mxu0
      %v2225 = vpop.f32.mrb[0].mxu0
      %v2226 = vadd.f32 %v2149, %v2225
      %v2227 = vpop.f32.mrb[0].mxu0
      %2228 = vmatprep.mubr.bf16.mxu0 0
      %2229 = vmatmul.mubr.bf16.gmra.mrb[0].mxu0 %v1590
      %v2230 = vpop.f32.mrb[0].mxu0
      %v2231 = vadd.f32 %v2154, %v2230
      %v2232 = vpop.f32.mrb[0].mxu0
      %v2233 = vpop.f32.mrb[0].mxu0
      %v2234 = vadd.f32 %v2157, %v2233
      %v2235 = vpop.f32.mrb[0].mxu0
      %2236 = vmatprep.mubr.bf16.mxu0 0
      %2237 = vmatmul.mubr.bf16.gmra.mrb[0].mxu0 %v1581
      %v2238 = vpop.f32.mrb[0].mxu0
      %v2239 = vadd.f32 %v2162, %v2238
      %v2240 = vpop.f32.mrb[0].mxu0
      %v2241 = vpop.f32.mrb[0].mxu0
      %v2242 = vadd.f32 %v2165, %v2241
      %v2243 = vpop.f32.mrb[0].mxu0
      %2244 = vdwg.mxu0
      %s2245 = scalar_lea.vmem %s288, 272
      %v2246 = vld [vmem:[%s2245] sm:$0xf]
      %v2247 = vld [vmem:[%s2245 + $0x4] sm:$0xf]
      %v2248 = vld [vmem:[%s2245 + $0x8] sm:$0xf]
      %v2249 = vld [vmem:[%s2245 + $0xc] sm:$0xf]
      %v2254 = vunpack.c.l.b16 %v2246
      %v2255 = vunpack.c.l.b16 %v2247
      %v2256 = vunpack.c.l.b16 %v2248
      %v2257 = vunpack.c.l.b16 %v2249
      %v2258 = vpack.c.b16 %v2255, %v2254
      %v2259 = vpack.c.b16 %v2257, %v2256
      %2262 = vmatprep.subr.bf16.mxu0 0
      %2263 = vmatpush1.bf16.msra.mxu0 %v2258
      %2264 = vmatprep.subr.bf16.mxu0 0
      %2265 = vmatpush1.bf16.msra.mxu0 %v2259
      %2266 = vmatprep.subr.bf16.mxu0 0
      %2267 = vmatpush1.bf16.msra.mxu0 0
      %2268 = vmatprep.subr.bf16.mxu0 0
      %2269 = vmatpush1.bf16.msra.mxu0 0
      %2270 = vmatprep.subr.bf16.mxu0 0
      %2271 = vmatpush1.bf16.msra.mxu0 0
      %2272 = vmatprep.subr.bf16.mxu0 0
      %2273 = vmatpush1.bf16.msra.mxu0 0
      %2274 = vmatprep.subr.bf16.mxu0 0
      %2275 = vmatpush1.bf16.msra.mxu0 0
      %2276 = vmatprep.subr.bf16.mxu0 0
      %2277 = vmatpush1.bf16.msra.mxu0 0
      %2278 = vmatprep.subr.bf16.mxu0 0
      %2279 = vmatpush1.bf16.msra.mxu0 0
      %2280 = vmatprep.subr.bf16.mxu0 0
      %2281 = vmatpush1.bf16.msra.mxu0 0
      %2282 = vmatprep.subr.bf16.mxu0 0
      %2283 = vmatpush1.bf16.msra.mxu0 0
      %2284 = vmatprep.subr.bf16.mxu0 0
      %2285 = vmatpush1.bf16.msra.mxu0 0
      %2286 = vmatprep.subr.bf16.mxu0 0
      %2287 = vmatpush1.bf16.msra.mxu0 0
      %2288 = vmatprep.subr.bf16.mxu0 0
      %2289 = vmatpush1.bf16.msra.mxu0 0
      %2290 = vmatprep.subr.bf16.mxu0 0
      %2291 = vmatpush1.bf16.msra.mxu0 0
      %2292 = vmatprep.subr.bf16.mxu0 0
      %2293 = vmatpush1.bf16.msra.mxu0 0
      %2294 = vmatprep.mubr.bf16.mxu0 0
      %2295 = vmatmul.mubr.bf16.gmra.mrb[0].mxu0 %v1682
      %v2296 = vpop.f32.mrb[0].mxu0
      %v2297 = vadd.f32 0.0, %v2296
      %v2298 = vpop.f32.mrb[0].mxu0
      %v2299 = vpop.f32.mrb[0].mxu0
      %v2300 = vadd.f32 0.0, %v2299
      %v2301 = vpop.f32.mrb[0].mxu0
      %2302 = vmatprep.mubr.bf16.mxu0 0
      %2303 = vmatmul.mubr.bf16.gmra.mrb[0].mxu0 %v1685
      %v2304 = vpop.f32.mrb[0].mxu0
      %v2305 = vadd.f32 0.0, %v2304
      %v2306 = vpop.f32.mrb[0].mxu0
      %v2307 = vpop.f32.mrb[0].mxu0
      %v2308 = vadd.f32 0.0, %v2307
      %v2309 = vpop.f32.mrb[0].mxu0
      %2310 = vmatprep.mubr.bf16.mxu0 0
      %2311 = vmatmul.mubr.bf16.gmra.mrb[0].mxu0 %v1688
      %v2312 = vpop.f32.mrb[0].mxu0
      %v2313 = vadd.f32 0.0, %v2312
      %v2314 = vpop.f32.mrb[0].mxu0
      %v2315 = vpop.f32.mrb[0].mxu0
      %v2316 = vadd.f32 0.0, %v2315
      %v2317 = vpop.f32.mrb[0].mxu0
      %2318 = vmatprep.mubr.bf16.mxu0 0
      %2319 = vmatmul.mubr.bf16.gmra.mrb[0].mxu0 %v1679
      %v2320 = vpop.f32.mrb[0].mxu0
      %v2321 = vadd.f32 0.0, %v2320
      %v2322 = vpop.f32.mrb[0].mxu0
      %v2323 = vpop.f32.mrb[0].mxu0
      %v2324 = vadd.f32 0.0, %v2323
      %v2325 = vpop.f32.mrb[0].mxu0
      %2326 = vdwg.mxu0
      %v2327 = vadd.f32 %v2215, %v2297
      %v2328 = vadd.f32 %v2218, %v2300
      %v2329 = vadd.f32 %v2223, %v2305
      %v2330 = vadd.f32 %v2226, %v2308
      %v2331 = vadd.f32 %v2231, %v2313
      %v2332 = vadd.f32 %v2234, %v2316
      %v2333 = vadd.f32 %v2239, %v2321
      %v2334 = vadd.f32 %v2242, %v2324
      %v2335 = vsel %vm401, %v2327, 0.0
      %v2336 = vsel %vm402, %v2328, 0.0
      %v2337 = vsel %vm403, %v2329, 0.0
      %v2338 = vsel %vm404, %v2330, 0.0
      %v2339 = vsel %vm405, %v2331, 0.0
      %v2340 = vsel %vm406, %v2332, 0.0
      %v2341 = vsel %vm407, %v2333, 0.0
      %v2342 = vsel %vm408, %v2334, 0.0
      %v2343 = vadd.f32 %v2073, %v2335
      %v2344 = vadd.f32 %v2074, %v2336
      %v2345 = vadd.f32 %v2075, %v2337
      %v2346 = vadd.f32 %v2076, %v2338
      %v2347 = vadd.f32 %v2077, %v2339
      %v2348 = vadd.f32 %v2078, %v2340
      %v2349 = vadd.f32 %v2079, %v2341
      %v2350 = vadd.f32 %v2080, %v2342
      %s2351 = scalar_lea.vmem %s5, 1
      %v2352 = vld [vmem:[%s2351] sm:$0x1]
      %v2354 = vlaneseq
      %v2355 = vshrl.u32 %v2354, 7
      %v2356 = vsub.s32 0, %v2355
      %v2357 = vrot.slane %v2352, %v2356
      %v2359 = vadd.f32 %v2343, %v2357
      %v2360 = vadd.f32 %v2344, %v2357
      %v2361 = vadd.f32 %v2345, %v2357
      %v2362 = vadd.f32 %v2346, %v2357
      %v2363 = vadd.f32 %v2347, %v2357
      %v2364 = vadd.f32 %v2348, %v2357
      %v2365 = vadd.f32 %v2349, %v2357
      %v2366 = vadd.f32 %v2350, %v2357
      %v2367 = vmul.f32 %v2359, 0.2
      %v2368 = vmul.f32 %v2360, 0.2
      %v2369 = vmul.f32 %v2361, 0.2
      %v2370 = vmul.f32 %v2362, 0.2
      %v2371 = vmul.f32 %v2363, 0.2
      %v2372 = vmul.f32 %v2364, 0.2
      %v2373 = vmul.f32 %v2365, 0.2
      %v2374 = vmul.f32 %v2366, 0.2
      %v2375 = vmax.f32 %v2359, %v2367
      %v2376 = vmax.f32 %v2360, %v2368
      %v2377 = vmax.f32 %v2361, %v2369
      %v2378 = vmax.f32 %v2362, %v2370
      %v2379 = vmax.f32 %v2363, %v2371
      %v2380 = vmax.f32 %v2364, %v2372
      %v2381 = vmax.f32 %v2365, %v2373
      %v2382 = vmax.f32 %v2366, %v2374
      %v2383 = vmax.f32 %v2375, -362.03867
      %v2384 = vmax.f32 %v2376, -362.03867
      %v2385 = vmax.f32 %v2377, -362.03867
      %v2386 = vmax.f32 %v2378, -362.03867
      %v2387 = vmax.f32 %v2379, -362.03867
      %v2388 = vmax.f32 %v2380, -362.03867
      %v2389 = vmax.f32 %v2381, -362.03867
      %v2390 = vmax.f32 %v2382, -362.03867
      %v2391 = vmin.f32 %v2383, 362.03867
      %v2392 = vmin.f32 %v2384, 362.03867
      %v2393 = vmin.f32 %v2385, 362.03867
      %v2394 = vmin.f32 %v2386, 362.03867
      %v2395 = vmin.f32 %v2387, 362.03867
      %v2396 = vmin.f32 %v2388, 362.03867
      %v2397 = vmin.f32 %v2389, 362.03867
      %v2398 = vmin.f32 %v2390, 362.03867
      %v2399 = vrot.slane %v2391, 7
      %v2400 = vrot.slane %v2392, 7
      %v2401 = vrot.slane %v2393, 7
      %v2402 = vrot.slane %v2394, 7
      %v2403 = vrot.slane %v2395, 7
      %v2404 = vrot.slane %v2396, 7
      %v2405 = vrot.slane %v2397, 7
      %v2406 = vrot.slane %v2398, 7
      %v2407 = vsel %vm629, %v2405, %v2406
      %v2408 = vsel %vm629, %v2404, %v2405
      %v2409 = vsel %vm629, %v2403, %v2404
      %v2410 = vsel %vm629, %v2402, %v2403
      %v2411 = vsel %vm629, %v2401, %v2402
      %v2412 = vsel %vm629, %v2400, %v2401
      %v2413 = vsel %vm629, %v2399, %v2400
      %v2414 = vsel %vm629, %v2406, %v2399
      %v2415 = vsel %vm377, %v2414, 0.0
      %v2416 = vsel %vm378, %v2413, 0.0
      %v2417 = vsel %vm379, %v2412, 0.0
      %v2418 = vsel %vm380, %v2411, 0.0
      %v2419 = vsel %vm381, %v2410, 0.0
      %v2420 = vsel %vm382, %v2409, 0.0
      %v2421 = vsel %vm383, %v2408, 0.0
      %v2422 = vsel %vm384, %v2407, 0.0
      %v2423 = vrot.slane %v2391, 1
      %v2424 = vrot.slane %v2392, 1
      %v2425 = vrot.slane %v2393, 1
      %v2426 = vrot.slane %v2394, 1
      %v2427 = vrot.slane %v2395, 1
      %v2428 = vrot.slane %v2396, 1
      %v2429 = vrot.slane %v2397, 1
      %v2430 = vrot.slane %v2398, 1
      %v2431 = vsel %vm636, %v2429, %v2430
      %v2432 = vsel %vm636, %v2428, %v2429
      %v2433 = vsel %vm636, %v2427, %v2428
      %v2434 = vsel %vm636, %v2426, %v2427
      %v2435 = vsel %vm636, %v2425, %v2426
      %v2436 = vsel %vm636, %v2424, %v2425
      %v2437 = vsel %vm636, %v2423, %v2424
      %v2438 = vsel %vm636, %v2430, %v2423
      %v2439 = vsel %vm385, %v2437, 0.0
      %v2440 = vsel %vm386, %v2436, 0.0
      %v2441 = vsel %vm387, %v2435, 0.0
      %v2442 = vsel %vm388, %v2434, 0.0
      %v2443 = vsel %vm389, %v2433, 0.0
      %v2444 = vsel %vm390, %v2432, 0.0
      %v2445 = vsel %vm391, %v2431, 0.0
      %v2446 = vsel %vm392, %v2438, 0.0
      %v2447 = vpack.c.bf16 %v2415, %v2422
      %v2448 = vpack.c.bf16 %v2417, %v2416
      %v2449 = vpack.c.bf16 %v2419, %v2418
      %v2450 = vpack.c.bf16 %v2421, %v2420
      %s2451 = scalar_lea.vmem %s288, 288
      %v2452 = vld [vmem:[%s2451] sm:$0xf]
      %v2453 = vld [vmem:[%s2451 + $0x4] sm:$0xf]
      %v2454 = vld [vmem:[%s2451 + $0x8] sm:$0xf]
      %v2455 = vld [vmem:[%s2451 + $0xc] sm:$0xf]
      %v2456 = vpack.c.bf16 %v2391, %v2398
      %v2457 = vpack.c.bf16 %v2393, %v2392
      %v2458 = vpack.c.bf16 %v2395, %v2394
      %v2459 = vpack.c.bf16 %v2397, %v2396
      %s2460 = scalar_lea.vmem %s288, 304
      %v2461 = vld [vmem:[%s2460] sm:$0xf]
      %v2462 = vld [vmem:[%s2460 + $0x4] sm:$0xf]
      %v2463 = vld [vmem:[%s2460 + $0x8] sm:$0xf]
      %v2464 = vld [vmem:[%s2460 + $0xc] sm:$0xf]
      %v2469 = vunpack.c.l.b16 %v2461
      %v2470 = vunpack.c.l.b16 %v2462
      %v2471 = vunpack.c.l.b16 %v2463
      %v2472 = vunpack.c.l.b16 %v2464
      %v2473 = vpack.c.b16 %v2470, %v2469
      %v2474 = vpack.c.b16 %v2472, %v2471
      %v2478 = vsel %vm673, %v2456, 0
      %v2481 = vsel %vm673, %v2457, 0
      %v2484 = vsel %vm673, %v2458, 0
      %v2487 = vsel %vm673, %v2459, 0
      %2489 = vmatprep.subr.bf16.mxu0 0
      %2490 = vmatpush1.bf16.msra.mxu0 %v2473
      %2491 = vmatprep.subr.bf16.mxu0 0
      %2492 = vmatpush1.bf16.msra.mxu0 %v2474
      %2493 = vmatprep.subr.bf16.mxu0 0
      %2494 = vmatpush1.bf16.msra.mxu0 0
      %2495 = vmatprep.subr.bf16.mxu0 0
      %2496 = vmatpush1.bf16.msra.mxu0 0
      %2497 = vmatprep.subr.bf16.mxu0 0
      %2498 = vmatpush1.bf16.msra.mxu0 0
      %2499 = vmatprep.subr.bf16.mxu0 0
      %2500 = vmatpush1.bf16.msra.mxu0 0
      %2501 = vmatprep.subr.bf16.mxu0 0
      %2502 = vmatpush1.bf16.msra.mxu0 0
      %2503 = vmatprep.subr.bf16.mxu0 0
      %2504 = vmatpush1.bf16.msra.mxu0 0
      %2505 = vmatprep.subr.bf16.mxu0 0
      %2506 = vmatpush1.bf16.msra.mxu0 0
      %2507 = vmatprep.subr.bf16.mxu0 0
      %2508 = vmatpush1.bf16.msra.mxu0 0
      %2509 = vmatprep.subr.bf16.mxu0 0
      %2510 = vmatpush1.bf16.msra.mxu0 0
      %2511 = vmatprep.subr.bf16.mxu0 0
      %2512 = vmatpush1.bf16.msra.mxu0 0
      %2513 = vmatprep.subr.bf16.mxu0 0
      %2514 = vmatpush1.bf16.msra.mxu0 0
      %2515 = vmatprep.subr.bf16.mxu0 0
      %2516 = vmatpush1.bf16.msra.mxu0 0
      %2517 = vmatprep.subr.bf16.mxu0 0
      %2518 = vmatpush1.bf16.msra.mxu0 0
      %2519 = vmatprep.subr.bf16.mxu0 0
      %2520 = vmatpush1.bf16.msra.mxu0 0
      %2521 = vmatprep.mubr.bf16.mxu0 0
      %2522 = vmatmul.mubr.bf16.gmra.mrb[0].mxu0 %v2478
      %v2523 = vpop.f32.mrb[0].mxu0
      %v2524 = vadd.f32 0.0, %v2523
      %v2525 = vpop.f32.mrb[0].mxu0
      %v2526 = vpop.f32.mrb[0].mxu0
      %v2527 = vadd.f32 0.0, %v2526
      %v2528 = vpop.f32.mrb[0].mxu0
      %2529 = vmatprep.mubr.bf16.mxu0 0
      %2530 = vmatmul.mubr.bf16.gmra.mrb[0].mxu0 %v2481
      %v2531 = vpop.f32.mrb[0].mxu0
      %v2532 = vadd.f32 0.0, %v2531
      %v2533 = vpop.f32.mrb[0].mxu0
      %v2534 = vpop.f32.mrb[0].mxu0
      %v2535 = vadd.f32 0.0, %v2534
      %v2536 = vpop.f32.mrb[0].mxu0
      %2537 = vmatprep.mubr.bf16.mxu0 0
      %2538 = vmatmul.mubr.bf16.gmra.mrb[0].mxu0 %v2484
      %v2539 = vpop.f32.mrb[0].mxu0
      %v2540 = vadd.f32 0.0, %v2539
      %v2541 = vpop.f32.mrb[0].mxu0
      %v2542 = vpop.f32.mrb[0].mxu0
      %v2543 = vadd.f32 0.0, %v2542
      %v2544 = vpop.f32.mrb[0].mxu0
      %2545 = vmatprep.mubr.bf16.mxu0 0
      %2546 = vmatmul.mubr.bf16.gmra.mrb[0].mxu0 %v2487
      %v2547 = vpop.f32.mrb[0].mxu0
      %v2548 = vadd.f32 0.0, %v2547
      %v2549 = vpop.f32.mrb[0].mxu0
      %v2550 = vpop.f32.mrb[0].mxu0
      %v2551 = vadd.f32 0.0, %v2550
      %v2552 = vpop.f32.mrb[0].mxu0
      %2553 = vdwg.mxu0
      %v2558 = vunpack.c.l.b16 %v2452
      %v2559 = vunpack.c.l.b16 %v2453
      %v2560 = vunpack.c.l.b16 %v2454
      %v2561 = vunpack.c.l.b16 %v2455
      %v2562 = vpack.c.b16 %v2559, %v2558
      %v2563 = vpack.c.b16 %v2561, %v2560
      %v2567 = vsel %vm673, %v2447, 0
      %v2570 = vsel %vm673, %v2448, 0
      %v2573 = vsel %vm673, %v2449, 0
      %v2576 = vsel %vm673, %v2450, 0
      %2578 = vmatprep.subr.bf16.mxu0 0
      %2579 = vmatpush1.bf16.msra.mxu0 %v2562
      %2580 = vmatprep.subr.bf16.mxu0 0
      %2581 = vmatpush1.bf16.msra.mxu0 %v2563
      %2582 = vmatprep.subr.bf16.mxu0 0
      %2583 = vmatpush1.bf16.msra.mxu0 0
      %2584 = vmatprep.subr.bf16.mxu0 0
      %2585 = vmatpush1.bf16.msra.mxu0 0
      %2586 = vmatprep.subr.bf16.mxu0 0
      %2587 = vmatpush1.bf16.msra.mxu0 0
      %2588 = vmatprep.subr.bf16.mxu0 0
      %2589 = vmatpush1.bf16.msra.mxu0 0
      %2590 = vmatprep.subr.bf16.mxu0 0
      %2591 = vmatpush1.bf16.msra.mxu0 0
      %2592 = vmatprep.subr.bf16.mxu0 0
      %2593 = vmatpush1.bf16.msra.mxu0 0
      %2594 = vmatprep.subr.bf16.mxu0 0
      %2595 = vmatpush1.bf16.msra.mxu0 0
      %2596 = vmatprep.subr.bf16.mxu0 0
      %2597 = vmatpush1.bf16.msra.mxu0 0
      %2598 = vmatprep.subr.bf16.mxu0 0
      %2599 = vmatpush1.bf16.msra.mxu0 0
      %2600 = vmatprep.subr.bf16.mxu0 0
      %2601 = vmatpush1.bf16.msra.mxu0 0
      %2602 = vmatprep.subr.bf16.mxu0 0
      %2603 = vmatpush1.bf16.msra.mxu0 0
      %2604 = vmatprep.subr.bf16.mxu0 0
      %2605 = vmatpush1.bf16.msra.mxu0 0
      %2606 = vmatprep.subr.bf16.mxu0 0
      %2607 = vmatpush1.bf16.msra.mxu0 0
      %2608 = vmatprep.subr.bf16.mxu0 0
      %2609 = vmatpush1.bf16.msra.mxu0 0
      %2610 = vmatprep.mubr.bf16.mxu0 0
      %2611 = vmatmul.mubr.bf16.gmra.mrb[0].mxu0 %v2567
      %v2612 = vpop.f32.mrb[0].mxu0
      %v2613 = vadd.f32 %v2524, %v2612
      %v2614 = vpop.f32.mrb[0].mxu0
      %v2615 = vpop.f32.mrb[0].mxu0
      %v2616 = vadd.f32 %v2527, %v2615
      %v2617 = vpop.f32.mrb[0].mxu0
      %2618 = vmatprep.mubr.bf16.mxu0 0
      %2619 = vmatmul.mubr.bf16.gmra.mrb[0].mxu0 %v2570
      %v2620 = vpop.f32.mrb[0].mxu0
      %v2621 = vadd.f32 %v2532, %v2620
      %v2622 = vpop.f32.mrb[0].mxu0
      %v2623 = vpop.f32.mrb[0].mxu0
      %v2624 = vadd.f32 %v2535, %v2623
      %v2625 = vpop.f32.mrb[0].mxu0
      %2626 = vmatprep.mubr.bf16.mxu0 0
      %2627 = vmatmul.mubr.bf16.gmra.mrb[0].mxu0 %v2573
      %v2628 = vpop.f32.mrb[0].mxu0
      %v2629 = vadd.f32 %v2540, %v2628
      %v2630 = vpop.f32.mrb[0].mxu0
      %v2631 = vpop.f32.mrb[0].mxu0
      %v2632 = vadd.f32 %v2543, %v2631
      %v2633 = vpop.f32.mrb[0].mxu0
      %2634 = vmatprep.mubr.bf16.mxu0 0
      %2635 = vmatmul.mubr.bf16.gmra.mrb[0].mxu0 %v2576
      %v2636 = vpop.f32.mrb[0].mxu0
      %v2637 = vadd.f32 %v2548, %v2636
      %v2638 = vpop.f32.mrb[0].mxu0
      %v2639 = vpop.f32.mrb[0].mxu0
      %v2640 = vadd.f32 %v2551, %v2639
      %v2641 = vpop.f32.mrb[0].mxu0
      %2642 = vdwg.mxu0
      %v2643 = vpack.c.bf16 %v2439, %v2446
      %v2644 = vpack.c.bf16 %v2441, %v2440
      %v2645 = vpack.c.bf16 %v2443, %v2442
      %v2646 = vpack.c.bf16 %v2445, %v2444
      %s2647 = scalar_lea.vmem %s288, 320
      %v2648 = vld [vmem:[%s2647] sm:$0xf]
      %v2649 = vld [vmem:[%s2647 + $0x4] sm:$0xf]
      %v2650 = vld [vmem:[%s2647 + $0x8] sm:$0xf]
      %v2651 = vld [vmem:[%s2647 + $0xc] sm:$0xf]
      %v2656 = vunpack.c.l.b16 %v2648
      %v2657 = vunpack.c.l.b16 %v2649
      %v2658 = vunpack.c.l.b16 %v2650
      %v2659 = vunpack.c.l.b16 %v2651
      %v2660 = vpack.c.b16 %v2657, %v2656
      %v2661 = vpack.c.b16 %v2659, %v2658
      %v2665 = vsel %vm673, %v2643, 0
      %v2668 = vsel %vm673, %v2644, 0
      %v2671 = vsel %vm673, %v2645, 0
      %v2674 = vsel %vm673, %v2646, 0
      %2676 = vmatprep.subr.bf16.mxu0 0
      %2677 = vmatpush1.bf16.msra.mxu0 %v2660
      %2678 = vmatprep.subr.bf16.mxu0 0
      %2679 = vmatpush1.bf16.msra.mxu0 %v2661
      %2680 = vmatprep.subr.bf16.mxu0 0
      %2681 = vmatpush1.bf16.msra.mxu0 0
      %2682 = vmatprep.subr.bf16.mxu0 0
      %2683 = vmatpush1.bf16.msra.mxu0 0
      %2684 = vmatprep.subr.bf16.mxu0 0
      %2685 = vmatpush1.bf16.msra.mxu0 0
      %2686 = vmatprep.subr.bf16.mxu0 0
      %2687 = vmatpush1.bf16.msra.mxu0 0
      %2688 = vmatprep.subr.bf16.mxu0 0
      %2689 = vmatpush1.bf16.msra.mxu0 0
      %2690 = vmatprep.subr.bf16.mxu0 0
      %2691 = vmatpush1.bf16.msra.mxu0 0
      %2692 = vmatprep.subr.bf16.mxu0 0
      %2693 = vmatpush1.bf16.msra.mxu0 0
      %2694 = vmatprep.subr.bf16.mxu0 0
      %2695 = vmatpush1.bf16.msra.mxu0 0
      %2696 = vmatprep.subr.bf16.mxu0 0
      %2697 = vmatpush1.bf16.msra.mxu0 0
      %2698 = vmatprep.subr.bf16.mxu0 0
      %2699 = vmatpush1.bf16.msra.mxu0 0
      %2700 = vmatprep.subr.bf16.mxu0 0
      %2701 = vmatpush1.bf16.msra.mxu0 0
      %2702 = vmatprep.subr.bf16.mxu0 0
      %2703 = vmatpush1.bf16.msra.mxu0 0
      %2704 = vmatprep.subr.bf16.mxu0 0
      %2705 = vmatpush1.bf16.msra.mxu0 0
      %2706 = vmatprep.subr.bf16.mxu0 0
      %2707 = vmatpush1.bf16.msra.mxu0 0
      %2708 = vmatprep.mubr.bf16.mxu0 0
      %2709 = vmatmul.mubr.bf16.gmra.mrb[0].mxu0 %v2665
      %v2710 = vpop.f32.mrb[0].mxu0
      %v2711 = vadd.f32 0.0, %v2710
      %v2712 = vpop.f32.mrb[0].mxu0
      %v2713 = vpop.f32.mrb[0].mxu0
      %v2714 = vadd.f32 0.0, %v2713
      %v2715 = vpop.f32.mrb[0].mxu0
      %2716 = vmatprep.mubr.bf16.mxu0 0
      %2717 = vmatmul.mubr.bf16.gmra.mrb[0].mxu0 %v2668
      %v2718 = vpop.f32.mrb[0].mxu0
      %v2719 = vadd.f32 0.0, %v2718
      %v2720 = vpop.f32.mrb[0].mxu0
      %v2721 = vpop.f32.mrb[0].mxu0
      %v2722 = vadd.f32 0.0, %v2721
      %v2723 = vpop.f32.mrb[0].mxu0
      %2724 = vmatprep.mubr.bf16.mxu0 0
      %2725 = vmatmul.mubr.bf16.gmra.mrb[0].mxu0 %v2671
      %v2726 = vpop.f32.mrb[0].mxu0
      %v2727 = vadd.f32 0.0, %v2726
      %v2728 = vpop.f32.mrb[0].mxu0
      %v2729 = vpop.f32.mrb[0].mxu0
      %v2730 = vadd.f32 0.0, %v2729
      %v2731 = vpop.f32.mrb[0].mxu0
      %2732 = vmatprep.mubr.bf16.mxu0 0
      %2733 = vmatmul.mubr.bf16.gmra.mrb[0].mxu0 %v2674
      %v2734 = vpop.f32.mrb[0].mxu0
      %v2735 = vadd.f32 0.0, %v2734
      %v2736 = vpop.f32.mrb[0].mxu0
      %v2737 = vpop.f32.mrb[0].mxu0
      %v2738 = vadd.f32 0.0, %v2737
      %v2739 = vpop.f32.mrb[0].mxu0
      %2740 = vdwg.mxu0
      %v2741 = vadd.f32 %v2613, %v2711
      %v2742 = vadd.f32 %v2616, %v2714
      %v2743 = vadd.f32 %v2621, %v2719
      %v2744 = vadd.f32 %v2624, %v2722
      %v2745 = vadd.f32 %v2629, %v2727
      %v2746 = vadd.f32 %v2632, %v2730
      %v2747 = vadd.f32 %v2637, %v2735
      %v2748 = vadd.f32 %v2640, %v2738
      %v2749 = vsel %vm393, %v2741, 0.0
      %v2750 = vsel %vm394, %v2742, 0.0
      %v2751 = vsel %vm395, %v2743, 0.0
      %v2752 = vsel %vm396, %v2744, 0.0
      %v2753 = vsel %vm397, %v2745, 0.0
      %v2754 = vsel %vm398, %v2746, 0.0
      %v2755 = vsel %vm399, %v2747, 0.0
      %v2756 = vsel %vm400, %v2748, 0.0
      %v2757 = vpack.c.bf16 %v2416, %v2415
      %v2758 = vpack.c.bf16 %v2418, %v2417
      %v2759 = vpack.c.bf16 %v2420, %v2419
      %v2760 = vpack.c.bf16 %v2422, %v2421
      %s2761 = scalar_lea.vmem %s288, 336
      %v2762 = vld [vmem:[%s2761] sm:$0xf]
      %v2763 = vld [vmem:[%s2761 + $0x4] sm:$0xf]
      %v2764 = vld [vmem:[%s2761 + $0x8] sm:$0xf]
      %v2765 = vld [vmem:[%s2761 + $0xc] sm:$0xf]
      %v2766 = vpack.c.bf16 %v2392, %v2391
      %v2767 = vpack.c.bf16 %v2394, %v2393
      %v2768 = vpack.c.bf16 %v2396, %v2395
      %v2769 = vpack.c.bf16 %v2398, %v2397
      %s2770 = scalar_lea.vmem %s288, 352
      %v2771 = vld [vmem:[%s2770] sm:$0xf]
      %v2772 = vld [vmem:[%s2770 + $0x4] sm:$0xf]
      %v2773 = vld [vmem:[%s2770 + $0x8] sm:$0xf]
      %v2774 = vld [vmem:[%s2770 + $0xc] sm:$0xf]
      %v2779 = vunpack.c.l.b16 %v2771
      %v2780 = vunpack.c.l.b16 %v2772
      %v2781 = vunpack.c.l.b16 %v2773
      %v2782 = vunpack.c.l.b16 %v2774
      %v2783 = vpack.c.b16 %v2780, %v2779
      %v2784 = vpack.c.b16 %v2782, %v2781
      %v2788 = vsel %vm673, %v2766, 0
      %v2791 = vsel %vm673, %v2767, 0
      %v2794 = vsel %vm673, %v2768, 0
      %v2797 = vsel %vm673, %v2769, 0
      %2799 = vmatprep.subr.bf16.mxu0 0
      %2800 = vmatpush1.bf16.msra.mxu0 %v2783
      %2801 = vmatprep.subr.bf16.mxu0 0
      %2802 = vmatpush1.bf16.msra.mxu0 %v2784
      %2803 = vmatprep.subr.bf16.mxu0 0
      %2804 = vmatpush1.bf16.msra.mxu0 0
      %2805 = vmatprep.subr.bf16.mxu0 0
      %2806 = vmatpush1.bf16.msra.mxu0 0
      %2807 = vmatprep.subr.bf16.mxu0 0
      %2808 = vmatpush1.bf16.msra.mxu0 0
      %2809 = vmatprep.subr.bf16.mxu0 0
      %2810 = vmatpush1.bf16.msra.mxu0 0
      %2811 = vmatprep.subr.bf16.mxu0 0
      %2812 = vmatpush1.bf16.msra.mxu0 0
      %2813 = vmatprep.subr.bf16.mxu0 0
      %2814 = vmatpush1.bf16.msra.mxu0 0
      %2815 = vmatprep.subr.bf16.mxu0 0
      %2816 = vmatpush1.bf16.msra.mxu0 0
      %2817 = vmatprep.subr.bf16.mxu0 0
      %2818 = vmatpush1.bf16.msra.mxu0 0
      %2819 = vmatprep.subr.bf16.mxu0 0
      %2820 = vmatpush1.bf16.msra.mxu0 0
      %2821 = vmatprep.subr.bf16.mxu0 0
      %2822 = vmatpush1.bf16.msra.mxu0 0
      %2823 = vmatprep.subr.bf16.mxu0 0
      %2824 = vmatpush1.bf16.msra.mxu0 0
      %2825 = vmatprep.subr.bf16.mxu0 0
      %2826 = vmatpush1.bf16.msra.mxu0 0
      %2827 = vmatprep.subr.bf16.mxu0 0
      %2828 = vmatpush1.bf16.msra.mxu0 0
      %2829 = vmatprep.subr.bf16.mxu0 0
      %2830 = vmatpush1.bf16.msra.mxu0 0
      %2831 = vmatprep.mubr.bf16.mxu0 0
      %2832 = vmatmul.mubr.bf16.gmra.mrb[0].mxu0 %v2788
      %v2833 = vpop.f32.mrb[0].mxu0
      %v2834 = vadd.f32 0.0, %v2833
      %v2835 = vpop.f32.mrb[0].mxu0
      %v2836 = vpop.f32.mrb[0].mxu0
      %v2837 = vadd.f32 0.0, %v2836
      %v2838 = vpop.f32.mrb[0].mxu0
      %2839 = vmatprep.mubr.bf16.mxu0 0
      %2840 = vmatmul.mubr.bf16.gmra.mrb[0].mxu0 %v2791
      %v2841 = vpop.f32.mrb[0].mxu0
      %v2842 = vadd.f32 0.0, %v2841
      %v2843 = vpop.f32.mrb[0].mxu0
      %v2844 = vpop.f32.mrb[0].mxu0
      %v2845 = vadd.f32 0.0, %v2844
      %v2846 = vpop.f32.mrb[0].mxu0
      %2847 = vmatprep.mubr.bf16.mxu0 0
      %2848 = vmatmul.mubr.bf16.gmra.mrb[0].mxu0 %v2794
      %v2849 = vpop.f32.mrb[0].mxu0
      %v2850 = vadd.f32 0.0, %v2849
      %v2851 = vpop.f32.mrb[0].mxu0
      %v2852 = vpop.f32.mrb[0].mxu0
      %v2853 = vadd.f32 0.0, %v2852
      %v2854 = vpop.f32.mrb[0].mxu0
      %2855 = vmatprep.mubr.bf16.mxu0 0
      %2856 = vmatmul.mubr.bf16.gmra.mrb[0].mxu0 %v2797
      %v2857 = vpop.f32.mrb[0].mxu0
      %v2858 = vadd.f32 0.0, %v2857
      %v2859 = vpop.f32.mrb[0].mxu0
      %v2860 = vpop.f32.mrb[0].mxu0
      %v2861 = vadd.f32 0.0, %v2860
      %v2862 = vpop.f32.mrb[0].mxu0
      %2863 = vdwg.mxu0
      %v2868 = vunpack.c.l.b16 %v2762
      %v2869 = vunpack.c.l.b16 %v2763
      %v2870 = vunpack.c.l.b16 %v2764
      %v2871 = vunpack.c.l.b16 %v2765
      %v2872 = vpack.c.b16 %v2869, %v2868
      %v2873 = vpack.c.b16 %v2871, %v2870
      %v2877 = vsel %vm673, %v2757, 0
      %v2880 = vsel %vm673, %v2758, 0
      %v2883 = vsel %vm673, %v2759, 0
      %v2886 = vsel %vm673, %v2760, 0
      %2888 = vmatprep.subr.bf16.mxu0 0
      %2889 = vmatpush1.bf16.msra.mxu0 %v2872
      %2890 = vmatprep.subr.bf16.mxu0 0
      %2891 = vmatpush1.bf16.msra.mxu0 %v2873
      %2892 = vmatprep.subr.bf16.mxu0 0
      %2893 = vmatpush1.bf16.msra.mxu0 0
      %2894 = vmatprep.subr.bf16.mxu0 0
      %2895 = vmatpush1.bf16.msra.mxu0 0
      %2896 = vmatprep.subr.bf16.mxu0 0
      %2897 = vmatpush1.bf16.msra.mxu0 0
      %2898 = vmatprep.subr.bf16.mxu0 0
      %2899 = vmatpush1.bf16.msra.mxu0 0
      %2900 = vmatprep.subr.bf16.mxu0 0
      %2901 = vmatpush1.bf16.msra.mxu0 0
      %2902 = vmatprep.subr.bf16.mxu0 0
      %2903 = vmatpush1.bf16.msra.mxu0 0
      %2904 = vmatprep.subr.bf16.mxu0 0
      %2905 = vmatpush1.bf16.msra.mxu0 0
      %2906 = vmatprep.subr.bf16.mxu0 0
      %2907 = vmatpush1.bf16.msra.mxu0 0
      %2908 = vmatprep.subr.bf16.mxu0 0
      %2909 = vmatpush1.bf16.msra.mxu0 0
      %2910 = vmatprep.subr.bf16.mxu0 0
      %2911 = vmatpush1.bf16.msra.mxu0 0
      %2912 = vmatprep.subr.bf16.mxu0 0
      %2913 = vmatpush1.bf16.msra.mxu0 0
      %2914 = vmatprep.subr.bf16.mxu0 0
      %2915 = vmatpush1.bf16.msra.mxu0 0
      %2916 = vmatprep.subr.bf16.mxu0 0
      %2917 = vmatpush1.bf16.msra.mxu0 0
      %2918 = vmatprep.subr.bf16.mxu0 0
      %2919 = vmatpush1.bf16.msra.mxu0 0
      %2920 = vmatprep.mubr.bf16.mxu0 0
      %2921 = vmatmul.mubr.bf16.gmra.mrb[0].mxu0 %v2877
      %v2922 = vpop.f32.mrb[0].mxu0
      %v2923 = vadd.f32 %v2834, %v2922
      %v2924 = vpop.f32.mrb[0].mxu0
      %v2925 = vpop.f32.mrb[0].mxu0
      %v2926 = vadd.f32 %v2837, %v2925
      %v2927 = vpop.f32.mrb[0].mxu0
      %2928 = vmatprep.mubr.bf16.mxu0 0
      %2929 = vmatmul.mubr.bf16.gmra.mrb[0].mxu0 %v2880
      %v2930 = vpop.f32.mrb[0].mxu0
      %v2931 = vadd.f32 %v2842, %v2930
      %v2932 = vpop.f32.mrb[0].mxu0
      %v2933 = vpop.f32.mrb[0].mxu0
      %v2934 = vadd.f32 %v2845, %v2933
      %v2935 = vpop.f32.mrb[0].mxu0
      %2936 = vmatprep.mubr.bf16.mxu0 0
      %2937 = vmatmul.mubr.bf16.gmra.mrb[0].mxu0 %v2883
      %v2938 = vpop.f32.mrb[0].mxu0
      %v2939 = vadd.f32 %v2850, %v2938
      %v2940 = vpop.f32.mrb[0].mxu0
      %v2941 = vpop.f32.mrb[0].mxu0
      %v2942 = vadd.f32 %v2853, %v2941
      %v2943 = vpop.f32.mrb[0].mxu0
      %2944 = vmatprep.mubr.bf16.mxu0 0
      %2945 = vmatmul.mubr.bf16.gmra.mrb[0].mxu0 %v2886
      %v2946 = vpop.f32.mrb[0].mxu0
      %v2947 = vadd.f32 %v2858, %v2946
      %v2948 = vpop.f32.mrb[0].mxu0
      %v2949 = vpop.f32.mrb[0].mxu0
      %v2950 = vadd.f32 %v2861, %v2949
      %v2951 = vpop.f32.mrb[0].mxu0
      %2952 = vdwg.mxu0
      %v2953 = vpack.c.bf16 %v2440, %v2439
      %v2954 = vpack.c.bf16 %v2442, %v2441
      %v2955 = vpack.c.bf16 %v2444, %v2443
      %v2956 = vpack.c.bf16 %v2446, %v2445
      %s2957 = scalar_lea.vmem %s288, 368
      %v2958 = vld [vmem:[%s2957] sm:$0xf]
      %v2959 = vld [vmem:[%s2957 + $0x4] sm:$0xf]
      %v2960 = vld [vmem:[%s2957 + $0x8] sm:$0xf]
      %v2961 = vld [vmem:[%s2957 + $0xc] sm:$0xf]
      %v2966 = vunpack.c.l.b16 %v2958
      %v2967 = vunpack.c.l.b16 %v2959
      %v2968 = vunpack.c.l.b16 %v2960
      %v2969 = vunpack.c.l.b16 %v2961
      %v2970 = vpack.c.b16 %v2967, %v2966
      %v2971 = vpack.c.b16 %v2969, %v2968
      %v2975 = vsel %vm673, %v2953, 0
      %v2978 = vsel %vm673, %v2954, 0
      %v2981 = vsel %vm673, %v2955, 0
      %v2984 = vsel %vm673, %v2956, 0
      %2986 = vmatprep.subr.bf16.mxu0 0
      %2987 = vmatpush1.bf16.msra.mxu0 %v2970
      %2988 = vmatprep.subr.bf16.mxu0 0
      %2989 = vmatpush1.bf16.msra.mxu0 %v2971
      %2990 = vmatprep.subr.bf16.mxu0 0
      %2991 = vmatpush1.bf16.msra.mxu0 0
      %2992 = vmatprep.subr.bf16.mxu0 0
      %2993 = vmatpush1.bf16.msra.mxu0 0
      %2994 = vmatprep.subr.bf16.mxu0 0
      %2995 = vmatpush1.bf16.msra.mxu0 0
      %2996 = vmatprep.subr.bf16.mxu0 0
      %2997 = vmatpush1.bf16.msra.mxu0 0
      %2998 = vmatprep.subr.bf16.mxu0 0
      %2999 = vmatpush1.bf16.msra.mxu0 0
      %3000 = vmatprep.subr.bf16.mxu0 0
      %3001 = vmatpush1.bf16.msra.mxu0 0
      %3002 = vmatprep.subr.bf16.mxu0 0
      %3003 = vmatpush1.bf16.msra.mxu0 0
      %3004 = vmatprep.subr.bf16.mxu0 0
      %3005 = vmatpush1.bf16.msra.mxu0 0
      %3006 = vmatprep.subr.bf16.mxu0 0
      %3007 = vmatpush1.bf16.msra.mxu0 0
      %3008 = vmatprep.subr.bf16.mxu0 0
      %3009 = vmatpush1.bf16.msra.mxu0 0
      %3010 = vmatprep.subr.bf16.mxu0 0
      %3011 = vmatpush1.bf16.msra.mxu0 0
      %3012 = vmatprep.subr.bf16.mxu0 0
      %3013 = vmatpush1.bf16.msra.mxu0 0
      %3014 = vmatprep.subr.bf16.mxu0 0
      %3015 = vmatpush1.bf16.msra.mxu0 0
      %3016 = vmatprep.subr.bf16.mxu0 0
      %3017 = vmatpush1.bf16.msra.mxu0 0
      %3018 = vmatprep.mubr.bf16.mxu0 0
      %3019 = vmatmul.mubr.bf16.gmra.mrb[0].mxu0 %v2975
      %v3020 = vpop.f32.mrb[0].mxu0
      %v3021 = vadd.f32 0.0, %v3020
      %v3022 = vpop.f32.mrb[0].mxu0
      %v3023 = vpop.f32.mrb[0].mxu0
      %v3024 = vadd.f32 0.0, %v3023
      %v3025 = vpop.f32.mrb[0].mxu0
      %3026 = vmatprep.mubr.bf16.mxu0 0
      %3027 = vmatmul.mubr.bf16.gmra.mrb[0].mxu0 %v2978
      %v3028 = vpop.f32.mrb[0].mxu0
      %v3029 = vadd.f32 0.0, %v3028
      %v3030 = vpop.f32.mrb[0].mxu0
      %v3031 = vpop.f32.mrb[0].mxu0
      %v3032 = vadd.f32 0.0, %v3031
      %v3033 = vpop.f32.mrb[0].mxu0
      %3034 = vmatprep.mubr.bf16.mxu0 0
      %3035 = vmatmul.mubr.bf16.gmra.mrb[0].mxu0 %v2981
      %v3036 = vpop.f32.mrb[0].mxu0
      %v3037 = vadd.f32 0.0, %v3036
      %v3038 = vpop.f32.mrb[0].mxu0
      %v3039 = vpop.f32.mrb[0].mxu0
      %v3040 = vadd.f32 0.0, %v3039
      %v3041 = vpop.f32.mrb[0].mxu0
      %3042 = vmatprep.mubr.bf16.mxu0 0
      %3043 = vmatmul.mubr.bf16.gmra.mrb[0].mxu0 %v2984
      %v3044 = vpop.f32.mrb[0].mxu0
      %v3045 = vadd.f32 0.0, %v3044
      %v3046 = vpop.f32.mrb[0].mxu0
      %v3047 = vpop.f32.mrb[0].mxu0
      %v3048 = vadd.f32 0.0, %v3047
      %v3049 = vpop.f32.mrb[0].mxu0
      %3050 = vdwg.mxu0
      %v3051 = vadd.f32 %v2923, %v3021
      %v3052 = vadd.f32 %v2926, %v3024
      %v3053 = vadd.f32 %v2931, %v3029
      %v3054 = vadd.f32 %v2934, %v3032
      %v3055 = vadd.f32 %v2939, %v3037
      %v3056 = vadd.f32 %v2942, %v3040
      %v3057 = vadd.f32 %v2947, %v3045
      %v3058 = vadd.f32 %v2950, %v3048
      %v3059 = vadd.f32 %v2749, %v3051
      %v3060 = vadd.f32 %v2750, %v3052
      %v3061 = vadd.f32 %v2751, %v3053
      %v3062 = vadd.f32 %v2752, %v3054
      %v3063 = vadd.f32 %v2753, %v3055
      %v3064 = vadd.f32 %v2754, %v3056
      %v3065 = vadd.f32 %v2755, %v3057
      %v3066 = vadd.f32 %v2756, %v3058
      %s3067 = scalar_lea.vmem %s288, 384
      %v3068 = vld [vmem:[%s3067] sm:$0xf]
      %v3069 = vld [vmem:[%s3067 + $0x4] sm:$0xf]
      %v3070 = vld [vmem:[%s3067 + $0x8] sm:$0xf]
      %v3071 = vld [vmem:[%s3067 + $0xc] sm:$0xf]
      %s3072 = scalar_lea.vmem %s288, 400
      %v3073 = vld [vmem:[%s3072] sm:$0xf]
      %v3074 = vld [vmem:[%s3072 + $0x4] sm:$0xf]
      %v3075 = vld [vmem:[%s3072 + $0x8] sm:$0xf]
      %v3076 = vld [vmem:[%s3072 + $0xc] sm:$0xf]
      %v3081 = vunpack.c.l.b16 %v3073
      %v3082 = vunpack.c.l.b16 %v3074
      %v3083 = vunpack.c.l.b16 %v3075
      %v3084 = vunpack.c.l.b16 %v3076
      %v3085 = vpack.c.b16 %v3082, %v3081
      %v3086 = vpack.c.b16 %v3084, %v3083
      %3089 = vmatprep.subr.bf16.mxu0 0
      %3090 = vmatpush1.bf16.msra.mxu0 %v3085
      %3091 = vmatprep.subr.bf16.mxu0 0
      %3092 = vmatpush1.bf16.msra.mxu0 %v3086
      %3093 = vmatprep.subr.bf16.mxu0 0
      %3094 = vmatpush1.bf16.msra.mxu0 0
      %3095 = vmatprep.subr.bf16.mxu0 0
      %3096 = vmatpush1.bf16.msra.mxu0 0
      %3097 = vmatprep.subr.bf16.mxu0 0
      %3098 = vmatpush1.bf16.msra.mxu0 0
      %3099 = vmatprep.subr.bf16.mxu0 0
      %3100 = vmatpush1.bf16.msra.mxu0 0
      %3101 = vmatprep.subr.bf16.mxu0 0
      %3102 = vmatpush1.bf16.msra.mxu0 0
      %3103 = vmatprep.subr.bf16.mxu0 0
      %3104 = vmatpush1.bf16.msra.mxu0 0
      %3105 = vmatprep.subr.bf16.mxu0 0
      %3106 = vmatpush1.bf16.msra.mxu0 0
      %3107 = vmatprep.subr.bf16.mxu0 0
      %3108 = vmatpush1.bf16.msra.mxu0 0
      %3109 = vmatprep.subr.bf16.mxu0 0
      %3110 = vmatpush1.bf16.msra.mxu0 0
      %3111 = vmatprep.subr.bf16.mxu0 0
      %3112 = vmatpush1.bf16.msra.mxu0 0
      %3113 = vmatprep.subr.bf16.mxu0 0
      %3114 = vmatpush1.bf16.msra.mxu0 0
      %3115 = vmatprep.subr.bf16.mxu0 0
      %3116 = vmatpush1.bf16.msra.mxu0 0
      %3117 = vmatprep.subr.bf16.mxu0 0
      %3118 = vmatpush1.bf16.msra.mxu0 0
      %3119 = vmatprep.subr.bf16.mxu0 0
      %3120 = vmatpush1.bf16.msra.mxu0 0
      %3121 = vmatprep.mubr.bf16.mxu0 0
      %3122 = vmatmul.mubr.bf16.gmra.mrb[0].mxu0 %v2481
      %v3123 = vpop.f32.mrb[0].mxu0
      %v3124 = vadd.f32 0.0, %v3123
      %v3125 = vpop.f32.mrb[0].mxu0
      %v3126 = vpop.f32.mrb[0].mxu0
      %v3127 = vadd.f32 0.0, %v3126
      %v3128 = vpop.f32.mrb[0].mxu0
      %3129 = vmatprep.mubr.bf16.mxu0 0
      %3130 = vmatmul.mubr.bf16.gmra.mrb[0].mxu0 %v2484
      %v3131 = vpop.f32.mrb[0].mxu0
      %v3132 = vadd.f32 0.0, %v3131
      %v3133 = vpop.f32.mrb[0].mxu0
      %v3134 = vpop.f32.mrb[0].mxu0
      %v3135 = vadd.f32 0.0, %v3134
      %v3136 = vpop.f32.mrb[0].mxu0
      %3137 = vmatprep.mubr.bf16.mxu0 0
      %3138 = vmatmul.mubr.bf16.gmra.mrb[0].mxu0 %v2487
      %v3139 = vpop.f32.mrb[0].mxu0
      %v3140 = vadd.f32 0.0, %v3139
      %v3141 = vpop.f32.mrb[0].mxu0
      %v3142 = vpop.f32.mrb[0].mxu0
      %v3143 = vadd.f32 0.0, %v3142
      %v3144 = vpop.f32.mrb[0].mxu0
      %3145 = vmatprep.mubr.bf16.mxu0 0
      %3146 = vmatmul.mubr.bf16.gmra.mrb[0].mxu0 %v2478
      %v3147 = vpop.f32.mrb[0].mxu0
      %v3148 = vadd.f32 0.0, %v3147
      %v3149 = vpop.f32.mrb[0].mxu0
      %v3150 = vpop.f32.mrb[0].mxu0
      %v3151 = vadd.f32 0.0, %v3150
      %v3152 = vpop.f32.mrb[0].mxu0
      %3153 = vdwg.mxu0
      %v3158 = vunpack.c.l.b16 %v3068
      %v3159 = vunpack.c.l.b16 %v3069
      %v3160 = vunpack.c.l.b16 %v3070
      %v3161 = vunpack.c.l.b16 %v3071
      %v3162 = vpack.c.b16 %v3159, %v3158
      %v3163 = vpack.c.b16 %v3161, %v3160
      %3166 = vmatprep.subr.bf16.mxu0 0
      %3167 = vmatpush1.bf16.msra.mxu0 %v3162
      %3168 = vmatprep.subr.bf16.mxu0 0
      %3169 = vmatpush1.bf16.msra.mxu0 %v3163
      %3170 = vmatprep.subr.bf16.mxu0 0
      %3171 = vmatpush1.bf16.msra.mxu0 0
      %3172 = vmatprep.subr.bf16.mxu0 0
      %3173 = vmatpush1.bf16.msra.mxu0 0
      %3174 = vmatprep.subr.bf16.mxu0 0
      %3175 = vmatpush1.bf16.msra.mxu0 0
      %3176 = vmatprep.subr.bf16.mxu0 0
      %3177 = vmatpush1.bf16.msra.mxu0 0
      %3178 = vmatprep.subr.bf16.mxu0 0
      %3179 = vmatpush1.bf16.msra.mxu0 0
      %3180 = vmatprep.subr.bf16.mxu0 0
      %3181 = vmatpush1.bf16.msra.mxu0 0
      %3182 = vmatprep.subr.bf16.mxu0 0
      %3183 = vmatpush1.bf16.msra.mxu0 0
      %3184 = vmatprep.subr.bf16.mxu0 0
      %3185 = vmatpush1.bf16.msra.mxu0 0
      %3186 = vmatprep.subr.bf16.mxu0 0
      %3187 = vmatpush1.bf16.msra.mxu0 0
      %3188 = vmatprep.subr.bf16.mxu0 0
      %3189 = vmatpush1.bf16.msra.mxu0 0
      %3190 = vmatprep.subr.bf16.mxu0 0
      %3191 = vmatpush1.bf16.msra.mxu0 0
      %3192 = vmatprep.subr.bf16.mxu0 0
      %3193 = vmatpush1.bf16.msra.mxu0 0
      %3194 = vmatprep.subr.bf16.mxu0 0
      %3195 = vmatpush1.bf16.msra.mxu0 0
      %3196 = vmatprep.subr.bf16.mxu0 0
      %3197 = vmatpush1.bf16.msra.mxu0 0
      %3198 = vmatprep.mubr.bf16.mxu0 0
      %3199 = vmatmul.mubr.bf16.gmra.mrb[0].mxu0 %v2570
      %v3200 = vpop.f32.mrb[0].mxu0
      %v3201 = vadd.f32 %v3124, %v3200
      %v3202 = vpop.f32.mrb[0].mxu0
      %v3203 = vpop.f32.mrb[0].mxu0
      %v3204 = vadd.f32 %v3127, %v3203
      %v3205 = vpop.f32.mrb[0].mxu0
      %3206 = vmatprep.mubr.bf16.mxu0 0
      %3207 = vmatmul.mubr.bf16.gmra.mrb[0].mxu0 %v2573
      %v3208 = vpop.f32.mrb[0].mxu0
      %v3209 = vadd.f32 %v3132, %v3208
      %v3210 = vpop.f32.mrb[0].mxu0
      %v3211 = vpop.f32.mrb[0].mxu0
      %v3212 = vadd.f32 %v3135, %v3211
      %v3213 = vpop.f32.mrb[0].mxu0
      %3214 = vmatprep.mubr.bf16.mxu0 0
      %3215 = vmatmul.mubr.bf16.gmra.mrb[0].mxu0 %v2576
      %v3216 = vpop.f32.mrb[0].mxu0
      %v3217 = vadd.f32 %v3140, %v3216
      %v3218 = vpop.f32.mrb[0].mxu0
      %v3219 = vpop.f32.mrb[0].mxu0
      %v3220 = vadd.f32 %v3143, %v3219
      %v3221 = vpop.f32.mrb[0].mxu0
      %3222 = vmatprep.mubr.bf16.mxu0 0
      %3223 = vmatmul.mubr.bf16.gmra.mrb[0].mxu0 %v2567
      %v3224 = vpop.f32.mrb[0].mxu0
      %v3225 = vadd.f32 %v3148, %v3224
      %v3226 = vpop.f32.mrb[0].mxu0
      %v3227 = vpop.f32.mrb[0].mxu0
      %v3228 = vadd.f32 %v3151, %v3227
      %v3229 = vpop.f32.mrb[0].mxu0
      %3230 = vdwg.mxu0
      %s3231 = scalar_lea.vmem %s288, 416
      %v3232 = vld [vmem:[%s3231] sm:$0xf]
      %v3233 = vld [vmem:[%s3231 + $0x4] sm:$0xf]
      %v3234 = vld [vmem:[%s3231 + $0x8] sm:$0xf]
      %v3235 = vld [vmem:[%s3231 + $0xc] sm:$0xf]
      %v3240 = vunpack.c.l.b16 %v3232
      %v3241 = vunpack.c.l.b16 %v3233
      %v3242 = vunpack.c.l.b16 %v3234
      %v3243 = vunpack.c.l.b16 %v3235
      %v3244 = vpack.c.b16 %v3241, %v3240
      %v3245 = vpack.c.b16 %v3243, %v3242
      %3248 = vmatprep.subr.bf16.mxu0 0
      %3249 = vmatpush1.bf16.msra.mxu0 %v3244
      %3250 = vmatprep.subr.bf16.mxu0 0
      %3251 = vmatpush1.bf16.msra.mxu0 %v3245
      %3252 = vmatprep.subr.bf16.mxu0 0
      %3253 = vmatpush1.bf16.msra.mxu0 0
      %3254 = vmatprep.subr.bf16.mxu0 0
      %3255 = vmatpush1.bf16.msra.mxu0 0
      %3256 = vmatprep.subr.bf16.mxu0 0
      %3257 = vmatpush1.bf16.msra.mxu0 0
      %3258 = vmatprep.subr.bf16.mxu0 0
      %3259 = vmatpush1.bf16.msra.mxu0 0
      %3260 = vmatprep.subr.bf16.mxu0 0
      %3261 = vmatpush1.bf16.msra.mxu0 0
      %3262 = vmatprep.subr.bf16.mxu0 0
      %3263 = vmatpush1.bf16.msra.mxu0 0
      %3264 = vmatprep.subr.bf16.mxu0 0
      %3265 = vmatpush1.bf16.msra.mxu0 0
      %3266 = vmatprep.subr.bf16.mxu0 0
      %3267 = vmatpush1.bf16.msra.mxu0 0
      %3268 = vmatprep.subr.bf16.mxu0 0
      %3269 = vmatpush1.bf16.msra.mxu0 0
      %3270 = vmatprep.subr.bf16.mxu0 0
      %3271 = vmatpush1.bf16.msra.mxu0 0
      %3272 = vmatprep.subr.bf16.mxu0 0
      %3273 = vmatpush1.bf16.msra.mxu0 0
      %3274 = vmatprep.subr.bf16.mxu0 0
      %3275 = vmatpush1.bf16.msra.mxu0 0
      %3276 = vmatprep.subr.bf16.mxu0 0
      %3277 = vmatpush1.bf16.msra.mxu0 0
      %3278 = vmatprep.subr.bf16.mxu0 0
      %3279 = vmatpush1.bf16.msra.mxu0 0
      %3280 = vmatprep.mubr.bf16.mxu0 0
      %3281 = vmatmul.mubr.bf16.gmra.mrb[0].mxu0 %v2668
      %v3282 = vpop.f32.mrb[0].mxu0
      %v3283 = vadd.f32 0.0, %v3282
      %v3284 = vpop.f32.mrb[0].mxu0
      %v3285 = vpop.f32.mrb[0].mxu0
      %v3286 = vadd.f32 0.0, %v3285
      %v3287 = vpop.f32.mrb[0].mxu0
      %3288 = vmatprep.mubr.bf16.mxu0 0
      %3289 = vmatmul.mubr.bf16.gmra.mrb[0].mxu0 %v2671
      %v3290 = vpop.f32.mrb[0].mxu0
      %v3291 = vadd.f32 0.0, %v3290
      %v3292 = vpop.f32.mrb[0].mxu0
      %v3293 = vpop.f32.mrb[0].mxu0
      %v3294 = vadd.f32 0.0, %v3293
      %v3295 = vpop.f32.mrb[0].mxu0
      %3296 = vmatprep.mubr.bf16.mxu0 0
      %3297 = vmatmul.mubr.bf16.gmra.mrb[0].mxu0 %v2674
      %v3298 = vpop.f32.mrb[0].mxu0
      %v3299 = vadd.f32 0.0, %v3298
      %v3300 = vpop.f32.mrb[0].mxu0
      %v3301 = vpop.f32.mrb[0].mxu0
      %v3302 = vadd.f32 0.0, %v3301
      %v3303 = vpop.f32.mrb[0].mxu0
      %3304 = vmatprep.mubr.bf16.mxu0 0
      %3305 = vmatmul.mubr.bf16.gmra.mrb[0].mxu0 %v2665
      %v3306 = vpop.f32.mrb[0].mxu0
      %v3307 = vadd.f32 0.0, %v3306
      %v3308 = vpop.f32.mrb[0].mxu0
      %v3309 = vpop.f32.mrb[0].mxu0
      %v3310 = vadd.f32 0.0, %v3309
      %v3311 = vpop.f32.mrb[0].mxu0
      %3312 = vdwg.mxu0
      %v3313 = vadd.f32 %v3201, %v3283
      %v3314 = vadd.f32 %v3204, %v3286
      %v3315 = vadd.f32 %v3209, %v3291
      %v3316 = vadd.f32 %v3212, %v3294
      %v3317 = vadd.f32 %v3217, %v3299
      %v3318 = vadd.f32 %v3220, %v3302
      %v3319 = vadd.f32 %v3225, %v3307
      %v3320 = vadd.f32 %v3228, %v3310
      %v3321 = vsel %vm401, %v3313, 0.0
      %v3322 = vsel %vm402, %v3314, 0.0
      %v3323 = vsel %vm403, %v3315, 0.0
      %v3324 = vsel %vm404, %v3316, 0.0
      %v3325 = vsel %vm405, %v3317, 0.0
      %v3326 = vsel %vm406, %v3318, 0.0
      %v3327 = vsel %vm407, %v3319, 0.0
      %v3328 = vsel %vm408, %v3320, 0.0
      %v3329 = vadd.f32 %v3059, %v3321
      %v3330 = vadd.f32 %v3060, %v3322
      %v3331 = vadd.f32 %v3061, %v3323
      %v3332 = vadd.f32 %v3062, %v3324
      %v3333 = vadd.f32 %v3063, %v3325
      %v3334 = vadd.f32 %v3064, %v3326
      %v3335 = vadd.f32 %v3065, %v3327
      %v3336 = vadd.f32 %v3066, %v3328
      %s3337 = scalar_lea.vmem %s5, 2
      %v3338 = vld [vmem:[%s3337] sm:$0x1]
      %v3340 = vlaneseq
      %v3341 = vshrl.u32 %v3340, 7
      %v3342 = vsub.s32 0, %v3341
      %v3343 = vrot.slane %v3338, %v3342
      %v3345 = vadd.f32 %v3329, %v3343
      %v3346 = vadd.f32 %v3330, %v3343
      %v3347 = vadd.f32 %v3331, %v3343
      %v3348 = vadd.f32 %v3332, %v3343
      %v3349 = vadd.f32 %v3333, %v3343
      %v3350 = vadd.f32 %v3334, %v3343
      %v3351 = vadd.f32 %v3335, %v3343
      %v3352 = vadd.f32 %v3336, %v3343
      %v3353 = vmul.f32 %v3345, 0.2
      %v3354 = vmul.f32 %v3346, 0.2
      %v3355 = vmul.f32 %v3347, 0.2
      %v3356 = vmul.f32 %v3348, 0.2
      %v3357 = vmul.f32 %v3349, 0.2
      %v3358 = vmul.f32 %v3350, 0.2
      %v3359 = vmul.f32 %v3351, 0.2
      %v3360 = vmul.f32 %v3352, 0.2
      %v3361 = vmax.f32 %v3345, %v3353
      %v3362 = vmax.f32 %v3346, %v3354
      %v3363 = vmax.f32 %v3347, %v3355
      %v3364 = vmax.f32 %v3348, %v3356
      %v3365 = vmax.f32 %v3349, %v3357
      %v3366 = vmax.f32 %v3350, %v3358
      %v3367 = vmax.f32 %v3351, %v3359
      %v3368 = vmax.f32 %v3352, %v3360
      %v3369 = vmax.f32 %v3361, -362.03867
      %v3370 = vmax.f32 %v3362, -362.03867
      %v3371 = vmax.f32 %v3363, -362.03867
      %v3372 = vmax.f32 %v3364, -362.03867
      %v3373 = vmax.f32 %v3365, -362.03867
      %v3374 = vmax.f32 %v3366, -362.03867
      %v3375 = vmax.f32 %v3367, -362.03867
      %v3376 = vmax.f32 %v3368, -362.03867
      %v3377 = vmin.f32 %v3369, 362.03867
      %v3378 = vmin.f32 %v3370, 362.03867
      %v3379 = vmin.f32 %v3371, 362.03867
      %v3380 = vmin.f32 %v3372, 362.03867
      %v3381 = vmin.f32 %v3373, 362.03867
      %v3382 = vmin.f32 %v3374, 362.03867
      %v3383 = vmin.f32 %v3375, 362.03867
      %v3384 = vmin.f32 %v3376, 362.03867
      %v3385 = vpack.c.bf16 %v3378, %v3377
      %v3386 = vpack.c.bf16 %v3380, %v3379
      %v3387 = vpack.c.bf16 %v3382, %v3381
      %v3388 = vpack.c.bf16 %v3384, %v3383
      %v3389 = vpack.c.bf16 %v1314, %v1313
      %s3390 = scalar_lea.vmem %s293, 16
      %v3391 = vld [vmem:[%s3390] sm:$0xf]
      %v3392 = vld [vmem:[%s3390 + $0x4] sm:$0xf]
      %v3393 = vld [vmem:[%s3390 + $0x8] sm:$0xf]
      %v3394 = vld [vmem:[%s3390 + $0xc] sm:$0xf]
      %s3395 = scalar_lea.vmem %s6, 1
      %v3396 = vld [vmem:[%s3395] sm:$0x1]
      %v3398 = vlaneseq
      %v3399 = vshrl.u32 %v3398, 7
      %v3400 = vsub.s32 0, %v3399
      %v3401 = vrot.slane %v3396, %v3400
      %v3407 = vunpack.c.l.b16 %v3391
      %v3408 = vunpack.c.l.b16 %v3392
      %v3409 = vunpack.c.l.b16 %v3393
      %v3410 = vunpack.c.l.b16 %v3394
      %v3411 = vpack.c.b16 %v3408, %v3407
      %v3412 = vpack.c.b16 %v3410, %v3409
      %v3416 = vsel %vm673, %v3385, 0
      %v3419 = vsel %vm673, %v3386, 0
      %v3422 = vsel %vm673, %v3387, 0
      %v3425 = vsel %vm673, %v3388, 0
      %3427 = vmatprep.subr.bf16.mxu0 0
      %3428 = vmatpush1.bf16.msra.mxu0 %v3411
      %3429 = vmatprep.subr.bf16.mxu0 0
      %3430 = vmatpush1.bf16.msra.mxu0 %v3412
      %3431 = vmatprep.subr.bf16.mxu0 0
      %3432 = vmatpush1.bf16.msra.mxu0 0
      %3433 = vmatprep.subr.bf16.mxu0 0
      %3434 = vmatpush1.bf16.msra.mxu0 0
      %3435 = vmatprep.subr.bf16.mxu0 0
      %3436 = vmatpush1.bf16.msra.mxu0 0
      %3437 = vmatprep.subr.bf16.mxu0 0
      %3438 = vmatpush1.bf16.msra.mxu0 0
      %3439 = vmatprep.subr.bf16.mxu0 0
      %3440 = vmatpush1.bf16.msra.mxu0 0
      %3441 = vmatprep.subr.bf16.mxu0 0
      %3442 = vmatpush1.bf16.msra.mxu0 0
      %3443 = vmatprep.subr.bf16.mxu0 0
      %3444 = vmatpush1.bf16.msra.mxu0 0
      %3445 = vmatprep.subr.bf16.mxu0 0
      %3446 = vmatpush1.bf16.msra.mxu0 0
      %3447 = vmatprep.subr.bf16.mxu0 0
      %3448 = vmatpush1.bf16.msra.mxu0 0
      %3449 = vmatprep.subr.bf16.mxu0 0
      %3450 = vmatpush1.bf16.msra.mxu0 0
      %3451 = vmatprep.subr.bf16.mxu0 0
      %3452 = vmatpush1.bf16.msra.mxu0 0
      %3453 = vmatprep.subr.bf16.mxu0 0
      %3454 = vmatpush1.bf16.msra.mxu0 0
      %3455 = vmatprep.subr.bf16.mxu0 0
      %3456 = vmatpush1.bf16.msra.mxu0 0
      %3457 = vmatprep.subr.bf16.mxu0 0
      %3458 = vmatpush1.bf16.msra.mxu0 0
      %3459 = vmatprep.mubr.bf16.mxu0 0
      %3460 = vmatmul.mubr.bf16.gmra.mrb[0].mxu0 %v3416
      %v3461 = vpop.f32.mrb[0].mxu0
      %v3462 = vadd.f32 %v3401, %v3461
      %v3463 = vpop.f32.mrb[0].mxu0
      %v3464 = vpop.f32.mrb[0].mxu0
      %v3465 = vadd.f32 %v3401, %v3464
      %v3466 = vpop.f32.mrb[0].mxu0
      %3467 = vmatprep.mubr.bf16.mxu0 0
      %3468 = vmatmul.mubr.bf16.gmra.mrb[0].mxu0 %v3419
      %v3469 = vpop.f32.mrb[0].mxu0
      %v3470 = vadd.f32 %v3401, %v3469
      %v3471 = vpop.f32.mrb[0].mxu0
      %v3472 = vpop.f32.mrb[0].mxu0
      %v3473 = vadd.f32 %v3401, %v3472
      %v3474 = vpop.f32.mrb[0].mxu0
      %3475 = vmatprep.mubr.bf16.mxu0 0
      %3476 = vmatmul.mubr.bf16.gmra.mrb[0].mxu0 %v3422
      %v3477 = vpop.f32.mrb[0].mxu0
      %v3478 = vadd.f32 %v3401, %v3477
      %v3479 = vpop.f32.mrb[0].mxu0
      %v3480 = vpop.f32.mrb[0].mxu0
      %v3481 = vadd.f32 %v3401, %v3480
      %v3482 = vpop.f32.mrb[0].mxu0
      %3483 = vmatprep.mubr.bf16.mxu0 0
      %3484 = vmatmul.mubr.bf16.gmra.mrb[0].mxu0 %v3425
      %v3485 = vpop.f32.mrb[0].mxu0
      %v3486 = vadd.f32 %v3401, %v3485
      %v3487 = vpop.f32.mrb[0].mxu0
      %v3488 = vpop.f32.mrb[0].mxu0
      %v3489 = vadd.f32 %v3401, %v3488
      %v3490 = vpop.f32.mrb[0].mxu0
      %3491 = vdwg.mxu0
      %v3492 = vmax.f32 %v3462, -256.0
      %v3493 = vmax.f32 %v3465, -256.0
      %v3494 = vmax.f32 %v3470, -256.0
      %v3495 = vmax.f32 %v3473, -256.0
      %v3496 = vmax.f32 %v3478, -256.0
      %v3497 = vmax.f32 %v3481, -256.0
      %v3498 = vmax.f32 %v3486, -256.0
      %v3499 = vmax.f32 %v3489, -256.0
      %v3500 = vmin.f32 %v3492, 256.0
      %v3501 = vmin.f32 %v3493, 256.0
      %v3502 = vmin.f32 %v3494, 256.0
      %v3503 = vmin.f32 %v3495, 256.0
      %v3504 = vmin.f32 %v3496, 256.0
      %v3505 = vmin.f32 %v3497, 256.0
      %v3506 = vmin.f32 %v3498, 256.0
      %v3507 = vmin.f32 %v3499, 256.0
      %3508 = vmatprep.subr.bf16.mxu0 0
      %3509 = vmatpush1.bf16.msra.mxu0 %v3389
      %3510 = vmatprep.subr.bf16.mxu0 0
      %3511 = vmatpush1.bf16.msra.mxu0 0
      %3512 = vmatprep.subr.bf16.mxu0 0
      %3513 = vmatpush1.bf16.msra.mxu0 0
      %3514 = vmatprep.subr.bf16.mxu0 0
      %3515 = vmatpush1.bf16.msra.mxu0 0
      %3516 = vmatprep.subr.bf16.mxu0 0
      %3517 = vmatpush1.bf16.msra.mxu0 0
      %3518 = vmatprep.subr.bf16.mxu0 0
      %3519 = vmatpush1.bf16.msra.mxu0 0
      %3520 = vmatprep.subr.bf16.mxu0 0
      %3521 = vmatpush1.bf16.msra.mxu0 0
      %3522 = vmatprep.subr.bf16.mxu0 0
      %3523 = vmatpush1.bf16.msra.mxu0 0
      %3524 = vmatprep.subr.bf16.mxu0 0
      %3525 = vmatpush1.bf16.msra.mxu0 0
      %3526 = vmatprep.subr.bf16.mxu0 0
      %3527 = vmatpush1.bf16.msra.mxu0 0
      %3528 = vmatprep.subr.bf16.mxu0 0
      %3529 = vmatpush1.bf16.msra.mxu0 0
      %3530 = vmatprep.subr.bf16.mxu0 0
      %3531 = vmatpush1.bf16.msra.mxu0 0
      %3532 = vmatprep.subr.bf16.mxu0 0
      %3533 = vmatpush1.bf16.msra.mxu0 0
      %3534 = vmatprep.subr.bf16.mxu0 0
      %3535 = vmatpush1.bf16.msra.mxu0 0
      %3536 = vmatprep.subr.bf16.mxu0 0
      %3537 = vmatpush1.bf16.msra.mxu0 0
      %3538 = vmatprep.subr.bf16.mxu0 0
      %3539 = vmatpush1.bf16.msra.mxu0 0
      %3540 = vmatprep.mubr.bf16.mxu0 0
      %3541 = vmatmul.mubr.bf16.gmra.mrb[0].mxu0 %v1337
      %v3542 = vpop.f32.mrb[0].mxu0
      %v3543 = vadd.f32 %v3500, %v3542
      %v3544 = vpop.f32.mrb[0].mxu0
      %v3545 = vpop.f32.mrb[0].mxu0
      %v3546 = vadd.f32 %v3501, %v3545
      %v3547 = vpop.f32.mrb[0].mxu0
      %3548 = vmatprep.mubr.bf16.mxu0 0
      %3549 = vmatmul.mubr.bf16.gmra.mrb[0].mxu0 %v1340
      %v3550 = vpop.f32.mrb[0].mxu0
      %v3551 = vadd.f32 %v3502, %v3550
      %v3552 = vpop.f32.mrb[0].mxu0
      %v3553 = vpop.f32.mrb[0].mxu0
      %v3554 = vadd.f32 %v3503, %v3553
      %v3555 = vpop.f32.mrb[0].mxu0
      %3556 = vmatprep.mubr.bf16.mxu0 0
      %3557 = vmatmul.mubr.bf16.gmra.mrb[0].mxu0 %v1343
      %v3558 = vpop.f32.mrb[0].mxu0
      %v3559 = vadd.f32 %v3504, %v3558
      %v3560 = vpop.f32.mrb[0].mxu0
      %v3561 = vpop.f32.mrb[0].mxu0
      %v3562 = vadd.f32 %v3505, %v3561
      %v3563 = vpop.f32.mrb[0].mxu0
      %3564 = vmatprep.mubr.bf16.mxu0 0
      %3565 = vmatmul.mubr.bf16.gmra.mrb[0].mxu0 %v1346
      %v3566 = vpop.f32.mrb[0].mxu0
      %v3567 = vadd.f32 %v3506, %v3566
      %v3568 = vpop.f32.mrb[0].mxu0
      %v3569 = vpop.f32.mrb[0].mxu0
      %v3570 = vadd.f32 %v3507, %v3569
      %v3571 = vpop.f32.mrb[0].mxu0
      %3572 = vdwg.mxu0
      %v3605 = vunpack.c.l.b16 %v308
      %v3606 = vunpack.c.l.b16 %v309
      %v3607 = vunpack.c.l.b16 %v310
      %v3608 = vunpack.c.l.b16 %v311
      %v3609 = vunpack.c.l.b16 %v312
      %v3610 = vunpack.c.l.b16 %v313
      %v3611 = vunpack.c.l.b16 %v314
      %v3612 = vunpack.c.l.b16 %v315
      %v3613 = vunpack.c.l.b16 %v316
      %v3614 = vunpack.c.l.b16 %v317
      %v3615 = vunpack.c.l.b16 %v318
      %v3616 = vunpack.c.l.b16 %v319
      %v3617 = vunpack.c.l.b16 %v320
      %v3618 = vunpack.c.l.b16 %v321
      %v3619 = vunpack.c.l.b16 %v322
      %v3620 = vunpack.c.l.b16 %v323
      %v3621 = vunpack.c.l.b16 %v324
      %v3622 = vunpack.c.l.b16 %v325
      %v3623 = vunpack.c.l.b16 %v326
      %v3624 = vunpack.c.l.b16 %v327
      %v3625 = vunpack.c.l.b16 %v328
      %v3626 = vunpack.c.l.b16 %v329
      %v3627 = vunpack.c.l.b16 %v330
      %v3628 = vunpack.c.l.b16 %v331
      %v3629 = vunpack.c.l.b16 %v332
      %v3630 = vunpack.c.l.b16 %v333
      %v3631 = vunpack.c.l.b16 %v334
      %v3632 = vunpack.c.l.b16 %v335
      %v3633 = vunpack.c.l.b16 %v336
      %v3634 = vunpack.c.l.b16 %v337
      %v3635 = vunpack.c.l.b16 %v338
      %v3636 = vunpack.c.l.b16 %v339
      %v3637 = vpack.c.b16 %v3606, %v3605
      %v3638 = vpack.c.b16 %v3608, %v3607
      %v3639 = vpack.c.b16 %v3610, %v3609
      %v3640 = vpack.c.b16 %v3612, %v3611
      %v3641 = vpack.c.b16 %v3614, %v3613
      %v3642 = vpack.c.b16 %v3616, %v3615
      %v3643 = vpack.c.b16 %v3618, %v3617
      %v3644 = vpack.c.b16 %v3620, %v3619
      %v3645 = vpack.c.b16 %v3622, %v3621
      %v3646 = vpack.c.b16 %v3624, %v3623
      %v3647 = vpack.c.b16 %v3626, %v3625
      %v3648 = vpack.c.b16 %v3628, %v3627
      %v3649 = vpack.c.b16 %v3630, %v3629
      %v3650 = vpack.c.b16 %v3632, %v3631
      %v3651 = vpack.c.b16 %v3634, %v3633
      %v3652 = vpack.c.b16 %v3636, %v3635
      %vm3653 = vcmask 523264
      %v3655 = vsel %vm3653, %v3637, 0
      %v3658 = vsel %vm3653, %v3638, 0
      %v3661 = vsel %vm3653, %v3639, 0
      %v3664 = vsel %vm3653, %v3640, 0
      %v3667 = vsel %vm3653, %v3641, 0
      %v3670 = vsel %vm3653, %v3642, 0
      %v3673 = vsel %vm3653, %v3643, 0
      %v3676 = vsel %vm3653, %v3644, 0
      %v3679 = vsel %vm3653, %v3645, 0
      %v3682 = vsel %vm3653, %v3646, 0
      %v3685 = vsel %vm3653, %v3647, 0
      %v3688 = vsel %vm3653, %v3648, 0
      %v3691 = vsel %vm3653, %v3649, 0
      %v3694 = vsel %vm3653, %v3650, 0
      %v3697 = vsel %vm3653, %v3651, 0
      %v3700 = vsel %vm3653, %v3652, 0
      %3702 = vmatprep.subr.bf16.mxu0 0
      %3703 = vmatpush1.bf16.msra.mxu0 %v3385
      %3704 = vmatprep.subr.bf16.mxu0 0
      %3705 = vmatpush1.bf16.msra.mxu0 %v3386
      %3706 = vmatprep.subr.bf16.mxu0 0
      %3707 = vmatpush1.bf16.msra.mxu0 %v3387
      %3708 = vmatprep.subr.bf16.mxu0 0
      %3709 = vmatpush1.bf16.msra.mxu0 %v3388
      %3710 = vmatprep.subr.bf16.mxu0 0
      %3711 = vmatpush1.bf16.msra.mxu0 0
      %3712 = vmatprep.subr.bf16.mxu0 0
      %3713 = vmatpush1.bf16.msra.mxu0 0
      %3714 = vmatprep.subr.bf16.mxu0 0
      %3715 = vmatpush1.bf16.msra.mxu0 0
      %3716 = vmatprep.subr.bf16.mxu0 0
      %3717 = vmatpush1.bf16.msra.mxu0 0
      %3718 = vmatprep.subr.bf16.mxu0 0
      %3719 = vmatpush1.bf16.msra.mxu0 0
      %3720 = vmatprep.subr.bf16.mxu0 0
      %3721 = vmatpush1.bf16.msra.mxu0 0
      %3722 = vmatprep.subr.bf16.mxu0 0
      %3723 = vmatpush1.bf16.msra.mxu0 0
      %3724 = vmatprep.subr.bf16.mxu0 0
      %3725 = vmatpush1.bf16.msra.mxu0 0
      %3726 = vmatprep.subr.bf16.mxu0 0
      %3727 = vmatpush1.bf16.msra.mxu0 0
      %3728 = vmatprep.subr.bf16.mxu0 0
      %3729 = vmatpush1.bf16.msra.mxu0 0
      %3730 = vmatprep.subr.bf16.mxu0 0
      %3731 = vmatpush1.bf16.msra.mxu0 0
      %3732 = vmatprep.subr.bf16.mxu0 0
      %3733 = vmatpush1.bf16.msra.mxu0 0
      %3734 = vmatprep.mubr.bf16.mxu0 0
      %3735 = vmatmul.mubr.bf16.gmra.mrb[0].mxu0 %v3655
      %v3736 = vpop.f32.mrb[0].mxu0
      %v3737 = vadd.f32 0.0, %v3736
      %v3738 = vpop.f32.mrb[0].mxu0
      %v3739 = vpop.f32.mrb[0].mxu0
      %v3740 = vadd.f32 0.0, %v3739
      %v3741 = vpop.f32.mrb[0].mxu0
      %3742 = vmatprep.mubr.bf16.mxu0 0
      %3743 = vmatmul.mubr.bf16.gmra.mrb[0].mxu0 %v3658
      %v3744 = vpop.f32.mrb[0].mxu0
      %v3745 = vadd.f32 0.0, %v3744
      %v3746 = vpop.f32.mrb[0].mxu0
      %v3747 = vpop.f32.mrb[0].mxu0
      %v3748 = vadd.f32 0.0, %v3747
      %v3749 = vpop.f32.mrb[0].mxu0
      %3750 = vmatprep.mubr.bf16.mxu0 0
      %3751 = vmatmul.mubr.bf16.gmra.mrb[0].mxu0 %v3661
      %v3752 = vpop.f32.mrb[0].mxu0
      %v3753 = vadd.f32 0.0, %v3752
      %v3754 = vpop.f32.mrb[0].mxu0
      %v3755 = vpop.f32.mrb[0].mxu0
      %v3756 = vadd.f32 0.0, %v3755
      %v3757 = vpop.f32.mrb[0].mxu0
      %3758 = vmatprep.mubr.bf16.mxu0 0
      %3759 = vmatmul.mubr.bf16.gmra.mrb[0].mxu0 %v3664
      %v3760 = vpop.f32.mrb[0].mxu0
      %v3761 = vadd.f32 0.0, %v3760
      %v3762 = vpop.f32.mrb[0].mxu0
      %v3763 = vpop.f32.mrb[0].mxu0
      %v3764 = vadd.f32 0.0, %v3763
      %v3765 = vpop.f32.mrb[0].mxu0
      %3766 = vmatprep.mubr.bf16.mxu0 0
      %3767 = vmatmul.mubr.bf16.gmra.mrb[0].mxu0 %v3667
      %v3768 = vpop.f32.mrb[0].mxu0
      %v3769 = vadd.f32 0.0, %v3768
      %v3770 = vpop.f32.mrb[0].mxu0
      %v3771 = vpop.f32.mrb[0].mxu0
      %v3772 = vadd.f32 0.0, %v3771
      %v3773 = vpop.f32.mrb[0].mxu0
      %3774 = vmatprep.mubr.bf16.mxu0 0
      %3775 = vmatmul.mubr.bf16.gmra.mrb[0].mxu0 %v3670
      %v3776 = vpop.f32.mrb[0].mxu0
      %v3777 = vadd.f32 0.0, %v3776
      %v3778 = vpop.f32.mrb[0].mxu0
      %v3779 = vpop.f32.mrb[0].mxu0
      %v3780 = vadd.f32 0.0, %v3779
      %v3781 = vpop.f32.mrb[0].mxu0
      %3782 = vmatprep.mubr.bf16.mxu0 0
      %3783 = vmatmul.mubr.bf16.gmra.mrb[0].mxu0 %v3673
      %v3784 = vpop.f32.mrb[0].mxu0
      %v3785 = vadd.f32 0.0, %v3784
      %v3786 = vpop.f32.mrb[0].mxu0
      %v3787 = vpop.f32.mrb[0].mxu0
      %v3788 = vadd.f32 0.0, %v3787
      %v3789 = vpop.f32.mrb[0].mxu0
      %3790 = vmatprep.mubr.bf16.mxu0 0
      %3791 = vmatmul.mubr.bf16.gmra.mrb[0].mxu0 %v3676
      %v3792 = vpop.f32.mrb[0].mxu0
      %v3793 = vadd.f32 0.0, %v3792
      %v3794 = vpop.f32.mrb[0].mxu0
      %v3795 = vpop.f32.mrb[0].mxu0
      %v3796 = vadd.f32 0.0, %v3795
      %v3797 = vpop.f32.mrb[0].mxu0
      %3798 = vmatprep.mubr.bf16.mxu0 0
      %3799 = vmatmul.mubr.bf16.gmra.mrb[0].mxu0 %v3679
      %v3800 = vpop.f32.mrb[0].mxu0
      %v3801 = vadd.f32 0.0, %v3800
      %v3802 = vpop.f32.mrb[0].mxu0
      %v3803 = vpop.f32.mrb[0].mxu0
      %v3804 = vadd.f32 0.0, %v3803
      %v3805 = vpop.f32.mrb[0].mxu0
      %3806 = vmatprep.mubr.bf16.mxu0 0
      %3807 = vmatmul.mubr.bf16.gmra.mrb[0].mxu0 %v3682
      %v3808 = vpop.f32.mrb[0].mxu0
      %v3809 = vadd.f32 0.0, %v3808
      %v3810 = vpop.f32.mrb[0].mxu0
      %v3811 = vpop.f32.mrb[0].mxu0
      %v3812 = vadd.f32 0.0, %v3811
      %v3813 = vpop.f32.mrb[0].mxu0
      %3814 = vmatprep.mubr.bf16.mxu0 0
      %3815 = vmatmul.mubr.bf16.gmra.mrb[0].mxu0 %v3685
      %v3816 = vpop.f32.mrb[0].mxu0
      %v3817 = vadd.f32 0.0, %v3816
      %v3818 = vpop.f32.mrb[0].mxu0
      %v3819 = vpop.f32.mrb[0].mxu0
      %v3820 = vadd.f32 0.0, %v3819
      %v3821 = vpop.f32.mrb[0].mxu0
      %3822 = vmatprep.mubr.bf16.mxu0 0
      %3823 = vmatmul.mubr.bf16.gmra.mrb[0].mxu0 %v3688
      %v3824 = vpop.f32.mrb[0].mxu0
      %v3825 = vadd.f32 0.0, %v3824
      %v3826 = vpop.f32.mrb[0].mxu0
      %v3827 = vpop.f32.mrb[0].mxu0
      %v3828 = vadd.f32 0.0, %v3827
      %v3829 = vpop.f32.mrb[0].mxu0
      %3830 = vmatprep.mubr.bf16.mxu0 0
      %3831 = vmatmul.mubr.bf16.gmra.mrb[0].mxu0 %v3691
      %v3832 = vpop.f32.mrb[0].mxu0
      %v3833 = vadd.f32 0.0, %v3832
      %v3834 = vpop.f32.mrb[0].mxu0
      %v3835 = vpop.f32.mrb[0].mxu0
      %v3836 = vadd.f32 0.0, %v3835
      %v3837 = vpop.f32.mrb[0].mxu0
      %3838 = vmatprep.mubr.bf16.mxu0 0
      %3839 = vmatmul.mubr.bf16.gmra.mrb[0].mxu0 %v3694
      %v3840 = vpop.f32.mrb[0].mxu0
      %v3841 = vadd.f32 0.0, %v3840
      %v3842 = vpop.f32.mrb[0].mxu0
      %v3843 = vpop.f32.mrb[0].mxu0
      %v3844 = vadd.f32 0.0, %v3843
      %v3845 = vpop.f32.mrb[0].mxu0
      %3846 = vmatprep.mubr.bf16.mxu0 0
      %3847 = vmatmul.mubr.bf16.gmra.mrb[0].mxu0 %v3697
      %v3848 = vpop.f32.mrb[0].mxu0
      %v3849 = vadd.f32 0.0, %v3848
      %v3850 = vpop.f32.mrb[0].mxu0
      %v3851 = vpop.f32.mrb[0].mxu0
      %v3852 = vadd.f32 0.0, %v3851
      %v3853 = vpop.f32.mrb[0].mxu0
      %3854 = vmatprep.mubr.bf16.mxu0 0
      %3855 = vmatmul.mubr.bf16.gmra.mrb[0].mxu0 %v3700
      %v3856 = vpop.f32.mrb[0].mxu0
      %v3857 = vadd.f32 0.0, %v3856
      %v3858 = vpop.f32.mrb[0].mxu0
      %v3859 = vpop.f32.mrb[0].mxu0
      %v3860 = vadd.f32 0.0, %v3859
      %v3861 = vpop.f32.mrb[0].mxu0
      %3862 = vdwg.mxu0
      %v3863 = vrot.slane %v3737, 7
      %v3864 = vrot.slane %v3740, 7
      %v3865 = vrot.slane %v3745, 7
      %v3866 = vrot.slane %v3748, 7
      %v3867 = vrot.slane %v3753, 7
      %v3868 = vrot.slane %v3756, 7
      %v3869 = vrot.slane %v3761, 7
      %v3870 = vrot.slane %v3764, 7
      %v3871 = vrot.slane %v3769, 7
      %v3872 = vrot.slane %v3772, 7
      %v3873 = vrot.slane %v3777, 7
      %v3874 = vrot.slane %v3780, 7
      %v3875 = vrot.slane %v3785, 7
      %v3876 = vrot.slane %v3788, 7
      %v3877 = vrot.slane %v3793, 7
      %v3878 = vrot.slane %v3796, 7
      %v3879 = vrot.slane %v3801, 7
      %v3880 = vrot.slane %v3804, 7
      %v3881 = vrot.slane %v3809, 7
      %v3882 = vrot.slane %v3812, 7
      %v3883 = vrot.slane %v3817, 7
      %v3884 = vrot.slane %v3820, 7
      %v3885 = vrot.slane %v3825, 7
      %v3886 = vrot.slane %v3828, 7
      %v3887 = vrot.slane %v3833, 7
      %v3888 = vrot.slane %v3836, 7
      %v3889 = vrot.slane %v3841, 7
      %v3890 = vrot.slane %v3844, 7
      %v3891 = vrot.slane %v3849, 7
      %v3892 = vrot.slane %v3852, 7
      %v3893 = vrot.slane %v3857, 7
      %v3894 = vrot.slane %v3860, 7
      %v3895 = vsel %vm629, %v3893, %v3894
      %v3896 = vsel %vm629, %v3892, %v3893
      %v3897 = vsel %vm629, %v3891, %v3892
      %v3898 = vsel %vm629, %v3890, %v3891
      %v3899 = vsel %vm629, %v3889, %v3890
      %v3900 = vsel %vm629, %v3888, %v3889
      %v3901 = vsel %vm629, %v3887, %v3888
      %v3902 = vsel %vm629, %v3886, %v3887
      %v3903 = vsel %vm629, %v3885, %v3886
      %v3904 = vsel %vm629, %v3884, %v3885
      %v3905 = vsel %vm629, %v3883, %v3884
      %v3906 = vsel %vm629, %v3882, %v3883
      %v3907 = vsel %vm629, %v3881, %v3882
      %v3908 = vsel %vm629, %v3880, %v3881
      %v3909 = vsel %vm629, %v3879, %v3880
      %v3910 = vsel %vm629, %v3878, %v3879
      %v3911 = vsel %vm629, %v3877, %v3878
      %v3912 = vsel %vm629, %v3876, %v3877
      %v3913 = vsel %vm629, %v3875, %v3876
      %v3914 = vsel %vm629, %v3874, %v3875
      %v3915 = vsel %vm629, %v3873, %v3874
      %v3916 = vsel %vm629, %v3872, %v3873
      %v3917 = vsel %vm629, %v3871, %v3872
      %v3918 = vsel %vm629, %v3870, %v3871
      %v3919 = vsel %vm629, %v3869, %v3870
      %v3920 = vsel %vm629, %v3868, %v3869
      %v3921 = vsel %vm629, %v3867, %v3868
      %v3922 = vsel %vm629, %v3866, %v3867
      %v3923 = vsel %vm629, %v3865, %v3866
      %v3924 = vsel %vm629, %v3864, %v3865
      %v3925 = vsel %vm629, %v3863, %v3864
      %v3926 = vsel %vm629, %v3894, %v3863
      %v3927 = vsel %vm497, %v3926, 0.0
      %v3928 = vsel %vm498, %v3925, 0.0
      %v3929 = vsel %vm499, %v3924, 0.0
      %v3930 = vsel %vm500, %v3923, 0.0
      %v3931 = vsel %vm501, %v3922, 0.0
      %v3932 = vsel %vm502, %v3921, 0.0
      %v3933 = vsel %vm503, %v3920, 0.0
      %v3934 = vsel %vm504, %v3919, 0.0
      %v3935 = vsel %vm505, %v3918, 0.0
      %v3936 = vsel %vm506, %v3917, 0.0
      %v3937 = vsel %vm507, %v3916, 0.0
      %v3938 = vsel %vm508, %v3915, 0.0
      %v3939 = vsel %vm509, %v3914, 0.0
      %v3940 = vsel %vm510, %v3913, 0.0
      %v3941 = vsel %vm511, %v3912, 0.0
      %v3942 = vsel %vm512, %v3911, 0.0
      %v3943 = vsel %vm513, %v3910, 0.0
      %v3944 = vsel %vm514, %v3909, 0.0
      %v3945 = vsel %vm515, %v3908, 0.0
      %v3946 = vsel %vm516, %v3907, 0.0
      %v3947 = vsel %vm517, %v3906, 0.0
      %v3948 = vsel %vm518, %v3905, 0.0
      %v3949 = vsel %vm519, %v3904, 0.0
      %v3950 = vsel %vm520, %v3903, 0.0
      %v3951 = vsel %vm521, %v3902, 0.0
      %v3952 = vsel %vm522, %v3901, 0.0
      %v3953 = vsel %vm523, %v3900, 0.0
      %v3954 = vsel %vm524, %v3899, 0.0
      %v3955 = vsel %vm525, %v3898, 0.0
      %v3956 = vsel %vm526, %v3897, 0.0
      %v3957 = vsel %vm527, %v3896, 0.0
      %v3958 = vsel %vm528, %v3895, 0.0
      %v3959 = vrot.slane %v3737, 1
      %v3960 = vrot.slane %v3740, 1
      %v3961 = vrot.slane %v3745, 1
      %v3962 = vrot.slane %v3748, 1
      %v3963 = vrot.slane %v3753, 1
      %v3964 = vrot.slane %v3756, 1
      %v3965 = vrot.slane %v3761, 1
      %v3966 = vrot.slane %v3764, 1
      %v3967 = vrot.slane %v3769, 1
      %v3968 = vrot.slane %v3772, 1
      %v3969 = vrot.slane %v3777, 1
      %v3970 = vrot.slane %v3780, 1
      %v3971 = vrot.slane %v3785, 1
      %v3972 = vrot.slane %v3788, 1
      %v3973 = vrot.slane %v3793, 1
      %v3974 = vrot.slane %v3796, 1
      %v3975 = vrot.slane %v3801, 1
      %v3976 = vrot.slane %v3804, 1
      %v3977 = vrot.slane %v3809, 1
      %v3978 = vrot.slane %v3812, 1
      %v3979 = vrot.slane %v3817, 1
      %v3980 = vrot.slane %v3820, 1
      %v3981 = vrot.slane %v3825, 1
      %v3982 = vrot.slane %v3828, 1
      %v3983 = vrot.slane %v3833, 1
      %v3984 = vrot.slane %v3836, 1
      %v3985 = vrot.slane %v3841, 1
      %v3986 = vrot.slane %v3844, 1
      %v3987 = vrot.slane %v3849, 1
      %v3988 = vrot.slane %v3852, 1
      %v3989 = vrot.slane %v3857, 1
      %v3990 = vrot.slane %v3860, 1
      %v3991 = vsel %vm636, %v3989, %v3990
      %v3992 = vsel %vm636, %v3988, %v3989
      %v3993 = vsel %vm636, %v3987, %v3988
      %v3994 = vsel %vm636, %v3986, %v3987
      %v3995 = vsel %vm636, %v3985, %v3986
      %v3996 = vsel %vm636, %v3984, %v3985
      %v3997 = vsel %vm636, %v3983, %v3984
      %v3998 = vsel %vm636, %v3982, %v3983
      %v3999 = vsel %vm636, %v3981, %v3982
      %v4000 = vsel %vm636, %v3980, %v3981
      %v4001 = vsel %vm636, %v3979, %v3980
      %v4002 = vsel %vm636, %v3978, %v3979
      %v4003 = vsel %vm636, %v3977, %v3978
      %v4004 = vsel %vm636, %v3976, %v3977
      %v4005 = vsel %vm636, %v3975, %v3976
      %v4006 = vsel %vm636, %v3974, %v3975
      %v4007 = vsel %vm636, %v3973, %v3974
      %v4008 = vsel %vm636, %v3972, %v3973
      %v4009 = vsel %vm636, %v3971, %v3972
      %v4010 = vsel %vm636, %v3970, %v3971
      %v4011 = vsel %vm636, %v3969, %v3970
      %v4012 = vsel %vm636, %v3968, %v3969
      %v4013 = vsel %vm636, %v3967, %v3968
      %v4014 = vsel %vm636, %v3966, %v3967
      %v4015 = vsel %vm636, %v3965, %v3966
      %v4016 = vsel %vm636, %v3964, %v3965
      %v4017 = vsel %vm636, %v3963, %v3964
      %v4018 = vsel %vm636, %v3962, %v3963
      %v4019 = vsel %vm636, %v3961, %v3962
      %v4020 = vsel %vm636, %v3960, %v3961
      %v4021 = vsel %vm636, %v3959, %v3960
      %v4022 = vsel %vm636, %v3990, %v3959
      %v4023 = vsel %vm529, %v4021, 0.0
      %v4024 = vsel %vm530, %v4020, 0.0
      %v4025 = vsel %vm531, %v4019, 0.0
      %v4026 = vsel %vm532, %v4018, 0.0
      %v4027 = vsel %vm533, %v4017, 0.0
      %v4028 = vsel %vm534, %v4016, 0.0
      %v4029 = vsel %vm535, %v4015, 0.0
      %v4030 = vsel %vm536, %v4014, 0.0
      %v4031 = vsel %vm537, %v4013, 0.0
      %v4032 = vsel %vm538, %v4012, 0.0
      %v4033 = vsel %vm539, %v4011, 0.0
      %v4034 = vsel %vm540, %v4010, 0.0
      %v4035 = vsel %vm541, %v4009, 0.0
      %v4036 = vsel %vm542, %v4008, 0.0
      %v4037 = vsel %vm543, %v4007, 0.0
      %v4038 = vsel %vm544, %v4006, 0.0
      %v4039 = vsel %vm545, %v4005, 0.0
      %v4040 = vsel %vm546, %v4004, 0.0
      %v4041 = vsel %vm547, %v4003, 0.0
      %v4042 = vsel %vm548, %v4002, 0.0
      %v4043 = vsel %vm549, %v4001, 0.0
      %v4044 = vsel %vm550, %v4000, 0.0
      %v4045 = vsel %vm551, %v3999, 0.0
      %v4046 = vsel %vm552, %v3998, 0.0
      %v4047 = vsel %vm553, %v3997, 0.0
      %v4048 = vsel %vm554, %v3996, 0.0
      %v4049 = vsel %vm555, %v3995, 0.0
      %v4050 = vsel %vm556, %v3994, 0.0
      %v4051 = vsel %vm557, %v3993, 0.0
      %v4052 = vsel %vm558, %v3992, 0.0
      %v4053 = vsel %vm559, %v3991, 0.0
      %v4054 = vsel %vm560, %v4022, 0.0
      %v4055 = vpack.c.bf16 %v3958, %v3957
      %v4056 = vpack.c.bf16 %v3928, %v3927
      %v4057 = vpack.c.bf16 %v3930, %v3929
      %v4058 = vpack.c.bf16 %v3932, %v3931
      %v4059 = vpack.c.bf16 %v3934, %v3933
      %v4060 = vpack.c.bf16 %v3936, %v3935
      %v4061 = vpack.c.bf16 %v3938, %v3937
      %v4062 = vpack.c.bf16 %v3940, %v3939
      %v4063 = vpack.c.bf16 %v3942, %v3941
      %v4064 = vpack.c.bf16 %v3944, %v3943
      %v4065 = vpack.c.bf16 %v3946, %v3945
      %v4066 = vpack.c.bf16 %v3948, %v3947
      %v4067 = vpack.c.bf16 %v3950, %v3949
      %v4068 = vpack.c.bf16 %v3952, %v3951
      %v4069 = vpack.c.bf16 %v3954, %v3953
      %v4070 = vpack.c.bf16 %v3956, %v3955
      %s4071 = scalar_lea.vmem %s288, 432
      %v4072 = vld [vmem:[%s4071] sm:$0xf]
      %v4073 = vld [vmem:[%s4071 + $0x4] sm:$0xf]
      %v4074 = vld [vmem:[%s4071 + $0x8] sm:$0xf]
      %v4075 = vld [vmem:[%s4071 + $0xc] sm:$0xf]
      %v4076 = vpack.c.bf16 %v3860, %v3857
      %v4077 = vpack.c.bf16 %v3740, %v3737
      %v4078 = vpack.c.bf16 %v3748, %v3745
      %v4079 = vpack.c.bf16 %v3756, %v3753
      %v4080 = vpack.c.bf16 %v3764, %v3761
      %v4081 = vpack.c.bf16 %v3772, %v3769
      %v4082 = vpack.c.bf16 %v3780, %v3777
      %v4083 = vpack.c.bf16 %v3788, %v3785
      %v4084 = vpack.c.bf16 %v3796, %v3793
      %v4085 = vpack.c.bf16 %v3804, %v3801
      %v4086 = vpack.c.bf16 %v3812, %v3809
      %v4087 = vpack.c.bf16 %v3820, %v3817
      %v4088 = vpack.c.bf16 %v3828, %v3825
      %v4089 = vpack.c.bf16 %v3836, %v3833
      %v4090 = vpack.c.bf16 %v3844, %v3841
      %v4091 = vpack.c.bf16 %v3852, %v3849
      %s4092 = scalar_lea.vmem %s288, 448
      %v4093 = vld [vmem:[%s4092] sm:$0xf]
      %v4094 = vld [vmem:[%s4092 + $0x4] sm:$0xf]
      %v4095 = vld [vmem:[%s4092 + $0x8] sm:$0xf]
      %v4096 = vld [vmem:[%s4092 + $0xc] sm:$0xf]
      %v4101 = vunpack.c.l.b16 %v4093
      %v4102 = vunpack.c.l.b16 %v4094
      %v4103 = vunpack.c.l.b16 %v4095
      %v4104 = vunpack.c.l.b16 %v4096
      %v4105 = vpack.c.b16 %v4102, %v4101
      %v4106 = vpack.c.b16 %v4104, %v4103
      %v4110 = vsel %vm673, %v4076, 0
      %v4113 = vsel %vm673, %v4077, 0
      %v4116 = vsel %vm673, %v4078, 0
      %v4119 = vsel %vm673, %v4079, 0
      %v4122 = vsel %vm673, %v4080, 0
      %v4125 = vsel %vm673, %v4081, 0
      %v4128 = vsel %vm673, %v4082, 0
      %v4131 = vsel %vm673, %v4083, 0
      %v4134 = vsel %vm673, %v4084, 0
      %v4137 = vsel %vm673, %v4085, 0
      %v4140 = vsel %vm673, %v4086, 0
      %v4143 = vsel %vm673, %v4087, 0
      %v4146 = vsel %vm673, %v4088, 0
      %v4149 = vsel %vm673, %v4089, 0
      %v4152 = vsel %vm673, %v4090, 0
      %v4155 = vsel %vm673, %v4091, 0
      %4157 = vmatprep.subr.bf16.mxu0 0
      %4158 = vmatpush1.bf16.msra.mxu0 %v4105
      %4159 = vmatprep.subr.bf16.mxu0 0
      %4160 = vmatpush1.bf16.msra.mxu0 %v4106
      %4161 = vmatprep.subr.bf16.mxu0 0
      %4162 = vmatpush1.bf16.msra.mxu0 0
      %4163 = vmatprep.subr.bf16.mxu0 0
      %4164 = vmatpush1.bf16.msra.mxu0 0
      %4165 = vmatprep.subr.bf16.mxu0 0
      %4166 = vmatpush1.bf16.msra.mxu0 0
      %4167 = vmatprep.subr.bf16.mxu0 0
      %4168 = vmatpush1.bf16.msra.mxu0 0
      %4169 = vmatprep.subr.bf16.mxu0 0
      %4170 = vmatpush1.bf16.msra.mxu0 0
      %4171 = vmatprep.subr.bf16.mxu0 0
      %4172 = vmatpush1.bf16.msra.mxu0 0
      %4173 = vmatprep.subr.bf16.mxu0 0
      %4174 = vmatpush1.bf16.msra.mxu0 0
      %4175 = vmatprep.subr.bf16.mxu0 0
      %4176 = vmatpush1.bf16.msra.mxu0 0
      %4177 = vmatprep.subr.bf16.mxu0 0
      %4178 = vmatpush1.bf16.msra.mxu0 0
      %4179 = vmatprep.subr.bf16.mxu0 0
      %4180 = vmatpush1.bf16.msra.mxu0 0
      %4181 = vmatprep.subr.bf16.mxu0 0
      %4182 = vmatpush1.bf16.msra.mxu0 0
      %4183 = vmatprep.subr.bf16.mxu0 0
      %4184 = vmatpush1.bf16.msra.mxu0 0
      %4185 = vmatprep.subr.bf16.mxu0 0
      %4186 = vmatpush1.bf16.msra.mxu0 0
      %4187 = vmatprep.subr.bf16.mxu0 0
      %4188 = vmatpush1.bf16.msra.mxu0 0
      %4189 = vmatprep.mubr.bf16.mxu0 0
      %4190 = vmatmul.mubr.bf16.gmra.mrb[0].mxu0 %v4110
      %v4191 = vpop.f32.mrb[0].mxu0
      %v4192 = vadd.f32 0.0, %v4191
      %v4193 = vpop.f32.mrb[0].mxu0
      %v4194 = vpop.f32.mrb[0].mxu0
      %v4195 = vadd.f32 0.0, %v4194
      %v4196 = vpop.f32.mrb[0].mxu0
      %4197 = vmatprep.mubr.bf16.mxu0 0
      %4198 = vmatmul.mubr.bf16.gmra.mrb[0].mxu0 %v4113
      %v4199 = vpop.f32.mrb[0].mxu0
      %v4200 = vadd.f32 0.0, %v4199
      %v4201 = vpop.f32.mrb[0].mxu0
      %v4202 = vpop.f32.mrb[0].mxu0
      %v4203 = vadd.f32 0.0, %v4202
      %v4204 = vpop.f32.mrb[0].mxu0
      %4205 = vmatprep.mubr.bf16.mxu0 0
      %4206 = vmatmul.mubr.bf16.gmra.mrb[0].mxu0 %v4116
      %v4207 = vpop.f32.mrb[0].mxu0
      %v4208 = vadd.f32 0.0, %v4207
      %v4209 = vpop.f32.mrb[0].mxu0
      %v4210 = vpop.f32.mrb[0].mxu0
      %v4211 = vadd.f32 0.0, %v4210
      %v4212 = vpop.f32.mrb[0].mxu0
      %4213 = vmatprep.mubr.bf16.mxu0 0
      %4214 = vmatmul.mubr.bf16.gmra.mrb[0].mxu0 %v4119
      %v4215 = vpop.f32.mrb[0].mxu0
      %v4216 = vadd.f32 0.0, %v4215
      %v4217 = vpop.f32.mrb[0].mxu0
      %v4218 = vpop.f32.mrb[0].mxu0
      %v4219 = vadd.f32 0.0, %v4218
      %v4220 = vpop.f32.mrb[0].mxu0
      %4221 = vmatprep.mubr.bf16.mxu0 0
      %4222 = vmatmul.mubr.bf16.gmra.mrb[0].mxu0 %v4122
      %v4223 = vpop.f32.mrb[0].mxu0
      %v4224 = vadd.f32 0.0, %v4223
      %v4225 = vpop.f32.mrb[0].mxu0
      %v4226 = vpop.f32.mrb[0].mxu0
      %v4227 = vadd.f32 0.0, %v4226
      %v4228 = vpop.f32.mrb[0].mxu0
      %4229 = vmatprep.mubr.bf16.mxu0 0
      %4230 = vmatmul.mubr.bf16.gmra.mrb[0].mxu0 %v4125
      %v4231 = vpop.f32.mrb[0].mxu0
      %v4232 = vadd.f32 0.0, %v4231
      %v4233 = vpop.f32.mrb[0].mxu0
      %v4234 = vpop.f32.mrb[0].mxu0
      %v4235 = vadd.f32 0.0, %v4234
      %v4236 = vpop.f32.mrb[0].mxu0
      %4237 = vmatprep.mubr.bf16.mxu0 0
      %4238 = vmatmul.mubr.bf16.gmra.mrb[0].mxu0 %v4128
      %v4239 = vpop.f32.mrb[0].mxu0
      %v4240 = vadd.f32 0.0, %v4239
      %v4241 = vpop.f32.mrb[0].mxu0
      %v4242 = vpop.f32.mrb[0].mxu0
      %v4243 = vadd.f32 0.0, %v4242
      %v4244 = vpop.f32.mrb[0].mxu0
      %4245 = vmatprep.mubr.bf16.mxu0 0
      %4246 = vmatmul.mubr.bf16.gmra.mrb[0].mxu0 %v4131
      %v4247 = vpop.f32.mrb[0].mxu0
      %v4248 = vadd.f32 0.0, %v4247
      %v4249 = vpop.f32.mrb[0].mxu0
      %v4250 = vpop.f32.mrb[0].mxu0
      %v4251 = vadd.f32 0.0, %v4250
      %v4252 = vpop.f32.mrb[0].mxu0
      %4253 = vmatprep.mubr.bf16.mxu0 0
      %4254 = vmatmul.mubr.bf16.gmra.mrb[0].mxu0 %v4134
      %v4255 = vpop.f32.mrb[0].mxu0
      %v4256 = vadd.f32 0.0, %v4255
      %v4257 = vpop.f32.mrb[0].mxu0
      %v4258 = vpop.f32.mrb[0].mxu0
      %v4259 = vadd.f32 0.0, %v4258
      %v4260 = vpop.f32.mrb[0].mxu0
      %4261 = vmatprep.mubr.bf16.mxu0 0
      %4262 = vmatmul.mubr.bf16.gmra.mrb[0].mxu0 %v4137
      %v4263 = vpop.f32.mrb[0].mxu0
      %v4264 = vadd.f32 0.0, %v4263
      %v4265 = vpop.f32.mrb[0].mxu0
      %v4266 = vpop.f32.mrb[0].mxu0
      %v4267 = vadd.f32 0.0, %v4266
      %v4268 = vpop.f32.mrb[0].mxu0
      %4269 = vmatprep.mubr.bf16.mxu0 0
      %4270 = vmatmul.mubr.bf16.gmra.mrb[0].mxu0 %v4140
      %v4271 = vpop.f32.mrb[0].mxu0
      %v4272 = vadd.f32 0.0, %v4271
      %v4273 = vpop.f32.mrb[0].mxu0
      %v4274 = vpop.f32.mrb[0].mxu0
      %v4275 = vadd.f32 0.0, %v4274
      %v4276 = vpop.f32.mrb[0].mxu0
      %4277 = vmatprep.mubr.bf16.mxu0 0
      %4278 = vmatmul.mubr.bf16.gmra.mrb[0].mxu0 %v4143
      %v4279 = vpop.f32.mrb[0].mxu0
      %v4280 = vadd.f32 0.0, %v4279
      %v4281 = vpop.f32.mrb[0].mxu0
      %v4282 = vpop.f32.mrb[0].mxu0
      %v4283 = vadd.f32 0.0, %v4282
      %v4284 = vpop.f32.mrb[0].mxu0
      %4285 = vmatprep.mubr.bf16.mxu0 0
      %4286 = vmatmul.mubr.bf16.gmra.mrb[0].mxu0 %v4146
      %v4287 = vpop.f32.mrb[0].mxu0
      %v4288 = vadd.f32 0.0, %v4287
      %v4289 = vpop.f32.mrb[0].mxu0
      %v4290 = vpop.f32.mrb[0].mxu0
      %v4291 = vadd.f32 0.0, %v4290
      %v4292 = vpop.f32.mrb[0].mxu0
      %4293 = vmatprep.mubr.bf16.mxu0 0
      %4294 = vmatmul.mubr.bf16.gmra.mrb[0].mxu0 %v4149
      %v4295 = vpop.f32.mrb[0].mxu0
      %v4296 = vadd.f32 0.0, %v4295
      %v4297 = vpop.f32.mrb[0].mxu0
      %v4298 = vpop.f32.mrb[0].mxu0
      %v4299 = vadd.f32 0.0, %v4298
      %v4300 = vpop.f32.mrb[0].mxu0
      %4301 = vmatprep.mubr.bf16.mxu0 0
      %4302 = vmatmul.mubr.bf16.gmra.mrb[0].mxu0 %v4152
      %v4303 = vpop.f32.mrb[0].mxu0
      %v4304 = vadd.f32 0.0, %v4303
      %v4305 = vpop.f32.mrb[0].mxu0
      %v4306 = vpop.f32.mrb[0].mxu0
      %v4307 = vadd.f32 0.0, %v4306
      %v4308 = vpop.f32.mrb[0].mxu0
      %4309 = vmatprep.mubr.bf16.mxu0 0
      %4310 = vmatmul.mubr.bf16.gmra.mrb[0].mxu0 %v4155
      %v4311 = vpop.f32.mrb[0].mxu0
      %v4312 = vadd.f32 0.0, %v4311
      %v4313 = vpop.f32.mrb[0].mxu0
      %v4314 = vpop.f32.mrb[0].mxu0
      %v4315 = vadd.f32 0.0, %v4314
      %v4316 = vpop.f32.mrb[0].mxu0
      %4317 = vdwg.mxu0
      %v4322 = vunpack.c.l.b16 %v4072
      %v4323 = vunpack.c.l.b16 %v4073
      %v4324 = vunpack.c.l.b16 %v4074
      %v4325 = vunpack.c.l.b16 %v4075
      %v4326 = vpack.c.b16 %v4323, %v4322
      %v4327 = vpack.c.b16 %v4325, %v4324
      %v4331 = vsel %vm673, %v4055, 0
      %v4334 = vsel %vm673, %v4056, 0
      %v4337 = vsel %vm673, %v4057, 0
      %v4340 = vsel %vm673, %v4058, 0
      %v4343 = vsel %vm673, %v4059, 0
      %v4346 = vsel %vm673, %v4060, 0
      %v4349 = vsel %vm673, %v4061, 0
      %v4352 = vsel %vm673, %v4062, 0
      %v4355 = vsel %vm673, %v4063, 0
      %v4358 = vsel %vm673, %v4064, 0
      %v4361 = vsel %vm673, %v4065, 0
      %v4364 = vsel %vm673, %v4066, 0
      %v4367 = vsel %vm673, %v4067, 0
      %v4370 = vsel %vm673, %v4068, 0
      %v4373 = vsel %vm673, %v4069, 0
      %v4376 = vsel %vm673, %v4070, 0
      %4378 = vmatprep.subr.bf16.mxu0 0
      %4379 = vmatpush1.bf16.msra.mxu0 %v4326
      %4380 = vmatprep.subr.bf16.mxu0 0
      %4381 = vmatpush1.bf16.msra.mxu0 %v4327
      %4382 = vmatprep.subr.bf16.mxu0 0
      %4383 = vmatpush1.bf16.msra.mxu0 0
      %4384 = vmatprep.subr.bf16.mxu0 0
      %4385 = vmatpush1.bf16.msra.mxu0 0
      %4386 = vmatprep.subr.bf16.mxu0 0
      %4387 = vmatpush1.bf16.msra.mxu0 0
      %4388 = vmatprep.subr.bf16.mxu0 0
      %4389 = vmatpush1.bf16.msra.mxu0 0
      %4390 = vmatprep.subr.bf16.mxu0 0
      %4391 = vmatpush1.bf16.msra.mxu0 0
      %4392 = vmatprep.subr.bf16.mxu0 0
      %4393 = vmatpush1.bf16.msra.mxu0 0
      %4394 = vmatprep.subr.bf16.mxu0 0
      %4395 = vmatpush1.bf16.msra.mxu0 0
      %4396 = vmatprep.subr.bf16.mxu0 0
      %4397 = vmatpush1.bf16.msra.mxu0 0
      %4398 = vmatprep.subr.bf16.mxu0 0
      %4399 = vmatpush1.bf16.msra.mxu0 0
      %4400 = vmatprep.subr.bf16.mxu0 0
      %4401 = vmatpush1.bf16.msra.mxu0 0
      %4402 = vmatprep.subr.bf16.mxu0 0
      %4403 = vmatpush1.bf16.msra.mxu0 0
      %4404 = vmatprep.subr.bf16.mxu0 0
      %4405 = vmatpush1.bf16.msra.mxu0 0
      %4406 = vmatprep.subr.bf16.mxu0 0
      %4407 = vmatpush1.bf16.msra.mxu0 0
      %4408 = vmatprep.subr.bf16.mxu0 0
      %4409 = vmatpush1.bf16.msra.mxu0 0
      %4410 = vmatprep.mubr.bf16.mxu0 0
      %4411 = vmatmul.mubr.bf16.gmra.mrb[0].mxu0 %v4331
      %v4412 = vpop.f32.mrb[0].mxu0
      %v4413 = vadd.f32 %v4192, %v4412
      %v4414 = vpop.f32.mrb[0].mxu0
      %v4415 = vpop.f32.mrb[0].mxu0
      %v4416 = vadd.f32 %v4195, %v4415
      %v4417 = vpop.f32.mrb[0].mxu0
      %4418 = vmatprep.mubr.bf16.mxu0 0
      %4419 = vmatmul.mubr.bf16.gmra.mrb[0].mxu0 %v4334
      %v4420 = vpop.f32.mrb[0].mxu0
      %v4421 = vadd.f32 %v4200, %v4420
      %v4422 = vpop.f32.mrb[0].mxu0
      %v4423 = vpop.f32.mrb[0].mxu0
      %v4424 = vadd.f32 %v4203, %v4423
      %v4425 = vpop.f32.mrb[0].mxu0
      %4426 = vmatprep.mubr.bf16.mxu0 0
      %4427 = vmatmul.mubr.bf16.gmra.mrb[0].mxu0 %v4337
      %v4428 = vpop.f32.mrb[0].mxu0
      %v4429 = vadd.f32 %v4208, %v4428
      %v4430 = vpop.f32.mrb[0].mxu0
      %v4431 = vpop.f32.mrb[0].mxu0
      %v4432 = vadd.f32 %v4211, %v4431
      %v4433 = vpop.f32.mrb[0].mxu0
      %4434 = vmatprep.mubr.bf16.mxu0 0
      %4435 = vmatmul.mubr.bf16.gmra.mrb[0].mxu0 %v4340
      %v4436 = vpop.f32.mrb[0].mxu0
      %v4437 = vadd.f32 %v4216, %v4436
      %v4438 = vpop.f32.mrb[0].mxu0
      %v4439 = vpop.f32.mrb[0].mxu0
      %v4440 = vadd.f32 %v4219, %v4439
      %v4441 = vpop.f32.mrb[0].mxu0
      %4442 = vmatprep.mubr.bf16.mxu0 0
      %4443 = vmatmul.mubr.bf16.gmra.mrb[0].mxu0 %v4343
      %v4444 = vpop.f32.mrb[0].mxu0
      %v4445 = vadd.f32 %v4224, %v4444
      %v4446 = vpop.f32.mrb[0].mxu0
      %v4447 = vpop.f32.mrb[0].mxu0
      %v4448 = vadd.f32 %v4227, %v4447
      %v4449 = vpop.f32.mrb[0].mxu0
      %4450 = vmatprep.mubr.bf16.mxu0 0
      %4451 = vmatmul.mubr.bf16.gmra.mrb[0].mxu0 %v4346
      %v4452 = vpop.f32.mrb[0].mxu0
      %v4453 = vadd.f32 %v4232, %v4452
      %v4454 = vpop.f32.mrb[0].mxu0
      %v4455 = vpop.f32.mrb[0].mxu0
      %v4456 = vadd.f32 %v4235, %v4455
      %v4457 = vpop.f32.mrb[0].mxu0
      %4458 = vmatprep.mubr.bf16.mxu0 0
      %4459 = vmatmul.mubr.bf16.gmra.mrb[0].mxu0 %v4349
      %v4460 = vpop.f32.mrb[0].mxu0
      %v4461 = vadd.f32 %v4240, %v4460
      %v4462 = vpop.f32.mrb[0].mxu0
      %v4463 = vpop.f32.mrb[0].mxu0
      %v4464 = vadd.f32 %v4243, %v4463
      %v4465 = vpop.f32.mrb[0].mxu0
      %4466 = vmatprep.mubr.bf16.mxu0 0
      %4467 = vmatmul.mubr.bf16.gmra.mrb[0].mxu0 %v4352
      %v4468 = vpop.f32.mrb[0].mxu0
      %v4469 = vadd.f32 %v4248, %v4468
      %v4470 = vpop.f32.mrb[0].mxu0
      %v4471 = vpop.f32.mrb[0].mxu0
      %v4472 = vadd.f32 %v4251, %v4471
      %v4473 = vpop.f32.mrb[0].mxu0
      %4474 = vmatprep.mubr.bf16.mxu0 0
      %4475 = vmatmul.mubr.bf16.gmra.mrb[0].mxu0 %v4355
      %v4476 = vpop.f32.mrb[0].mxu0
      %v4477 = vadd.f32 %v4256, %v4476
      %v4478 = vpop.f32.mrb[0].mxu0
      %v4479 = vpop.f32.mrb[0].mxu0
      %v4480 = vadd.f32 %v4259, %v4479
      %v4481 = vpop.f32.mrb[0].mxu0
      %4482 = vmatprep.mubr.bf16.mxu0 0
      %4483 = vmatmul.mubr.bf16.gmra.mrb[0].mxu0 %v4358
      %v4484 = vpop.f32.mrb[0].mxu0
      %v4485 = vadd.f32 %v4264, %v4484
      %v4486 = vpop.f32.mrb[0].mxu0
      %v4487 = vpop.f32.mrb[0].mxu0
      %v4488 = vadd.f32 %v4267, %v4487
      %v4489 = vpop.f32.mrb[0].mxu0
      %4490 = vmatprep.mubr.bf16.mxu0 0
      %4491 = vmatmul.mubr.bf16.gmra.mrb[0].mxu0 %v4361
      %v4492 = vpop.f32.mrb[0].mxu0
      %v4493 = vadd.f32 %v4272, %v4492
      %v4494 = vpop.f32.mrb[0].mxu0
      %v4495 = vpop.f32.mrb[0].mxu0
      %v4496 = vadd.f32 %v4275, %v4495
      %v4497 = vpop.f32.mrb[0].mxu0
      %4498 = vmatprep.mubr.bf16.mxu0 0
      %4499 = vmatmul.mubr.bf16.gmra.mrb[0].mxu0 %v4364
      %v4500 = vpop.f32.mrb[0].mxu0
      %v4501 = vadd.f32 %v4280, %v4500
      %v4502 = vpop.f32.mrb[0].mxu0
      %v4503 = vpop.f32.mrb[0].mxu0
      %v4504 = vadd.f32 %v4283, %v4503
      %v4505 = vpop.f32.mrb[0].mxu0
      %4506 = vmatprep.mubr.bf16.mxu0 0
      %4507 = vmatmul.mubr.bf16.gmra.mrb[0].mxu0 %v4367
      %v4508 = vpop.f32.mrb[0].mxu0
      %v4509 = vadd.f32 %v4288, %v4508
      %v4510 = vpop.f32.mrb[0].mxu0
      %v4511 = vpop.f32.mrb[0].mxu0
      %v4512 = vadd.f32 %v4291, %v4511
      %v4513 = vpop.f32.mrb[0].mxu0
      %4514 = vmatprep.mubr.bf16.mxu0 0
      %4515 = vmatmul.mubr.bf16.gmra.mrb[0].mxu0 %v4370
      %v4516 = vpop.f32.mrb[0].mxu0
      %v4517 = vadd.f32 %v4296, %v4516
      %v4518 = vpop.f32.mrb[0].mxu0
      %v4519 = vpop.f32.mrb[0].mxu0
      %v4520 = vadd.f32 %v4299, %v4519
      %v4521 = vpop.f32.mrb[0].mxu0
      %4522 = vmatprep.mubr.bf16.mxu0 0
      %4523 = vmatmul.mubr.bf16.gmra.mrb[0].mxu0 %v4373
      %v4524 = vpop.f32.mrb[0].mxu0
      %v4525 = vadd.f32 %v4304, %v4524
      %v4526 = vpop.f32.mrb[0].mxu0
      %v4527 = vpop.f32.mrb[0].mxu0
      %v4528 = vadd.f32 %v4307, %v4527
      %v4529 = vpop.f32.mrb[0].mxu0
      %4530 = vmatprep.mubr.bf16.mxu0 0
      %4531 = vmatmul.mubr.bf16.gmra.mrb[0].mxu0 %v4376
      %v4532 = vpop.f32.mrb[0].mxu0
      %v4533 = vadd.f32 %v4312, %v4532
      %v4534 = vpop.f32.mrb[0].mxu0
      %v4535 = vpop.f32.mrb[0].mxu0
      %v4536 = vadd.f32 %v4315, %v4535
      %v4537 = vpop.f32.mrb[0].mxu0
      %4538 = vdwg.mxu0
      %v4539 = vpack.c.bf16 %v4054, %v4053
      %v4540 = vpack.c.bf16 %v4024, %v4023
      %v4541 = vpack.c.bf16 %v4026, %v4025
      %v4542 = vpack.c.bf16 %v4028, %v4027
      %v4543 = vpack.c.bf16 %v4030, %v4029
      %v4544 = vpack.c.bf16 %v4032, %v4031
      %v4545 = vpack.c.bf16 %v4034, %v4033
      %v4546 = vpack.c.bf16 %v4036, %v4035
      %v4547 = vpack.c.bf16 %v4038, %v4037
      %v4548 = vpack.c.bf16 %v4040, %v4039
      %v4549 = vpack.c.bf16 %v4042, %v4041
      %v4550 = vpack.c.bf16 %v4044, %v4043
      %v4551 = vpack.c.bf16 %v4046, %v4045
      %v4552 = vpack.c.bf16 %v4048, %v4047
      %v4553 = vpack.c.bf16 %v4050, %v4049
      %v4554 = vpack.c.bf16 %v4052, %v4051
      %s4555 = scalar_lea.vmem %s288, 464
      %v4556 = vld [vmem:[%s4555] sm:$0xf]
      %v4557 = vld [vmem:[%s4555 + $0x4] sm:$0xf]
      %v4558 = vld [vmem:[%s4555 + $0x8] sm:$0xf]
      %v4559 = vld [vmem:[%s4555 + $0xc] sm:$0xf]
      %v4564 = vunpack.c.l.b16 %v4556
      %v4565 = vunpack.c.l.b16 %v4557
      %v4566 = vunpack.c.l.b16 %v4558
      %v4567 = vunpack.c.l.b16 %v4559
      %v4568 = vpack.c.b16 %v4565, %v4564
      %v4569 = vpack.c.b16 %v4567, %v4566
      %v4573 = vsel %vm673, %v4539, 0
      %v4576 = vsel %vm673, %v4540, 0
      %v4579 = vsel %vm673, %v4541, 0
      %v4582 = vsel %vm673, %v4542, 0
      %v4585 = vsel %vm673, %v4543, 0
      %v4588 = vsel %vm673, %v4544, 0
      %v4591 = vsel %vm673, %v4545, 0
      %v4594 = vsel %vm673, %v4546, 0
      %v4597 = vsel %vm673, %v4547, 0
      %v4600 = vsel %vm673, %v4548, 0
      %v4603 = vsel %vm673, %v4549, 0
      %v4606 = vsel %vm673, %v4550, 0
      %v4609 = vsel %vm673, %v4551, 0
      %v4612 = vsel %vm673, %v4552, 0
      %v4615 = vsel %vm673, %v4553, 0
      %v4618 = vsel %vm673, %v4554, 0
      %4620 = vmatprep.subr.bf16.mxu0 0
      %4621 = vmatpush1.bf16.msra.mxu0 %v4568
      %4622 = vmatprep.subr.bf16.mxu0 0
      %4623 = vmatpush1.bf16.msra.mxu0 %v4569
      %4624 = vmatprep.subr.bf16.mxu0 0
      %4625 = vmatpush1.bf16.msra.mxu0 0
      %4626 = vmatprep.subr.bf16.mxu0 0
      %4627 = vmatpush1.bf16.msra.mxu0 0
      %4628 = vmatprep.subr.bf16.mxu0 0
      %4629 = vmatpush1.bf16.msra.mxu0 0
      %4630 = vmatprep.subr.bf16.mxu0 0
      %4631 = vmatpush1.bf16.msra.mxu0 0
      %4632 = vmatprep.subr.bf16.mxu0 0
      %4633 = vmatpush1.bf16.msra.mxu0 0
      %4634 = vmatprep.subr.bf16.mxu0 0
      %4635 = vmatpush1.bf16.msra.mxu0 0
      %4636 = vmatprep.subr.bf16.mxu0 0
      %4637 = vmatpush1.bf16.msra.mxu0 0
      %4638 = vmatprep.subr.bf16.mxu0 0
      %4639 = vmatpush1.bf16.msra.mxu0 0
      %4640 = vmatprep.subr.bf16.mxu0 0
      %4641 = vmatpush1.bf16.msra.mxu0 0
      %4642 = vmatprep.subr.bf16.mxu0 0
      %4643 = vmatpush1.bf16.msra.mxu0 0
      %4644 = vmatprep.subr.bf16.mxu0 0
      %4645 = vmatpush1.bf16.msra.mxu0 0
      %4646 = vmatprep.subr.bf16.mxu0 0
      %4647 = vmatpush1.bf16.msra.mxu0 0
      %4648 = vmatprep.subr.bf16.mxu0 0
      %4649 = vmatpush1.bf16.msra.mxu0 0
      %4650 = vmatprep.subr.bf16.mxu0 0
      %4651 = vmatpush1.bf16.msra.mxu0 0
      %4652 = vmatprep.mubr.bf16.mxu0 0
      %4653 = vmatmul.mubr.bf16.gmra.mrb[0].mxu0 %v4573
      %v4654 = vpop.f32.mrb[0].mxu0
      %v4655 = vadd.f32 0.0, %v4654
      %v4656 = vpop.f32.mrb[0].mxu0
      %v4657 = vpop.f32.mrb[0].mxu0
      %v4658 = vadd.f32 0.0, %v4657
      %v4659 = vpop.f32.mrb[0].mxu0
      %4660 = vmatprep.mubr.bf16.mxu0 0
      %4661 = vmatmul.mubr.bf16.gmra.mrb[0].mxu0 %v4576
      %v4662 = vpop.f32.mrb[0].mxu0
      %v4663 = vadd.f32 0.0, %v4662
      %v4664 = vpop.f32.mrb[0].mxu0
      %v4665 = vpop.f32.mrb[0].mxu0
      %v4666 = vadd.f32 0.0, %v4665
      %v4667 = vpop.f32.mrb[0].mxu0
      %4668 = vmatprep.mubr.bf16.mxu0 0
      %4669 = vmatmul.mubr.bf16.gmra.mrb[0].mxu0 %v4579
      %v4670 = vpop.f32.mrb[0].mxu0
      %v4671 = vadd.f32 0.0, %v4670
      %v4672 = vpop.f32.mrb[0].mxu0
      %v4673 = vpop.f32.mrb[0].mxu0
      %v4674 = vadd.f32 0.0, %v4673
      %v4675 = vpop.f32.mrb[0].mxu0
      %4676 = vmatprep.mubr.bf16.mxu0 0
      %4677 = vmatmul.mubr.bf16.gmra.mrb[0].mxu0 %v4582
      %v4678 = vpop.f32.mrb[0].mxu0
      %v4679 = vadd.f32 0.0, %v4678
      %v4680 = vpop.f32.mrb[0].mxu0
      %v4681 = vpop.f32.mrb[0].mxu0
      %v4682 = vadd.f32 0.0, %v4681
      %v4683 = vpop.f32.mrb[0].mxu0
      %4684 = vmatprep.mubr.bf16.mxu0 0
      %4685 = vmatmul.mubr.bf16.gmra.mrb[0].mxu0 %v4585
      %v4686 = vpop.f32.mrb[0].mxu0
      %v4687 = vadd.f32 0.0, %v4686
      %v4688 = vpop.f32.mrb[0].mxu0
      %v4689 = vpop.f32.mrb[0].mxu0
      %v4690 = vadd.f32 0.0, %v4689
      %v4691 = vpop.f32.mrb[0].mxu0
      %4692 = vmatprep.mubr.bf16.mxu0 0
      %4693 = vmatmul.mubr.bf16.gmra.mrb[0].mxu0 %v4588
      %v4694 = vpop.f32.mrb[0].mxu0
      %v4695 = vadd.f32 0.0, %v4694
      %v4696 = vpop.f32.mrb[0].mxu0
      %v4697 = vpop.f32.mrb[0].mxu0
      %v4698 = vadd.f32 0.0, %v4697
      %v4699 = vpop.f32.mrb[0].mxu0
      %4700 = vmatprep.mubr.bf16.mxu0 0
      %4701 = vmatmul.mubr.bf16.gmra.mrb[0].mxu0 %v4591
      %v4702 = vpop.f32.mrb[0].mxu0
      %v4703 = vadd.f32 0.0, %v4702
      %v4704 = vpop.f32.mrb[0].mxu0
      %v4705 = vpop.f32.mrb[0].mxu0
      %v4706 = vadd.f32 0.0, %v4705
      %v4707 = vpop.f32.mrb[0].mxu0
      %4708 = vmatprep.mubr.bf16.mxu0 0
      %4709 = vmatmul.mubr.bf16.gmra.mrb[0].mxu0 %v4594
      %v4710 = vpop.f32.mrb[0].mxu0
      %v4711 = vadd.f32 0.0, %v4710
      %v4712 = vpop.f32.mrb[0].mxu0
      %v4713 = vpop.f32.mrb[0].mxu0
      %v4714 = vadd.f32 0.0, %v4713
      %v4715 = vpop.f32.mrb[0].mxu0
      %4716 = vmatprep.mubr.bf16.mxu0 0
      %4717 = vmatmul.mubr.bf16.gmra.mrb[0].mxu0 %v4597
      %v4718 = vpop.f32.mrb[0].mxu0
      %v4719 = vadd.f32 0.0, %v4718
      %v4720 = vpop.f32.mrb[0].mxu0
      %v4721 = vpop.f32.mrb[0].mxu0
      %v4722 = vadd.f32 0.0, %v4721
      %v4723 = vpop.f32.mrb[0].mxu0
      %4724 = vmatprep.mubr.bf16.mxu0 0
      %4725 = vmatmul.mubr.bf16.gmra.mrb[0].mxu0 %v4600
      %v4726 = vpop.f32.mrb[0].mxu0
      %v4727 = vadd.f32 0.0, %v4726
      %v4728 = vpop.f32.mrb[0].mxu0
      %v4729 = vpop.f32.mrb[0].mxu0
      %v4730 = vadd.f32 0.0, %v4729
      %v4731 = vpop.f32.mrb[0].mxu0
      %4732 = vmatprep.mubr.bf16.mxu0 0
      %4733 = vmatmul.mubr.bf16.gmra.mrb[0].mxu0 %v4603
      %v4734 = vpop.f32.mrb[0].mxu0
      %v4735 = vadd.f32 0.0, %v4734
      %v4736 = vpop.f32.mrb[0].mxu0
      %v4737 = vpop.f32.mrb[0].mxu0
      %v4738 = vadd.f32 0.0, %v4737
      %v4739 = vpop.f32.mrb[0].mxu0
      %4740 = vmatprep.mubr.bf16.mxu0 0
      %4741 = vmatmul.mubr.bf16.gmra.mrb[0].mxu0 %v4606
      %v4742 = vpop.f32.mrb[0].mxu0
      %v4743 = vadd.f32 0.0, %v4742
      %v4744 = vpop.f32.mrb[0].mxu0
      %v4745 = vpop.f32.mrb[0].mxu0
      %v4746 = vadd.f32 0.0, %v4745
      %v4747 = vpop.f32.mrb[0].mxu0
      %4748 = vmatprep.mubr.bf16.mxu0 0
      %4749 = vmatmul.mubr.bf16.gmra.mrb[0].mxu0 %v4609
      %v4750 = vpop.f32.mrb[0].mxu0
      %v4751 = vadd.f32 0.0, %v4750
      %v4752 = vpop.f32.mrb[0].mxu0
      %v4753 = vpop.f32.mrb[0].mxu0
      %v4754 = vadd.f32 0.0, %v4753
      %v4755 = vpop.f32.mrb[0].mxu0
      %4756 = vmatprep.mubr.bf16.mxu0 0
      %4757 = vmatmul.mubr.bf16.gmra.mrb[0].mxu0 %v4612
      %v4758 = vpop.f32.mrb[0].mxu0
      %v4759 = vadd.f32 0.0, %v4758
      %v4760 = vpop.f32.mrb[0].mxu0
      %v4761 = vpop.f32.mrb[0].mxu0
      %v4762 = vadd.f32 0.0, %v4761
      %v4763 = vpop.f32.mrb[0].mxu0
      %4764 = vmatprep.mubr.bf16.mxu0 0
      %4765 = vmatmul.mubr.bf16.gmra.mrb[0].mxu0 %v4615
      %v4766 = vpop.f32.mrb[0].mxu0
      %v4767 = vadd.f32 0.0, %v4766
      %v4768 = vpop.f32.mrb[0].mxu0
      %v4769 = vpop.f32.mrb[0].mxu0
      %v4770 = vadd.f32 0.0, %v4769
      %v4771 = vpop.f32.mrb[0].mxu0
      %4772 = vmatprep.mubr.bf16.mxu0 0
      %4773 = vmatmul.mubr.bf16.gmra.mrb[0].mxu0 %v4618
      %v4774 = vpop.f32.mrb[0].mxu0
      %v4775 = vadd.f32 0.0, %v4774
      %v4776 = vpop.f32.mrb[0].mxu0
      %v4777 = vpop.f32.mrb[0].mxu0
      %v4778 = vadd.f32 0.0, %v4777
      %v4779 = vpop.f32.mrb[0].mxu0
      %4780 = vdwg.mxu0
      %v4781 = vadd.f32 %v4413, %v4655
      %v4782 = vadd.f32 %v4416, %v4658
      %v4783 = vadd.f32 %v4421, %v4663
      %v4784 = vadd.f32 %v4424, %v4666
      %v4785 = vadd.f32 %v4429, %v4671
      %v4786 = vadd.f32 %v4432, %v4674
      %v4787 = vadd.f32 %v4437, %v4679
      %v4788 = vadd.f32 %v4440, %v4682
      %v4789 = vadd.f32 %v4445, %v4687
      %v4790 = vadd.f32 %v4448, %v4690
      %v4791 = vadd.f32 %v4453, %v4695
      %v4792 = vadd.f32 %v4456, %v4698
      %v4793 = vadd.f32 %v4461, %v4703
      %v4794 = vadd.f32 %v4464, %v4706
      %v4795 = vadd.f32 %v4469, %v4711
      %v4796 = vadd.f32 %v4472, %v4714
      %v4797 = vadd.f32 %v4477, %v4719
      %v4798 = vadd.f32 %v4480, %v4722
      %v4799 = vadd.f32 %v4485, %v4727
      %v4800 = vadd.f32 %v4488, %v4730
      %v4801 = vadd.f32 %v4493, %v4735
      %v4802 = vadd.f32 %v4496, %v4738
      %v4803 = vadd.f32 %v4501, %v4743
      %v4804 = vadd.f32 %v4504, %v4746
      %v4805 = vadd.f32 %v4509, %v4751
      %v4806 = vadd.f32 %v4512, %v4754
      %v4807 = vadd.f32 %v4517, %v4759
      %v4808 = vadd.f32 %v4520, %v4762
      %v4809 = vadd.f32 %v4525, %v4767
      %v4810 = vadd.f32 %v4528, %v4770
      %v4811 = vadd.f32 %v4533, %v4775
      %v4812 = vadd.f32 %v4536, %v4778
      %v4813 = vsel %vm561, %v4781, 0.0
      %v4814 = vsel %vm562, %v4782, 0.0
      %v4815 = vsel %vm563, %v4783, 0.0
      %v4816 = vsel %vm564, %v4784, 0.0
      %v4817 = vsel %vm565, %v4785, 0.0
      %v4818 = vsel %vm566, %v4786, 0.0
      %v4819 = vsel %vm567, %v4787, 0.0
      %v4820 = vsel %vm568, %v4788, 0.0
      %v4821 = vsel %vm569, %v4789, 0.0
      %v4822 = vsel %vm570, %v4790, 0.0
      %v4823 = vsel %vm571, %v4791, 0.0
      %v4824 = vsel %vm572, %v4792, 0.0
      %v4825 = vsel %vm573, %v4793, 0.0
      %v4826 = vsel %vm574, %v4794, 0.0
      %v4827 = vsel %vm575, %v4795, 0.0
      %v4828 = vsel %vm576, %v4796, 0.0
      %v4829 = vsel %vm577, %v4797, 0.0
      %v4830 = vsel %vm578, %v4798, 0.0
      %v4831 = vsel %vm579, %v4799, 0.0
      %v4832 = vsel %vm580, %v4800, 0.0
      %v4833 = vsel %vm581, %v4801, 0.0
      %v4834 = vsel %vm582, %v4802, 0.0
      %v4835 = vsel %vm583, %v4803, 0.0
      %v4836 = vsel %vm584, %v4804, 0.0
      %v4837 = vsel %vm585, %v4805, 0.0
      %v4838 = vsel %vm586, %v4806, 0.0
      %v4839 = vsel %vm587, %v4807, 0.0
      %v4840 = vsel %vm588, %v4808, 0.0
      %v4841 = vsel %vm589, %v4809, 0.0
      %v4842 = vsel %vm590, %v4810, 0.0
      %v4843 = vsel %vm591, %v4811, 0.0
      %v4844 = vsel %vm592, %v4812, 0.0
      %s4845 = scalar_lea.vmem %s288, 480
      %v4846 = vld [vmem:[%s4845] sm:$0xf]
      %v4847 = vld [vmem:[%s4845 + $0x4] sm:$0xf]
      %v4848 = vld [vmem:[%s4845 + $0x8] sm:$0xf]
      %v4849 = vld [vmem:[%s4845 + $0xc] sm:$0xf]
      %s4850 = scalar_lea.vmem %s288, 496
      %v4851 = vld [vmem:[%s4850] sm:$0xf]
      %v4852 = vld [vmem:[%s4850 + $0x4] sm:$0xf]
      %v4853 = vld [vmem:[%s4850 + $0x8] sm:$0xf]
      %v4854 = vld [vmem:[%s4850 + $0xc] sm:$0xf]
      %v4859 = vunpack.c.l.b16 %v4851
      %v4860 = vunpack.c.l.b16 %v4852
      %v4861 = vunpack.c.l.b16 %v4853
      %v4862 = vunpack.c.l.b16 %v4854
      %v4863 = vpack.c.b16 %v4860, %v4859
      %v4864 = vpack.c.b16 %v4862, %v4861
      %4867 = vmatprep.subr.bf16.mxu0 0
      %4868 = vmatpush1.bf16.msra.mxu0 %v4863
      %4869 = vmatprep.subr.bf16.mxu0 0
      %4870 = vmatpush1.bf16.msra.mxu0 %v4864
      %4871 = vmatprep.subr.bf16.mxu0 0
      %4872 = vmatpush1.bf16.msra.mxu0 0
      %4873 = vmatprep.subr.bf16.mxu0 0
      %4874 = vmatpush1.bf16.msra.mxu0 0
      %4875 = vmatprep.subr.bf16.mxu0 0
      %4876 = vmatpush1.bf16.msra.mxu0 0
      %4877 = vmatprep.subr.bf16.mxu0 0
      %4878 = vmatpush1.bf16.msra.mxu0 0
      %4879 = vmatprep.subr.bf16.mxu0 0
      %4880 = vmatpush1.bf16.msra.mxu0 0
      %4881 = vmatprep.subr.bf16.mxu0 0
      %4882 = vmatpush1.bf16.msra.mxu0 0
      %4883 = vmatprep.subr.bf16.mxu0 0
      %4884 = vmatpush1.bf16.msra.mxu0 0
      %4885 = vmatprep.subr.bf16.mxu0 0
      %4886 = vmatpush1.bf16.msra.mxu0 0
      %4887 = vmatprep.subr.bf16.mxu0 0
      %4888 = vmatpush1.bf16.msra.mxu0 0
      %4889 = vmatprep.subr.bf16.mxu0 0
      %4890 = vmatpush1.bf16.msra.mxu0 0
      %4891 = vmatprep.subr.bf16.mxu0 0
      %4892 = vmatpush1.bf16.msra.mxu0 0
      %4893 = vmatprep.subr.bf16.mxu0 0
      %4894 = vmatpush1.bf16.msra.mxu0 0
      %4895 = vmatprep.subr.bf16.mxu0 0
      %4896 = vmatpush1.bf16.msra.mxu0 0
      %4897 = vmatprep.subr.bf16.mxu0 0
      %4898 = vmatpush1.bf16.msra.mxu0 0
      %4899 = vmatprep.mubr.bf16.mxu0 0
      %4900 = vmatmul.mubr.bf16.gmra.mrb[0].mxu0 %v4113
      %v4901 = vpop.f32.mrb[0].mxu0
      %v4902 = vadd.f32 0.0, %v4901
      %v4903 = vpop.f32.mrb[0].mxu0
      %v4904 = vpop.f32.mrb[0].mxu0
      %v4905 = vadd.f32 0.0, %v4904
      %v4906 = vpop.f32.mrb[0].mxu0
      %4907 = vmatprep.mubr.bf16.mxu0 0
      %4908 = vmatmul.mubr.bf16.gmra.mrb[0].mxu0 %v4116
      %v4909 = vpop.f32.mrb[0].mxu0
      %v4910 = vadd.f32 0.0, %v4909
      %v4911 = vpop.f32.mrb[0].mxu0
      %v4912 = vpop.f32.mrb[0].mxu0
      %v4913 = vadd.f32 0.0, %v4912
      %v4914 = vpop.f32.mrb[0].mxu0
      %4915 = vmatprep.mubr.bf16.mxu0 0
      %4916 = vmatmul.mubr.bf16.gmra.mrb[0].mxu0 %v4119
      %v4917 = vpop.f32.mrb[0].mxu0
      %v4918 = vadd.f32 0.0, %v4917
      %v4919 = vpop.f32.mrb[0].mxu0
      %v4920 = vpop.f32.mrb[0].mxu0
      %v4921 = vadd.f32 0.0, %v4920
      %v4922 = vpop.f32.mrb[0].mxu0
      %4923 = vmatprep.mubr.bf16.mxu0 0
      %4924 = vmatmul.mubr.bf16.gmra.mrb[0].mxu0 %v4122
      %v4925 = vpop.f32.mrb[0].mxu0
      %v4926 = vadd.f32 0.0, %v4925
      %v4927 = vpop.f32.mrb[0].mxu0
      %v4928 = vpop.f32.mrb[0].mxu0
      %v4929 = vadd.f32 0.0, %v4928
      %v4930 = vpop.f32.mrb[0].mxu0
      %4931 = vmatprep.mubr.bf16.mxu0 0
      %4932 = vmatmul.mubr.bf16.gmra.mrb[0].mxu0 %v4125
      %v4933 = vpop.f32.mrb[0].mxu0
      %v4934 = vadd.f32 0.0, %v4933
      %v4935 = vpop.f32.mrb[0].mxu0
      %v4936 = vpop.f32.mrb[0].mxu0
      %v4937 = vadd.f32 0.0, %v4936
      %v4938 = vpop.f32.mrb[0].mxu0
      %4939 = vmatprep.mubr.bf16.mxu0 0
      %4940 = vmatmul.mubr.bf16.gmra.mrb[0].mxu0 %v4128
      %v4941 = vpop.f32.mrb[0].mxu0
      %v4942 = vadd.f32 0.0, %v4941
      %v4943 = vpop.f32.mrb[0].mxu0
      %v4944 = vpop.f32.mrb[0].mxu0
      %v4945 = vadd.f32 0.0, %v4944
      %v4946 = vpop.f32.mrb[0].mxu0
      %4947 = vmatprep.mubr.bf16.mxu0 0
      %4948 = vmatmul.mubr.bf16.gmra.mrb[0].mxu0 %v4131
      %v4949 = vpop.f32.mrb[0].mxu0
      %v4950 = vadd.f32 0.0, %v4949
      %v4951 = vpop.f32.mrb[0].mxu0
      %v4952 = vpop.f32.mrb[0].mxu0
      %v4953 = vadd.f32 0.0, %v4952
      %v4954 = vpop.f32.mrb[0].mxu0
      %4955 = vmatprep.mubr.bf16.mxu0 0
      %4956 = vmatmul.mubr.bf16.gmra.mrb[0].mxu0 %v4134
      %v4957 = vpop.f32.mrb[0].mxu0
      %v4958 = vadd.f32 0.0, %v4957
      %v4959 = vpop.f32.mrb[0].mxu0
      %v4960 = vpop.f32.mrb[0].mxu0
      %v4961 = vadd.f32 0.0, %v4960
      %v4962 = vpop.f32.mrb[0].mxu0
      %4963 = vmatprep.mubr.bf16.mxu0 0
      %4964 = vmatmul.mubr.bf16.gmra.mrb[0].mxu0 %v4137
      %v4965 = vpop.f32.mrb[0].mxu0
      %v4966 = vadd.f32 0.0, %v4965
      %v4967 = vpop.f32.mrb[0].mxu0
      %v4968 = vpop.f32.mrb[0].mxu0
      %v4969 = vadd.f32 0.0, %v4968
      %v4970 = vpop.f32.mrb[0].mxu0
      %4971 = vmatprep.mubr.bf16.mxu0 0
      %4972 = vmatmul.mubr.bf16.gmra.mrb[0].mxu0 %v4140
      %v4973 = vpop.f32.mrb[0].mxu0
      %v4974 = vadd.f32 0.0, %v4973
      %v4975 = vpop.f32.mrb[0].mxu0
      %v4976 = vpop.f32.mrb[0].mxu0
      %v4977 = vadd.f32 0.0, %v4976
      %v4978 = vpop.f32.mrb[0].mxu0
      %4979 = vmatprep.mubr.bf16.mxu0 0
      %4980 = vmatmul.mubr.bf16.gmra.mrb[0].mxu0 %v4143
      %v4981 = vpop.f32.mrb[0].mxu0
      %v4982 = vadd.f32 0.0, %v4981
      %v4983 = vpop.f32.mrb[0].mxu0
      %v4984 = vpop.f32.mrb[0].mxu0
      %v4985 = vadd.f32 0.0, %v4984
      %v4986 = vpop.f32.mrb[0].mxu0
      %4987 = vmatprep.mubr.bf16.mxu0 0
      %4988 = vmatmul.mubr.bf16.gmra.mrb[0].mxu0 %v4146
      %v4989 = vpop.f32.mrb[0].mxu0
      %v4990 = vadd.f32 0.0, %v4989
      %v4991 = vpop.f32.mrb[0].mxu0
      %v4992 = vpop.f32.mrb[0].mxu0
      %v4993 = vadd.f32 0.0, %v4992
      %v4994 = vpop.f32.mrb[0].mxu0
      %4995 = vmatprep.mubr.bf16.mxu0 0
      %4996 = vmatmul.mubr.bf16.gmra.mrb[0].mxu0 %v4149
      %v4997 = vpop.f32.mrb[0].mxu0
      %v4998 = vadd.f32 0.0, %v4997
      %v4999 = vpop.f32.mrb[0].mxu0
      %v5000 = vpop.f32.mrb[0].mxu0
      %v5001 = vadd.f32 0.0, %v5000
      %v5002 = vpop.f32.mrb[0].mxu0
      %5003 = vmatprep.mubr.bf16.mxu0 0
      %5004 = vmatmul.mubr.bf16.gmra.mrb[0].mxu0 %v4152
      %v5005 = vpop.f32.mrb[0].mxu0
      %v5006 = vadd.f32 0.0, %v5005
      %v5007 = vpop.f32.mrb[0].mxu0
      %v5008 = vpop.f32.mrb[0].mxu0
      %v5009 = vadd.f32 0.0, %v5008
      %v5010 = vpop.f32.mrb[0].mxu0
      %5011 = vmatprep.mubr.bf16.mxu0 0
      %5012 = vmatmul.mubr.bf16.gmra.mrb[0].mxu0 %v4155
      %v5013 = vpop.f32.mrb[0].mxu0
      %v5014 = vadd.f32 0.0, %v5013
      %v5015 = vpop.f32.mrb[0].mxu0
      %v5016 = vpop.f32.mrb[0].mxu0
      %v5017 = vadd.f32 0.0, %v5016
      %v5018 = vpop.f32.mrb[0].mxu0
      %5019 = vmatprep.mubr.bf16.mxu0 0
      %5020 = vmatmul.mubr.bf16.gmra.mrb[0].mxu0 %v4110
      %v5021 = vpop.f32.mrb[0].mxu0
      %v5022 = vadd.f32 0.0, %v5021
      %v5023 = vpop.f32.mrb[0].mxu0
      %v5024 = vpop.f32.mrb[0].mxu0
      %v5025 = vadd.f32 0.0, %v5024
      %v5026 = vpop.f32.mrb[0].mxu0
      %5027 = vdwg.mxu0
      %v5032 = vunpack.c.l.b16 %v4846
      %v5033 = vunpack.c.l.b16 %v4847
      %v5034 = vunpack.c.l.b16 %v4848
      %v5035 = vunpack.c.l.b16 %v4849
      %v5036 = vpack.c.b16 %v5033, %v5032
      %v5037 = vpack.c.b16 %v5035, %v5034
      %5040 = vmatprep.subr.bf16.mxu0 0
      %5041 = vmatpush1.bf16.msra.mxu0 %v5036
      %5042 = vmatprep.subr.bf16.mxu0 0
      %5043 = vmatpush1.bf16.msra.mxu0 %v5037
      %5044 = vmatprep.subr.bf16.mxu0 0
      %5045 = vmatpush1.bf16.msra.mxu0 0
      %5046 = vmatprep.subr.bf16.mxu0 0
      %5047 = vmatpush1.bf16.msra.mxu0 0
      %5048 = vmatprep.subr.bf16.mxu0 0
      %5049 = vmatpush1.bf16.msra.mxu0 0
      %5050 = vmatprep.subr.bf16.mxu0 0
      %5051 = vmatpush1.bf16.msra.mxu0 0
      %5052 = vmatprep.subr.bf16.mxu0 0
      %5053 = vmatpush1.bf16.msra.mxu0 0
      %5054 = vmatprep.subr.bf16.mxu0 0
      %5055 = vmatpush1.bf16.msra.mxu0 0
      %5056 = vmatprep.subr.bf16.mxu0 0
      %5057 = vmatpush1.bf16.msra.mxu0 0
      %5058 = vmatprep.subr.bf16.mxu0 0
      %5059 = vmatpush1.bf16.msra.mxu0 0
      %5060 = vmatprep.subr.bf16.mxu0 0
      %5061 = vmatpush1.bf16.msra.mxu0 0
      %5062 = vmatprep.subr.bf16.mxu0 0
      %5063 = vmatpush1.bf16.msra.mxu0 0
      %5064 = vmatprep.subr.bf16.mxu0 0
      %5065 = vmatpush1.bf16.msra.mxu0 0
      %5066 = vmatprep.subr.bf16.mxu0 0
      %5067 = vmatpush1.bf16.msra.mxu0 0
      %5068 = vmatprep.subr.bf16.mxu0 0
      %5069 = vmatpush1.bf16.msra.mxu0 0
      %5070 = vmatprep.subr.bf16.mxu0 0
      %5071 = vmatpush1.bf16.msra.mxu0 0
      %5072 = vmatprep.mubr.bf16.mxu0 0
      %5073 = vmatmul.mubr.bf16.gmra.mrb[0].mxu0 %v4334
      %v5074 = vpop.f32.mrb[0].mxu0
      %v5075 = vadd.f32 %v4902, %v5074
      %v5076 = vpop.f32.mrb[0].mxu0
      %v5077 = vpop.f32.mrb[0].mxu0
      %v5078 = vadd.f32 %v4905, %v5077
      %v5079 = vpop.f32.mrb[0].mxu0
      %5080 = vmatprep.mubr.bf16.mxu0 0
      %5081 = vmatmul.mubr.bf16.gmra.mrb[0].mxu0 %v4337
      %v5082 = vpop.f32.mrb[0].mxu0
      %v5083 = vadd.f32 %v4910, %v5082
      %v5084 = vpop.f32.mrb[0].mxu0
      %v5085 = vpop.f32.mrb[0].mxu0
      %v5086 = vadd.f32 %v4913, %v5085
      %v5087 = vpop.f32.mrb[0].mxu0
      %5088 = vmatprep.mubr.bf16.mxu0 0
      %5089 = vmatmul.mubr.bf16.gmra.mrb[0].mxu0 %v4340
      %v5090 = vpop.f32.mrb[0].mxu0
      %v5091 = vadd.f32 %v4918, %v5090
      %v5092 = vpop.f32.mrb[0].mxu0
      %v5093 = vpop.f32.mrb[0].mxu0
      %v5094 = vadd.f32 %v4921, %v5093
      %v5095 = vpop.f32.mrb[0].mxu0
      %5096 = vmatprep.mubr.bf16.mxu0 0
      %5097 = vmatmul.mubr.bf16.gmra.mrb[0].mxu0 %v4343
      %v5098 = vpop.f32.mrb[0].mxu0
      %v5099 = vadd.f32 %v4926, %v5098
      %v5100 = vpop.f32.mrb[0].mxu0
      %v5101 = vpop.f32.mrb[0].mxu0
      %v5102 = vadd.f32 %v4929, %v5101
      %v5103 = vpop.f32.mrb[0].mxu0
      %5104 = vmatprep.mubr.bf16.mxu0 0
      %5105 = vmatmul.mubr.bf16.gmra.mrb[0].mxu0 %v4346
      %v5106 = vpop.f32.mrb[0].mxu0
      %v5107 = vadd.f32 %v4934, %v5106
      %v5108 = vpop.f32.mrb[0].mxu0
      %v5109 = vpop.f32.mrb[0].mxu0
      %v5110 = vadd.f32 %v4937, %v5109
      %v5111 = vpop.f32.mrb[0].mxu0
      %5112 = vmatprep.mubr.bf16.mxu0 0
      %5113 = vmatmul.mubr.bf16.gmra.mrb[0].mxu0 %v4349
      %v5114 = vpop.f32.mrb[0].mxu0
      %v5115 = vadd.f32 %v4942, %v5114
      %v5116 = vpop.f32.mrb[0].mxu0
      %v5117 = vpop.f32.mrb[0].mxu0
      %v5118 = vadd.f32 %v4945, %v5117
      %v5119 = vpop.f32.mrb[0].mxu0
      %5120 = vmatprep.mubr.bf16.mxu0 0
      %5121 = vmatmul.mubr.bf16.gmra.mrb[0].mxu0 %v4352
      %v5122 = vpop.f32.mrb[0].mxu0
      %v5123 = vadd.f32 %v4950, %v5122
      %v5124 = vpop.f32.mrb[0].mxu0
      %v5125 = vpop.f32.mrb[0].mxu0
      %v5126 = vadd.f32 %v4953, %v5125
      %v5127 = vpop.f32.mrb[0].mxu0
      %5128 = vmatprep.mubr.bf16.mxu0 0
      %5129 = vmatmul.mubr.bf16.gmra.mrb[0].mxu0 %v4355
      %v5130 = vpop.f32.mrb[0].mxu0
      %v5131 = vadd.f32 %v4958, %v5130
      %v5132 = vpop.f32.mrb[0].mxu0
      %v5133 = vpop.f32.mrb[0].mxu0
      %v5134 = vadd.f32 %v4961, %v5133
      %v5135 = vpop.f32.mrb[0].mxu0
      %5136 = vmatprep.mubr.bf16.mxu0 0
      %5137 = vmatmul.mubr.bf16.gmra.mrb[0].mxu0 %v4358
      %v5138 = vpop.f32.mrb[0].mxu0
      %v5139 = vadd.f32 %v4966, %v5138
      %v5140 = vpop.f32.mrb[0].mxu0
      %v5141 = vpop.f32.mrb[0].mxu0
      %v5142 = vadd.f32 %v4969, %v5141
      %v5143 = vpop.f32.mrb[0].mxu0
      %5144 = vmatprep.mubr.bf16.mxu0 0
      %5145 = vmatmul.mubr.bf16.gmra.mrb[0].mxu0 %v4361
      %v5146 = vpop.f32.mrb[0].mxu0
      %v5147 = vadd.f32 %v4974, %v5146
      %v5148 = vpop.f32.mrb[0].mxu0
      %v5149 = vpop.f32.mrb[0].mxu0
      %v5150 = vadd.f32 %v4977, %v5149
      %v5151 = vpop.f32.mrb[0].mxu0
      %5152 = vmatprep.mubr.bf16.mxu0 0
      %5153 = vmatmul.mubr.bf16.gmra.mrb[0].mxu0 %v4364
      %v5154 = vpop.f32.mrb[0].mxu0
      %v5155 = vadd.f32 %v4982, %v5154
      %v5156 = vpop.f32.mrb[0].mxu0
      %v5157 = vpop.f32.mrb[0].mxu0
      %v5158 = vadd.f32 %v4985, %v5157
      %v5159 = vpop.f32.mrb[0].mxu0
      %5160 = vmatprep.mubr.bf16.mxu0 0
      %5161 = vmatmul.mubr.bf16.gmra.mrb[0].mxu0 %v4367
      %v5162 = vpop.f32.mrb[0].mxu0
      %v5163 = vadd.f32 %v4990, %v5162
      %v5164 = vpop.f32.mrb[0].mxu0
      %v5165 = vpop.f32.mrb[0].mxu0
      %v5166 = vadd.f32 %v4993, %v5165
      %v5167 = vpop.f32.mrb[0].mxu0
      %5168 = vmatprep.mubr.bf16.mxu0 0
      %5169 = vmatmul.mubr.bf16.gmra.mrb[0].mxu0 %v4370
      %v5170 = vpop.f32.mrb[0].mxu0
      %v5171 = vadd.f32 %v4998, %v5170
      %v5172 = vpop.f32.mrb[0].mxu0
      %v5173 = vpop.f32.mrb[0].mxu0
      %v5174 = vadd.f32 %v5001, %v5173
      %v5175 = vpop.f32.mrb[0].mxu0
      %5176 = vmatprep.mubr.bf16.mxu0 0
      %5177 = vmatmul.mubr.bf16.gmra.mrb[0].mxu0 %v4373
      %v5178 = vpop.f32.mrb[0].mxu0
      %v5179 = vadd.f32 %v5006, %v5178
      %v5180 = vpop.f32.mrb[0].mxu0
      %v5181 = vpop.f32.mrb[0].mxu0
      %v5182 = vadd.f32 %v5009, %v5181
      %v5183 = vpop.f32.mrb[0].mxu0
      %5184 = vmatprep.mubr.bf16.mxu0 0
      %5185 = vmatmul.mubr.bf16.gmra.mrb[0].mxu0 %v4376
      %v5186 = vpop.f32.mrb[0].mxu0
      %v5187 = vadd.f32 %v5014, %v5186
      %v5188 = vpop.f32.mrb[0].mxu0
      %v5189 = vpop.f32.mrb[0].mxu0
      %v5190 = vadd.f32 %v5017, %v5189
      %v5191 = vpop.f32.mrb[0].mxu0
      %5192 = vmatprep.mubr.bf16.mxu0 0
      %5193 = vmatmul.mubr.bf16.gmra.mrb[0].mxu0 %v4331
      %v5194 = vpop.f32.mrb[0].mxu0
      %v5195 = vadd.f32 %v5022, %v5194
      %v5196 = vpop.f32.mrb[0].mxu0
      %v5197 = vpop.f32.mrb[0].mxu0
      %v5198 = vadd.f32 %v5025, %v5197
      %v5199 = vpop.f32.mrb[0].mxu0
      %5200 = vdwg.mxu0
      %s5201 = scalar_lea.vmem %s288, 512
      %v5202 = vld [vmem:[%s5201] sm:$0xf]
      %v5203 = vld [vmem:[%s5201 + $0x4] sm:$0xf]
      %v5204 = vld [vmem:[%s5201 + $0x8] sm:$0xf]
      %v5205 = vld [vmem:[%s5201 + $0xc] sm:$0xf]
      %v5210 = vunpack.c.l.b16 %v5202
      %v5211 = vunpack.c.l.b16 %v5203
      %v5212 = vunpack.c.l.b16 %v5204
      %v5213 = vunpack.c.l.b16 %v5205
      %v5214 = vpack.c.b16 %v5211, %v5210
      %v5215 = vpack.c.b16 %v5213, %v5212
      %5218 = vmatprep.subr.bf16.mxu0 0
      %5219 = vmatpush1.bf16.msra.mxu0 %v5214
      %5220 = vmatprep.subr.bf16.mxu0 0
      %5221 = vmatpush1.bf16.msra.mxu0 %v5215
      %5222 = vmatprep.subr.bf16.mxu0 0
      %5223 = vmatpush1.bf16.msra.mxu0 0
      %5224 = vmatprep.subr.bf16.mxu0 0
      %5225 = vmatpush1.bf16.msra.mxu0 0
      %5226 = vmatprep.subr.bf16.mxu0 0
      %5227 = vmatpush1.bf16.msra.mxu0 0
      %5228 = vmatprep.subr.bf16.mxu0 0
      %5229 = vmatpush1.bf16.msra.mxu0 0
      %5230 = vmatprep.subr.bf16.mxu0 0
      %5231 = vmatpush1.bf16.msra.mxu0 0
      %5232 = vmatprep.subr.bf16.mxu0 0
      %5233 = vmatpush1.bf16.msra.mxu0 0
      %5234 = vmatprep.subr.bf16.mxu0 0
      %5235 = vmatpush1.bf16.msra.mxu0 0
      %5236 = vmatprep.subr.bf16.mxu0 0
      %5237 = vmatpush1.bf16.msra.mxu0 0
      %5238 = vmatprep.subr.bf16.mxu0 0
      %5239 = vmatpush1.bf16.msra.mxu0 0
      %5240 = vmatprep.subr.bf16.mxu0 0
      %5241 = vmatpush1.bf16.msra.mxu0 0
      %5242 = vmatprep.subr.bf16.mxu0 0
      %5243 = vmatpush1.bf16.msra.mxu0 0
      %5244 = vmatprep.subr.bf16.mxu0 0
      %5245 = vmatpush1.bf16.msra.mxu0 0
      %5246 = vmatprep.subr.bf16.mxu0 0
      %5247 = vmatpush1.bf16.msra.mxu0 0
      %5248 = vmatprep.subr.bf16.mxu0 0
      %5249 = vmatpush1.bf16.msra.mxu0 0
      %5250 = vmatprep.mubr.bf16.mxu0 0
      %5251 = vmatmul.mubr.bf16.gmra.mrb[0].mxu0 %v4576
      %v5252 = vpop.f32.mrb[0].mxu0
      %v5253 = vadd.f32 0.0, %v5252
      %v5254 = vpop.f32.mrb[0].mxu0
      %v5255 = vpop.f32.mrb[0].mxu0
      %v5256 = vadd.f32 0.0, %v5255
      %v5257 = vpop.f32.mrb[0].mxu0
      %5258 = vmatprep.mubr.bf16.mxu0 0
      %5259 = vmatmul.mubr.bf16.gmra.mrb[0].mxu0 %v4579
      %v5260 = vpop.f32.mrb[0].mxu0
      %v5261 = vadd.f32 0.0, %v5260
      %v5262 = vpop.f32.mrb[0].mxu0
      %v5263 = vpop.f32.mrb[0].mxu0
      %v5264 = vadd.f32 0.0, %v5263
      %v5265 = vpop.f32.mrb[0].mxu0
      %5266 = vmatprep.mubr.bf16.mxu0 0
      %5267 = vmatmul.mubr.bf16.gmra.mrb[0].mxu0 %v4582
      %v5268 = vpop.f32.mrb[0].mxu0
      %v5269 = vadd.f32 0.0, %v5268
      %v5270 = vpop.f32.mrb[0].mxu0
      %v5271 = vpop.f32.mrb[0].mxu0
      %v5272 = vadd.f32 0.0, %v5271
      %v5273 = vpop.f32.mrb[0].mxu0
      %5274 = vmatprep.mubr.bf16.mxu0 0
      %5275 = vmatmul.mubr.bf16.gmra.mrb[0].mxu0 %v4585
      %v5276 = vpop.f32.mrb[0].mxu0
      %v5277 = vadd.f32 0.0, %v5276
      %v5278 = vpop.f32.mrb[0].mxu0
      %v5279 = vpop.f32.mrb[0].mxu0
      %v5280 = vadd.f32 0.0, %v5279
      %v5281 = vpop.f32.mrb[0].mxu0
      %5282 = vmatprep.mubr.bf16.mxu0 0
      %5283 = vmatmul.mubr.bf16.gmra.mrb[0].mxu0 %v4588
      %v5284 = vpop.f32.mrb[0].mxu0
      %v5285 = vadd.f32 0.0, %v5284
      %v5286 = vpop.f32.mrb[0].mxu0
      %v5287 = vpop.f32.mrb[0].mxu0
      %v5288 = vadd.f32 0.0, %v5287
      %v5289 = vpop.f32.mrb[0].mxu0
      %5290 = vmatprep.mubr.bf16.mxu0 0
      %5291 = vmatmul.mubr.bf16.gmra.mrb[0].mxu0 %v4591
      %v5292 = vpop.f32.mrb[0].mxu0
      %v5293 = vadd.f32 0.0, %v5292
      %v5294 = vpop.f32.mrb[0].mxu0
      %v5295 = vpop.f32.mrb[0].mxu0
      %v5296 = vadd.f32 0.0, %v5295
      %v5297 = vpop.f32.mrb[0].mxu0
      %5298 = vmatprep.mubr.bf16.mxu0 0
      %5299 = vmatmul.mubr.bf16.gmra.mrb[0].mxu0 %v4594
      %v5300 = vpop.f32.mrb[0].mxu0
      %v5301 = vadd.f32 0.0, %v5300
      %v5302 = vpop.f32.mrb[0].mxu0
      %v5303 = vpop.f32.mrb[0].mxu0
      %v5304 = vadd.f32 0.0, %v5303
      %v5305 = vpop.f32.mrb[0].mxu0
      %5306 = vmatprep.mubr.bf16.mxu0 0
      %5307 = vmatmul.mubr.bf16.gmra.mrb[0].mxu0 %v4597
      %v5308 = vpop.f32.mrb[0].mxu0
      %v5309 = vadd.f32 0.0, %v5308
      %v5310 = vpop.f32.mrb[0].mxu0
      %v5311 = vpop.f32.mrb[0].mxu0
      %v5312 = vadd.f32 0.0, %v5311
      %v5313 = vpop.f32.mrb[0].mxu0
      %5314 = vmatprep.mubr.bf16.mxu0 0
      %5315 = vmatmul.mubr.bf16.gmra.mrb[0].mxu0 %v4600
      %v5316 = vpop.f32.mrb[0].mxu0
      %v5317 = vadd.f32 0.0, %v5316
      %v5318 = vpop.f32.mrb[0].mxu0
      %v5319 = vpop.f32.mrb[0].mxu0
      %v5320 = vadd.f32 0.0, %v5319
      %v5321 = vpop.f32.mrb[0].mxu0
      %5322 = vmatprep.mubr.bf16.mxu0 0
      %5323 = vmatmul.mubr.bf16.gmra.mrb[0].mxu0 %v4603
      %v5324 = vpop.f32.mrb[0].mxu0
      %v5325 = vadd.f32 0.0, %v5324
      %v5326 = vpop.f32.mrb[0].mxu0
      %v5327 = vpop.f32.mrb[0].mxu0
      %v5328 = vadd.f32 0.0, %v5327
      %v5329 = vpop.f32.mrb[0].mxu0
      %5330 = vmatprep.mubr.bf16.mxu0 0
      %5331 = vmatmul.mubr.bf16.gmra.mrb[0].mxu0 %v4606
      %v5332 = vpop.f32.mrb[0].mxu0
      %v5333 = vadd.f32 0.0, %v5332
      %v5334 = vpop.f32.mrb[0].mxu0
      %v5335 = vpop.f32.mrb[0].mxu0
      %v5336 = vadd.f32 0.0, %v5335
      %v5337 = vpop.f32.mrb[0].mxu0
      %5338 = vmatprep.mubr.bf16.mxu0 0
      %5339 = vmatmul.mubr.bf16.gmra.mrb[0].mxu0 %v4609
      %v5340 = vpop.f32.mrb[0].mxu0
      %v5341 = vadd.f32 0.0, %v5340
      %v5342 = vpop.f32.mrb[0].mxu0
      %v5343 = vpop.f32.mrb[0].mxu0
      %v5344 = vadd.f32 0.0, %v5343
      %v5345 = vpop.f32.mrb[0].mxu0
      %5346 = vmatprep.mubr.bf16.mxu0 0
      %5347 = vmatmul.mubr.bf16.gmra.mrb[0].mxu0 %v4612
      %v5348 = vpop.f32.mrb[0].mxu0
      %v5349 = vadd.f32 0.0, %v5348
      %v5350 = vpop.f32.mrb[0].mxu0
      %v5351 = vpop.f32.mrb[0].mxu0
      %v5352 = vadd.f32 0.0, %v5351
      %v5353 = vpop.f32.mrb[0].mxu0
      %5354 = vmatprep.mubr.bf16.mxu0 0
      %5355 = vmatmul.mubr.bf16.gmra.mrb[0].mxu0 %v4615
      %v5356 = vpop.f32.mrb[0].mxu0
      %v5357 = vadd.f32 0.0, %v5356
      %v5358 = vpop.f32.mrb[0].mxu0
      %v5359 = vpop.f32.mrb[0].mxu0
      %v5360 = vadd.f32 0.0, %v5359
      %v5361 = vpop.f32.mrb[0].mxu0
      %5362 = vmatprep.mubr.bf16.mxu0 0
      %5363 = vmatmul.mubr.bf16.gmra.mrb[0].mxu0 %v4618
      %v5364 = vpop.f32.mrb[0].mxu0
      %v5365 = vadd.f32 0.0, %v5364
      %v5366 = vpop.f32.mrb[0].mxu0
      %v5367 = vpop.f32.mrb[0].mxu0
      %v5368 = vadd.f32 0.0, %v5367
      %v5369 = vpop.f32.mrb[0].mxu0
      %5370 = vmatprep.mubr.bf16.mxu0 0
      %5371 = vmatmul.mubr.bf16.gmra.mrb[0].mxu0 %v4573
      %v5372 = vpop.f32.mrb[0].mxu0
      %v5373 = vadd.f32 0.0, %v5372
      %v5374 = vpop.f32.mrb[0].mxu0
      %v5375 = vpop.f32.mrb[0].mxu0
      %v5376 = vadd.f32 0.0, %v5375
      %v5377 = vpop.f32.mrb[0].mxu0
      %5378 = vdwg.mxu0
      %v5379 = vadd.f32 %v5075, %v5253
      %v5380 = vadd.f32 %v5078, %v5256
      %v5381 = vadd.f32 %v5083, %v5261
      %v5382 = vadd.f32 %v5086, %v5264
      %v5383 = vadd.f32 %v5091, %v5269
      %v5384 = vadd.f32 %v5094, %v5272
      %v5385 = vadd.f32 %v5099, %v5277
      %v5386 = vadd.f32 %v5102, %v5280
      %v5387 = vadd.f32 %v5107, %v5285
      %v5388 = vadd.f32 %v5110, %v5288
      %v5389 = vadd.f32 %v5115, %v5293
      %v5390 = vadd.f32 %v5118, %v5296
      %v5391 = vadd.f32 %v5123, %v5301
      %v5392 = vadd.f32 %v5126, %v5304
      %v5393 = vadd.f32 %v5131, %v5309
      %v5394 = vadd.f32 %v5134, %v5312
      %v5395 = vadd.f32 %v5139, %v5317
      %v5396 = vadd.f32 %v5142, %v5320
      %v5397 = vadd.f32 %v5147, %v5325
      %v5398 = vadd.f32 %v5150, %v5328
      %v5399 = vadd.f32 %v5155, %v5333
      %v5400 = vadd.f32 %v5158, %v5336
      %v5401 = vadd.f32 %v5163, %v5341
      %v5402 = vadd.f32 %v5166, %v5344
      %v5403 = vadd.f32 %v5171, %v5349
      %v5404 = vadd.f32 %v5174, %v5352
      %v5405 = vadd.f32 %v5179, %v5357
      %v5406 = vadd.f32 %v5182, %v5360
      %v5407 = vadd.f32 %v5187, %v5365
      %v5408 = vadd.f32 %v5190, %v5368
      %v5409 = vadd.f32 %v5195, %v5373
      %v5410 = vadd.f32 %v5198, %v5376
      %v5411 = vadd.f32 %v4813, %v5379
      %v5412 = vadd.f32 %v4814, %v5380
      %v5413 = vadd.f32 %v4815, %v5381
      %v5414 = vadd.f32 %v4816, %v5382
      %v5415 = vadd.f32 %v4817, %v5383
      %v5416 = vadd.f32 %v4818, %v5384
      %v5417 = vadd.f32 %v4819, %v5385
      %v5418 = vadd.f32 %v4820, %v5386
      %v5419 = vadd.f32 %v4821, %v5387
      %v5420 = vadd.f32 %v4822, %v5388
      %v5421 = vadd.f32 %v4823, %v5389
      %v5422 = vadd.f32 %v4824, %v5390
      %v5423 = vadd.f32 %v4825, %v5391
      %v5424 = vadd.f32 %v4826, %v5392
      %v5425 = vadd.f32 %v4827, %v5393
      %v5426 = vadd.f32 %v4828, %v5394
      %v5427 = vadd.f32 %v4829, %v5395
      %v5428 = vadd.f32 %v4830, %v5396
      %v5429 = vadd.f32 %v4831, %v5397
      %v5430 = vadd.f32 %v4832, %v5398
      %v5431 = vadd.f32 %v4833, %v5399
      %v5432 = vadd.f32 %v4834, %v5400
      %v5433 = vadd.f32 %v4835, %v5401
      %v5434 = vadd.f32 %v4836, %v5402
      %v5435 = vadd.f32 %v4837, %v5403
      %v5436 = vadd.f32 %v4838, %v5404
      %v5437 = vadd.f32 %v4839, %v5405
      %v5438 = vadd.f32 %v4840, %v5406
      %v5439 = vadd.f32 %v4841, %v5407
      %v5440 = vadd.f32 %v4842, %v5408
      %v5441 = vadd.f32 %v4843, %v5409
      %v5442 = vadd.f32 %v4844, %v5410
      %s5443 = scalar_lea.vmem %s288, 528
      %v5444 = vld [vmem:[%s5443] sm:$0xf]
      %v5445 = vld [vmem:[%s5443 + $0x4] sm:$0xf]
      %v5446 = vld [vmem:[%s5443 + $0x8] sm:$0xf]
      %v5447 = vld [vmem:[%s5443 + $0xc] sm:$0xf]
      %s5448 = scalar_lea.vmem %s288, 544
      %v5449 = vld [vmem:[%s5448] sm:$0xf]
      %v5450 = vld [vmem:[%s5448 + $0x4] sm:$0xf]
      %v5451 = vld [vmem:[%s5448 + $0x8] sm:$0xf]
      %v5452 = vld [vmem:[%s5448 + $0xc] sm:$0xf]
      %v5457 = vunpack.c.l.b16 %v5449
      %v5458 = vunpack.c.l.b16 %v5450
      %v5459 = vunpack.c.l.b16 %v5451
      %v5460 = vunpack.c.l.b16 %v5452
      %v5461 = vpack.c.b16 %v5458, %v5457
      %v5462 = vpack.c.b16 %v5460, %v5459
      %5465 = vmatprep.subr.bf16.mxu0 0
      %5466 = vmatpush1.bf16.msra.mxu0 %v5461
      %5467 = vmatprep.subr.bf16.mxu0 0
      %5468 = vmatpush1.bf16.msra.mxu0 %v5462
      %5469 = vmatprep.subr.bf16.mxu0 0
      %5470 = vmatpush1.bf16.msra.mxu0 0
      %5471 = vmatprep.subr.bf16.mxu0 0
      %5472 = vmatpush1.bf16.msra.mxu0 0
      %5473 = vmatprep.subr.bf16.mxu0 0
      %5474 = vmatpush1.bf16.msra.mxu0 0
      %5475 = vmatprep.subr.bf16.mxu0 0
      %5476 = vmatpush1.bf16.msra.mxu0 0
      %5477 = vmatprep.subr.bf16.mxu0 0
      %5478 = vmatpush1.bf16.msra.mxu0 0
      %5479 = vmatprep.subr.bf16.mxu0 0
      %5480 = vmatpush1.bf16.msra.mxu0 0
      %5481 = vmatprep.subr.bf16.mxu0 0
      %5482 = vmatpush1.bf16.msra.mxu0 0
      %5483 = vmatprep.subr.bf16.mxu0 0
      %5484 = vmatpush1.bf16.msra.mxu0 0
      %5485 = vmatprep.subr.bf16.mxu0 0
      %5486 = vmatpush1.bf16.msra.mxu0 0
      %5487 = vmatprep.subr.bf16.mxu0 0
      %5488 = vmatpush1.bf16.msra.mxu0 0
      %5489 = vmatprep.subr.bf16.mxu0 0
      %5490 = vmatpush1.bf16.msra.mxu0 0
      %5491 = vmatprep.subr.bf16.mxu0 0
      %5492 = vmatpush1.bf16.msra.mxu0 0
      %5493 = vmatprep.subr.bf16.mxu0 0
      %5494 = vmatpush1.bf16.msra.mxu0 0
      %5495 = vmatprep.subr.bf16.mxu0 0
      %5496 = vmatpush1.bf16.msra.mxu0 0
      %5497 = vmatprep.mubr.bf16.mxu0 0
      %5498 = vmatmul.mubr.bf16.gmra.mrb[0].mxu0 %v4116
      %v5499 = vpop.f32.mrb[0].mxu0
      %v5500 = vadd.f32 0.0, %v5499
      %v5501 = vpop.f32.mrb[0].mxu0
      %v5502 = vpop.f32.mrb[0].mxu0
      %v5503 = vadd.f32 0.0, %v5502
      %v5504 = vpop.f32.mrb[0].mxu0
      %5505 = vmatprep.mubr.bf16.mxu0 0
      %5506 = vmatmul.mubr.bf16.gmra.mrb[0].mxu0 %v4119
      %v5507 = vpop.f32.mrb[0].mxu0
      %v5508 = vadd.f32 0.0, %v5507
      %v5509 = vpop.f32.mrb[0].mxu0
      %v5510 = vpop.f32.mrb[0].mxu0
      %v5511 = vadd.f32 0.0, %v5510
      %v5512 = vpop.f32.mrb[0].mxu0
      %5513 = vmatprep.mubr.bf16.mxu0 0
      %5514 = vmatmul.mubr.bf16.gmra.mrb[0].mxu0 %v4122
      %v5515 = vpop.f32.mrb[0].mxu0
      %v5516 = vadd.f32 0.0, %v5515
      %v5517 = vpop.f32.mrb[0].mxu0
      %v5518 = vpop.f32.mrb[0].mxu0
      %v5519 = vadd.f32 0.0, %v5518
      %v5520 = vpop.f32.mrb[0].mxu0
      %5521 = vmatprep.mubr.bf16.mxu0 0
      %5522 = vmatmul.mubr.bf16.gmra.mrb[0].mxu0 %v4125
      %v5523 = vpop.f32.mrb[0].mxu0
      %v5524 = vadd.f32 0.0, %v5523
      %v5525 = vpop.f32.mrb[0].mxu0
      %v5526 = vpop.f32.mrb[0].mxu0
      %v5527 = vadd.f32 0.0, %v5526
      %v5528 = vpop.f32.mrb[0].mxu0
      %5529 = vmatprep.mubr.bf16.mxu0 0
      %5530 = vmatmul.mubr.bf16.gmra.mrb[0].mxu0 %v4128
      %v5531 = vpop.f32.mrb[0].mxu0
      %v5532 = vadd.f32 0.0, %v5531
      %v5533 = vpop.f32.mrb[0].mxu0
      %v5534 = vpop.f32.mrb[0].mxu0
      %v5535 = vadd.f32 0.0, %v5534
      %v5536 = vpop.f32.mrb[0].mxu0
      %5537 = vmatprep.mubr.bf16.mxu0 0
      %5538 = vmatmul.mubr.bf16.gmra.mrb[0].mxu0 %v4131
      %v5539 = vpop.f32.mrb[0].mxu0
      %v5540 = vadd.f32 0.0, %v5539
      %v5541 = vpop.f32.mrb[0].mxu0
      %v5542 = vpop.f32.mrb[0].mxu0
      %v5543 = vadd.f32 0.0, %v5542
      %v5544 = vpop.f32.mrb[0].mxu0
      %5545 = vmatprep.mubr.bf16.mxu0 0
      %5546 = vmatmul.mubr.bf16.gmra.mrb[0].mxu0 %v4134
      %v5547 = vpop.f32.mrb[0].mxu0
      %v5548 = vadd.f32 0.0, %v5547
      %v5549 = vpop.f32.mrb[0].mxu0
      %v5550 = vpop.f32.mrb[0].mxu0
      %v5551 = vadd.f32 0.0, %v5550
      %v5552 = vpop.f32.mrb[0].mxu0
      %5553 = vmatprep.mubr.bf16.mxu0 0
      %5554 = vmatmul.mubr.bf16.gmra.mrb[0].mxu0 %v4137
      %v5555 = vpop.f32.mrb[0].mxu0
      %v5556 = vadd.f32 0.0, %v5555
      %v5557 = vpop.f32.mrb[0].mxu0
      %v5558 = vpop.f32.mrb[0].mxu0
      %v5559 = vadd.f32 0.0, %v5558
      %v5560 = vpop.f32.mrb[0].mxu0
      %5561 = vmatprep.mubr.bf16.mxu0 0
      %5562 = vmatmul.mubr.bf16.gmra.mrb[0].mxu0 %v4140
      %v5563 = vpop.f32.mrb[0].mxu0
      %v5564 = vadd.f32 0.0, %v5563
      %v5565 = vpop.f32.mrb[0].mxu0
      %v5566 = vpop.f32.mrb[0].mxu0
      %v5567 = vadd.f32 0.0, %v5566
      %v5568 = vpop.f32.mrb[0].mxu0
      %5569 = vmatprep.mubr.bf16.mxu0 0
      %5570 = vmatmul.mubr.bf16.gmra.mrb[0].mxu0 %v4143
      %v5571 = vpop.f32.mrb[0].mxu0
      %v5572 = vadd.f32 0.0, %v5571
      %v5573 = vpop.f32.mrb[0].mxu0
      %v5574 = vpop.f32.mrb[0].mxu0
      %v5575 = vadd.f32 0.0, %v5574
      %v5576 = vpop.f32.mrb[0].mxu0
      %5577 = vmatprep.mubr.bf16.mxu0 0
      %5578 = vmatmul.mubr.bf16.gmra.mrb[0].mxu0 %v4146
      %v5579 = vpop.f32.mrb[0].mxu0
      %v5580 = vadd.f32 0.0, %v5579
      %v5581 = vpop.f32.mrb[0].mxu0
      %v5582 = vpop.f32.mrb[0].mxu0
      %v5583 = vadd.f32 0.0, %v5582
      %v5584 = vpop.f32.mrb[0].mxu0
      %5585 = vmatprep.mubr.bf16.mxu0 0
      %5586 = vmatmul.mubr.bf16.gmra.mrb[0].mxu0 %v4149
      %v5587 = vpop.f32.mrb[0].mxu0
      %v5588 = vadd.f32 0.0, %v5587
      %v5589 = vpop.f32.mrb[0].mxu0
      %v5590 = vpop.f32.mrb[0].mxu0
      %v5591 = vadd.f32 0.0, %v5590
      %v5592 = vpop.f32.mrb[0].mxu0
      %5593 = vmatprep.mubr.bf16.mxu0 0
      %5594 = vmatmul.mubr.bf16.gmra.mrb[0].mxu0 %v4152
      %v5595 = vpop.f32.mrb[0].mxu0
      %v5596 = vadd.f32 0.0, %v5595
      %v5597 = vpop.f32.mrb[0].mxu0
      %v5598 = vpop.f32.mrb[0].mxu0
      %v5599 = vadd.f32 0.0, %v5598
      %v5600 = vpop.f32.mrb[0].mxu0
      %5601 = vmatprep.mubr.bf16.mxu0 0
      %5602 = vmatmul.mubr.bf16.gmra.mrb[0].mxu0 %v4155
      %v5603 = vpop.f32.mrb[0].mxu0
      %v5604 = vadd.f32 0.0, %v5603
      %v5605 = vpop.f32.mrb[0].mxu0
      %v5606 = vpop.f32.mrb[0].mxu0
      %v5607 = vadd.f32 0.0, %v5606
      %v5608 = vpop.f32.mrb[0].mxu0
      %5609 = vmatprep.mubr.bf16.mxu0 0
      %5610 = vmatmul.mubr.bf16.gmra.mrb[0].mxu0 %v4110
      %v5611 = vpop.f32.mrb[0].mxu0
      %v5612 = vadd.f32 0.0, %v5611
      %v5613 = vpop.f32.mrb[0].mxu0
      %v5614 = vpop.f32.mrb[0].mxu0
      %v5615 = vadd.f32 0.0, %v5614
      %v5616 = vpop.f32.mrb[0].mxu0
      %5617 = vmatprep.mubr.bf16.mxu0 0
      %5618 = vmatmul.mubr.bf16.gmra.mrb[0].mxu0 %v4113
      %v5619 = vpop.f32.mrb[0].mxu0
      %v5620 = vadd.f32 0.0, %v5619
      %v5621 = vpop.f32.mrb[0].mxu0
      %v5622 = vpop.f32.mrb[0].mxu0
      %v5623 = vadd.f32 0.0, %v5622
      %v5624 = vpop.f32.mrb[0].mxu0
      %5625 = vdwg.mxu0
      %v5630 = vunpack.c.l.b16 %v5444
      %v5631 = vunpack.c.l.b16 %v5445
      %v5632 = vunpack.c.l.b16 %v5446
      %v5633 = vunpack.c.l.b16 %v5447
      %v5634 = vpack.c.b16 %v5631, %v5630
      %v5635 = vpack.c.b16 %v5633, %v5632
      %5638 = vmatprep.subr.bf16.mxu0 0
      %5639 = vmatpush1.bf16.msra.mxu0 %v5634
      %5640 = vmatprep.subr.bf16.mxu0 0
      %5641 = vmatpush1.bf16.msra.mxu0 %v5635
      %5642 = vmatprep.subr.bf16.mxu0 0
      %5643 = vmatpush1.bf16.msra.mxu0 0
      %5644 = vmatprep.subr.bf16.mxu0 0
      %5645 = vmatpush1.bf16.msra.mxu0 0
      %5646 = vmatprep.subr.bf16.mxu0 0
      %5647 = vmatpush1.bf16.msra.mxu0 0
      %5648 = vmatprep.subr.bf16.mxu0 0
      %5649 = vmatpush1.bf16.msra.mxu0 0
      %5650 = vmatprep.subr.bf16.mxu0 0
      %5651 = vmatpush1.bf16.msra.mxu0 0
      %5652 = vmatprep.subr.bf16.mxu0 0
      %5653 = vmatpush1.bf16.msra.mxu0 0
      %5654 = vmatprep.subr.bf16.mxu0 0
      %5655 = vmatpush1.bf16.msra.mxu0 0
      %5656 = vmatprep.subr.bf16.mxu0 0
      %5657 = vmatpush1.bf16.msra.mxu0 0
      %5658 = vmatprep.subr.bf16.mxu0 0
      %5659 = vmatpush1.bf16.msra.mxu0 0
      %5660 = vmatprep.subr.bf16.mxu0 0
      %5661 = vmatpush1.bf16.msra.mxu0 0
      %5662 = vmatprep.subr.bf16.mxu0 0
      %5663 = vmatpush1.bf16.msra.mxu0 0
      %5664 = vmatprep.subr.bf16.mxu0 0
      %5665 = vmatpush1.bf16.msra.mxu0 0
      %5666 = vmatprep.subr.bf16.mxu0 0
      %5667 = vmatpush1.bf16.msra.mxu0 0
      %5668 = vmatprep.subr.bf16.mxu0 0
      %5669 = vmatpush1.bf16.msra.mxu0 0
      %5670 = vmatprep.mubr.bf16.mxu0 0
      %5671 = vmatmul.mubr.bf16.gmra.mrb[0].mxu0 %v4337
      %v5672 = vpop.f32.mrb[0].mxu0
      %v5673 = vadd.f32 %v5500, %v5672
      %v5674 = vpop.f32.mrb[0].mxu0
      %v5675 = vpop.f32.mrb[0].mxu0
      %v5676 = vadd.f32 %v5503, %v5675
      %v5677 = vpop.f32.mrb[0].mxu0
      %5678 = vmatprep.mubr.bf16.mxu0 0
      %5679 = vmatmul.mubr.bf16.gmra.mrb[0].mxu0 %v4340
      %v5680 = vpop.f32.mrb[0].mxu0
      %v5681 = vadd.f32 %v5508, %v5680
      %v5682 = vpop.f32.mrb[0].mxu0
      %v5683 = vpop.f32.mrb[0].mxu0
      %v5684 = vadd.f32 %v5511, %v5683
      %v5685 = vpop.f32.mrb[0].mxu0
      %5686 = vmatprep.mubr.bf16.mxu0 0
      %5687 = vmatmul.mubr.bf16.gmra.mrb[0].mxu0 %v4343
      %v5688 = vpop.f32.mrb[0].mxu0
      %v5689 = vadd.f32 %v5516, %v5688
      %v5690 = vpop.f32.mrb[0].mxu0
      %v5691 = vpop.f32.mrb[0].mxu0
      %v5692 = vadd.f32 %v5519, %v5691
      %v5693 = vpop.f32.mrb[0].mxu0
      %5694 = vmatprep.mubr.bf16.mxu0 0
      %5695 = vmatmul.mubr.bf16.gmra.mrb[0].mxu0 %v4346
      %v5696 = vpop.f32.mrb[0].mxu0
      %v5697 = vadd.f32 %v5524, %v5696
      %v5698 = vpop.f32.mrb[0].mxu0
      %v5699 = vpop.f32.mrb[0].mxu0
      %v5700 = vadd.f32 %v5527, %v5699
      %v5701 = vpop.f32.mrb[0].mxu0
      %5702 = vmatprep.mubr.bf16.mxu0 0
      %5703 = vmatmul.mubr.bf16.gmra.mrb[0].mxu0 %v4349
      %v5704 = vpop.f32.mrb[0].mxu0
      %v5705 = vadd.f32 %v5532, %v5704
      %v5706 = vpop.f32.mrb[0].mxu0
      %v5707 = vpop.f32.mrb[0].mxu0
      %v5708 = vadd.f32 %v5535, %v5707
      %v5709 = vpop.f32.mrb[0].mxu0
      %5710 = vmatprep.mubr.bf16.mxu0 0
      %5711 = vmatmul.mubr.bf16.gmra.mrb[0].mxu0 %v4352
      %v5712 = vpop.f32.mrb[0].mxu0
      %v5713 = vadd.f32 %v5540, %v5712
      %v5714 = vpop.f32.mrb[0].mxu0
      %v5715 = vpop.f32.mrb[0].mxu0
      %v5716 = vadd.f32 %v5543, %v5715
      %v5717 = vpop.f32.mrb[0].mxu0
      %5718 = vmatprep.mubr.bf16.mxu0 0
      %5719 = vmatmul.mubr.bf16.gmra.mrb[0].mxu0 %v4355
      %v5720 = vpop.f32.mrb[0].mxu0
      %v5721 = vadd.f32 %v5548, %v5720
      %v5722 = vpop.f32.mrb[0].mxu0
      %v5723 = vpop.f32.mrb[0].mxu0
      %v5724 = vadd.f32 %v5551, %v5723
      %v5725 = vpop.f32.mrb[0].mxu0
      %5726 = vmatprep.mubr.bf16.mxu0 0
      %5727 = vmatmul.mubr.bf16.gmra.mrb[0].mxu0 %v4358
      %v5728 = vpop.f32.mrb[0].mxu0
      %v5729 = vadd.f32 %v5556, %v5728
      %v5730 = vpop.f32.mrb[0].mxu0
      %v5731 = vpop.f32.mrb[0].mxu0
      %v5732 = vadd.f32 %v5559, %v5731
      %v5733 = vpop.f32.mrb[0].mxu0
      %5734 = vmatprep.mubr.bf16.mxu0 0
      %5735 = vmatmul.mubr.bf16.gmra.mrb[0].mxu0 %v4361
      %v5736 = vpop.f32.mrb[0].mxu0
      %v5737 = vadd.f32 %v5564, %v5736
      %v5738 = vpop.f32.mrb[0].mxu0
      %v5739 = vpop.f32.mrb[0].mxu0
      %v5740 = vadd.f32 %v5567, %v5739
      %v5741 = vpop.f32.mrb[0].mxu0
      %5742 = vmatprep.mubr.bf16.mxu0 0
      %5743 = vmatmul.mubr.bf16.gmra.mrb[0].mxu0 %v4364
      %v5744 = vpop.f32.mrb[0].mxu0
      %v5745 = vadd.f32 %v5572, %v5744
      %v5746 = vpop.f32.mrb[0].mxu0
      %v5747 = vpop.f32.mrb[0].mxu0
      %v5748 = vadd.f32 %v5575, %v5747
      %v5749 = vpop.f32.mrb[0].mxu0
      %5750 = vmatprep.mubr.bf16.mxu0 0
      %5751 = vmatmul.mubr.bf16.gmra.mrb[0].mxu0 %v4367
      %v5752 = vpop.f32.mrb[0].mxu0
      %v5753 = vadd.f32 %v5580, %v5752
      %v5754 = vpop.f32.mrb[0].mxu0
      %v5755 = vpop.f32.mrb[0].mxu0
      %v5756 = vadd.f32 %v5583, %v5755
      %v5757 = vpop.f32.mrb[0].mxu0
      %5758 = vmatprep.mubr.bf16.mxu0 0
      %5759 = vmatmul.mubr.bf16.gmra.mrb[0].mxu0 %v4370
      %v5760 = vpop.f32.mrb[0].mxu0
      %v5761 = vadd.f32 %v5588, %v5760
      %v5762 = vpop.f32.mrb[0].mxu0
      %v5763 = vpop.f32.mrb[0].mxu0
      %v5764 = vadd.f32 %v5591, %v5763
      %v5765 = vpop.f32.mrb[0].mxu0
      %5766 = vmatprep.mubr.bf16.mxu0 0
      %5767 = vmatmul.mubr.bf16.gmra.mrb[0].mxu0 %v4373
      %v5768 = vpop.f32.mrb[0].mxu0
      %v5769 = vadd.f32 %v5596, %v5768
      %v5770 = vpop.f32.mrb[0].mxu0
      %v5771 = vpop.f32.mrb[0].mxu0
      %v5772 = vadd.f32 %v5599, %v5771
      %v5773 = vpop.f32.mrb[0].mxu0
      %5774 = vmatprep.mubr.bf16.mxu0 0
      %5775 = vmatmul.mubr.bf16.gmra.mrb[0].mxu0 %v4376
      %v5776 = vpop.f32.mrb[0].mxu0
      %v5777 = vadd.f32 %v5604, %v5776
      %v5778 = vpop.f32.mrb[0].mxu0
      %v5779 = vpop.f32.mrb[0].mxu0
      %v5780 = vadd.f32 %v5607, %v5779
      %v5781 = vpop.f32.mrb[0].mxu0
      %5782 = vmatprep.mubr.bf16.mxu0 0
      %5783 = vmatmul.mubr.bf16.gmra.mrb[0].mxu0 %v4331
      %v5784 = vpop.f32.mrb[0].mxu0
      %v5785 = vadd.f32 %v5612, %v5784
      %v5786 = vpop.f32.mrb[0].mxu0
      %v5787 = vpop.f32.mrb[0].mxu0
      %v5788 = vadd.f32 %v5615, %v5787
      %v5789 = vpop.f32.mrb[0].mxu0
      %5790 = vmatprep.mubr.bf16.mxu0 0
      %5791 = vmatmul.mubr.bf16.gmra.mrb[0].mxu0 %v4334
      %v5792 = vpop.f32.mrb[0].mxu0
      %v5793 = vadd.f32 %v5620, %v5792
      %v5794 = vpop.f32.mrb[0].mxu0
      %v5795 = vpop.f32.mrb[0].mxu0
      %v5796 = vadd.f32 %v5623, %v5795
      %v5797 = vpop.f32.mrb[0].mxu0
      %5798 = vdwg.mxu0
      %s5799 = scalar_lea.vmem %s288, 560
      %v5800 = vld [vmem:[%s5799] sm:$0xf]
      %v5801 = vld [vmem:[%s5799 + $0x4] sm:$0xf]
      %v5802 = vld [vmem:[%s5799 + $0x8] sm:$0xf]
      %v5803 = vld [vmem:[%s5799 + $0xc] sm:$0xf]
      %v5808 = vunpack.c.l.b16 %v5800
      %v5809 = vunpack.c.l.b16 %v5801
      %v5810 = vunpack.c.l.b16 %v5802
      %v5811 = vunpack.c.l.b16 %v5803
      %v5812 = vpack.c.b16 %v5809, %v5808
      %v5813 = vpack.c.b16 %v5811, %v5810
      %5816 = vmatprep.subr.bf16.mxu0 0
      %5817 = vmatpush1.bf16.msra.mxu0 %v5812
      %5818 = vmatprep.subr.bf16.mxu0 0
      %5819 = vmatpush1.bf16.msra.mxu0 %v5813
      %5820 = vmatprep.subr.bf16.mxu0 0
      %5821 = vmatpush1.bf16.msra.mxu0 0
      %5822 = vmatprep.subr.bf16.mxu0 0
      %5823 = vmatpush1.bf16.msra.mxu0 0
      %5824 = vmatprep.subr.bf16.mxu0 0
      %5825 = vmatpush1.bf16.msra.mxu0 0
      %5826 = vmatprep.subr.bf16.mxu0 0
      %5827 = vmatpush1.bf16.msra.mxu0 0
      %5828 = vmatprep.subr.bf16.mxu0 0
      %5829 = vmatpush1.bf16.msra.mxu0 0
      %5830 = vmatprep.subr.bf16.mxu0 0
      %5831 = vmatpush1.bf16.msra.mxu0 0
      %5832 = vmatprep.subr.bf16.mxu0 0
      %5833 = vmatpush1.bf16.msra.mxu0 0
      %5834 = vmatprep.subr.bf16.mxu0 0
      %5835 = vmatpush1.bf16.msra.mxu0 0
      %5836 = vmatprep.subr.bf16.mxu0 0
      %5837 = vmatpush1.bf16.msra.mxu0 0
      %5838 = vmatprep.subr.bf16.mxu0 0
      %5839 = vmatpush1.bf16.msra.mxu0 0
      %5840 = vmatprep.subr.bf16.mxu0 0
      %5841 = vmatpush1.bf16.msra.mxu0 0
      %5842 = vmatprep.subr.bf16.mxu0 0
      %5843 = vmatpush1.bf16.msra.mxu0 0
      %5844 = vmatprep.subr.bf16.mxu0 0
      %5845 = vmatpush1.bf16.msra.mxu0 0
      %5846 = vmatprep.subr.bf16.mxu0 0
      %5847 = vmatpush1.bf16.msra.mxu0 0
      %5848 = vmatprep.mubr.bf16.mxu0 0
      %5849 = vmatmul.mubr.bf16.gmra.mrb[0].mxu0 %v4579
      %v5850 = vpop.f32.mrb[0].mxu0
      %v5851 = vadd.f32 0.0, %v5850
      %v5852 = vpop.f32.mrb[0].mxu0
      %v5853 = vpop.f32.mrb[0].mxu0
      %v5854 = vadd.f32 0.0, %v5853
      %v5855 = vpop.f32.mrb[0].mxu0
      %5856 = vmatprep.mubr.bf16.mxu0 0
      %5857 = vmatmul.mubr.bf16.gmra.mrb[0].mxu0 %v4582
      %v5858 = vpop.f32.mrb[0].mxu0
      %v5859 = vadd.f32 0.0, %v5858
      %v5860 = vpop.f32.mrb[0].mxu0
      %v5861 = vpop.f32.mrb[0].mxu0
      %v5862 = vadd.f32 0.0, %v5861
      %v5863 = vpop.f32.mrb[0].mxu0
      %5864 = vmatprep.mubr.bf16.mxu0 0
      %5865 = vmatmul.mubr.bf16.gmra.mrb[0].mxu0 %v4585
      %v5866 = vpop.f32.mrb[0].mxu0
      %v5867 = vadd.f32 0.0, %v5866
      %v5868 = vpop.f32.mrb[0].mxu0
      %v5869 = vpop.f32.mrb[0].mxu0
      %v5870 = vadd.f32 0.0, %v5869
      %v5871 = vpop.f32.mrb[0].mxu0
      %5872 = vmatprep.mubr.bf16.mxu0 0
      %5873 = vmatmul.mubr.bf16.gmra.mrb[0].mxu0 %v4588
      %v5874 = vpop.f32.mrb[0].mxu0
      %v5875 = vadd.f32 0.0, %v5874
      %v5876 = vpop.f32.mrb[0].mxu0
      %v5877 = vpop.f32.mrb[0].mxu0
      %v5878 = vadd.f32 0.0, %v5877
      %v5879 = vpop.f32.mrb[0].mxu0
      %5880 = vmatprep.mubr.bf16.mxu0 0
      %5881 = vmatmul.mubr.bf16.gmra.mrb[0].mxu0 %v4591
      %v5882 = vpop.f32.mrb[0].mxu0
      %v5883 = vadd.f32 0.0, %v5882
      %v5884 = vpop.f32.mrb[0].mxu0
      %v5885 = vpop.f32.mrb[0].mxu0
      %v5886 = vadd.f32 0.0, %v5885
      %v5887 = vpop.f32.mrb[0].mxu0
      %5888 = vmatprep.mubr.bf16.mxu0 0
      %5889 = vmatmul.mubr.bf16.gmra.mrb[0].mxu0 %v4594
      %v5890 = vpop.f32.mrb[0].mxu0
      %v5891 = vadd.f32 0.0, %v5890
      %v5892 = vpop.f32.mrb[0].mxu0
      %v5893 = vpop.f32.mrb[0].mxu0
      %v5894 = vadd.f32 0.0, %v5893
      %v5895 = vpop.f32.mrb[0].mxu0
      %5896 = vmatprep.mubr.bf16.mxu0 0
      %5897 = vmatmul.mubr.bf16.gmra.mrb[0].mxu0 %v4597
      %v5898 = vpop.f32.mrb[0].mxu0
      %v5899 = vadd.f32 0.0, %v5898
      %v5900 = vpop.f32.mrb[0].mxu0
      %v5901 = vpop.f32.mrb[0].mxu0
      %v5902 = vadd.f32 0.0, %v5901
      %v5903 = vpop.f32.mrb[0].mxu0
      %5904 = vmatprep.mubr.bf16.mxu0 0
      %5905 = vmatmul.mubr.bf16.gmra.mrb[0].mxu0 %v4600
      %v5906 = vpop.f32.mrb[0].mxu0
      %v5907 = vadd.f32 0.0, %v5906
      %v5908 = vpop.f32.mrb[0].mxu0
      %v5909 = vpop.f32.mrb[0].mxu0
      %v5910 = vadd.f32 0.0, %v5909
      %v5911 = vpop.f32.mrb[0].mxu0
      %5912 = vmatprep.mubr.bf16.mxu0 0
      %5913 = vmatmul.mubr.bf16.gmra.mrb[0].mxu0 %v4603
      %v5914 = vpop.f32.mrb[0].mxu0
      %v5915 = vadd.f32 0.0, %v5914
      %v5916 = vpop.f32.mrb[0].mxu0
      %v5917 = vpop.f32.mrb[0].mxu0
      %v5918 = vadd.f32 0.0, %v5917
      %v5919 = vpop.f32.mrb[0].mxu0
      %5920 = vmatprep.mubr.bf16.mxu0 0
      %5921 = vmatmul.mubr.bf16.gmra.mrb[0].mxu0 %v4606
      %v5922 = vpop.f32.mrb[0].mxu0
      %v5923 = vadd.f32 0.0, %v5922
      %v5924 = vpop.f32.mrb[0].mxu0
      %v5925 = vpop.f32.mrb[0].mxu0
      %v5926 = vadd.f32 0.0, %v5925
      %v5927 = vpop.f32.mrb[0].mxu0
      %5928 = vmatprep.mubr.bf16.mxu0 0
      %5929 = vmatmul.mubr.bf16.gmra.mrb[0].mxu0 %v4609
      %v5930 = vpop.f32.mrb[0].mxu0
      %v5931 = vadd.f32 0.0, %v5930
      %v5932 = vpop.f32.mrb[0].mxu0
      %v5933 = vpop.f32.mrb[0].mxu0
      %v5934 = vadd.f32 0.0, %v5933
      %v5935 = vpop.f32.mrb[0].mxu0
      %5936 = vmatprep.mubr.bf16.mxu0 0
      %5937 = vmatmul.mubr.bf16.gmra.mrb[0].mxu0 %v4612
      %v5938 = vpop.f32.mrb[0].mxu0
      %v5939 = vadd.f32 0.0, %v5938
      %v5940 = vpop.f32.mrb[0].mxu0
      %v5941 = vpop.f32.mrb[0].mxu0
      %v5942 = vadd.f32 0.0, %v5941
      %v5943 = vpop.f32.mrb[0].mxu0
      %5944 = vmatprep.mubr.bf16.mxu0 0
      %5945 = vmatmul.mubr.bf16.gmra.mrb[0].mxu0 %v4615
      %v5946 = vpop.f32.mrb[0].mxu0
      %v5947 = vadd.f32 0.0, %v5946
      %v5948 = vpop.f32.mrb[0].mxu0
      %v5949 = vpop.f32.mrb[0].mxu0
      %v5950 = vadd.f32 0.0, %v5949
      %v5951 = vpop.f32.mrb[0].mxu0
      %5952 = vmatprep.mubr.bf16.mxu0 0
      %5953 = vmatmul.mubr.bf16.gmra.mrb[0].mxu0 %v4618
      %v5954 = vpop.f32.mrb[0].mxu0
      %v5955 = vadd.f32 0.0, %v5954
      %v5956 = vpop.f32.mrb[0].mxu0
      %v5957 = vpop.f32.mrb[0].mxu0
      %v5958 = vadd.f32 0.0, %v5957
      %v5959 = vpop.f32.mrb[0].mxu0
      %5960 = vmatprep.mubr.bf16.mxu0 0
      %5961 = vmatmul.mubr.bf16.gmra.mrb[0].mxu0 %v4573
      %v5962 = vpop.f32.mrb[0].mxu0
      %v5963 = vadd.f32 0.0, %v5962
      %v5964 = vpop.f32.mrb[0].mxu0
      %v5965 = vpop.f32.mrb[0].mxu0
      %v5966 = vadd.f32 0.0, %v5965
      %v5967 = vpop.f32.mrb[0].mxu0
      %5968 = vmatprep.mubr.bf16.mxu0 0
      %5969 = vmatmul.mubr.bf16.gmra.mrb[0].mxu0 %v4576
      %v5970 = vpop.f32.mrb[0].mxu0
      %v5971 = vadd.f32 0.0, %v5970
      %v5972 = vpop.f32.mrb[0].mxu0
      %v5973 = vpop.f32.mrb[0].mxu0
      %v5974 = vadd.f32 0.0, %v5973
      %v5975 = vpop.f32.mrb[0].mxu0
      %5976 = vdwg.mxu0
      %v5977 = vadd.f32 %v5673, %v5851
      %v5978 = vadd.f32 %v5676, %v5854
      %v5979 = vadd.f32 %v5681, %v5859
      %v5980 = vadd.f32 %v5684, %v5862
      %v5981 = vadd.f32 %v5689, %v5867
      %v5982 = vadd.f32 %v5692, %v5870
      %v5983 = vadd.f32 %v5697, %v5875
      %v5984 = vadd.f32 %v5700, %v5878
      %v5985 = vadd.f32 %v5705, %v5883
      %v5986 = vadd.f32 %v5708, %v5886
      %v5987 = vadd.f32 %v5713, %v5891
      %v5988 = vadd.f32 %v5716, %v5894
      %v5989 = vadd.f32 %v5721, %v5899
      %v5990 = vadd.f32 %v5724, %v5902
      %v5991 = vadd.f32 %v5729, %v5907
      %v5992 = vadd.f32 %v5732, %v5910
      %v5993 = vadd.f32 %v5737, %v5915
      %v5994 = vadd.f32 %v5740, %v5918
      %v5995 = vadd.f32 %v5745, %v5923
      %v5996 = vadd.f32 %v5748, %v5926
      %v5997 = vadd.f32 %v5753, %v5931
      %v5998 = vadd.f32 %v5756, %v5934
      %v5999 = vadd.f32 %v5761, %v5939
      %v6000 = vadd.f32 %v5764, %v5942
      %v6001 = vadd.f32 %v5769, %v5947
      %v6002 = vadd.f32 %v5772, %v5950
      %v6003 = vadd.f32 %v5777, %v5955
      %v6004 = vadd.f32 %v5780, %v5958
      %v6005 = vadd.f32 %v5785, %v5963
      %v6006 = vadd.f32 %v5788, %v5966
      %v6007 = vadd.f32 %v5793, %v5971
      %v6008 = vadd.f32 %v5796, %v5974
      %v6009 = vsel %vm593, %v5977, 0.0
      %v6010 = vsel %vm594, %v5978, 0.0
      %v6011 = vsel %vm595, %v5979, 0.0
      %v6012 = vsel %vm596, %v5980, 0.0
      %v6013 = vsel %vm597, %v5981, 0.0
      %v6014 = vsel %vm598, %v5982, 0.0
      %v6015 = vsel %vm599, %v5983, 0.0
      %v6016 = vsel %vm600, %v5984, 0.0
      %v6017 = vsel %vm601, %v5985, 0.0
      %v6018 = vsel %vm602, %v5986, 0.0
      %v6019 = vsel %vm603, %v5987, 0.0
      %v6020 = vsel %vm604, %v5988, 0.0
      %v6021 = vsel %vm605, %v5989, 0.0
      %v6022 = vsel %vm606, %v5990, 0.0
      %v6023 = vsel %vm607, %v5991, 0.0
      %v6024 = vsel %vm608, %v5992, 0.0
      %v6025 = vsel %vm609, %v5993, 0.0
      %v6026 = vsel %vm610, %v5994, 0.0
      %v6027 = vsel %vm611, %v5995, 0.0
      %v6028 = vsel %vm612, %v5996, 0.0
      %v6029 = vsel %vm613, %v5997, 0.0
      %v6030 = vsel %vm614, %v5998, 0.0
      %v6031 = vsel %vm615, %v5999, 0.0
      %v6032 = vsel %vm616, %v6000, 0.0
      %v6033 = vsel %vm617, %v6001, 0.0
      %v6034 = vsel %vm618, %v6002, 0.0
      %v6035 = vsel %vm619, %v6003, 0.0
      %v6036 = vsel %vm620, %v6004, 0.0
      %v6037 = vsel %vm621, %v6005, 0.0
      %v6038 = vsel %vm622, %v6006, 0.0
      %v6039 = vsel %vm623, %v6007, 0.0
      %v6040 = vsel %vm624, %v6008, 0.0
      %v6041 = vadd.f32 %v5411, %v6009
      %v6042 = vadd.f32 %v5412, %v6010
      %v6043 = vadd.f32 %v5413, %v6011
      %v6044 = vadd.f32 %v5414, %v6012
      %v6045 = vadd.f32 %v5415, %v6013
      %v6046 = vadd.f32 %v5416, %v6014
      %v6047 = vadd.f32 %v5417, %v6015
      %v6048 = vadd.f32 %v5418, %v6016
      %v6049 = vadd.f32 %v5419, %v6017
      %v6050 = vadd.f32 %v5420, %v6018
      %v6051 = vadd.f32 %v5421, %v6019
      %v6052 = vadd.f32 %v5422, %v6020
      %v6053 = vadd.f32 %v5423, %v6021
      %v6054 = vadd.f32 %v5424, %v6022
      %v6055 = vadd.f32 %v5425, %v6023
      %v6056 = vadd.f32 %v5426, %v6024
      %v6057 = vadd.f32 %v5427, %v6025
      %v6058 = vadd.f32 %v5428, %v6026
      %v6059 = vadd.f32 %v5429, %v6027
      %v6060 = vadd.f32 %v5430, %v6028
      %v6061 = vadd.f32 %v5431, %v6029
      %v6062 = vadd.f32 %v5432, %v6030
      %v6063 = vadd.f32 %v5433, %v6031
      %v6064 = vadd.f32 %v5434, %v6032
      %v6065 = vadd.f32 %v5435, %v6033
      %v6066 = vadd.f32 %v5436, %v6034
      %v6067 = vadd.f32 %v5437, %v6035
      %v6068 = vadd.f32 %v5438, %v6036
      %v6069 = vadd.f32 %v5439, %v6037
      %v6070 = vadd.f32 %v5440, %v6038
      %v6071 = vadd.f32 %v5441, %v6039
      %v6072 = vadd.f32 %v5442, %v6040
      %s6073 = scalar_lea.vmem %s5, 3
      %v6074 = vld [vmem:[%s6073] sm:$0x1]
      %v6076 = vlaneseq
      %v6077 = vshrl.u32 %v6076, 7
      %v6078 = vsub.s32 0, %v6077
      %v6079 = vrot.slane %v6074, %v6078
      %v6081 = vadd.f32 %v6041, %v6079
      %v6082 = vadd.f32 %v6042, %v6079
      %v6083 = vadd.f32 %v6043, %v6079
      %v6084 = vadd.f32 %v6044, %v6079
      %v6085 = vadd.f32 %v6045, %v6079
      %v6086 = vadd.f32 %v6046, %v6079
      %v6087 = vadd.f32 %v6047, %v6079
      %v6088 = vadd.f32 %v6048, %v6079
      %v6089 = vadd.f32 %v6049, %v6079
      %v6090 = vadd.f32 %v6050, %v6079
      %v6091 = vadd.f32 %v6051, %v6079
      %v6092 = vadd.f32 %v6052, %v6079
      %v6093 = vadd.f32 %v6053, %v6079
      %v6094 = vadd.f32 %v6054, %v6079
      %v6095 = vadd.f32 %v6055, %v6079
      %v6096 = vadd.f32 %v6056, %v6079
      %v6097 = vadd.f32 %v6057, %v6079
      %v6098 = vadd.f32 %v6058, %v6079
      %v6099 = vadd.f32 %v6059, %v6079
      %v6100 = vadd.f32 %v6060, %v6079
      %v6101 = vadd.f32 %v6061, %v6079
      %v6102 = vadd.f32 %v6062, %v6079
      %v6103 = vadd.f32 %v6063, %v6079
      %v6104 = vadd.f32 %v6064, %v6079
      %v6105 = vadd.f32 %v6065, %v6079
      %v6106 = vadd.f32 %v6066, %v6079
      %v6107 = vadd.f32 %v6067, %v6079
      %v6108 = vadd.f32 %v6068, %v6079
      %v6109 = vadd.f32 %v6069, %v6079
      %v6110 = vadd.f32 %v6070, %v6079
      %v6111 = vadd.f32 %v6071, %v6079
      %v6112 = vadd.f32 %v6072, %v6079
      %v6113 = vmul.f32 %v6081, 0.2
      %v6114 = vmul.f32 %v6082, 0.2
      %v6115 = vmul.f32 %v6083, 0.2
      %v6116 = vmul.f32 %v6084, 0.2
      %v6117 = vmul.f32 %v6085, 0.2
      %v6118 = vmul.f32 %v6086, 0.2
      %v6119 = vmul.f32 %v6087, 0.2
      %v6120 = vmul.f32 %v6088, 0.2
      %v6121 = vmul.f32 %v6089, 0.2
      %v6122 = vmul.f32 %v6090, 0.2
      %v6123 = vmul.f32 %v6091, 0.2
      %v6124 = vmul.f32 %v6092, 0.2
      %v6125 = vmul.f32 %v6093, 0.2
      %v6126 = vmul.f32 %v6094, 0.2
      %v6127 = vmul.f32 %v6095, 0.2
      %v6128 = vmul.f32 %v6096, 0.2
      %v6129 = vmul.f32 %v6097, 0.2
      %v6130 = vmul.f32 %v6098, 0.2
      %v6131 = vmul.f32 %v6099, 0.2
      %v6132 = vmul.f32 %v6100, 0.2
      %v6133 = vmul.f32 %v6101, 0.2
      %v6134 = vmul.f32 %v6102, 0.2
      %v6135 = vmul.f32 %v6103, 0.2
      %v6136 = vmul.f32 %v6104, 0.2
      %v6137 = vmul.f32 %v6105, 0.2
      %v6138 = vmul.f32 %v6106, 0.2
      %v6139 = vmul.f32 %v6107, 0.2
      %v6140 = vmul.f32 %v6108, 0.2
      %v6141 = vmul.f32 %v6109, 0.2
      %v6142 = vmul.f32 %v6110, 0.2
      %v6143 = vmul.f32 %v6111, 0.2
      %v6144 = vmul.f32 %v6112, 0.2
      %v6145 = vmax.f32 %v6081, %v6113
      %v6146 = vmax.f32 %v6082, %v6114
      %v6147 = vmax.f32 %v6083, %v6115
      %v6148 = vmax.f32 %v6084, %v6116
      %v6149 = vmax.f32 %v6085, %v6117
      %v6150 = vmax.f32 %v6086, %v6118
      %v6151 = vmax.f32 %v6087, %v6119
      %v6152 = vmax.f32 %v6088, %v6120
      %v6153 = vmax.f32 %v6089, %v6121
      %v6154 = vmax.f32 %v6090, %v6122
      %v6155 = vmax.f32 %v6091, %v6123
      %v6156 = vmax.f32 %v6092, %v6124
      %v6157 = vmax.f32 %v6093, %v6125
      %v6158 = vmax.f32 %v6094, %v6126
      %v6159 = vmax.f32 %v6095, %v6127
      %v6160 = vmax.f32 %v6096, %v6128
      %v6161 = vmax.f32 %v6097, %v6129
      %v6162 = vmax.f32 %v6098, %v6130
      %v6163 = vmax.f32 %v6099, %v6131
      %v6164 = vmax.f32 %v6100, %v6132
      %v6165 = vmax.f32 %v6101, %v6133
      %v6166 = vmax.f32 %v6102, %v6134
      %v6167 = vmax.f32 %v6103, %v6135
      %v6168 = vmax.f32 %v6104, %v6136
      %v6169 = vmax.f32 %v6105, %v6137
      %v6170 = vmax.f32 %v6106, %v6138
      %v6171 = vmax.f32 %v6107, %v6139
      %v6172 = vmax.f32 %v6108, %v6140
      %v6173 = vmax.f32 %v6109, %v6141
      %v6174 = vmax.f32 %v6110, %v6142
      %v6175 = vmax.f32 %v6111, %v6143
      %v6176 = vmax.f32 %v6112, %v6144
      %v6177 = vmax.f32 %v6145, -362.03867
      %v6178 = vmax.f32 %v6146, -362.03867
      %v6179 = vmax.f32 %v6147, -362.03867
      %v6180 = vmax.f32 %v6148, -362.03867
      %v6181 = vmax.f32 %v6149, -362.03867
      %v6182 = vmax.f32 %v6150, -362.03867
      %v6183 = vmax.f32 %v6151, -362.03867
      %v6184 = vmax.f32 %v6152, -362.03867
      %v6185 = vmax.f32 %v6153, -362.03867
      %v6186 = vmax.f32 %v6154, -362.03867
      %v6187 = vmax.f32 %v6155, -362.03867
      %v6188 = vmax.f32 %v6156, -362.03867
      %v6189 = vmax.f32 %v6157, -362.03867
      %v6190 = vmax.f32 %v6158, -362.03867
      %v6191 = vmax.f32 %v6159, -362.03867
      %v6192 = vmax.f32 %v6160, -362.03867
      %v6193 = vmax.f32 %v6161, -362.03867
      %v6194 = vmax.f32 %v6162, -362.03867
      %v6195 = vmax.f32 %v6163, -362.03867
      %v6196 = vmax.f32 %v6164, -362.03867
      %v6197 = vmax.f32 %v6165, -362.03867
      %v6198 = vmax.f32 %v6166, -362.03867
      %v6199 = vmax.f32 %v6167, -362.03867
      %v6200 = vmax.f32 %v6168, -362.03867
      %v6201 = vmax.f32 %v6169, -362.03867
      %v6202 = vmax.f32 %v6170, -362.03867
      %v6203 = vmax.f32 %v6171, -362.03867
      %v6204 = vmax.f32 %v6172, -362.03867
      %v6205 = vmax.f32 %v6173, -362.03867
      %v6206 = vmax.f32 %v6174, -362.03867
      %v6207 = vmax.f32 %v6175, -362.03867
      %v6208 = vmax.f32 %v6176, -362.03867
      %v6209 = vmin.f32 %v6177, 362.03867
      %v6210 = vmin.f32 %v6178, 362.03867
      %v6211 = vmin.f32 %v6179, 362.03867
      %v6212 = vmin.f32 %v6180, 362.03867
      %v6213 = vmin.f32 %v6181, 362.03867
      %v6214 = vmin.f32 %v6182, 362.03867
      %v6215 = vmin.f32 %v6183, 362.03867
      %v6216 = vmin.f32 %v6184, 362.03867
      %v6217 = vmin.f32 %v6185, 362.03867
      %v6218 = vmin.f32 %v6186, 362.03867
      %v6219 = vmin.f32 %v6187, 362.03867
      %v6220 = vmin.f32 %v6188, 362.03867
      %v6221 = vmin.f32 %v6189, 362.03867
      %v6222 = vmin.f32 %v6190, 362.03867
      %v6223 = vmin.f32 %v6191, 362.03867
      %v6224 = vmin.f32 %v6192, 362.03867
      %v6225 = vmin.f32 %v6193, 362.03867
      %v6226 = vmin.f32 %v6194, 362.03867
      %v6227 = vmin.f32 %v6195, 362.03867
      %v6228 = vmin.f32 %v6196, 362.03867
      %v6229 = vmin.f32 %v6197, 362.03867
      %v6230 = vmin.f32 %v6198, 362.03867
      %v6231 = vmin.f32 %v6199, 362.03867
      %v6232 = vmin.f32 %v6200, 362.03867
      %v6233 = vmin.f32 %v6201, 362.03867
      %v6234 = vmin.f32 %v6202, 362.03867
      %v6235 = vmin.f32 %v6203, 362.03867
      %v6236 = vmin.f32 %v6204, 362.03867
      %v6237 = vmin.f32 %v6205, 362.03867
      %v6238 = vmin.f32 %v6206, 362.03867
      %v6239 = vmin.f32 %v6207, 362.03867
      %v6240 = vmin.f32 %v6208, 362.03867
      %v6241 = vrot.slane %v6209, 7
      %v6242 = vrot.slane %v6210, 7
      %v6243 = vrot.slane %v6211, 7
      %v6244 = vrot.slane %v6212, 7
      %v6245 = vrot.slane %v6213, 7
      %v6246 = vrot.slane %v6214, 7
      %v6247 = vrot.slane %v6215, 7
      %v6248 = vrot.slane %v6216, 7
      %v6249 = vrot.slane %v6217, 7
      %v6250 = vrot.slane %v6218, 7
      %v6251 = vrot.slane %v6219, 7
      %v6252 = vrot.slane %v6220, 7
      %v6253 = vrot.slane %v6221, 7
      %v6254 = vrot.slane %v6222, 7
      %v6255 = vrot.slane %v6223, 7
      %v6256 = vrot.slane %v6224, 7
      %v6257 = vrot.slane %v6225, 7
      %v6258 = vrot.slane %v6226, 7
      %v6259 = vrot.slane %v6227, 7
      %v6260 = vrot.slane %v6228, 7
      %v6261 = vrot.slane %v6229, 7
      %v6262 = vrot.slane %v6230, 7
      %v6263 = vrot.slane %v6231, 7
      %v6264 = vrot.slane %v6232, 7
      %v6265 = vrot.slane %v6233, 7
      %v6266 = vrot.slane %v6234, 7
      %v6267 = vrot.slane %v6235, 7
      %v6268 = vrot.slane %v6236, 7
      %v6269 = vrot.slane %v6237, 7
      %v6270 = vrot.slane %v6238, 7
      %v6271 = vrot.slane %v6239, 7
      %v6272 = vrot.slane %v6240, 7
      %v6273 = vsel %vm629, %v6271, %v6272
      %v6274 = vsel %vm629, %v6270, %v6271
      %v6275 = vsel %vm629, %v6269, %v6270
      %v6276 = vsel %vm629, %v6268, %v6269
      %v6277 = vsel %vm629, %v6267, %v6268
      %v6278 = vsel %vm629, %v6266, %v6267
      %v6279 = vsel %vm629, %v6265, %v6266
      %v6280 = vsel %vm629, %v6264, %v6265
      %v6281 = vsel %vm629, %v6263, %v6264
      %v6282 = vsel %vm629, %v6262, %v6263
      %v6283 = vsel %vm629, %v6261, %v6262
      %v6284 = vsel %vm629, %v6260, %v6261
      %v6285 = vsel %vm629, %v6259, %v6260
      %v6286 = vsel %vm629, %v6258, %v6259
      %v6287 = vsel %vm629, %v6257, %v6258
      %v6288 = vsel %vm629, %v6256, %v6257
      %v6289 = vsel %vm629, %v6255, %v6256
      %v6290 = vsel %vm629, %v6254, %v6255
      %v6291 = vsel %vm629, %v6253, %v6254
      %v6292 = vsel %vm629, %v6252, %v6253
      %v6293 = vsel %vm629, %v6251, %v6252
      %v6294 = vsel %vm629, %v6250, %v6251
      %v6295 = vsel %vm629, %v6249, %v6250
      %v6296 = vsel %vm629, %v6248, %v6249
      %v6297 = vsel %vm629, %v6247, %v6248
      %v6298 = vsel %vm629, %v6246, %v6247
      %v6299 = vsel %vm629, %v6245, %v6246
      %v6300 = vsel %vm629, %v6244, %v6245
      %v6301 = vsel %vm629, %v6243, %v6244
      %v6302 = vsel %vm629, %v6242, %v6243
      %v6303 = vsel %vm629, %v6241, %v6242
      %v6304 = vsel %vm629, %v6272, %v6241
      %v6305 = vsel %vm497, %v6304, 0.0
      %v6306 = vsel %vm498, %v6303, 0.0
      %v6307 = vsel %vm499, %v6302, 0.0
      %v6308 = vsel %vm500, %v6301, 0.0
      %v6309 = vsel %vm501, %v6300, 0.0
      %v6310 = vsel %vm502, %v6299, 0.0
      %v6311 = vsel %vm503, %v6298, 0.0
      %v6312 = vsel %vm504, %v6297, 0.0
      %v6313 = vsel %vm505, %v6296, 0.0
      %v6314 = vsel %vm506, %v6295, 0.0
      %v6315 = vsel %vm507, %v6294, 0.0
      %v6316 = vsel %vm508, %v6293, 0.0
      %v6317 = vsel %vm509, %v6292, 0.0
      %v6318 = vsel %vm510, %v6291, 0.0
      %v6319 = vsel %vm511, %v6290, 0.0
      %v6320 = vsel %vm512, %v6289, 0.0
      %v6321 = vsel %vm513, %v6288, 0.0
      %v6322 = vsel %vm514, %v6287, 0.0
      %v6323 = vsel %vm515, %v6286, 0.0
      %v6324 = vsel %vm516, %v6285, 0.0
      %v6325 = vsel %vm517, %v6284, 0.0
      %v6326 = vsel %vm518, %v6283, 0.0
      %v6327 = vsel %vm519, %v6282, 0.0
      %v6328 = vsel %vm520, %v6281, 0.0
      %v6329 = vsel %vm521, %v6280, 0.0
      %v6330 = vsel %vm522, %v6279, 0.0
      %v6331 = vsel %vm523, %v6278, 0.0
      %v6332 = vsel %vm524, %v6277, 0.0
      %v6333 = vsel %vm525, %v6276, 0.0
      %v6334 = vsel %vm526, %v6275, 0.0
      %v6335 = vsel %vm527, %v6274, 0.0
      %v6336 = vsel %vm528, %v6273, 0.0
      %v6337 = vrot.slane %v6209, 1
      %v6338 = vrot.slane %v6210, 1
      %v6339 = vrot.slane %v6211, 1
      %v6340 = vrot.slane %v6212, 1
      %v6341 = vrot.slane %v6213, 1
      %v6342 = vrot.slane %v6214, 1
      %v6343 = vrot.slane %v6215, 1
      %v6344 = vrot.slane %v6216, 1
      %v6345 = vrot.slane %v6217, 1
      %v6346 = vrot.slane %v6218, 1
      %v6347 = vrot.slane %v6219, 1
      %v6348 = vrot.slane %v6220, 1
      %v6349 = vrot.slane %v6221, 1
      %v6350 = vrot.slane %v6222, 1
      %v6351 = vrot.slane %v6223, 1
      %v6352 = vrot.slane %v6224, 1
      %v6353 = vrot.slane %v6225, 1
      %v6354 = vrot.slane %v6226, 1
      %v6355 = vrot.slane %v6227, 1
      %v6356 = vrot.slane %v6228, 1
      %v6357 = vrot.slane %v6229, 1
      %v6358 = vrot.slane %v6230, 1
      %v6359 = vrot.slane %v6231, 1
      %v6360 = vrot.slane %v6232, 1
      %v6361 = vrot.slane %v6233, 1
      %v6362 = vrot.slane %v6234, 1
      %v6363 = vrot.slane %v6235, 1
      %v6364 = vrot.slane %v6236, 1
      %v6365 = vrot.slane %v6237, 1
      %v6366 = vrot.slane %v6238, 1
      %v6367 = vrot.slane %v6239, 1
      %v6368 = vrot.slane %v6240, 1
      %v6369 = vsel %vm636, %v6367, %v6368
      %v6370 = vsel %vm636, %v6366, %v6367
      %v6371 = vsel %vm636, %v6365, %v6366
      %v6372 = vsel %vm636, %v6364, %v6365
      %v6373 = vsel %vm636, %v6363, %v6364
      %v6374 = vsel %vm636, %v6362, %v6363
      %v6375 = vsel %vm636, %v6361, %v6362
      %v6376 = vsel %vm636, %v6360, %v6361
      %v6377 = vsel %vm636, %v6359, %v6360
      %v6378 = vsel %vm636, %v6358, %v6359
      %v6379 = vsel %vm636, %v6357, %v6358
      %v6380 = vsel %vm636, %v6356, %v6357
      %v6381 = vsel %vm636, %v6355, %v6356
      %v6382 = vsel %vm636, %v6354, %v6355
      %v6383 = vsel %vm636, %v6353, %v6354
      %v6384 = vsel %vm636, %v6352, %v6353
      %v6385 = vsel %vm636, %v6351, %v6352
      %v6386 = vsel %vm636, %v6350, %v6351
      %v6387 = vsel %vm636, %v6349, %v6350
      %v6388 = vsel %vm636, %v6348, %v6349
      %v6389 = vsel %vm636, %v6347, %v6348
      %v6390 = vsel %vm636, %v6346, %v6347
      %v6391 = vsel %vm636, %v6345, %v6346
      %v6392 = vsel %vm636, %v6344, %v6345
      %v6393 = vsel %vm636, %v6343, %v6344
      %v6394 = vsel %vm636, %v6342, %v6343
      %v6395 = vsel %vm636, %v6341, %v6342
      %v6396 = vsel %vm636, %v6340, %v6341
      %v6397 = vsel %vm636, %v6339, %v6340
      %v6398 = vsel %vm636, %v6338, %v6339
      %v6399 = vsel %vm636, %v6337, %v6338
      %v6400 = vsel %vm636, %v6368, %v6337
      %v6401 = vsel %vm529, %v6399, 0.0
      %v6402 = vsel %vm530, %v6398, 0.0
      %v6403 = vsel %vm531, %v6397, 0.0
      %v6404 = vsel %vm532, %v6396, 0.0
      %v6405 = vsel %vm533, %v6395, 0.0
      %v6406 = vsel %vm534, %v6394, 0.0
      %v6407 = vsel %vm535, %v6393, 0.0
      %v6408 = vsel %vm536, %v6392, 0.0
      %v6409 = vsel %vm537, %v6391, 0.0
      %v6410 = vsel %vm538, %v6390, 0.0
      %v6411 = vsel %vm539, %v6389, 0.0
      %v6412 = vsel %vm540, %v6388, 0.0
      %v6413 = vsel %vm541, %v6387, 0.0
      %v6414 = vsel %vm542, %v6386, 0.0
      %v6415 = vsel %vm543, %v6385, 0.0
      %v6416 = vsel %vm544, %v6384, 0.0
      %v6417 = vsel %vm545, %v6383, 0.0
      %v6418 = vsel %vm546, %v6382, 0.0
      %v6419 = vsel %vm547, %v6381, 0.0
      %v6420 = vsel %vm548, %v6380, 0.0
      %v6421 = vsel %vm549, %v6379, 0.0
      %v6422 = vsel %vm550, %v6378, 0.0
      %v6423 = vsel %vm551, %v6377, 0.0
      %v6424 = vsel %vm552, %v6376, 0.0
      %v6425 = vsel %vm553, %v6375, 0.0
      %v6426 = vsel %vm554, %v6374, 0.0
      %v6427 = vsel %vm555, %v6373, 0.0
      %v6428 = vsel %vm556, %v6372, 0.0
      %v6429 = vsel %vm557, %v6371, 0.0
      %v6430 = vsel %vm558, %v6370, 0.0
      %v6431 = vsel %vm559, %v6369, 0.0
      %v6432 = vsel %vm560, %v6400, 0.0
      %v6433 = vpack.c.bf16 %v6336, %v6335
      %v6434 = vpack.c.bf16 %v6306, %v6305
      %v6435 = vpack.c.bf16 %v6308, %v6307
      %v6436 = vpack.c.bf16 %v6310, %v6309
      %v6437 = vpack.c.bf16 %v6312, %v6311
      %v6438 = vpack.c.bf16 %v6314, %v6313
      %v6439 = vpack.c.bf16 %v6316, %v6315
      %v6440 = vpack.c.bf16 %v6318, %v6317
      %v6441 = vpack.c.bf16 %v6320, %v6319
      %v6442 = vpack.c.bf16 %v6322, %v6321
      %v6443 = vpack.c.bf16 %v6324, %v6323
      %v6444 = vpack.c.bf16 %v6326, %v6325
      %v6445 = vpack.c.bf16 %v6328, %v6327
      %v6446 = vpack.c.bf16 %v6330, %v6329
      %v6447 = vpack.c.bf16 %v6332, %v6331
      %v6448 = vpack.c.bf16 %v6334, %v6333
      %s6449 = scalar_lea.vmem %s288, 576
      %v6450 = vld [vmem:[%s6449] sm:$0xf]
      %v6451 = vld [vmem:[%s6449 + $0x4] sm:$0xf]
      %v6452 = vld [vmem:[%s6449 + $0x8] sm:$0xf]
      %v6453 = vld [vmem:[%s6449 + $0xc] sm:$0xf]
      %v6454 = vpack.c.bf16 %v6240, %v6239
      %v6455 = vpack.c.bf16 %v6210, %v6209
      %v6456 = vpack.c.bf16 %v6212, %v6211
      %v6457 = vpack.c.bf16 %v6214, %v6213
      %v6458 = vpack.c.bf16 %v6216, %v6215
      %v6459 = vpack.c.bf16 %v6218, %v6217
      %v6460 = vpack.c.bf16 %v6220, %v6219
      %v6461 = vpack.c.bf16 %v6222, %v6221
      %v6462 = vpack.c.bf16 %v6224, %v6223
      %v6463 = vpack.c.bf16 %v6226, %v6225
      %v6464 = vpack.c.bf16 %v6228, %v6227
      %v6465 = vpack.c.bf16 %v6230, %v6229
      %v6466 = vpack.c.bf16 %v6232, %v6231
      %v6467 = vpack.c.bf16 %v6234, %v6233
      %v6468 = vpack.c.bf16 %v6236, %v6235
      %v6469 = vpack.c.bf16 %v6238, %v6237
      %s6470 = scalar_lea.vmem %s288, 592
      %v6471 = vld [vmem:[%s6470] sm:$0xf]
      %v6472 = vld [vmem:[%s6470 + $0x4] sm:$0xf]
      %v6473 = vld [vmem:[%s6470 + $0x8] sm:$0xf]
      %v6474 = vld [vmem:[%s6470 + $0xc] sm:$0xf]
      %v6479 = vunpack.c.l.b16 %v6471
      %v6480 = vunpack.c.l.b16 %v6472
      %v6481 = vunpack.c.l.b16 %v6473
      %v6482 = vunpack.c.l.b16 %v6474
      %v6483 = vpack.c.b16 %v6480, %v6479
      %v6484 = vpack.c.b16 %v6482, %v6481
      %v6488 = vsel %vm673, %v6454, 0
      %v6491 = vsel %vm673, %v6455, 0
      %v6494 = vsel %vm673, %v6456, 0
      %v6497 = vsel %vm673, %v6457, 0
      %v6500 = vsel %vm673, %v6458, 0
      %v6503 = vsel %vm673, %v6459, 0
      %v6506 = vsel %vm673, %v6460, 0
      %v6509 = vsel %vm673, %v6461, 0
      %v6512 = vsel %vm673, %v6462, 0
      %v6515 = vsel %vm673, %v6463, 0
      %v6518 = vsel %vm673, %v6464, 0
      %v6521 = vsel %vm673, %v6465, 0
      %v6524 = vsel %vm673, %v6466, 0
      %v6527 = vsel %vm673, %v6467, 0
      %v6530 = vsel %vm673, %v6468, 0
      %v6533 = vsel %vm673, %v6469, 0
      %6535 = vmatprep.subr.bf16.mxu0 0
      %6536 = vmatpush1.bf16.msra.mxu0 %v6483
      %6537 = vmatprep.subr.bf16.mxu0 0
      %6538 = vmatpush1.bf16.msra.mxu0 %v6484
      %6539 = vmatprep.subr.bf16.mxu0 0
      %6540 = vmatpush1.bf16.msra.mxu0 0
      %6541 = vmatprep.subr.bf16.mxu0 0
      %6542 = vmatpush1.bf16.msra.mxu0 0
      %6543 = vmatprep.subr.bf16.mxu0 0
      %6544 = vmatpush1.bf16.msra.mxu0 0
      %6545 = vmatprep.subr.bf16.mxu0 0
      %6546 = vmatpush1.bf16.msra.mxu0 0
      %6547 = vmatprep.subr.bf16.mxu0 0
      %6548 = vmatpush1.bf16.msra.mxu0 0
      %6549 = vmatprep.subr.bf16.mxu0 0
      %6550 = vmatpush1.bf16.msra.mxu0 0
      %6551 = vmatprep.subr.bf16.mxu0 0
      %6552 = vmatpush1.bf16.msra.mxu0 0
      %6553 = vmatprep.subr.bf16.mxu0 0
      %6554 = vmatpush1.bf16.msra.mxu0 0
      %6555 = vmatprep.subr.bf16.mxu0 0
      %6556 = vmatpush1.bf16.msra.mxu0 0
      %6557 = vmatprep.subr.bf16.mxu0 0
      %6558 = vmatpush1.bf16.msra.mxu0 0
      %6559 = vmatprep.subr.bf16.mxu0 0
      %6560 = vmatpush1.bf16.msra.mxu0 0
      %6561 = vmatprep.subr.bf16.mxu0 0
      %6562 = vmatpush1.bf16.msra.mxu0 0
      %6563 = vmatprep.subr.bf16.mxu0 0
      %6564 = vmatpush1.bf16.msra.mxu0 0
      %6565 = vmatprep.subr.bf16.mxu0 0
      %6566 = vmatpush1.bf16.msra.mxu0 0
      %6567 = vmatprep.mubr.bf16.mxu0 0
      %6568 = vmatmul.mubr.bf16.gmra.mrb[0].mxu0 %v6488
      %v6569 = vpop.f32.mrb[0].mxu0
      %v6570 = vadd.f32 0.0, %v6569
      %v6571 = vpop.f32.mrb[0].mxu0
      %v6572 = vpop.f32.mrb[0].mxu0
      %v6573 = vadd.f32 0.0, %v6572
      %v6574 = vpop.f32.mrb[0].mxu0
      %6575 = vmatprep.mubr.bf16.mxu0 0
      %6576 = vmatmul.mubr.bf16.gmra.mrb[0].mxu0 %v6491
      %v6577 = vpop.f32.mrb[0].mxu0
      %v6578 = vadd.f32 0.0, %v6577
      %v6579 = vpop.f32.mrb[0].mxu0
      %v6580 = vpop.f32.mrb[0].mxu0
      %v6581 = vadd.f32 0.0, %v6580
      %v6582 = vpop.f32.mrb[0].mxu0
      %6583 = vmatprep.mubr.bf16.mxu0 0
      %6584 = vmatmul.mubr.bf16.gmra.mrb[0].mxu0 %v6494
      %v6585 = vpop.f32.mrb[0].mxu0
      %v6586 = vadd.f32 0.0, %v6585
      %v6587 = vpop.f32.mrb[0].mxu0
      %v6588 = vpop.f32.mrb[0].mxu0
      %v6589 = vadd.f32 0.0, %v6588
      %v6590 = vpop.f32.mrb[0].mxu0
      %6591 = vmatprep.mubr.bf16.mxu0 0
      %6592 = vmatmul.mubr.bf16.gmra.mrb[0].mxu0 %v6497
      %v6593 = vpop.f32.mrb[0].mxu0
      %v6594 = vadd.f32 0.0, %v6593
      %v6595 = vpop.f32.mrb[0].mxu0
      %v6596 = vpop.f32.mrb[0].mxu0
      %v6597 = vadd.f32 0.0, %v6596
      %v6598 = vpop.f32.mrb[0].mxu0
      %6599 = vmatprep.mubr.bf16.mxu0 0
      %6600 = vmatmul.mubr.bf16.gmra.mrb[0].mxu0 %v6500
      %v6601 = vpop.f32.mrb[0].mxu0
      %v6602 = vadd.f32 0.0, %v6601
      %v6603 = vpop.f32.mrb[0].mxu0
      %v6604 = vpop.f32.mrb[0].mxu0
      %v6605 = vadd.f32 0.0, %v6604
      %v6606 = vpop.f32.mrb[0].mxu0
      %6607 = vmatprep.mubr.bf16.mxu0 0
      %6608 = vmatmul.mubr.bf16.gmra.mrb[0].mxu0 %v6503
      %v6609 = vpop.f32.mrb[0].mxu0
      %v6610 = vadd.f32 0.0, %v6609
      %v6611 = vpop.f32.mrb[0].mxu0
      %v6612 = vpop.f32.mrb[0].mxu0
      %v6613 = vadd.f32 0.0, %v6612
      %v6614 = vpop.f32.mrb[0].mxu0
      %6615 = vmatprep.mubr.bf16.mxu0 0
      %6616 = vmatmul.mubr.bf16.gmra.mrb[0].mxu0 %v6506
      %v6617 = vpop.f32.mrb[0].mxu0
      %v6618 = vadd.f32 0.0, %v6617
      %v6619 = vpop.f32.mrb[0].mxu0
      %v6620 = vpop.f32.mrb[0].mxu0
      %v6621 = vadd.f32 0.0, %v6620
      %v6622 = vpop.f32.mrb[0].mxu0
      %6623 = vmatprep.mubr.bf16.mxu0 0
      %6624 = vmatmul.mubr.bf16.gmra.mrb[0].mxu0 %v6509
      %v6625 = vpop.f32.mrb[0].mxu0
      %v6626 = vadd.f32 0.0, %v6625
      %v6627 = vpop.f32.mrb[0].mxu0
      %v6628 = vpop.f32.mrb[0].mxu0
      %v6629 = vadd.f32 0.0, %v6628
      %v6630 = vpop.f32.mrb[0].mxu0
      %6631 = vmatprep.mubr.bf16.mxu0 0
      %6632 = vmatmul.mubr.bf16.gmra.mrb[0].mxu0 %v6512
      %v6633 = vpop.f32.mrb[0].mxu0
      %v6634 = vadd.f32 0.0, %v6633
      %v6635 = vpop.f32.mrb[0].mxu0
      %v6636 = vpop.f32.mrb[0].mxu0
      %v6637 = vadd.f32 0.0, %v6636
      %v6638 = vpop.f32.mrb[0].mxu0
      %6639 = vmatprep.mubr.bf16.mxu0 0
      %6640 = vmatmul.mubr.bf16.gmra.mrb[0].mxu0 %v6515
      %v6641 = vpop.f32.mrb[0].mxu0
      %v6642 = vadd.f32 0.0, %v6641
      %v6643 = vpop.f32.mrb[0].mxu0
      %v6644 = vpop.f32.mrb[0].mxu0
      %v6645 = vadd.f32 0.0, %v6644
      %v6646 = vpop.f32.mrb[0].mxu0
      %6647 = vmatprep.mubr.bf16.mxu0 0
      %6648 = vmatmul.mubr.bf16.gmra.mrb[0].mxu0 %v6518
      %v6649 = vpop.f32.mrb[0].mxu0
      %v6650 = vadd.f32 0.0, %v6649
      %v6651 = vpop.f32.mrb[0].mxu0
      %v6652 = vpop.f32.mrb[0].mxu0
      %v6653 = vadd.f32 0.0, %v6652
      %v6654 = vpop.f32.mrb[0].mxu0
      %6655 = vmatprep.mubr.bf16.mxu0 0
      %6656 = vmatmul.mubr.bf16.gmra.mrb[0].mxu0 %v6521
      %v6657 = vpop.f32.mrb[0].mxu0
      %v6658 = vadd.f32 0.0, %v6657
      %v6659 = vpop.f32.mrb[0].mxu0
      %v6660 = vpop.f32.mrb[0].mxu0
      %v6661 = vadd.f32 0.0, %v6660
      %v6662 = vpop.f32.mrb[0].mxu0
      %6663 = vmatprep.mubr.bf16.mxu0 0
      %6664 = vmatmul.mubr.bf16.gmra.mrb[0].mxu0 %v6524
      %v6665 = vpop.f32.mrb[0].mxu0
      %v6666 = vadd.f32 0.0, %v6665
      %v6667 = vpop.f32.mrb[0].mxu0
      %v6668 = vpop.f32.mrb[0].mxu0
      %v6669 = vadd.f32 0.0, %v6668
      %v6670 = vpop.f32.mrb[0].mxu0
      %6671 = vmatprep.mubr.bf16.mxu0 0
      %6672 = vmatmul.mubr.bf16.gmra.mrb[0].mxu0 %v6527
      %v6673 = vpop.f32.mrb[0].mxu0
      %v6674 = vadd.f32 0.0, %v6673
      %v6675 = vpop.f32.mrb[0].mxu0
      %v6676 = vpop.f32.mrb[0].mxu0
      %v6677 = vadd.f32 0.0, %v6676
      %v6678 = vpop.f32.mrb[0].mxu0
      %6679 = vmatprep.mubr.bf16.mxu0 0
      %6680 = vmatmul.mubr.bf16.gmra.mrb[0].mxu0 %v6530
      %v6681 = vpop.f32.mrb[0].mxu0
      %v6682 = vadd.f32 0.0, %v6681
      %v6683 = vpop.f32.mrb[0].mxu0
      %v6684 = vpop.f32.mrb[0].mxu0
      %v6685 = vadd.f32 0.0, %v6684
      %v6686 = vpop.f32.mrb[0].mxu0
      %6687 = vmatprep.mubr.bf16.mxu0 0
      %6688 = vmatmul.mubr.bf16.gmra.mrb[0].mxu0 %v6533
      %v6689 = vpop.f32.mrb[0].mxu0
      %v6690 = vadd.f32 0.0, %v6689
      %v6691 = vpop.f32.mrb[0].mxu0
      %v6692 = vpop.f32.mrb[0].mxu0
      %v6693 = vadd.f32 0.0, %v6692
      %v6694 = vpop.f32.mrb[0].mxu0
      %6695 = vdwg.mxu0
      %v6700 = vunpack.c.l.b16 %v6450
      %v6701 = vunpack.c.l.b16 %v6451
      %v6702 = vunpack.c.l.b16 %v6452
      %v6703 = vunpack.c.l.b16 %v6453
      %v6704 = vpack.c.b16 %v6701, %v6700
      %v6705 = vpack.c.b16 %v6703, %v6702
      %v6709 = vsel %vm673, %v6433, 0
      %v6712 = vsel %vm673, %v6434, 0
      %v6715 = vsel %vm673, %v6435, 0
      %v6718 = vsel %vm673, %v6436, 0
      %v6721 = vsel %vm673, %v6437, 0
      %v6724 = vsel %vm673, %v6438, 0
      %v6727 = vsel %vm673, %v6439, 0
      %v6730 = vsel %vm673, %v6440, 0
      %v6733 = vsel %vm673, %v6441, 0
      %v6736 = vsel %vm673, %v6442, 0
      %v6739 = vsel %vm673, %v6443, 0
      %v6742 = vsel %vm673, %v6444, 0
      %v6745 = vsel %vm673, %v6445, 0
      %v6748 = vsel %vm673, %v6446, 0
      %v6751 = vsel %vm673, %v6447, 0
      %v6754 = vsel %vm673, %v6448, 0
      %6756 = vmatprep.subr.bf16.mxu0 0
      %6757 = vmatpush1.bf16.msra.mxu0 %v6704
      %6758 = vmatprep.subr.bf16.mxu0 0
      %6759 = vmatpush1.bf16.msra.mxu0 %v6705
      %6760 = vmatprep.subr.bf16.mxu0 0
      %6761 = vmatpush1.bf16.msra.mxu0 0
      %6762 = vmatprep.subr.bf16.mxu0 0
      %6763 = vmatpush1.bf16.msra.mxu0 0
      %6764 = vmatprep.subr.bf16.mxu0 0
      %6765 = vmatpush1.bf16.msra.mxu0 0
      %6766 = vmatprep.subr.bf16.mxu0 0
      %6767 = vmatpush1.bf16.msra.mxu0 0
      %6768 = vmatprep.subr.bf16.mxu0 0
      %6769 = vmatpush1.bf16.msra.mxu0 0
      %6770 = vmatprep.subr.bf16.mxu0 0
      %6771 = vmatpush1.bf16.msra.mxu0 0
      %6772 = vmatprep.subr.bf16.mxu0 0
      %6773 = vmatpush1.bf16.msra.mxu0 0
      %6774 = vmatprep.subr.bf16.mxu0 0
      %6775 = vmatpush1.bf16.msra.mxu0 0
      %6776 = vmatprep.subr.bf16.mxu0 0
      %6777 = vmatpush1.bf16.msra.mxu0 0
      %6778 = vmatprep.subr.bf16.mxu0 0
      %6779 = vmatpush1.bf16.msra.mxu0 0
      %6780 = vmatprep.subr.bf16.mxu0 0
      %6781 = vmatpush1.bf16.msra.mxu0 0
      %6782 = vmatprep.subr.bf16.mxu0 0
      %6783 = vmatpush1.bf16.msra.mxu0 0
      %6784 = vmatprep.subr.bf16.mxu0 0
      %6785 = vmatpush1.bf16.msra.mxu0 0
      %6786 = vmatprep.subr.bf16.mxu0 0
      %6787 = vmatpush1.bf16.msra.mxu0 0
      %6788 = vmatprep.mubr.bf16.mxu0 0
      %6789 = vmatmul.mubr.bf16.gmra.mrb[0].mxu0 %v6709
      %v6790 = vpop.f32.mrb[0].mxu0
      %v6791 = vadd.f32 %v6570, %v6790
      %v6792 = vpop.f32.mrb[0].mxu0
      %v6793 = vpop.f32.mrb[0].mxu0
      %v6794 = vadd.f32 %v6573, %v6793
      %v6795 = vpop.f32.mrb[0].mxu0
      %6796 = vmatprep.mubr.bf16.mxu0 0
      %6797 = vmatmul.mubr.bf16.gmra.mrb[0].mxu0 %v6712
      %v6798 = vpop.f32.mrb[0].mxu0
      %v6799 = vadd.f32 %v6578, %v6798
      %v6800 = vpop.f32.mrb[0].mxu0
      %v6801 = vpop.f32.mrb[0].mxu0
      %v6802 = vadd.f32 %v6581, %v6801
      %v6803 = vpop.f32.mrb[0].mxu0
      %6804 = vmatprep.mubr.bf16.mxu0 0
      %6805 = vmatmul.mubr.bf16.gmra.mrb[0].mxu0 %v6715
      %v6806 = vpop.f32.mrb[0].mxu0
      %v6807 = vadd.f32 %v6586, %v6806
      %v6808 = vpop.f32.mrb[0].mxu0
      %v6809 = vpop.f32.mrb[0].mxu0
      %v6810 = vadd.f32 %v6589, %v6809
      %v6811 = vpop.f32.mrb[0].mxu0
      %6812 = vmatprep.mubr.bf16.mxu0 0
      %6813 = vmatmul.mubr.bf16.gmra.mrb[0].mxu0 %v6718
      %v6814 = vpop.f32.mrb[0].mxu0
      %v6815 = vadd.f32 %v6594, %v6814
      %v6816 = vpop.f32.mrb[0].mxu0
      %v6817 = vpop.f32.mrb[0].mxu0
      %v6818 = vadd.f32 %v6597, %v6817
      %v6819 = vpop.f32.mrb[0].mxu0
      %6820 = vmatprep.mubr.bf16.mxu0 0
      %6821 = vmatmul.mubr.bf16.gmra.mrb[0].mxu0 %v6721
      %v6822 = vpop.f32.mrb[0].mxu0
      %v6823 = vadd.f32 %v6602, %v6822
      %v6824 = vpop.f32.mrb[0].mxu0
      %v6825 = vpop.f32.mrb[0].mxu0
      %v6826 = vadd.f32 %v6605, %v6825
      %v6827 = vpop.f32.mrb[0].mxu0
      %6828 = vmatprep.mubr.bf16.mxu0 0
      %6829 = vmatmul.mubr.bf16.gmra.mrb[0].mxu0 %v6724
      %v6830 = vpop.f32.mrb[0].mxu0
      %v6831 = vadd.f32 %v6610, %v6830
      %v6832 = vpop.f32.mrb[0].mxu0
      %v6833 = vpop.f32.mrb[0].mxu0
      %v6834 = vadd.f32 %v6613, %v6833
      %v6835 = vpop.f32.mrb[0].mxu0
      %6836 = vmatprep.mubr.bf16.mxu0 0
      %6837 = vmatmul.mubr.bf16.gmra.mrb[0].mxu0 %v6727
      %v6838 = vpop.f32.mrb[0].mxu0
      %v6839 = vadd.f32 %v6618, %v6838
      %v6840 = vpop.f32.mrb[0].mxu0
      %v6841 = vpop.f32.mrb[0].mxu0
      %v6842 = vadd.f32 %v6621, %v6841
      %v6843 = vpop.f32.mrb[0].mxu0
      %6844 = vmatprep.mubr.bf16.mxu0 0
      %6845 = vmatmul.mubr.bf16.gmra.mrb[0].mxu0 %v6730
      %v6846 = vpop.f32.mrb[0].mxu0
      %v6847 = vadd.f32 %v6626, %v6846
      %v6848 = vpop.f32.mrb[0].mxu0
      %v6849 = vpop.f32.mrb[0].mxu0
      %v6850 = vadd.f32 %v6629, %v6849
      %v6851 = vpop.f32.mrb[0].mxu0
      %6852 = vmatprep.mubr.bf16.mxu0 0
      %6853 = vmatmul.mubr.bf16.gmra.mrb[0].mxu0 %v6733
      %v6854 = vpop.f32.mrb[0].mxu0
      %v6855 = vadd.f32 %v6634, %v6854
      %v6856 = vpop.f32.mrb[0].mxu0
      %v6857 = vpop.f32.mrb[0].mxu0
      %v6858 = vadd.f32 %v6637, %v6857
      %v6859 = vpop.f32.mrb[0].mxu0
      %6860 = vmatprep.mubr.bf16.mxu0 0
      %6861 = vmatmul.mubr.bf16.gmra.mrb[0].mxu0 %v6736
      %v6862 = vpop.f32.mrb[0].mxu0
      %v6863 = vadd.f32 %v6642, %v6862
      %v6864 = vpop.f32.mrb[0].mxu0
      %v6865 = vpop.f32.mrb[0].mxu0
      %v6866 = vadd.f32 %v6645, %v6865
      %v6867 = vpop.f32.mrb[0].mxu0
      %6868 = vmatprep.mubr.bf16.mxu0 0
      %6869 = vmatmul.mubr.bf16.gmra.mrb[0].mxu0 %v6739
      %v6870 = vpop.f32.mrb[0].mxu0
      %v6871 = vadd.f32 %v6650, %v6870
      %v6872 = vpop.f32.mrb[0].mxu0
      %v6873 = vpop.f32.mrb[0].mxu0
      %v6874 = vadd.f32 %v6653, %v6873
      %v6875 = vpop.f32.mrb[0].mxu0
      %6876 = vmatprep.mubr.bf16.mxu0 0
      %6877 = vmatmul.mubr.bf16.gmra.mrb[0].mxu0 %v6742
      %v6878 = vpop.f32.mrb[0].mxu0
      %v6879 = vadd.f32 %v6658, %v6878
      %v6880 = vpop.f32.mrb[0].mxu0
      %v6881 = vpop.f32.mrb[0].mxu0
      %v6882 = vadd.f32 %v6661, %v6881
      %v6883 = vpop.f32.mrb[0].mxu0
      %6884 = vmatprep.mubr.bf16.mxu0 0
      %6885 = vmatmul.mubr.bf16.gmra.mrb[0].mxu0 %v6745
      %v6886 = vpop.f32.mrb[0].mxu0
      %v6887 = vadd.f32 %v6666, %v6886
      %v6888 = vpop.f32.mrb[0].mxu0
      %v6889 = vpop.f32.mrb[0].mxu0
      %v6890 = vadd.f32 %v6669, %v6889
      %v6891 = vpop.f32.mrb[0].mxu0
      %6892 = vmatprep.mubr.bf16.mxu0 0
      %6893 = vmatmul.mubr.bf16.gmra.mrb[0].mxu0 %v6748
      %v6894 = vpop.f32.mrb[0].mxu0
      %v6895 = vadd.f32 %v6674, %v6894
      %v6896 = vpop.f32.mrb[0].mxu0
      %v6897 = vpop.f32.mrb[0].mxu0
      %v6898 = vadd.f32 %v6677, %v6897
      %v6899 = vpop.f32.mrb[0].mxu0
      %6900 = vmatprep.mubr.bf16.mxu0 0
      %6901 = vmatmul.mubr.bf16.gmra.mrb[0].mxu0 %v6751
      %v6902 = vpop.f32.mrb[0].mxu0
      %v6903 = vadd.f32 %v6682, %v6902
      %v6904 = vpop.f32.mrb[0].mxu0
      %v6905 = vpop.f32.mrb[0].mxu0
      %v6906 = vadd.f32 %v6685, %v6905
      %v6907 = vpop.f32.mrb[0].mxu0
      %6908 = vmatprep.mubr.bf16.mxu0 0
      %6909 = vmatmul.mubr.bf16.gmra.mrb[0].mxu0 %v6754
      %v6910 = vpop.f32.mrb[0].mxu0
      %v6911 = vadd.f32 %v6690, %v6910
      %v6912 = vpop.f32.mrb[0].mxu0
      %v6913 = vpop.f32.mrb[0].mxu0
      %v6914 = vadd.f32 %v6693, %v6913
      %v6915 = vpop.f32.mrb[0].mxu0
      %6916 = vdwg.mxu0
      %v6917 = vpack.c.bf16 %v6432, %v6431
      %v6918 = vpack.c.bf16 %v6402, %v6401
      %v6919 = vpack.c.bf16 %v6404, %v6403
      %v6920 = vpack.c.bf16 %v6406, %v6405
      %v6921 = vpack.c.bf16 %v6408, %v6407
      %v6922 = vpack.c.bf16 %v6410, %v6409
      %v6923 = vpack.c.bf16 %v6412, %v6411
      %v6924 = vpack.c.bf16 %v6414, %v6413
      %v6925 = vpack.c.bf16 %v6416, %v6415
      %v6926 = vpack.c.bf16 %v6418, %v6417
      %v6927 = vpack.c.bf16 %v6420, %v6419
      %v6928 = vpack.c.bf16 %v6422, %v6421
      %v6929 = vpack.c.bf16 %v6424, %v6423
      %v6930 = vpack.c.bf16 %v6426, %v6425
      %v6931 = vpack.c.bf16 %v6428, %v6427
      %v6932 = vpack.c.bf16 %v6430, %v6429
      %s6933 = scalar_lea.vmem %s288, 608
      %v6934 = vld [vmem:[%s6933] sm:$0xf]
      %v6935 = vld [vmem:[%s6933 + $0x4] sm:$0xf]
      %v6936 = vld [vmem:[%s6933 + $0x8] sm:$0xf]
      %v6937 = vld [vmem:[%s6933 + $0xc] sm:$0xf]
      %v6942 = vunpack.c.l.b16 %v6934
      %v6943 = vunpack.c.l.b16 %v6935
      %v6944 = vunpack.c.l.b16 %v6936
      %v6945 = vunpack.c.l.b16 %v6937
      %v6946 = vpack.c.b16 %v6943, %v6942
      %v6947 = vpack.c.b16 %v6945, %v6944
      %v6951 = vsel %vm673, %v6917, 0
      %v6954 = vsel %vm673, %v6918, 0
      %v6957 = vsel %vm673, %v6919, 0
      %v6960 = vsel %vm673, %v6920, 0
      %v6963 = vsel %vm673, %v6921, 0
      %v6966 = vsel %vm673, %v6922, 0
      %v6969 = vsel %vm673, %v6923, 0
      %v6972 = vsel %vm673, %v6924, 0
      %v6975 = vsel %vm673, %v6925, 0
      %v6978 = vsel %vm673, %v6926, 0
      %v6981 = vsel %vm673, %v6927, 0
      %v6984 = vsel %vm673, %v6928, 0
      %v6987 = vsel %vm673, %v6929, 0
      %v6990 = vsel %vm673, %v6930, 0
      %v6993 = vsel %vm673, %v6931, 0
      %v6996 = vsel %vm673, %v6932, 0
      %6998 = vmatprep.subr.bf16.mxu0 0
      %6999 = vmatpush1.bf16.msra.mxu0 %v6946
      %7000 = vmatprep.subr.bf16.mxu0 0
      %7001 = vmatpush1.bf16.msra.mxu0 %v6947
      %7002 = vmatprep.subr.bf16.mxu0 0
      %7003 = vmatpush1.bf16.msra.mxu0 0
      %7004 = vmatprep.subr.bf16.mxu0 0
      %7005 = vmatpush1.bf16.msra.mxu0 0
      %7006 = vmatprep.subr.bf16.mxu0 0
      %7007 = vmatpush1.bf16.msra.mxu0 0
      %7008 = vmatprep.subr.bf16.mxu0 0
      %7009 = vmatpush1.bf16.msra.mxu0 0
      %7010 = vmatprep.subr.bf16.mxu0 0
      %7011 = vmatpush1.bf16.msra.mxu0 0
      %7012 = vmatprep.subr.bf16.mxu0 0
      %7013 = vmatpush1.bf16.msra.mxu0 0
      %7014 = vmatprep.subr.bf16.mxu0 0
      %7015 = vmatpush1.bf16.msra.mxu0 0
      %7016 = vmatprep.subr.bf16.mxu0 0
      %7017 = vmatpush1.bf16.msra.mxu0 0
      %7018 = vmatprep.subr.bf16.mxu0 0
      %7019 = vmatpush1.bf16.msra.mxu0 0
      %7020 = vmatprep.subr.bf16.mxu0 0
      %7021 = vmatpush1.bf16.msra.mxu0 0
      %7022 = vmatprep.subr.bf16.mxu0 0
      %7023 = vmatpush1.bf16.msra.mxu0 0
      %7024 = vmatprep.subr.bf16.mxu0 0
      %7025 = vmatpush1.bf16.msra.mxu0 0
      %7026 = vmatprep.subr.bf16.mxu0 0
      %7027 = vmatpush1.bf16.msra.mxu0 0
      %7028 = vmatprep.subr.bf16.mxu0 0
      %7029 = vmatpush1.bf16.msra.mxu0 0
      %7030 = vmatprep.mubr.bf16.mxu0 0
      %7031 = vmatmul.mubr.bf16.gmra.mrb[0].mxu0 %v6951
      %v7032 = vpop.f32.mrb[0].mxu0
      %v7033 = vadd.f32 0.0, %v7032
      %v7034 = vpop.f32.mrb[0].mxu0
      %v7035 = vpop.f32.mrb[0].mxu0
      %v7036 = vadd.f32 0.0, %v7035
      %v7037 = vpop.f32.mrb[0].mxu0
      %7038 = vmatprep.mubr.bf16.mxu0 0
      %7039 = vmatmul.mubr.bf16.gmra.mrb[0].mxu0 %v6954
      %v7040 = vpop.f32.mrb[0].mxu0
      %v7041 = vadd.f32 0.0, %v7040
      %v7042 = vpop.f32.mrb[0].mxu0
      %v7043 = vpop.f32.mrb[0].mxu0
      %v7044 = vadd.f32 0.0, %v7043
      %v7045 = vpop.f32.mrb[0].mxu0
      %7046 = vmatprep.mubr.bf16.mxu0 0
      %7047 = vmatmul.mubr.bf16.gmra.mrb[0].mxu0 %v6957
      %v7048 = vpop.f32.mrb[0].mxu0
      %v7049 = vadd.f32 0.0, %v7048
      %v7050 = vpop.f32.mrb[0].mxu0
      %v7051 = vpop.f32.mrb[0].mxu0
      %v7052 = vadd.f32 0.0, %v7051
      %v7053 = vpop.f32.mrb[0].mxu0
      %7054 = vmatprep.mubr.bf16.mxu0 0
      %7055 = vmatmul.mubr.bf16.gmra.mrb[0].mxu0 %v6960
      %v7056 = vpop.f32.mrb[0].mxu0
      %v7057 = vadd.f32 0.0, %v7056
      %v7058 = vpop.f32.mrb[0].mxu0
      %v7059 = vpop.f32.mrb[0].mxu0
      %v7060 = vadd.f32 0.0, %v7059
      %v7061 = vpop.f32.mrb[0].mxu0
      %7062 = vmatprep.mubr.bf16.mxu0 0
      %7063 = vmatmul.mubr.bf16.gmra.mrb[0].mxu0 %v6963
      %v7064 = vpop.f32.mrb[0].mxu0
      %v7065 = vadd.f32 0.0, %v7064
      %v7066 = vpop.f32.mrb[0].mxu0
      %v7067 = vpop.f32.mrb[0].mxu0
      %v7068 = vadd.f32 0.0, %v7067
      %v7069 = vpop.f32.mrb[0].mxu0
      %7070 = vmatprep.mubr.bf16.mxu0 0
      %7071 = vmatmul.mubr.bf16.gmra.mrb[0].mxu0 %v6966
      %v7072 = vpop.f32.mrb[0].mxu0
      %v7073 = vadd.f32 0.0, %v7072
      %v7074 = vpop.f32.mrb[0].mxu0
      %v7075 = vpop.f32.mrb[0].mxu0
      %v7076 = vadd.f32 0.0, %v7075
      %v7077 = vpop.f32.mrb[0].mxu0
      %7078 = vmatprep.mubr.bf16.mxu0 0
      %7079 = vmatmul.mubr.bf16.gmra.mrb[0].mxu0 %v6969
      %v7080 = vpop.f32.mrb[0].mxu0
      %v7081 = vadd.f32 0.0, %v7080
      %v7082 = vpop.f32.mrb[0].mxu0
      %v7083 = vpop.f32.mrb[0].mxu0
      %v7084 = vadd.f32 0.0, %v7083
      %v7085 = vpop.f32.mrb[0].mxu0
      %7086 = vmatprep.mubr.bf16.mxu0 0
      %7087 = vmatmul.mubr.bf16.gmra.mrb[0].mxu0 %v6972
      %v7088 = vpop.f32.mrb[0].mxu0
      %v7089 = vadd.f32 0.0, %v7088
      %v7090 = vpop.f32.mrb[0].mxu0
      %v7091 = vpop.f32.mrb[0].mxu0
      %v7092 = vadd.f32 0.0, %v7091
      %v7093 = vpop.f32.mrb[0].mxu0
      %7094 = vmatprep.mubr.bf16.mxu0 0
      %7095 = vmatmul.mubr.bf16.gmra.mrb[0].mxu0 %v6975
      %v7096 = vpop.f32.mrb[0].mxu0
      %v7097 = vadd.f32 0.0, %v7096
      %v7098 = vpop.f32.mrb[0].mxu0
      %v7099 = vpop.f32.mrb[0].mxu0
      %v7100 = vadd.f32 0.0, %v7099
      %v7101 = vpop.f32.mrb[0].mxu0
      %7102 = vmatprep.mubr.bf16.mxu0 0
      %7103 = vmatmul.mubr.bf16.gmra.mrb[0].mxu0 %v6978
      %v7104 = vpop.f32.mrb[0].mxu0
      %v7105 = vadd.f32 0.0, %v7104
      %v7106 = vpop.f32.mrb[0].mxu0
      %v7107 = vpop.f32.mrb[0].mxu0
      %v7108 = vadd.f32 0.0, %v7107
      %v7109 = vpop.f32.mrb[0].mxu0
      %7110 = vmatprep.mubr.bf16.mxu0 0
      %7111 = vmatmul.mubr.bf16.gmra.mrb[0].mxu0 %v6981
      %v7112 = vpop.f32.mrb[0].mxu0
      %v7113 = vadd.f32 0.0, %v7112
      %v7114 = vpop.f32.mrb[0].mxu0
      %v7115 = vpop.f32.mrb[0].mxu0
      %v7116 = vadd.f32 0.0, %v7115
      %v7117 = vpop.f32.mrb[0].mxu0
      %7118 = vmatprep.mubr.bf16.mxu0 0
      %7119 = vmatmul.mubr.bf16.gmra.mrb[0].mxu0 %v6984
      %v7120 = vpop.f32.mrb[0].mxu0
      %v7121 = vadd.f32 0.0, %v7120
      %v7122 = vpop.f32.mrb[0].mxu0
      %v7123 = vpop.f32.mrb[0].mxu0
      %v7124 = vadd.f32 0.0, %v7123
      %v7125 = vpop.f32.mrb[0].mxu0
      %7126 = vmatprep.mubr.bf16.mxu0 0
      %7127 = vmatmul.mubr.bf16.gmra.mrb[0].mxu0 %v6987
      %v7128 = vpop.f32.mrb[0].mxu0
      %v7129 = vadd.f32 0.0, %v7128
      %v7130 = vpop.f32.mrb[0].mxu0
      %v7131 = vpop.f32.mrb[0].mxu0
      %v7132 = vadd.f32 0.0, %v7131
      %v7133 = vpop.f32.mrb[0].mxu0
      %7134 = vmatprep.mubr.bf16.mxu0 0
      %7135 = vmatmul.mubr.bf16.gmra.mrb[0].mxu0 %v6990
      %v7136 = vpop.f32.mrb[0].mxu0
      %v7137 = vadd.f32 0.0, %v7136
      %v7138 = vpop.f32.mrb[0].mxu0
      %v7139 = vpop.f32.mrb[0].mxu0
      %v7140 = vadd.f32 0.0, %v7139
      %v7141 = vpop.f32.mrb[0].mxu0
      %7142 = vmatprep.mubr.bf16.mxu0 0
      %7143 = vmatmul.mubr.bf16.gmra.mrb[0].mxu0 %v6993
      %v7144 = vpop.f32.mrb[0].mxu0
      %v7145 = vadd.f32 0.0, %v7144
      %v7146 = vpop.f32.mrb[0].mxu0
      %v7147 = vpop.f32.mrb[0].mxu0
      %v7148 = vadd.f32 0.0, %v7147
      %v7149 = vpop.f32.mrb[0].mxu0
      %7150 = vmatprep.mubr.bf16.mxu0 0
      %7151 = vmatmul.mubr.bf16.gmra.mrb[0].mxu0 %v6996
      %v7152 = vpop.f32.mrb[0].mxu0
      %v7153 = vadd.f32 0.0, %v7152
      %v7154 = vpop.f32.mrb[0].mxu0
      %v7155 = vpop.f32.mrb[0].mxu0
      %v7156 = vadd.f32 0.0, %v7155
      %v7157 = vpop.f32.mrb[0].mxu0
      %7158 = vdwg.mxu0
      %v7159 = vadd.f32 %v6791, %v7033
      %v7160 = vadd.f32 %v6794, %v7036
      %v7161 = vadd.f32 %v6799, %v7041
      %v7162 = vadd.f32 %v6802, %v7044
      %v7163 = vadd.f32 %v6807, %v7049
      %v7164 = vadd.f32 %v6810, %v7052
      %v7165 = vadd.f32 %v6815, %v7057
      %v7166 = vadd.f32 %v6818, %v7060
      %v7167 = vadd.f32 %v6823, %v7065
      %v7168 = vadd.f32 %v6826, %v7068
      %v7169 = vadd.f32 %v6831, %v7073
      %v7170 = vadd.f32 %v6834, %v7076
      %v7171 = vadd.f32 %v6839, %v7081
      %v7172 = vadd.f32 %v6842, %v7084
      %v7173 = vadd.f32 %v6847, %v7089
      %v7174 = vadd.f32 %v6850, %v7092
      %v7175 = vadd.f32 %v6855, %v7097
      %v7176 = vadd.f32 %v6858, %v7100
      %v7177 = vadd.f32 %v6863, %v7105
      %v7178 = vadd.f32 %v6866, %v7108
      %v7179 = vadd.f32 %v6871, %v7113
      %v7180 = vadd.f32 %v6874, %v7116
      %v7181 = vadd.f32 %v6879, %v7121
      %v7182 = vadd.f32 %v6882, %v7124
      %v7183 = vadd.f32 %v6887, %v7129
      %v7184 = vadd.f32 %v6890, %v7132
      %v7185 = vadd.f32 %v6895, %v7137
      %v7186 = vadd.f32 %v6898, %v7140
      %v7187 = vadd.f32 %v6903, %v7145
      %v7188 = vadd.f32 %v6906, %v7148
      %v7189 = vadd.f32 %v6911, %v7153
      %v7190 = vadd.f32 %v6914, %v7156
      %v7191 = vsel %vm561, %v7159, 0.0
      %v7192 = vsel %vm562, %v7160, 0.0
      %v7193 = vsel %vm563, %v7161, 0.0
      %v7194 = vsel %vm564, %v7162, 0.0
      %v7195 = vsel %vm565, %v7163, 0.0
      %v7196 = vsel %vm566, %v7164, 0.0
      %v7197 = vsel %vm567, %v7165, 0.0
      %v7198 = vsel %vm568, %v7166, 0.0
      %v7199 = vsel %vm569, %v7167, 0.0
      %v7200 = vsel %vm570, %v7168, 0.0
      %v7201 = vsel %vm571, %v7169, 0.0
      %v7202 = vsel %vm572, %v7170, 0.0
      %v7203 = vsel %vm573, %v7171, 0.0
      %v7204 = vsel %vm574, %v7172, 0.0
      %v7205 = vsel %vm575, %v7173, 0.0
      %v7206 = vsel %vm576, %v7174, 0.0
      %v7207 = vsel %vm577, %v7175, 0.0
      %v7208 = vsel %vm578, %v7176, 0.0
      %v7209 = vsel %vm579, %v7177, 0.0
      %v7210 = vsel %vm580, %v7178, 0.0
      %v7211 = vsel %vm581, %v7179, 0.0
      %v7212 = vsel %vm582, %v7180, 0.0
      %v7213 = vsel %vm583, %v7181, 0.0
      %v7214 = vsel %vm584, %v7182, 0.0
      %v7215 = vsel %vm585, %v7183, 0.0
      %v7216 = vsel %vm586, %v7184, 0.0
      %v7217 = vsel %vm587, %v7185, 0.0
      %v7218 = vsel %vm588, %v7186, 0.0
      %v7219 = vsel %vm589, %v7187, 0.0
      %v7220 = vsel %vm590, %v7188, 0.0
      %v7221 = vsel %vm591, %v7189, 0.0
      %v7222 = vsel %vm592, %v7190, 0.0
      %s7223 = scalar_lea.vmem %s288, 624
      %v7224 = vld [vmem:[%s7223] sm:$0xf]
      %v7225 = vld [vmem:[%s7223 + $0x4] sm:$0xf]
      %v7226 = vld [vmem:[%s7223 + $0x8] sm:$0xf]
      %v7227 = vld [vmem:[%s7223 + $0xc] sm:$0xf]
      %s7228 = scalar_lea.vmem %s288, 640
      %v7229 = vld [vmem:[%s7228] sm:$0xf]
      %v7230 = vld [vmem:[%s7228 + $0x4] sm:$0xf]
      %v7231 = vld [vmem:[%s7228 + $0x8] sm:$0xf]
      %v7232 = vld [vmem:[%s7228 + $0xc] sm:$0xf]
      %v7237 = vunpack.c.l.b16 %v7229
      %v7238 = vunpack.c.l.b16 %v7230
      %v7239 = vunpack.c.l.b16 %v7231
      %v7240 = vunpack.c.l.b16 %v7232
      %v7241 = vpack.c.b16 %v7238, %v7237
      %v7242 = vpack.c.b16 %v7240, %v7239
      %7245 = vmatprep.subr.bf16.mxu0 0
      %7246 = vmatpush1.bf16.msra.mxu0 %v7241
      %7247 = vmatprep.subr.bf16.mxu0 0
      %7248 = vmatpush1.bf16.msra.mxu0 %v7242
      %7249 = vmatprep.subr.bf16.mxu0 0
      %7250 = vmatpush1.bf16.msra.mxu0 0
      %7251 = vmatprep.subr.bf16.mxu0 0
      %7252 = vmatpush1.bf16.msra.mxu0 0
      %7253 = vmatprep.subr.bf16.mxu0 0
      %7254 = vmatpush1.bf16.msra.mxu0 0
      %7255 = vmatprep.subr.bf16.mxu0 0
      %7256 = vmatpush1.bf16.msra.mxu0 0
      %7257 = vmatprep.subr.bf16.mxu0 0
      %7258 = vmatpush1.bf16.msra.mxu0 0
      %7259 = vmatprep.subr.bf16.mxu0 0
      %7260 = vmatpush1.bf16.msra.mxu0 0
      %7261 = vmatprep.subr.bf16.mxu0 0
      %7262 = vmatpush1.bf16.msra.mxu0 0
      %7263 = vmatprep.subr.bf16.mxu0 0
      %7264 = vmatpush1.bf16.msra.mxu0 0
      %7265 = vmatprep.subr.bf16.mxu0 0
      %7266 = vmatpush1.bf16.msra.mxu0 0
      %7267 = vmatprep.subr.bf16.mxu0 0
      %7268 = vmatpush1.bf16.msra.mxu0 0
      %7269 = vmatprep.subr.bf16.mxu0 0
      %7270 = vmatpush1.bf16.msra.mxu0 0
      %7271 = vmatprep.subr.bf16.mxu0 0
      %7272 = vmatpush1.bf16.msra.mxu0 0
      %7273 = vmatprep.subr.bf16.mxu0 0
      %7274 = vmatpush1.bf16.msra.mxu0 0
      %7275 = vmatprep.subr.bf16.mxu0 0
      %7276 = vmatpush1.bf16.msra.mxu0 0
      %7277 = vmatprep.mubr.bf16.mxu0 0
      %7278 = vmatmul.mubr.bf16.gmra.mrb[0].mxu0 %v6491
      %v7279 = vpop.f32.mrb[0].mxu0
      %v7280 = vadd.f32 0.0, %v7279
      %v7281 = vpop.f32.mrb[0].mxu0
      %v7282 = vpop.f32.mrb[0].mxu0
      %v7283 = vadd.f32 0.0, %v7282
      %v7284 = vpop.f32.mrb[0].mxu0
      %7285 = vmatprep.mubr.bf16.mxu0 0
      %7286 = vmatmul.mubr.bf16.gmra.mrb[0].mxu0 %v6494
      %v7287 = vpop.f32.mrb[0].mxu0
      %v7288 = vadd.f32 0.0, %v7287
      %v7289 = vpop.f32.mrb[0].mxu0
      %v7290 = vpop.f32.mrb[0].mxu0
      %v7291 = vadd.f32 0.0, %v7290
      %v7292 = vpop.f32.mrb[0].mxu0
      %7293 = vmatprep.mubr.bf16.mxu0 0
      %7294 = vmatmul.mubr.bf16.gmra.mrb[0].mxu0 %v6497
      %v7295 = vpop.f32.mrb[0].mxu0
      %v7296 = vadd.f32 0.0, %v7295
      %v7297 = vpop.f32.mrb[0].mxu0
      %v7298 = vpop.f32.mrb[0].mxu0
      %v7299 = vadd.f32 0.0, %v7298
      %v7300 = vpop.f32.mrb[0].mxu0
      %7301 = vmatprep.mubr.bf16.mxu0 0
      %7302 = vmatmul.mubr.bf16.gmra.mrb[0].mxu0 %v6500
      %v7303 = vpop.f32.mrb[0].mxu0
      %v7304 = vadd.f32 0.0, %v7303
      %v7305 = vpop.f32.mrb[0].mxu0
      %v7306 = vpop.f32.mrb[0].mxu0
      %v7307 = vadd.f32 0.0, %v7306
      %v7308 = vpop.f32.mrb[0].mxu0
      %7309 = vmatprep.mubr.bf16.mxu0 0
      %7310 = vmatmul.mubr.bf16.gmra.mrb[0].mxu0 %v6503
      %v7311 = vpop.f32.mrb[0].mxu0
      %v7312 = vadd.f32 0.0, %v7311
      %v7313 = vpop.f32.mrb[0].mxu0
      %v7314 = vpop.f32.mrb[0].mxu0
      %v7315 = vadd.f32 0.0, %v7314
      %v7316 = vpop.f32.mrb[0].mxu0
      %7317 = vmatprep.mubr.bf16.mxu0 0
      %7318 = vmatmul.mubr.bf16.gmra.mrb[0].mxu0 %v6506
      %v7319 = vpop.f32.mrb[0].mxu0
      %v7320 = vadd.f32 0.0, %v7319
      %v7321 = vpop.f32.mrb[0].mxu0
      %v7322 = vpop.f32.mrb[0].mxu0
      %v7323 = vadd.f32 0.0, %v7322
      %v7324 = vpop.f32.mrb[0].mxu0
      %7325 = vmatprep.mubr.bf16.mxu0 0
      %7326 = vmatmul.mubr.bf16.gmra.mrb[0].mxu0 %v6509
      %v7327 = vpop.f32.mrb[0].mxu0
      %v7328 = vadd.f32 0.0, %v7327
      %v7329 = vpop.f32.mrb[0].mxu0
      %v7330 = vpop.f32.mrb[0].mxu0
      %v7331 = vadd.f32 0.0, %v7330
      %v7332 = vpop.f32.mrb[0].mxu0
      %7333 = vmatprep.mubr.bf16.mxu0 0
      %7334 = vmatmul.mubr.bf16.gmra.mrb[0].mxu0 %v6512
      %v7335 = vpop.f32.mrb[0].mxu0
      %v7336 = vadd.f32 0.0, %v7335
      %v7337 = vpop.f32.mrb[0].mxu0
      %v7338 = vpop.f32.mrb[0].mxu0
      %v7339 = vadd.f32 0.0, %v7338
      %v7340 = vpop.f32.mrb[0].mxu0
      %7341 = vmatprep.mubr.bf16.mxu0 0
      %7342 = vmatmul.mubr.bf16.gmra.mrb[0].mxu0 %v6515
      %v7343 = vpop.f32.mrb[0].mxu0
      %v7344 = vadd.f32 0.0, %v7343
      %v7345 = vpop.f32.mrb[0].mxu0
      %v7346 = vpop.f32.mrb[0].mxu0
      %v7347 = vadd.f32 0.0, %v7346
      %v7348 = vpop.f32.mrb[0].mxu0
      %7349 = vmatprep.mubr.bf16.mxu0 0
      %7350 = vmatmul.mubr.bf16.gmra.mrb[0].mxu0 %v6518
      %v7351 = vpop.f32.mrb[0].mxu0
      %v7352 = vadd.f32 0.0, %v7351
      %v7353 = vpop.f32.mrb[0].mxu0
      %v7354 = vpop.f32.mrb[0].mxu0
      %v7355 = vadd.f32 0.0, %v7354
      %v7356 = vpop.f32.mrb[0].mxu0
      %7357 = vmatprep.mubr.bf16.mxu0 0
      %7358 = vmatmul.mubr.bf16.gmra.mrb[0].mxu0 %v6521
      %v7359 = vpop.f32.mrb[0].mxu0
      %v7360 = vadd.f32 0.0, %v7359
      %v7361 = vpop.f32.mrb[0].mxu0
      %v7362 = vpop.f32.mrb[0].mxu0
      %v7363 = vadd.f32 0.0, %v7362
      %v7364 = vpop.f32.mrb[0].mxu0
      %7365 = vmatprep.mubr.bf16.mxu0 0
      %7366 = vmatmul.mubr.bf16.gmra.mrb[0].mxu0 %v6524
      %v7367 = vpop.f32.mrb[0].mxu0
      %v7368 = vadd.f32 0.0, %v7367
      %v7369 = vpop.f32.mrb[0].mxu0
      %v7370 = vpop.f32.mrb[0].mxu0
      %v7371 = vadd.f32 0.0, %v7370
      %v7372 = vpop.f32.mrb[0].mxu0
      %7373 = vmatprep.mubr.bf16.mxu0 0
      %7374 = vmatmul.mubr.bf16.gmra.mrb[0].mxu0 %v6527
      %v7375 = vpop.f32.mrb[0].mxu0
      %v7376 = vadd.f32 0.0, %v7375
      %v7377 = vpop.f32.mrb[0].mxu0
      %v7378 = vpop.f32.mrb[0].mxu0
      %v7379 = vadd.f32 0.0, %v7378
      %v7380 = vpop.f32.mrb[0].mxu0
      %7381 = vmatprep.mubr.bf16.mxu0 0
      %7382 = vmatmul.mubr.bf16.gmra.mrb[0].mxu0 %v6530
      %v7383 = vpop.f32.mrb[0].mxu0
      %v7384 = vadd.f32 0.0, %v7383
      %v7385 = vpop.f32.mrb[0].mxu0
      %v7386 = vpop.f32.mrb[0].mxu0
      %v7387 = vadd.f32 0.0, %v7386
      %v7388 = vpop.f32.mrb[0].mxu0
      %7389 = vmatprep.mubr.bf16.mxu0 0
      %7390 = vmatmul.mubr.bf16.gmra.mrb[0].mxu0 %v6533
      %v7391 = vpop.f32.mrb[0].mxu0
      %v7392 = vadd.f32 0.0, %v7391
      %v7393 = vpop.f32.mrb[0].mxu0
      %v7394 = vpop.f32.mrb[0].mxu0
      %v7395 = vadd.f32 0.0, %v7394
      %v7396 = vpop.f32.mrb[0].mxu0
      %7397 = vmatprep.mubr.bf16.mxu0 0
      %7398 = vmatmul.mubr.bf16.gmra.mrb[0].mxu0 %v6488
      %v7399 = vpop.f32.mrb[0].mxu0
      %v7400 = vadd.f32 0.0, %v7399
      %v7401 = vpop.f32.mrb[0].mxu0
      %v7402 = vpop.f32.mrb[0].mxu0
      %v7403 = vadd.f32 0.0, %v7402
      %v7404 = vpop.f32.mrb[0].mxu0
      %7405 = vdwg.mxu0
      %v7410 = vunpack.c.l.b16 %v7224
      %v7411 = vunpack.c.l.b16 %v7225
      %v7412 = vunpack.c.l.b16 %v7226
      %v7413 = vunpack.c.l.b16 %v7227
      %v7414 = vpack.c.b16 %v7411, %v7410
      %v7415 = vpack.c.b16 %v7413, %v7412
      %7418 = vmatprep.subr.bf16.mxu0 0
      %7419 = vmatpush1.bf16.msra.mxu0 %v7414
      %7420 = vmatprep.subr.bf16.mxu0 0
      %7421 = vmatpush1.bf16.msra.mxu0 %v7415
      %7422 = vmatprep.subr.bf16.mxu0 0
      %7423 = vmatpush1.bf16.msra.mxu0 0
      %7424 = vmatprep.subr.bf16.mxu0 0
      %7425 = vmatpush1.bf16.msra.mxu0 0
      %7426 = vmatprep.subr.bf16.mxu0 0
      %7427 = vmatpush1.bf16.msra.mxu0 0
      %7428 = vmatprep.subr.bf16.mxu0 0
      %7429 = vmatpush1.bf16.msra.mxu0 0
      %7430 = vmatprep.subr.bf16.mxu0 0
      %7431 = vmatpush1.bf16.msra.mxu0 0
      %7432 = vmatprep.subr.bf16.mxu0 0
      %7433 = vmatpush1.bf16.msra.mxu0 0
      %7434 = vmatprep.subr.bf16.mxu0 0
      %7435 = vmatpush1.bf16.msra.mxu0 0
      %7436 = vmatprep.subr.bf16.mxu0 0
      %7437 = vmatpush1.bf16.msra.mxu0 0
      %7438 = vmatprep.subr.bf16.mxu0 0
      %7439 = vmatpush1.bf16.msra.mxu0 0
      %7440 = vmatprep.subr.bf16.mxu0 0
      %7441 = vmatpush1.bf16.msra.mxu0 0
      %7442 = vmatprep.subr.bf16.mxu0 0
      %7443 = vmatpush1.bf16.msra.mxu0 0
      %7444 = vmatprep.subr.bf16.mxu0 0
      %7445 = vmatpush1.bf16.msra.mxu0 0
      %7446 = vmatprep.subr.bf16.mxu0 0
      %7447 = vmatpush1.bf16.msra.mxu0 0
      %7448 = vmatprep.subr.bf16.mxu0 0
      %7449 = vmatpush1.bf16.msra.mxu0 0
      %7450 = vmatprep.mubr.bf16.mxu0 0
      %7451 = vmatmul.mubr.bf16.gmra.mrb[0].mxu0 %v6712
      %v7452 = vpop.f32.mrb[0].mxu0
      %v7453 = vadd.f32 %v7280, %v7452
      %v7454 = vpop.f32.mrb[0].mxu0
      %v7455 = vpop.f32.mrb[0].mxu0
      %v7456 = vadd.f32 %v7283, %v7455
      %v7457 = vpop.f32.mrb[0].mxu0
      %7458 = vmatprep.mubr.bf16.mxu0 0
      %7459 = vmatmul.mubr.bf16.gmra.mrb[0].mxu0 %v6715
      %v7460 = vpop.f32.mrb[0].mxu0
      %v7461 = vadd.f32 %v7288, %v7460
      %v7462 = vpop.f32.mrb[0].mxu0
      %v7463 = vpop.f32.mrb[0].mxu0
      %v7464 = vadd.f32 %v7291, %v7463
      %v7465 = vpop.f32.mrb[0].mxu0
      %7466 = vmatprep.mubr.bf16.mxu0 0
      %7467 = vmatmul.mubr.bf16.gmra.mrb[0].mxu0 %v6718
      %v7468 = vpop.f32.mrb[0].mxu0
      %v7469 = vadd.f32 %v7296, %v7468
      %v7470 = vpop.f32.mrb[0].mxu0
      %v7471 = vpop.f32.mrb[0].mxu0
      %v7472 = vadd.f32 %v7299, %v7471
      %v7473 = vpop.f32.mrb[0].mxu0
      %7474 = vmatprep.mubr.bf16.mxu0 0
      %7475 = vmatmul.mubr.bf16.gmra.mrb[0].mxu0 %v6721
      %v7476 = vpop.f32.mrb[0].mxu0
      %v7477 = vadd.f32 %v7304, %v7476
      %v7478 = vpop.f32.mrb[0].mxu0
      %v7479 = vpop.f32.mrb[0].mxu0
      %v7480 = vadd.f32 %v7307, %v7479
      %v7481 = vpop.f32.mrb[0].mxu0
      %7482 = vmatprep.mubr.bf16.mxu0 0
      %7483 = vmatmul.mubr.bf16.gmra.mrb[0].mxu0 %v6724
      %v7484 = vpop.f32.mrb[0].mxu0
      %v7485 = vadd.f32 %v7312, %v7484
      %v7486 = vpop.f32.mrb[0].mxu0
      %v7487 = vpop.f32.mrb[0].mxu0
      %v7488 = vadd.f32 %v7315, %v7487
      %v7489 = vpop.f32.mrb[0].mxu0
      %7490 = vmatprep.mubr.bf16.mxu0 0
      %7491 = vmatmul.mubr.bf16.gmra.mrb[0].mxu0 %v6727
      %v7492 = vpop.f32.mrb[0].mxu0
      %v7493 = vadd.f32 %v7320, %v7492
      %v7494 = vpop.f32.mrb[0].mxu0
      %v7495 = vpop.f32.mrb[0].mxu0
      %v7496 = vadd.f32 %v7323, %v7495
      %v7497 = vpop.f32.mrb[0].mxu0
      %7498 = vmatprep.mubr.bf16.mxu0 0
      %7499 = vmatmul.mubr.bf16.gmra.mrb[0].mxu0 %v6730
      %v7500 = vpop.f32.mrb[0].mxu0
      %v7501 = vadd.f32 %v7328, %v7500
      %v7502 = vpop.f32.mrb[0].mxu0
      %v7503 = vpop.f32.mrb[0].mxu0
      %v7504 = vadd.f32 %v7331, %v7503
      %v7505 = vpop.f32.mrb[0].mxu0
      %7506 = vmatprep.mubr.bf16.mxu0 0
      %7507 = vmatmul.mubr.bf16.gmra.mrb[0].mxu0 %v6733
      %v7508 = vpop.f32.mrb[0].mxu0
      %v7509 = vadd.f32 %v7336, %v7508
      %v7510 = vpop.f32.mrb[0].mxu0
      %v7511 = vpop.f32.mrb[0].mxu0
      %v7512 = vadd.f32 %v7339, %v7511
      %v7513 = vpop.f32.mrb[0].mxu0
      %7514 = vmatprep.mubr.bf16.mxu0 0
      %7515 = vmatmul.mubr.bf16.gmra.mrb[0].mxu0 %v6736
      %v7516 = vpop.f32.mrb[0].mxu0
      %v7517 = vadd.f32 %v7344, %v7516
      %v7518 = vpop.f32.mrb[0].mxu0
      %v7519 = vpop.f32.mrb[0].mxu0
      %v7520 = vadd.f32 %v7347, %v7519
      %v7521 = vpop.f32.mrb[0].mxu0
      %7522 = vmatprep.mubr.bf16.mxu0 0
      %7523 = vmatmul.mubr.bf16.gmra.mrb[0].mxu0 %v6739
      %v7524 = vpop.f32.mrb[0].mxu0
      %v7525 = vadd.f32 %v7352, %v7524
      %v7526 = vpop.f32.mrb[0].mxu0
      %v7527 = vpop.f32.mrb[0].mxu0
      %v7528 = vadd.f32 %v7355, %v7527
      %v7529 = vpop.f32.mrb[0].mxu0
      %7530 = vmatprep.mubr.bf16.mxu0 0
      %7531 = vmatmul.mubr.bf16.gmra.mrb[0].mxu0 %v6742
      %v7532 = vpop.f32.mrb[0].mxu0
      %v7533 = vadd.f32 %v7360, %v7532
      %v7534 = vpop.f32.mrb[0].mxu0
      %v7535 = vpop.f32.mrb[0].mxu0
      %v7536 = vadd.f32 %v7363, %v7535
      %v7537 = vpop.f32.mrb[0].mxu0
      %7538 = vmatprep.mubr.bf16.mxu0 0
      %7539 = vmatmul.mubr.bf16.gmra.mrb[0].mxu0 %v6745
      %v7540 = vpop.f32.mrb[0].mxu0
      %v7541 = vadd.f32 %v7368, %v7540
      %v7542 = vpop.f32.mrb[0].mxu0
      %v7543 = vpop.f32.mrb[0].mxu0
      %v7544 = vadd.f32 %v7371, %v7543
      %v7545 = vpop.f32.mrb[0].mxu0
      %7546 = vmatprep.mubr.bf16.mxu0 0
      %7547 = vmatmul.mubr.bf16.gmra.mrb[0].mxu0 %v6748
      %v7548 = vpop.f32.mrb[0].mxu0
      %v7549 = vadd.f32 %v7376, %v7548
      %v7550 = vpop.f32.mrb[0].mxu0
      %v7551 = vpop.f32.mrb[0].mxu0
      %v7552 = vadd.f32 %v7379, %v7551
      %v7553 = vpop.f32.mrb[0].mxu0
      %7554 = vmatprep.mubr.bf16.mxu0 0
      %7555 = vmatmul.mubr.bf16.gmra.mrb[0].mxu0 %v6751
      %v7556 = vpop.f32.mrb[0].mxu0
      %v7557 = vadd.f32 %v7384, %v7556
      %v7558 = vpop.f32.mrb[0].mxu0
      %v7559 = vpop.f32.mrb[0].mxu0
      %v7560 = vadd.f32 %v7387, %v7559
      %v7561 = vpop.f32.mrb[0].mxu0
      %7562 = vmatprep.mubr.bf16.mxu0 0
      %7563 = vmatmul.mubr.bf16.gmra.mrb[0].mxu0 %v6754
      %v7564 = vpop.f32.mrb[0].mxu0
      %v7565 = vadd.f32 %v7392, %v7564
      %v7566 = vpop.f32.mrb[0].mxu0
      %v7567 = vpop.f32.mrb[0].mxu0
      %v7568 = vadd.f32 %v7395, %v7567
      %v7569 = vpop.f32.mrb[0].mxu0
      %7570 = vmatprep.mubr.bf16.mxu0 0
      %7571 = vmatmul.mubr.bf16.gmra.mrb[0].mxu0 %v6709
      %v7572 = vpop.f32.mrb[0].mxu0
      %v7573 = vadd.f32 %v7400, %v7572
      %v7574 = vpop.f32.mrb[0].mxu0
      %v7575 = vpop.f32.mrb[0].mxu0
      %v7576 = vadd.f32 %v7403, %v7575
      %v7577 = vpop.f32.mrb[0].mxu0
      %7578 = vdwg.mxu0
      %s7579 = scalar_lea.vmem %s288, 656
      %v7580 = vld [vmem:[%s7579] sm:$0xf]
      %v7581 = vld [vmem:[%s7579 + $0x4] sm:$0xf]
      %v7582 = vld [vmem:[%s7579 + $0x8] sm:$0xf]
      %v7583 = vld [vmem:[%s7579 + $0xc] sm:$0xf]
      %v7588 = vunpack.c.l.b16 %v7580
      %v7589 = vunpack.c.l.b16 %v7581
      %v7590 = vunpack.c.l.b16 %v7582
      %v7591 = vunpack.c.l.b16 %v7583
      %v7592 = vpack.c.b16 %v7589, %v7588
      %v7593 = vpack.c.b16 %v7591, %v7590
      %7596 = vmatprep.subr.bf16.mxu0 0
      %7597 = vmatpush1.bf16.msra.mxu0 %v7592
      %7598 = vmatprep.subr.bf16.mxu0 0
      %7599 = vmatpush1.bf16.msra.mxu0 %v7593
      %7600 = vmatprep.subr.bf16.mxu0 0
      %7601 = vmatpush1.bf16.msra.mxu0 0
      %7602 = vmatprep.subr.bf16.mxu0 0
      %7603 = vmatpush1.bf16.msra.mxu0 0
      %7604 = vmatprep.subr.bf16.mxu0 0
      %7605 = vmatpush1.bf16.msra.mxu0 0
      %7606 = vmatprep.subr.bf16.mxu0 0
      %7607 = vmatpush1.bf16.msra.mxu0 0
      %7608 = vmatprep.subr.bf16.mxu0 0
      %7609 = vmatpush1.bf16.msra.mxu0 0
      %7610 = vmatprep.subr.bf16.mxu0 0
      %7611 = vmatpush1.bf16.msra.mxu0 0
      %7612 = vmatprep.subr.bf16.mxu0 0
      %7613 = vmatpush1.bf16.msra.mxu0 0
      %7614 = vmatprep.subr.bf16.mxu0 0
      %7615 = vmatpush1.bf16.msra.mxu0 0
      %7616 = vmatprep.subr.bf16.mxu0 0
      %7617 = vmatpush1.bf16.msra.mxu0 0
      %7618 = vmatprep.subr.bf16.mxu0 0
      %7619 = vmatpush1.bf16.msra.mxu0 0
      %7620 = vmatprep.subr.bf16.mxu0 0
      %7621 = vmatpush1.bf16.msra.mxu0 0
      %7622 = vmatprep.subr.bf16.mxu0 0
      %7623 = vmatpush1.bf16.msra.mxu0 0
      %7624 = vmatprep.subr.bf16.mxu0 0
      %7625 = vmatpush1.bf16.msra.mxu0 0
      %7626 = vmatprep.subr.bf16.mxu0 0
      %7627 = vmatpush1.bf16.msra.mxu0 0
      %7628 = vmatprep.mubr.bf16.mxu0 0
      %7629 = vmatmul.mubr.bf16.gmra.mrb[0].mxu0 %v6954
      %v7630 = vpop.f32.mrb[0].mxu0
      %v7631 = vadd.f32 0.0, %v7630
      %v7632 = vpop.f32.mrb[0].mxu0
      %v7633 = vpop.f32.mrb[0].mxu0
      %v7634 = vadd.f32 0.0, %v7633
      %v7635 = vpop.f32.mrb[0].mxu0
      %7636 = vmatprep.mubr.bf16.mxu0 0
      %7637 = vmatmul.mubr.bf16.gmra.mrb[0].mxu0 %v6957
      %v7638 = vpop.f32.mrb[0].mxu0
      %v7639 = vadd.f32 0.0, %v7638
      %v7640 = vpop.f32.mrb[0].mxu0
      %v7641 = vpop.f32.mrb[0].mxu0
      %v7642 = vadd.f32 0.0, %v7641
      %v7643 = vpop.f32.mrb[0].mxu0
      %7644 = vmatprep.mubr.bf16.mxu0 0
      %7645 = vmatmul.mubr.bf16.gmra.mrb[0].mxu0 %v6960
      %v7646 = vpop.f32.mrb[0].mxu0
      %v7647 = vadd.f32 0.0, %v7646
      %v7648 = vpop.f32.mrb[0].mxu0
      %v7649 = vpop.f32.mrb[0].mxu0
      %v7650 = vadd.f32 0.0, %v7649
      %v7651 = vpop.f32.mrb[0].mxu0
      %7652 = vmatprep.mubr.bf16.mxu0 0
      %7653 = vmatmul.mubr.bf16.gmra.mrb[0].mxu0 %v6963
      %v7654 = vpop.f32.mrb[0].mxu0
      %v7655 = vadd.f32 0.0, %v7654
      %v7656 = vpop.f32.mrb[0].mxu0
      %v7657 = vpop.f32.mrb[0].mxu0
      %v7658 = vadd.f32 0.0, %v7657
      %v7659 = vpop.f32.mrb[0].mxu0
      %7660 = vmatprep.mubr.bf16.mxu0 0
      %7661 = vmatmul.mubr.bf16.gmra.mrb[0].mxu0 %v6966
      %v7662 = vpop.f32.mrb[0].mxu0
      %v7663 = vadd.f32 0.0, %v7662
      %v7664 = vpop.f32.mrb[0].mxu0
      %v7665 = vpop.f32.mrb[0].mxu0
      %v7666 = vadd.f32 0.0, %v7665
      %v7667 = vpop.f32.mrb[0].mxu0
      %7668 = vmatprep.mubr.bf16.mxu0 0
      %7669 = vmatmul.mubr.bf16.gmra.mrb[0].mxu0 %v6969
      %v7670 = vpop.f32.mrb[0].mxu0
      %v7671 = vadd.f32 0.0, %v7670
      %v7672 = vpop.f32.mrb[0].mxu0
      %v7673 = vpop.f32.mrb[0].mxu0
      %v7674 = vadd.f32 0.0, %v7673
      %v7675 = vpop.f32.mrb[0].mxu0
      %7676 = vmatprep.mubr.bf16.mxu0 0
      %7677 = vmatmul.mubr.bf16.gmra.mrb[0].mxu0 %v6972
      %v7678 = vpop.f32.mrb[0].mxu0
      %v7679 = vadd.f32 0.0, %v7678
      %v7680 = vpop.f32.mrb[0].mxu0
      %v7681 = vpop.f32.mrb[0].mxu0
      %v7682 = vadd.f32 0.0, %v7681
      %v7683 = vpop.f32.mrb[0].mxu0
      %7684 = vmatprep.mubr.bf16.mxu0 0
      %7685 = vmatmul.mubr.bf16.gmra.mrb[0].mxu0 %v6975
      %v7686 = vpop.f32.mrb[0].mxu0
      %v7687 = vadd.f32 0.0, %v7686
      %v7688 = vpop.f32.mrb[0].mxu0
      %v7689 = vpop.f32.mrb[0].mxu0
      %v7690 = vadd.f32 0.0, %v7689
      %v7691 = vpop.f32.mrb[0].mxu0
      %7692 = vmatprep.mubr.bf16.mxu0 0
      %7693 = vmatmul.mubr.bf16.gmra.mrb[0].mxu0 %v6978
      %v7694 = vpop.f32.mrb[0].mxu0
      %v7695 = vadd.f32 0.0, %v7694
      %v7696 = vpop.f32.mrb[0].mxu0
      %v7697 = vpop.f32.mrb[0].mxu0
      %v7698 = vadd.f32 0.0, %v7697
      %v7699 = vpop.f32.mrb[0].mxu0
      %7700 = vmatprep.mubr.bf16.mxu0 0
      %7701 = vmatmul.mubr.bf16.gmra.mrb[0].mxu0 %v6981
      %v7702 = vpop.f32.mrb[0].mxu0
      %v7703 = vadd.f32 0.0, %v7702
      %v7704 = vpop.f32.mrb[0].mxu0
      %v7705 = vpop.f32.mrb[0].mxu0
      %v7706 = vadd.f32 0.0, %v7705
      %v7707 = vpop.f32.mrb[0].mxu0
      %7708 = vmatprep.mubr.bf16.mxu0 0
      %7709 = vmatmul.mubr.bf16.gmra.mrb[0].mxu0 %v6984
      %v7710 = vpop.f32.mrb[0].mxu0
      %v7711 = vadd.f32 0.0, %v7710
      %v7712 = vpop.f32.mrb[0].mxu0
      %v7713 = vpop.f32.mrb[0].mxu0
      %v7714 = vadd.f32 0.0, %v7713
      %v7715 = vpop.f32.mrb[0].mxu0
      %7716 = vmatprep.mubr.bf16.mxu0 0
      %7717 = vmatmul.mubr.bf16.gmra.mrb[0].mxu0 %v6987
      %v7718 = vpop.f32.mrb[0].mxu0
      %v7719 = vadd.f32 0.0, %v7718
      %v7720 = vpop.f32.mrb[0].mxu0
      %v7721 = vpop.f32.mrb[0].mxu0
      %v7722 = vadd.f32 0.0, %v7721
      %v7723 = vpop.f32.mrb[0].mxu0
      %7724 = vmatprep.mubr.bf16.mxu0 0
      %7725 = vmatmul.mubr.bf16.gmra.mrb[0].mxu0 %v6990
      %v7726 = vpop.f32.mrb[0].mxu0
      %v7727 = vadd.f32 0.0, %v7726
      %v7728 = vpop.f32.mrb[0].mxu0
      %v7729 = vpop.f32.mrb[0].mxu0
      %v7730 = vadd.f32 0.0, %v7729
      %v7731 = vpop.f32.mrb[0].mxu0
      %7732 = vmatprep.mubr.bf16.mxu0 0
      %7733 = vmatmul.mubr.bf16.gmra.mrb[0].mxu0 %v6993
      %v7734 = vpop.f32.mrb[0].mxu0
      %v7735 = vadd.f32 0.0, %v7734
      %v7736 = vpop.f32.mrb[0].mxu0
      %v7737 = vpop.f32.mrb[0].mxu0
      %v7738 = vadd.f32 0.0, %v7737
      %v7739 = vpop.f32.mrb[0].mxu0
      %7740 = vmatprep.mubr.bf16.mxu0 0
      %7741 = vmatmul.mubr.bf16.gmra.mrb[0].mxu0 %v6996
      %v7742 = vpop.f32.mrb[0].mxu0
      %v7743 = vadd.f32 0.0, %v7742
      %v7744 = vpop.f32.mrb[0].mxu0
      %v7745 = vpop.f32.mrb[0].mxu0
      %v7746 = vadd.f32 0.0, %v7745
      %v7747 = vpop.f32.mrb[0].mxu0
      %7748 = vmatprep.mubr.bf16.mxu0 0
      %7749 = vmatmul.mubr.bf16.gmra.mrb[0].mxu0 %v6951
      %v7750 = vpop.f32.mrb[0].mxu0
      %v7751 = vadd.f32 0.0, %v7750
      %v7752 = vpop.f32.mrb[0].mxu0
      %v7753 = vpop.f32.mrb[0].mxu0
      %v7754 = vadd.f32 0.0, %v7753
      %v7755 = vpop.f32.mrb[0].mxu0
      %7756 = vdwg.mxu0
      %v7757 = vadd.f32 %v7453, %v7631
      %v7758 = vadd.f32 %v7456, %v7634
      %v7759 = vadd.f32 %v7461, %v7639
      %v7760 = vadd.f32 %v7464, %v7642
      %v7761 = vadd.f32 %v7469, %v7647
      %v7762 = vadd.f32 %v7472, %v7650
      %v7763 = vadd.f32 %v7477, %v7655
      %v7764 = vadd.f32 %v7480, %v7658
      %v7765 = vadd.f32 %v7485, %v7663
      %v7766 = vadd.f32 %v7488, %v7666
      %v7767 = vadd.f32 %v7493, %v7671
      %v7768 = vadd.f32 %v7496, %v7674
      %v7769 = vadd.f32 %v7501, %v7679
      %v7770 = vadd.f32 %v7504, %v7682
      %v7771 = vadd.f32 %v7509, %v7687
      %v7772 = vadd.f32 %v7512, %v7690
      %v7773 = vadd.f32 %v7517, %v7695
      %v7774 = vadd.f32 %v7520, %v7698
      %v7775 = vadd.f32 %v7525, %v7703
      %v7776 = vadd.f32 %v7528, %v7706
      %v7777 = vadd.f32 %v7533, %v7711
      %v7778 = vadd.f32 %v7536, %v7714
      %v7779 = vadd.f32 %v7541, %v7719
      %v7780 = vadd.f32 %v7544, %v7722
      %v7781 = vadd.f32 %v7549, %v7727
      %v7782 = vadd.f32 %v7552, %v7730
      %v7783 = vadd.f32 %v7557, %v7735
      %v7784 = vadd.f32 %v7560, %v7738
      %v7785 = vadd.f32 %v7565, %v7743
      %v7786 = vadd.f32 %v7568, %v7746
      %v7787 = vadd.f32 %v7573, %v7751
      %v7788 = vadd.f32 %v7576, %v7754
      %v7789 = vadd.f32 %v7191, %v7757
      %v7790 = vadd.f32 %v7192, %v7758
      %v7791 = vadd.f32 %v7193, %v7759
      %v7792 = vadd.f32 %v7194, %v7760
      %v7793 = vadd.f32 %v7195, %v7761
      %v7794 = vadd.f32 %v7196, %v7762
      %v7795 = vadd.f32 %v7197, %v7763
      %v7796 = vadd.f32 %v7198, %v7764
      %v7797 = vadd.f32 %v7199, %v7765
      %v7798 = vadd.f32 %v7200, %v7766
      %v7799 = vadd.f32 %v7201, %v7767
      %v7800 = vadd.f32 %v7202, %v7768
      %v7801 = vadd.f32 %v7203, %v7769
      %v7802 = vadd.f32 %v7204, %v7770
      %v7803 = vadd.f32 %v7205, %v7771
      %v7804 = vadd.f32 %v7206, %v7772
      %v7805 = vadd.f32 %v7207, %v7773
      %v7806 = vadd.f32 %v7208, %v7774
      %v7807 = vadd.f32 %v7209, %v7775
      %v7808 = vadd.f32 %v7210, %v7776
      %v7809 = vadd.f32 %v7211, %v7777
      %v7810 = vadd.f32 %v7212, %v7778
      %v7811 = vadd.f32 %v7213, %v7779
      %v7812 = vadd.f32 %v7214, %v7780
      %v7813 = vadd.f32 %v7215, %v7781
      %v7814 = vadd.f32 %v7216, %v7782
      %v7815 = vadd.f32 %v7217, %v7783
      %v7816 = vadd.f32 %v7218, %v7784
      %v7817 = vadd.f32 %v7219, %v7785
      %v7818 = vadd.f32 %v7220, %v7786
      %v7819 = vadd.f32 %v7221, %v7787
      %v7820 = vadd.f32 %v7222, %v7788
      %s7821 = scalar_lea.vmem %s288, 672
      %v7822 = vld [vmem:[%s7821] sm:$0xf]
      %v7823 = vld [vmem:[%s7821 + $0x4] sm:$0xf]
      %v7824 = vld [vmem:[%s7821 + $0x8] sm:$0xf]
      %v7825 = vld [vmem:[%s7821 + $0xc] sm:$0xf]
      %s7826 = scalar_lea.vmem %s288, 688
      %v7827 = vld [vmem:[%s7826] sm:$0xf]
      %v7828 = vld [vmem:[%s7826 + $0x4] sm:$0xf]
      %v7829 = vld [vmem:[%s7826 + $0x8] sm:$0xf]
      %v7830 = vld [vmem:[%s7826 + $0xc] sm:$0xf]
      %v7835 = vunpack.c.l.b16 %v7827
      %v7836 = vunpack.c.l.b16 %v7828
      %v7837 = vunpack.c.l.b16 %v7829
      %v7838 = vunpack.c.l.b16 %v7830
      %v7839 = vpack.c.b16 %v7836, %v7835
      %v7840 = vpack.c.b16 %v7838, %v7837
      %7843 = vmatprep.subr.bf16.mxu0 0
      %7844 = vmatpush1.bf16.msra.mxu0 %v7839
      %7845 = vmatprep.subr.bf16.mxu0 0
      %7846 = vmatpush1.bf16.msra.mxu0 %v7840
      %7847 = vmatprep.subr.bf16.mxu0 0
      %7848 = vmatpush1.bf16.msra.mxu0 0
      %7849 = vmatprep.subr.bf16.mxu0 0
      %7850 = vmatpush1.bf16.msra.mxu0 0
      %7851 = vmatprep.subr.bf16.mxu0 0
      %7852 = vmatpush1.bf16.msra.mxu0 0
      %7853 = vmatprep.subr.bf16.mxu0 0
      %7854 = vmatpush1.bf16.msra.mxu0 0
      %7855 = vmatprep.subr.bf16.mxu0 0
      %7856 = vmatpush1.bf16.msra.mxu0 0
      %7857 = vmatprep.subr.bf16.mxu0 0
      %7858 = vmatpush1.bf16.msra.mxu0 0
      %7859 = vmatprep.subr.bf16.mxu0 0
      %7860 = vmatpush1.bf16.msra.mxu0 0
      %7861 = vmatprep.subr.bf16.mxu0 0
      %7862 = vmatpush1.bf16.msra.mxu0 0
      %7863 = vmatprep.subr.bf16.mxu0 0
      %7864 = vmatpush1.bf16.msra.mxu0 0
      %7865 = vmatprep.subr.bf16.mxu0 0
      %7866 = vmatpush1.bf16.msra.mxu0 0
      %7867 = vmatprep.subr.bf16.mxu0 0
      %7868 = vmatpush1.bf16.msra.mxu0 0
      %7869 = vmatprep.subr.bf16.mxu0 0
      %7870 = vmatpush1.bf16.msra.mxu0 0
      %7871 = vmatprep.subr.bf16.mxu0 0
      %7872 = vmatpush1.bf16.msra.mxu0 0
      %7873 = vmatprep.subr.bf16.mxu0 0
      %7874 = vmatpush1.bf16.msra.mxu0 0
      %7875 = vmatprep.mubr.bf16.mxu0 0
      %7876 = vmatmul.mubr.bf16.gmra.mrb[0].mxu0 %v6494
      %v7877 = vpop.f32.mrb[0].mxu0
      %v7878 = vadd.f32 0.0, %v7877
      %v7879 = vpop.f32.mrb[0].mxu0
      %v7880 = vpop.f32.mrb[0].mxu0
      %v7881 = vadd.f32 0.0, %v7880
      %v7882 = vpop.f32.mrb[0].mxu0
      %7883 = vmatprep.mubr.bf16.mxu0 0
      %7884 = vmatmul.mubr.bf16.gmra.mrb[0].mxu0 %v6497
      %v7885 = vpop.f32.mrb[0].mxu0
      %v7886 = vadd.f32 0.0, %v7885
      %v7887 = vpop.f32.mrb[0].mxu0
      %v7888 = vpop.f32.mrb[0].mxu0
      %v7889 = vadd.f32 0.0, %v7888
      %v7890 = vpop.f32.mrb[0].mxu0
      %7891 = vmatprep.mubr.bf16.mxu0 0
      %7892 = vmatmul.mubr.bf16.gmra.mrb[0].mxu0 %v6500
      %v7893 = vpop.f32.mrb[0].mxu0
      %v7894 = vadd.f32 0.0, %v7893
      %v7895 = vpop.f32.mrb[0].mxu0
      %v7896 = vpop.f32.mrb[0].mxu0
      %v7897 = vadd.f32 0.0, %v7896
      %v7898 = vpop.f32.mrb[0].mxu0
      %7899 = vmatprep.mubr.bf16.mxu0 0
      %7900 = vmatmul.mubr.bf16.gmra.mrb[0].mxu0 %v6503
      %v7901 = vpop.f32.mrb[0].mxu0
      %v7902 = vadd.f32 0.0, %v7901
      %v7903 = vpop.f32.mrb[0].mxu0
      %v7904 = vpop.f32.mrb[0].mxu0
      %v7905 = vadd.f32 0.0, %v7904
      %v7906 = vpop.f32.mrb[0].mxu0
      %7907 = vmatprep.mubr.bf16.mxu0 0
      %7908 = vmatmul.mubr.bf16.gmra.mrb[0].mxu0 %v6506
      %v7909 = vpop.f32.mrb[0].mxu0
      %v7910 = vadd.f32 0.0, %v7909
      %v7911 = vpop.f32.mrb[0].mxu0
      %v7912 = vpop.f32.mrb[0].mxu0
      %v7913 = vadd.f32 0.0, %v7912
      %v7914 = vpop.f32.mrb[0].mxu0
      %7915 = vmatprep.mubr.bf16.mxu0 0
      %7916 = vmatmul.mubr.bf16.gmra.mrb[0].mxu0 %v6509
      %v7917 = vpop.f32.mrb[0].mxu0
      %v7918 = vadd.f32 0.0, %v7917
      %v7919 = vpop.f32.mrb[0].mxu0
      %v7920 = vpop.f32.mrb[0].mxu0
      %v7921 = vadd.f32 0.0, %v7920
      %v7922 = vpop.f32.mrb[0].mxu0
      %7923 = vmatprep.mubr.bf16.mxu0 0
      %7924 = vmatmul.mubr.bf16.gmra.mrb[0].mxu0 %v6512
      %v7925 = vpop.f32.mrb[0].mxu0
      %v7926 = vadd.f32 0.0, %v7925
      %v7927 = vpop.f32.mrb[0].mxu0
      %v7928 = vpop.f32.mrb[0].mxu0
      %v7929 = vadd.f32 0.0, %v7928
      %v7930 = vpop.f32.mrb[0].mxu0
      %7931 = vmatprep.mubr.bf16.mxu0 0
      %7932 = vmatmul.mubr.bf16.gmra.mrb[0].mxu0 %v6515
      %v7933 = vpop.f32.mrb[0].mxu0
      %v7934 = vadd.f32 0.0, %v7933
      %v7935 = vpop.f32.mrb[0].mxu0
      %v7936 = vpop.f32.mrb[0].mxu0
      %v7937 = vadd.f32 0.0, %v7936
      %v7938 = vpop.f32.mrb[0].mxu0
      %7939 = vmatprep.mubr.bf16.mxu0 0
      %7940 = vmatmul.mubr.bf16.gmra.mrb[0].mxu0 %v6518
      %v7941 = vpop.f32.mrb[0].mxu0
      %v7942 = vadd.f32 0.0, %v7941
      %v7943 = vpop.f32.mrb[0].mxu0
      %v7944 = vpop.f32.mrb[0].mxu0
      %v7945 = vadd.f32 0.0, %v7944
      %v7946 = vpop.f32.mrb[0].mxu0
      %7947 = vmatprep.mubr.bf16.mxu0 0
      %7948 = vmatmul.mubr.bf16.gmra.mrb[0].mxu0 %v6521
      %v7949 = vpop.f32.mrb[0].mxu0
      %v7950 = vadd.f32 0.0, %v7949
      %v7951 = vpop.f32.mrb[0].mxu0
      %v7952 = vpop.f32.mrb[0].mxu0
      %v7953 = vadd.f32 0.0, %v7952
      %v7954 = vpop.f32.mrb[0].mxu0
      %7955 = vmatprep.mubr.bf16.mxu0 0
      %7956 = vmatmul.mubr.bf16.gmra.mrb[0].mxu0 %v6524
      %v7957 = vpop.f32.mrb[0].mxu0
      %v7958 = vadd.f32 0.0, %v7957
      %v7959 = vpop.f32.mrb[0].mxu0
      %v7960 = vpop.f32.mrb[0].mxu0
      %v7961 = vadd.f32 0.0, %v7960
      %v7962 = vpop.f32.mrb[0].mxu0
      %7963 = vmatprep.mubr.bf16.mxu0 0
      %7964 = vmatmul.mubr.bf16.gmra.mrb[0].mxu0 %v6527
      %v7965 = vpop.f32.mrb[0].mxu0
      %v7966 = vadd.f32 0.0, %v7965
      %v7967 = vpop.f32.mrb[0].mxu0
      %v7968 = vpop.f32.mrb[0].mxu0
      %v7969 = vadd.f32 0.0, %v7968
      %v7970 = vpop.f32.mrb[0].mxu0
      %7971 = vmatprep.mubr.bf16.mxu0 0
      %7972 = vmatmul.mubr.bf16.gmra.mrb[0].mxu0 %v6530
      %v7973 = vpop.f32.mrb[0].mxu0
      %v7974 = vadd.f32 0.0, %v7973
      %v7975 = vpop.f32.mrb[0].mxu0
      %v7976 = vpop.f32.mrb[0].mxu0
      %v7977 = vadd.f32 0.0, %v7976
      %v7978 = vpop.f32.mrb[0].mxu0
      %7979 = vmatprep.mubr.bf16.mxu0 0
      %7980 = vmatmul.mubr.bf16.gmra.mrb[0].mxu0 %v6533
      %v7981 = vpop.f32.mrb[0].mxu0
      %v7982 = vadd.f32 0.0, %v7981
      %v7983 = vpop.f32.mrb[0].mxu0
      %v7984 = vpop.f32.mrb[0].mxu0
      %v7985 = vadd.f32 0.0, %v7984
      %v7986 = vpop.f32.mrb[0].mxu0
      %7987 = vmatprep.mubr.bf16.mxu0 0
      %7988 = vmatmul.mubr.bf16.gmra.mrb[0].mxu0 %v6488
      %v7989 = vpop.f32.mrb[0].mxu0
      %v7990 = vadd.f32 0.0, %v7989
      %v7991 = vpop.f32.mrb[0].mxu0
      %v7992 = vpop.f32.mrb[0].mxu0
      %v7993 = vadd.f32 0.0, %v7992
      %v7994 = vpop.f32.mrb[0].mxu0
      %7995 = vmatprep.mubr.bf16.mxu0 0
      %7996 = vmatmul.mubr.bf16.gmra.mrb[0].mxu0 %v6491
      %v7997 = vpop.f32.mrb[0].mxu0
      %v7998 = vadd.f32 0.0, %v7997
      %v7999 = vpop.f32.mrb[0].mxu0
      %v8000 = vpop.f32.mrb[0].mxu0
      %v8001 = vadd.f32 0.0, %v8000
      %v8002 = vpop.f32.mrb[0].mxu0
      %8003 = vdwg.mxu0
      %v8008 = vunpack.c.l.b16 %v7822
      %v8009 = vunpack.c.l.b16 %v7823
      %v8010 = vunpack.c.l.b16 %v7824
      %v8011 = vunpack.c.l.b16 %v7825
      %v8012 = vpack.c.b16 %v8009, %v8008
      %v8013 = vpack.c.b16 %v8011, %v8010
      %8016 = vmatprep.subr.bf16.mxu0 0
      %8017 = vmatpush1.bf16.msra.mxu0 %v8012
      %8018 = vmatprep.subr.bf16.mxu0 0
      %8019 = vmatpush1.bf16.msra.mxu0 %v8013
      %8020 = vmatprep.subr.bf16.mxu0 0
      %8021 = vmatpush1.bf16.msra.mxu0 0
      %8022 = vmatprep.subr.bf16.mxu0 0
      %8023 = vmatpush1.bf16.msra.mxu0 0
      %8024 = vmatprep.subr.bf16.mxu0 0
      %8025 = vmatpush1.bf16.msra.mxu0 0
      %8026 = vmatprep.subr.bf16.mxu0 0
      %8027 = vmatpush1.bf16.msra.mxu0 0
      %8028 = vmatprep.subr.bf16.mxu0 0
      %8029 = vmatpush1.bf16.msra.mxu0 0
      %8030 = vmatprep.subr.bf16.mxu0 0
      %8031 = vmatpush1.bf16.msra.mxu0 0
      %8032 = vmatprep.subr.bf16.mxu0 0
      %8033 = vmatpush1.bf16.msra.mxu0 0
      %8034 = vmatprep.subr.bf16.mxu0 0
      %8035 = vmatpush1.bf16.msra.mxu0 0
      %8036 = vmatprep.subr.bf16.mxu0 0
      %8037 = vmatpush1.bf16.msra.mxu0 0
      %8038 = vmatprep.subr.bf16.mxu0 0
      %8039 = vmatpush1.bf16.msra.mxu0 0
      %8040 = vmatprep.subr.bf16.mxu0 0
      %8041 = vmatpush1.bf16.msra.mxu0 0
      %8042 = vmatprep.subr.bf16.mxu0 0
      %8043 = vmatpush1.bf16.msra.mxu0 0
      %8044 = vmatprep.subr.bf16.mxu0 0
      %8045 = vmatpush1.bf16.msra.mxu0 0
      %8046 = vmatprep.subr.bf16.mxu0 0
      %8047 = vmatpush1.bf16.msra.mxu0 0
      %8048 = vmatprep.mubr.bf16.mxu0 0
      %8049 = vmatmul.mubr.bf16.gmra.mrb[0].mxu0 %v6715
      %v8050 = vpop.f32.mrb[0].mxu0
      %v8051 = vadd.f32 %v7878, %v8050
      %v8052 = vpop.f32.mrb[0].mxu0
      %v8053 = vpop.f32.mrb[0].mxu0
      %v8054 = vadd.f32 %v7881, %v8053
      %v8055 = vpop.f32.mrb[0].mxu0
      %8056 = vmatprep.mubr.bf16.mxu0 0
      %8057 = vmatmul.mubr.bf16.gmra.mrb[0].mxu0 %v6718
      %v8058 = vpop.f32.mrb[0].mxu0
      %v8059 = vadd.f32 %v7886, %v8058
      %v8060 = vpop.f32.mrb[0].mxu0
      %v8061 = vpop.f32.mrb[0].mxu0
      %v8062 = vadd.f32 %v7889, %v8061
      %v8063 = vpop.f32.mrb[0].mxu0
      %8064 = vmatprep.mubr.bf16.mxu0 0
      %8065 = vmatmul.mubr.bf16.gmra.mrb[0].mxu0 %v6721
      %v8066 = vpop.f32.mrb[0].mxu0
      %v8067 = vadd.f32 %v7894, %v8066
      %v8068 = vpop.f32.mrb[0].mxu0
      %v8069 = vpop.f32.mrb[0].mxu0
      %v8070 = vadd.f32 %v7897, %v8069
      %v8071 = vpop.f32.mrb[0].mxu0
      %8072 = vmatprep.mubr.bf16.mxu0 0
      %8073 = vmatmul.mubr.bf16.gmra.mrb[0].mxu0 %v6724
      %v8074 = vpop.f32.mrb[0].mxu0
      %v8075 = vadd.f32 %v7902, %v8074
      %v8076 = vpop.f32.mrb[0].mxu0
      %v8077 = vpop.f32.mrb[0].mxu0
      %v8078 = vadd.f32 %v7905, %v8077
      %v8079 = vpop.f32.mrb[0].mxu0
      %8080 = vmatprep.mubr.bf16.mxu0 0
      %8081 = vmatmul.mubr.bf16.gmra.mrb[0].mxu0 %v6727
      %v8082 = vpop.f32.mrb[0].mxu0
      %v8083 = vadd.f32 %v7910, %v8082
      %v8084 = vpop.f32.mrb[0].mxu0
      %v8085 = vpop.f32.mrb[0].mxu0
      %v8086 = vadd.f32 %v7913, %v8085
      %v8087 = vpop.f32.mrb[0].mxu0
      %8088 = vmatprep.mubr.bf16.mxu0 0
      %8089 = vmatmul.mubr.bf16.gmra.mrb[0].mxu0 %v6730
      %v8090 = vpop.f32.mrb[0].mxu0
      %v8091 = vadd.f32 %v7918, %v8090
      %v8092 = vpop.f32.mrb[0].mxu0
      %v8093 = vpop.f32.mrb[0].mxu0
      %v8094 = vadd.f32 %v7921, %v8093
      %v8095 = vpop.f32.mrb[0].mxu0
      %8096 = vmatprep.mubr.bf16.mxu0 0
      %8097 = vmatmul.mubr.bf16.gmra.mrb[0].mxu0 %v6733
      %v8098 = vpop.f32.mrb[0].mxu0
      %v8099 = vadd.f32 %v7926, %v8098
      %v8100 = vpop.f32.mrb[0].mxu0
      %v8101 = vpop.f32.mrb[0].mxu0
      %v8102 = vadd.f32 %v7929, %v8101
      %v8103 = vpop.f32.mrb[0].mxu0
      %8104 = vmatprep.mubr.bf16.mxu0 0
      %8105 = vmatmul.mubr.bf16.gmra.mrb[0].mxu0 %v6736
      %v8106 = vpop.f32.mrb[0].mxu0
      %v8107 = vadd.f32 %v7934, %v8106
      %v8108 = vpop.f32.mrb[0].mxu0
      %v8109 = vpop.f32.mrb[0].mxu0
      %v8110 = vadd.f32 %v7937, %v8109
      %v8111 = vpop.f32.mrb[0].mxu0
      %8112 = vmatprep.mubr.bf16.mxu0 0
      %8113 = vmatmul.mubr.bf16.gmra.mrb[0].mxu0 %v6739
      %v8114 = vpop.f32.mrb[0].mxu0
      %v8115 = vadd.f32 %v7942, %v8114
      %v8116 = vpop.f32.mrb[0].mxu0
      %v8117 = vpop.f32.mrb[0].mxu0
      %v8118 = vadd.f32 %v7945, %v8117
      %v8119 = vpop.f32.mrb[0].mxu0
      %8120 = vmatprep.mubr.bf16.mxu0 0
      %8121 = vmatmul.mubr.bf16.gmra.mrb[0].mxu0 %v6742
      %v8122 = vpop.f32.mrb[0].mxu0
      %v8123 = vadd.f32 %v7950, %v8122
      %v8124 = vpop.f32.mrb[0].mxu0
      %v8125 = vpop.f32.mrb[0].mxu0
      %v8126 = vadd.f32 %v7953, %v8125
      %v8127 = vpop.f32.mrb[0].mxu0
      %8128 = vmatprep.mubr.bf16.mxu0 0
      %8129 = vmatmul.mubr.bf16.gmra.mrb[0].mxu0 %v6745
      %v8130 = vpop.f32.mrb[0].mxu0
      %v8131 = vadd.f32 %v7958, %v8130
      %v8132 = vpop.f32.mrb[0].mxu0
      %v8133 = vpop.f32.mrb[0].mxu0
      %v8134 = vadd.f32 %v7961, %v8133
      %v8135 = vpop.f32.mrb[0].mxu0
      %8136 = vmatprep.mubr.bf16.mxu0 0
      %8137 = vmatmul.mubr.bf16.gmra.mrb[0].mxu0 %v6748
      %v8138 = vpop.f32.mrb[0].mxu0
      %v8139 = vadd.f32 %v7966, %v8138
      %v8140 = vpop.f32.mrb[0].mxu0
      %v8141 = vpop.f32.mrb[0].mxu0
      %v8142 = vadd.f32 %v7969, %v8141
      %v8143 = vpop.f32.mrb[0].mxu0
      %8144 = vmatprep.mubr.bf16.mxu0 0
      %8145 = vmatmul.mubr.bf16.gmra.mrb[0].mxu0 %v6751
      %v8146 = vpop.f32.mrb[0].mxu0
      %v8147 = vadd.f32 %v7974, %v8146
      %v8148 = vpop.f32.mrb[0].mxu0
      %v8149 = vpop.f32.mrb[0].mxu0
      %v8150 = vadd.f32 %v7977, %v8149
      %v8151 = vpop.f32.mrb[0].mxu0
      %8152 = vmatprep.mubr.bf16.mxu0 0
      %8153 = vmatmul.mubr.bf16.gmra.mrb[0].mxu0 %v6754
      %v8154 = vpop.f32.mrb[0].mxu0
      %v8155 = vadd.f32 %v7982, %v8154
      %v8156 = vpop.f32.mrb[0].mxu0
      %v8157 = vpop.f32.mrb[0].mxu0
      %v8158 = vadd.f32 %v7985, %v8157
      %v8159 = vpop.f32.mrb[0].mxu0
      %8160 = vmatprep.mubr.bf16.mxu0 0
      %8161 = vmatmul.mubr.bf16.gmra.mrb[0].mxu0 %v6709
      %v8162 = vpop.f32.mrb[0].mxu0
      %v8163 = vadd.f32 %v7990, %v8162
      %v8164 = vpop.f32.mrb[0].mxu0
      %v8165 = vpop.f32.mrb[0].mxu0
      %v8166 = vadd.f32 %v7993, %v8165
      %v8167 = vpop.f32.mrb[0].mxu0
      %8168 = vmatprep.mubr.bf16.mxu0 0
      %8169 = vmatmul.mubr.bf16.gmra.mrb[0].mxu0 %v6712
      %v8170 = vpop.f32.mrb[0].mxu0
      %v8171 = vadd.f32 %v7998, %v8170
      %v8172 = vpop.f32.mrb[0].mxu0
      %v8173 = vpop.f32.mrb[0].mxu0
      %v8174 = vadd.f32 %v8001, %v8173
      %v8175 = vpop.f32.mrb[0].mxu0
      %8176 = vdwg.mxu0
      %s8177 = scalar_lea.vmem %s288, 704
      %v8178 = vld [vmem:[%s8177] sm:$0xf]
      %v8179 = vld [vmem:[%s8177 + $0x4] sm:$0xf]
      %v8180 = vld [vmem:[%s8177 + $0x8] sm:$0xf]
      %v8181 = vld [vmem:[%s8177 + $0xc] sm:$0xf]
      %v8186 = vunpack.c.l.b16 %v8178
      %v8187 = vunpack.c.l.b16 %v8179
      %v8188 = vunpack.c.l.b16 %v8180
      %v8189 = vunpack.c.l.b16 %v8181
      %v8190 = vpack.c.b16 %v8187, %v8186
      %v8191 = vpack.c.b16 %v8189, %v8188
      %8194 = vmatprep.subr.bf16.mxu0 0
      %8195 = vmatpush1.bf16.msra.mxu0 %v8190
      %8196 = vmatprep.subr.bf16.mxu0 0
      %8197 = vmatpush1.bf16.msra.mxu0 %v8191
      %8198 = vmatprep.subr.bf16.mxu0 0
      %8199 = vmatpush1.bf16.msra.mxu0 0
      %8200 = vmatprep.subr.bf16.mxu0 0
      %8201 = vmatpush1.bf16.msra.mxu0 0
      %8202 = vmatprep.subr.bf16.mxu0 0
      %8203 = vmatpush1.bf16.msra.mxu0 0
      %8204 = vmatprep.subr.bf16.mxu0 0
      %8205 = vmatpush1.bf16.msra.mxu0 0
      %8206 = vmatprep.subr.bf16.mxu0 0
      %8207 = vmatpush1.bf16.msra.mxu0 0
      %8208 = vmatprep.subr.bf16.mxu0 0
      %8209 = vmatpush1.bf16.msra.mxu0 0
      %8210 = vmatprep.subr.bf16.mxu0 0
      %8211 = vmatpush1.bf16.msra.mxu0 0
      %8212 = vmatprep.subr.bf16.mxu0 0
      %8213 = vmatpush1.bf16.msra.mxu0 0
      %8214 = vmatprep.subr.bf16.mxu0 0
      %8215 = vmatpush1.bf16.msra.mxu0 0
      %8216 = vmatprep.subr.bf16.mxu0 0
      %8217 = vmatpush1.bf16.msra.mxu0 0
      %8218 = vmatprep.subr.bf16.mxu0 0
      %8219 = vmatpush1.bf16.msra.mxu0 0
      %8220 = vmatprep.subr.bf16.mxu0 0
      %8221 = vmatpush1.bf16.msra.mxu0 0
      %8222 = vmatprep.subr.bf16.mxu0 0
      %8223 = vmatpush1.bf16.msra.mxu0 0
      %8224 = vmatprep.subr.bf16.mxu0 0
      %8225 = vmatpush1.bf16.msra.mxu0 0
      %8226 = vmatprep.mubr.bf16.mxu0 0
      %8227 = vmatmul.mubr.bf16.gmra.mrb[0].mxu0 %v6957
      %v8228 = vpop.f32.mrb[0].mxu0
      %v8229 = vadd.f32 0.0, %v8228
      %v8230 = vpop.f32.mrb[0].mxu0
      %v8231 = vpop.f32.mrb[0].mxu0
      %v8232 = vadd.f32 0.0, %v8231
      %v8233 = vpop.f32.mrb[0].mxu0
      %8234 = vmatprep.mubr.bf16.mxu0 0
      %8235 = vmatmul.mubr.bf16.gmra.mrb[0].mxu0 %v6960
      %v8236 = vpop.f32.mrb[0].mxu0
      %v8237 = vadd.f32 0.0, %v8236
      %v8238 = vpop.f32.mrb[0].mxu0
      %v8239 = vpop.f32.mrb[0].mxu0
      %v8240 = vadd.f32 0.0, %v8239
      %v8241 = vpop.f32.mrb[0].mxu0
      %8242 = vmatprep.mubr.bf16.mxu0 0
      %8243 = vmatmul.mubr.bf16.gmra.mrb[0].mxu0 %v6963
      %v8244 = vpop.f32.mrb[0].mxu0
      %v8245 = vadd.f32 0.0, %v8244
      %v8246 = vpop.f32.mrb[0].mxu0
      %v8247 = vpop.f32.mrb[0].mxu0
      %v8248 = vadd.f32 0.0, %v8247
      %v8249 = vpop.f32.mrb[0].mxu0
      %8250 = vmatprep.mubr.bf16.mxu0 0
      %8251 = vmatmul.mubr.bf16.gmra.mrb[0].mxu0 %v6966
      %v8252 = vpop.f32.mrb[0].mxu0
      %v8253 = vadd.f32 0.0, %v8252
      %v8254 = vpop.f32.mrb[0].mxu0
      %v8255 = vpop.f32.mrb[0].mxu0
      %v8256 = vadd.f32 0.0, %v8255
      %v8257 = vpop.f32.mrb[0].mxu0
      %8258 = vmatprep.mubr.bf16.mxu0 0
      %8259 = vmatmul.mubr.bf16.gmra.mrb[0].mxu0 %v6969
      %v8260 = vpop.f32.mrb[0].mxu0
      %v8261 = vadd.f32 0.0, %v8260
      %v8262 = vpop.f32.mrb[0].mxu0
      %v8263 = vpop.f32.mrb[0].mxu0
      %v8264 = vadd.f32 0.0, %v8263
      %v8265 = vpop.f32.mrb[0].mxu0
      %8266 = vmatprep.mubr.bf16.mxu0 0
      %8267 = vmatmul.mubr.bf16.gmra.mrb[0].mxu0 %v6972
      %v8268 = vpop.f32.mrb[0].mxu0
      %v8269 = vadd.f32 0.0, %v8268
      %v8270 = vpop.f32.mrb[0].mxu0
      %v8271 = vpop.f32.mrb[0].mxu0
      %v8272 = vadd.f32 0.0, %v8271
      %v8273 = vpop.f32.mrb[0].mxu0
      %8274 = vmatprep.mubr.bf16.mxu0 0
      %8275 = vmatmul.mubr.bf16.gmra.mrb[0].mxu0 %v6975
      %v8276 = vpop.f32.mrb[0].mxu0
      %v8277 = vadd.f32 0.0, %v8276
      %v8278 = vpop.f32.mrb[0].mxu0
      %v8279 = vpop.f32.mrb[0].mxu0
      %v8280 = vadd.f32 0.0, %v8279
      %v8281 = vpop.f32.mrb[0].mxu0
      %8282 = vmatprep.mubr.bf16.mxu0 0
      %8283 = vmatmul.mubr.bf16.gmra.mrb[0].mxu0 %v6978
      %v8284 = vpop.f32.mrb[0].mxu0
      %v8285 = vadd.f32 0.0, %v8284
      %v8286 = vpop.f32.mrb[0].mxu0
      %v8287 = vpop.f32.mrb[0].mxu0
      %v8288 = vadd.f32 0.0, %v8287
      %v8289 = vpop.f32.mrb[0].mxu0
      %8290 = vmatprep.mubr.bf16.mxu0 0
      %8291 = vmatmul.mubr.bf16.gmra.mrb[0].mxu0 %v6981
      %v8292 = vpop.f32.mrb[0].mxu0
      %v8293 = vadd.f32 0.0, %v8292
      %v8294 = vpop.f32.mrb[0].mxu0
      %v8295 = vpop.f32.mrb[0].mxu0
      %v8296 = vadd.f32 0.0, %v8295
      %v8297 = vpop.f32.mrb[0].mxu0
      %8298 = vmatprep.mubr.bf16.mxu0 0
      %8299 = vmatmul.mubr.bf16.gmra.mrb[0].mxu0 %v6984
      %v8300 = vpop.f32.mrb[0].mxu0
      %v8301 = vadd.f32 0.0, %v8300
      %v8302 = vpop.f32.mrb[0].mxu0
      %v8303 = vpop.f32.mrb[0].mxu0
      %v8304 = vadd.f32 0.0, %v8303
      %v8305 = vpop.f32.mrb[0].mxu0
      %8306 = vmatprep.mubr.bf16.mxu0 0
      %8307 = vmatmul.mubr.bf16.gmra.mrb[0].mxu0 %v6987
      %v8308 = vpop.f32.mrb[0].mxu0
      %v8309 = vadd.f32 0.0, %v8308
      %v8310 = vpop.f32.mrb[0].mxu0
      %v8311 = vpop.f32.mrb[0].mxu0
      %v8312 = vadd.f32 0.0, %v8311
      %v8313 = vpop.f32.mrb[0].mxu0
      %8314 = vmatprep.mubr.bf16.mxu0 0
      %8315 = vmatmul.mubr.bf16.gmra.mrb[0].mxu0 %v6990
      %v8316 = vpop.f32.mrb[0].mxu0
      %v8317 = vadd.f32 0.0, %v8316
      %v8318 = vpop.f32.mrb[0].mxu0
      %v8319 = vpop.f32.mrb[0].mxu0
      %v8320 = vadd.f32 0.0, %v8319
      %v8321 = vpop.f32.mrb[0].mxu0
      %8322 = vmatprep.mubr.bf16.mxu0 0
      %8323 = vmatmul.mubr.bf16.gmra.mrb[0].mxu0 %v6993
      %v8324 = vpop.f32.mrb[0].mxu0
      %v8325 = vadd.f32 0.0, %v8324
      %v8326 = vpop.f32.mrb[0].mxu0
      %v8327 = vpop.f32.mrb[0].mxu0
      %v8328 = vadd.f32 0.0, %v8327
      %v8329 = vpop.f32.mrb[0].mxu0
      %8330 = vmatprep.mubr.bf16.mxu0 0
      %8331 = vmatmul.mubr.bf16.gmra.mrb[0].mxu0 %v6996
      %v8332 = vpop.f32.mrb[0].mxu0
      %v8333 = vadd.f32 0.0, %v8332
      %v8334 = vpop.f32.mrb[0].mxu0
      %v8335 = vpop.f32.mrb[0].mxu0
      %v8336 = vadd.f32 0.0, %v8335
      %v8337 = vpop.f32.mrb[0].mxu0
      %8338 = vmatprep.mubr.bf16.mxu0 0
      %8339 = vmatmul.mubr.bf16.gmra.mrb[0].mxu0 %v6951
      %v8340 = vpop.f32.mrb[0].mxu0
      %v8341 = vadd.f32 0.0, %v8340
      %v8342 = vpop.f32.mrb[0].mxu0
      %v8343 = vpop.f32.mrb[0].mxu0
      %v8344 = vadd.f32 0.0, %v8343
      %v8345 = vpop.f32.mrb[0].mxu0
      %8346 = vmatprep.mubr.bf16.mxu0 0
      %8347 = vmatmul.mubr.bf16.gmra.mrb[0].mxu0 %v6954
      %v8348 = vpop.f32.mrb[0].mxu0
      %v8349 = vadd.f32 0.0, %v8348
      %v8350 = vpop.f32.mrb[0].mxu0
      %v8351 = vpop.f32.mrb[0].mxu0
      %v8352 = vadd.f32 0.0, %v8351
      %v8353 = vpop.f32.mrb[0].mxu0
      %8354 = vdwg.mxu0
      %v8355 = vadd.f32 %v8051, %v8229
      %v8356 = vadd.f32 %v8054, %v8232
      %v8357 = vadd.f32 %v8059, %v8237
      %v8358 = vadd.f32 %v8062, %v8240
      %v8359 = vadd.f32 %v8067, %v8245
      %v8360 = vadd.f32 %v8070, %v8248
      %v8361 = vadd.f32 %v8075, %v8253
      %v8362 = vadd.f32 %v8078, %v8256
      %v8363 = vadd.f32 %v8083, %v8261
      %v8364 = vadd.f32 %v8086, %v8264
      %v8365 = vadd.f32 %v8091, %v8269
      %v8366 = vadd.f32 %v8094, %v8272
      %v8367 = vadd.f32 %v8099, %v8277
      %v8368 = vadd.f32 %v8102, %v8280
      %v8369 = vadd.f32 %v8107, %v8285
      %v8370 = vadd.f32 %v8110, %v8288
      %v8371 = vadd.f32 %v8115, %v8293
      %v8372 = vadd.f32 %v8118, %v8296
      %v8373 = vadd.f32 %v8123, %v8301
      %v8374 = vadd.f32 %v8126, %v8304
      %v8375 = vadd.f32 %v8131, %v8309
      %v8376 = vadd.f32 %v8134, %v8312
      %v8377 = vadd.f32 %v8139, %v8317
      %v8378 = vadd.f32 %v8142, %v8320
      %v8379 = vadd.f32 %v8147, %v8325
      %v8380 = vadd.f32 %v8150, %v8328
      %v8381 = vadd.f32 %v8155, %v8333
      %v8382 = vadd.f32 %v8158, %v8336
      %v8383 = vadd.f32 %v8163, %v8341
      %v8384 = vadd.f32 %v8166, %v8344
      %v8385 = vadd.f32 %v8171, %v8349
      %v8386 = vadd.f32 %v8174, %v8352
      %v8387 = vsel %vm593, %v8355, 0.0
      %v8388 = vsel %vm594, %v8356, 0.0
      %v8389 = vsel %vm595, %v8357, 0.0
      %v8390 = vsel %vm596, %v8358, 0.0
      %v8391 = vsel %vm597, %v8359, 0.0
      %v8392 = vsel %vm598, %v8360, 0.0
      %v8393 = vsel %vm599, %v8361, 0.0
      %v8394 = vsel %vm600, %v8362, 0.0
      %v8395 = vsel %vm601, %v8363, 0.0
      %v8396 = vsel %vm602, %v8364, 0.0
      %v8397 = vsel %vm603, %v8365, 0.0
      %v8398 = vsel %vm604, %v8366, 0.0
      %v8399 = vsel %vm605, %v8367, 0.0
      %v8400 = vsel %vm606, %v8368, 0.0
      %v8401 = vsel %vm607, %v8369, 0.0
      %v8402 = vsel %vm608, %v8370, 0.0
      %v8403 = vsel %vm609, %v8371, 0.0
      %v8404 = vsel %vm610, %v8372, 0.0
      %v8405 = vsel %vm611, %v8373, 0.0
      %v8406 = vsel %vm612, %v8374, 0.0
      %v8407 = vsel %vm613, %v8375, 0.0
      %v8408 = vsel %vm614, %v8376, 0.0
      %v8409 = vsel %vm615, %v8377, 0.0
      %v8410 = vsel %vm616, %v8378, 0.0
      %v8411 = vsel %vm617, %v8379, 0.0
      %v8412 = vsel %vm618, %v8380, 0.0
      %v8413 = vsel %vm619, %v8381, 0.0
      %v8414 = vsel %vm620, %v8382, 0.0
      %v8415 = vsel %vm621, %v8383, 0.0
      %v8416 = vsel %vm622, %v8384, 0.0
      %v8417 = vsel %vm623, %v8385, 0.0
      %v8418 = vsel %vm624, %v8386, 0.0
      %v8419 = vadd.f32 %v7789, %v8387
      %v8420 = vadd.f32 %v7790, %v8388
      %v8421 = vadd.f32 %v7791, %v8389
      %v8422 = vadd.f32 %v7792, %v8390
      %v8423 = vadd.f32 %v7793, %v8391
      %v8424 = vadd.f32 %v7794, %v8392
      %v8425 = vadd.f32 %v7795, %v8393
      %v8426 = vadd.f32 %v7796, %v8394
      %v8427 = vadd.f32 %v7797, %v8395
      %v8428 = vadd.f32 %v7798, %v8396
      %v8429 = vadd.f32 %v7799, %v8397
      %v8430 = vadd.f32 %v7800, %v8398
      %v8431 = vadd.f32 %v7801, %v8399
      %v8432 = vadd.f32 %v7802, %v8400
      %v8433 = vadd.f32 %v7803, %v8401
      %v8434 = vadd.f32 %v7804, %v8402
      %v8435 = vadd.f32 %v7805, %v8403
      %v8436 = vadd.f32 %v7806, %v8404
      %v8437 = vadd.f32 %v7807, %v8405
      %v8438 = vadd.f32 %v7808, %v8406
      %v8439 = vadd.f32 %v7809, %v8407
      %v8440 = vadd.f32 %v7810, %v8408
      %v8441 = vadd.f32 %v7811, %v8409
      %v8442 = vadd.f32 %v7812, %v8410
      %v8443 = vadd.f32 %v7813, %v8411
      %v8444 = vadd.f32 %v7814, %v8412
      %v8445 = vadd.f32 %v7815, %v8413
      %v8446 = vadd.f32 %v7816, %v8414
      %v8447 = vadd.f32 %v7817, %v8415
      %v8448 = vadd.f32 %v7818, %v8416
      %v8449 = vadd.f32 %v7819, %v8417
      %v8450 = vadd.f32 %v7820, %v8418
      %s8451 = scalar_lea.vmem %s5, 4
      %v8452 = vld [vmem:[%s8451] sm:$0x1]
      %v8454 = vlaneseq
      %v8455 = vshrl.u32 %v8454, 7
      %v8456 = vsub.s32 0, %v8455
      %v8457 = vrot.slane %v8452, %v8456
      %v8459 = vadd.f32 %v8419, %v8457
      %v8460 = vadd.f32 %v8420, %v8457
      %v8461 = vadd.f32 %v8421, %v8457
      %v8462 = vadd.f32 %v8422, %v8457
      %v8463 = vadd.f32 %v8423, %v8457
      %v8464 = vadd.f32 %v8424, %v8457
      %v8465 = vadd.f32 %v8425, %v8457
      %v8466 = vadd.f32 %v8426, %v8457
      %v8467 = vadd.f32 %v8427, %v8457
      %v8468 = vadd.f32 %v8428, %v8457
      %v8469 = vadd.f32 %v8429, %v8457
      %v8470 = vadd.f32 %v8430, %v8457
      %v8471 = vadd.f32 %v8431, %v8457
      %v8472 = vadd.f32 %v8432, %v8457
      %v8473 = vadd.f32 %v8433, %v8457
      %v8474 = vadd.f32 %v8434, %v8457
      %v8475 = vadd.f32 %v8435, %v8457
      %v8476 = vadd.f32 %v8436, %v8457
      %v8477 = vadd.f32 %v8437, %v8457
      %v8478 = vadd.f32 %v8438, %v8457
      %v8479 = vadd.f32 %v8439, %v8457
      %v8480 = vadd.f32 %v8440, %v8457
      %v8481 = vadd.f32 %v8441, %v8457
      %v8482 = vadd.f32 %v8442, %v8457
      %v8483 = vadd.f32 %v8443, %v8457
      %v8484 = vadd.f32 %v8444, %v8457
      %v8485 = vadd.f32 %v8445, %v8457
      %v8486 = vadd.f32 %v8446, %v8457
      %v8487 = vadd.f32 %v8447, %v8457
      %v8488 = vadd.f32 %v8448, %v8457
      %v8489 = vadd.f32 %v8449, %v8457
      %v8490 = vadd.f32 %v8450, %v8457
      %v8491 = vmul.f32 %v8459, 0.2
      %v8492 = vmul.f32 %v8460, 0.2
      %v8493 = vmul.f32 %v8461, 0.2
      %v8494 = vmul.f32 %v8462, 0.2
      %v8495 = vmul.f32 %v8463, 0.2
      %v8496 = vmul.f32 %v8464, 0.2
      %v8497 = vmul.f32 %v8465, 0.2
      %v8498 = vmul.f32 %v8466, 0.2
      %v8499 = vmul.f32 %v8467, 0.2
      %v8500 = vmul.f32 %v8468, 0.2
      %v8501 = vmul.f32 %v8469, 0.2
      %v8502 = vmul.f32 %v8470, 0.2
      %v8503 = vmul.f32 %v8471, 0.2
      %v8504 = vmul.f32 %v8472, 0.2
      %v8505 = vmul.f32 %v8473, 0.2
      %v8506 = vmul.f32 %v8474, 0.2
      %v8507 = vmul.f32 %v8475, 0.2
      %v8508 = vmul.f32 %v8476, 0.2
      %v8509 = vmul.f32 %v8477, 0.2
      %v8510 = vmul.f32 %v8478, 0.2
      %v8511 = vmul.f32 %v8479, 0.2
      %v8512 = vmul.f32 %v8480, 0.2
      %v8513 = vmul.f32 %v8481, 0.2
      %v8514 = vmul.f32 %v8482, 0.2
      %v8515 = vmul.f32 %v8483, 0.2
      %v8516 = vmul.f32 %v8484, 0.2
      %v8517 = vmul.f32 %v8485, 0.2
      %v8518 = vmul.f32 %v8486, 0.2
      %v8519 = vmul.f32 %v8487, 0.2
      %v8520 = vmul.f32 %v8488, 0.2
      %v8521 = vmul.f32 %v8489, 0.2
      %v8522 = vmul.f32 %v8490, 0.2
      %v8523 = vmax.f32 %v8459, %v8491
      %v8524 = vmax.f32 %v8460, %v8492
      %v8525 = vmax.f32 %v8461, %v8493
      %v8526 = vmax.f32 %v8462, %v8494
      %v8527 = vmax.f32 %v8463, %v8495
      %v8528 = vmax.f32 %v8464, %v8496
      %v8529 = vmax.f32 %v8465, %v8497
      %v8530 = vmax.f32 %v8466, %v8498
      %v8531 = vmax.f32 %v8467, %v8499
      %v8532 = vmax.f32 %v8468, %v8500
      %v8533 = vmax.f32 %v8469, %v8501
      %v8534 = vmax.f32 %v8470, %v8502
      %v8535 = vmax.f32 %v8471, %v8503
      %v8536 = vmax.f32 %v8472, %v8504
      %v8537 = vmax.f32 %v8473, %v8505
      %v8538 = vmax.f32 %v8474, %v8506
      %v8539 = vmax.f32 %v8475, %v8507
      %v8540 = vmax.f32 %v8476, %v8508
      %v8541 = vmax.f32 %v8477, %v8509
      %v8542 = vmax.f32 %v8478, %v8510
      %v8543 = vmax.f32 %v8479, %v8511
      %v8544 = vmax.f32 %v8480, %v8512
      %v8545 = vmax.f32 %v8481, %v8513
      %v8546 = vmax.f32 %v8482, %v8514
      %v8547 = vmax.f32 %v8483, %v8515
      %v8548 = vmax.f32 %v8484, %v8516
      %v8549 = vmax.f32 %v8485, %v8517
      %v8550 = vmax.f32 %v8486, %v8518
      %v8551 = vmax.f32 %v8487, %v8519
      %v8552 = vmax.f32 %v8488, %v8520
      %v8553 = vmax.f32 %v8489, %v8521
      %v8554 = vmax.f32 %v8490, %v8522
      %v8555 = vmax.f32 %v8523, -362.03867
      %v8556 = vmax.f32 %v8524, -362.03867
      %v8557 = vmax.f32 %v8525, -362.03867
      %v8558 = vmax.f32 %v8526, -362.03867
      %v8559 = vmax.f32 %v8527, -362.03867
      %v8560 = vmax.f32 %v8528, -362.03867
      %v8561 = vmax.f32 %v8529, -362.03867
      %v8562 = vmax.f32 %v8530, -362.03867
      %v8563 = vmax.f32 %v8531, -362.03867
      %v8564 = vmax.f32 %v8532, -362.03867
      %v8565 = vmax.f32 %v8533, -362.03867
      %v8566 = vmax.f32 %v8534, -362.03867
      %v8567 = vmax.f32 %v8535, -362.03867
      %v8568 = vmax.f32 %v8536, -362.03867
      %v8569 = vmax.f32 %v8537, -362.03867
      %v8570 = vmax.f32 %v8538, -362.03867
      %v8571 = vmax.f32 %v8539, -362.03867
      %v8572 = vmax.f32 %v8540, -362.03867
      %v8573 = vmax.f32 %v8541, -362.03867
      %v8574 = vmax.f32 %v8542, -362.03867
      %v8575 = vmax.f32 %v8543, -362.03867
      %v8576 = vmax.f32 %v8544, -362.03867
      %v8577 = vmax.f32 %v8545, -362.03867
      %v8578 = vmax.f32 %v8546, -362.03867
      %v8579 = vmax.f32 %v8547, -362.03867
      %v8580 = vmax.f32 %v8548, -362.03867
      %v8581 = vmax.f32 %v8549, -362.03867
      %v8582 = vmax.f32 %v8550, -362.03867
      %v8583 = vmax.f32 %v8551, -362.03867
      %v8584 = vmax.f32 %v8552, -362.03867
      %v8585 = vmax.f32 %v8553, -362.03867
      %v8586 = vmax.f32 %v8554, -362.03867
      %v8587 = vmin.f32 %v8555, 362.03867
      %v8588 = vmin.f32 %v8556, 362.03867
      %v8589 = vmin.f32 %v8557, 362.03867
      %v8590 = vmin.f32 %v8558, 362.03867
      %v8591 = vmin.f32 %v8559, 362.03867
      %v8592 = vmin.f32 %v8560, 362.03867
      %v8593 = vmin.f32 %v8561, 362.03867
      %v8594 = vmin.f32 %v8562, 362.03867
      %v8595 = vmin.f32 %v8563, 362.03867
      %v8596 = vmin.f32 %v8564, 362.03867
      %v8597 = vmin.f32 %v8565, 362.03867
      %v8598 = vmin.f32 %v8566, 362.03867
      %v8599 = vmin.f32 %v8567, 362.03867
      %v8600 = vmin.f32 %v8568, 362.03867
      %v8601 = vmin.f32 %v8569, 362.03867
      %v8602 = vmin.f32 %v8570, 362.03867
      %v8603 = vmin.f32 %v8571, 362.03867
      %v8604 = vmin.f32 %v8572, 362.03867
      %v8605 = vmin.f32 %v8573, 362.03867
      %v8606 = vmin.f32 %v8574, 362.03867
      %v8607 = vmin.f32 %v8575, 362.03867
      %v8608 = vmin.f32 %v8576, 362.03867
      %v8609 = vmin.f32 %v8577, 362.03867
      %v8610 = vmin.f32 %v8578, 362.03867
      %v8611 = vmin.f32 %v8579, 362.03867
      %v8612 = vmin.f32 %v8580, 362.03867
      %v8613 = vmin.f32 %v8581, 362.03867
      %v8614 = vmin.f32 %v8582, 362.03867
      %v8615 = vmin.f32 %v8583, 362.03867
      %v8616 = vmin.f32 %v8584, 362.03867
      %v8617 = vmin.f32 %v8585, 362.03867
      %v8618 = vmin.f32 %v8586, 362.03867
      %v8619 = vpack.c.bf16 %v8588, %v8587
      %v8620 = vpack.c.bf16 %v8590, %v8589
      %v8621 = vpack.c.bf16 %v8592, %v8591
      %v8622 = vpack.c.bf16 %v8594, %v8593
      %v8623 = vpack.c.bf16 %v8596, %v8595
      %v8624 = vpack.c.bf16 %v8598, %v8597
      %v8625 = vpack.c.bf16 %v8600, %v8599
      %v8626 = vpack.c.bf16 %v8602, %v8601
      %v8627 = vpack.c.bf16 %v8604, %v8603
      %v8628 = vpack.c.bf16 %v8606, %v8605
      %v8629 = vpack.c.bf16 %v8608, %v8607
      %v8630 = vpack.c.bf16 %v8610, %v8609
      %v8631 = vpack.c.bf16 %v8612, %v8611
      %v8632 = vpack.c.bf16 %v8614, %v8613
      %v8633 = vpack.c.bf16 %v8616, %v8615
      %v8634 = vpack.c.bf16 %v8618, %v8617
      %v8635 = vpack.c.bf16 %v3546, %v3543
      %v8636 = vpack.c.bf16 %v3554, %v3551
      %v8637 = vpack.c.bf16 %v3562, %v3559
      %v8638 = vpack.c.bf16 %v3570, %v3567
      %s8639 = scalar_lea.vmem %s293, 32
      %v8640 = vld [vmem:[%s8639] sm:$0xf]
      %v8641 = vld [vmem:[%s8639 + $0x4] sm:$0xf]
      %v8642 = vld [vmem:[%s8639 + $0x8] sm:$0xf]
      %v8643 = vld [vmem:[%s8639 + $0xc] sm:$0xf]
      %s8644 = scalar_lea.vmem %s6, 2
      %v8645 = vld [vmem:[%s8644] sm:$0x1]
      %v8647 = vlaneseq
      %v8648 = vshrl.u32 %v8647, 7
      %v8649 = vsub.s32 0, %v8648
      %v8650 = vrot.slane %v8645, %v8649
      %v8656 = vunpack.c.l.b16 %v8640
      %v8657 = vunpack.c.l.b16 %v8641
      %v8658 = vunpack.c.l.b16 %v8642
      %v8659 = vunpack.c.l.b16 %v8643
      %v8660 = vpack.c.b16 %v8657, %v8656
      %v8661 = vpack.c.b16 %v8659, %v8658
      %v8665 = vsel %vm673, %v8619, 0
      %v8668 = vsel %vm673, %v8620, 0
      %v8671 = vsel %vm673, %v8621, 0
      %v8674 = vsel %vm673, %v8622, 0
      %v8677 = vsel %vm673, %v8623, 0
      %v8680 = vsel %vm673, %v8624, 0
      %v8683 = vsel %vm673, %v8625, 0
      %v8686 = vsel %vm673, %v8626, 0
      %v8689 = vsel %vm673, %v8627, 0
      %v8692 = vsel %vm673, %v8628, 0
      %v8695 = vsel %vm673, %v8629, 0
      %v8698 = vsel %vm673, %v8630, 0
      %v8701 = vsel %vm673, %v8631, 0
      %v8704 = vsel %vm673, %v8632, 0
      %v8707 = vsel %vm673, %v8633, 0
      %v8710 = vsel %vm673, %v8634, 0
      %8712 = vmatprep.subr.bf16.mxu0 0
      %8713 = vmatpush1.bf16.msra.mxu0 %v8660
      %8714 = vmatprep.subr.bf16.mxu0 0
      %8715 = vmatpush1.bf16.msra.mxu0 %v8661
      %8716 = vmatprep.subr.bf16.mxu0 0
      %8717 = vmatpush1.bf16.msra.mxu0 0
      %8718 = vmatprep.subr.bf16.mxu0 0
      %8719 = vmatpush1.bf16.msra.mxu0 0
      %8720 = vmatprep.subr.bf16.mxu0 0
      %8721 = vmatpush1.bf16.msra.mxu0 0
      %8722 = vmatprep.subr.bf16.mxu0 0
      %8723 = vmatpush1.bf16.msra.mxu0 0
      %8724 = vmatprep.subr.bf16.mxu0 0
      %8725 = vmatpush1.bf16.msra.mxu0 0
      %8726 = vmatprep.subr.bf16.mxu0 0
      %8727 = vmatpush1.bf16.msra.mxu0 0
      %8728 = vmatprep.subr.bf16.mxu0 0
      %8729 = vmatpush1.bf16.msra.mxu0 0
      %8730 = vmatprep.subr.bf16.mxu0 0
      %8731 = vmatpush1.bf16.msra.mxu0 0
      %8732 = vmatprep.subr.bf16.mxu0 0
      %8733 = vmatpush1.bf16.msra.mxu0 0
      %8734 = vmatprep.subr.bf16.mxu0 0
      %8735 = vmatpush1.bf16.msra.mxu0 0
      %8736 = vmatprep.subr.bf16.mxu0 0
      %8737 = vmatpush1.bf16.msra.mxu0 0
      %8738 = vmatprep.subr.bf16.mxu0 0
      %8739 = vmatpush1.bf16.msra.mxu0 0
      %8740 = vmatprep.subr.bf16.mxu0 0
      %8741 = vmatpush1.bf16.msra.mxu0 0
      %8742 = vmatprep.subr.bf16.mxu0 0
      %8743 = vmatpush1.bf16.msra.mxu0 0
      %8744 = vmatprep.mubr.bf16.mxu0 0
      %8745 = vmatmul.mubr.bf16.gmra.mrb[0].mxu0 %v8665
      %v8746 = vpop.f32.mrb[0].mxu0
      %v8747 = vadd.f32 %v8650, %v8746
      %v8748 = vpop.f32.mrb[0].mxu0
      %v8749 = vpop.f32.mrb[0].mxu0
      %v8750 = vadd.f32 %v8650, %v8749
      %v8751 = vpop.f32.mrb[0].mxu0
      %8752 = vmatprep.mubr.bf16.mxu0 0
      %8753 = vmatmul.mubr.bf16.gmra.mrb[0].mxu0 %v8668
      %v8754 = vpop.f32.mrb[0].mxu0
      %v8755 = vadd.f32 %v8650, %v8754
      %v8756 = vpop.f32.mrb[0].mxu0
      %v8757 = vpop.f32.mrb[0].mxu0
      %v8758 = vadd.f32 %v8650, %v8757
      %v8759 = vpop.f32.mrb[0].mxu0
      %8760 = vmatprep.mubr.bf16.mxu0 0
      %8761 = vmatmul.mubr.bf16.gmra.mrb[0].mxu0 %v8671
      %v8762 = vpop.f32.mrb[0].mxu0
      %v8763 = vadd.f32 %v8650, %v8762
      %v8764 = vpop.f32.mrb[0].mxu0
      %v8765 = vpop.f32.mrb[0].mxu0
      %v8766 = vadd.f32 %v8650, %v8765
      %v8767 = vpop.f32.mrb[0].mxu0
      %8768 = vmatprep.mubr.bf16.mxu0 0
      %8769 = vmatmul.mubr.bf16.gmra.mrb[0].mxu0 %v8674
      %v8770 = vpop.f32.mrb[0].mxu0
      %v8771 = vadd.f32 %v8650, %v8770
      %v8772 = vpop.f32.mrb[0].mxu0
      %v8773 = vpop.f32.mrb[0].mxu0
      %v8774 = vadd.f32 %v8650, %v8773
      %v8775 = vpop.f32.mrb[0].mxu0
      %8776 = vmatprep.mubr.bf16.mxu0 0
      %8777 = vmatmul.mubr.bf16.gmra.mrb[0].mxu0 %v8677
      %v8778 = vpop.f32.mrb[0].mxu0
      %v8779 = vadd.f32 %v8650, %v8778
      %v8780 = vpop.f32.mrb[0].mxu0
      %v8781 = vpop.f32.mrb[0].mxu0
      %v8782 = vadd.f32 %v8650, %v8781
      %v8783 = vpop.f32.mrb[0].mxu0
      %8784 = vmatprep.mubr.bf16.mxu0 0
      %8785 = vmatmul.mubr.bf16.gmra.mrb[0].mxu0 %v8680
      %v8786 = vpop.f32.mrb[0].mxu0
      %v8787 = vadd.f32 %v8650, %v8786
      %v8788 = vpop.f32.mrb[0].mxu0
      %v8789 = vpop.f32.mrb[0].mxu0
      %v8790 = vadd.f32 %v8650, %v8789
      %v8791 = vpop.f32.mrb[0].mxu0
      %8792 = vmatprep.mubr.bf16.mxu0 0
      %8793 = vmatmul.mubr.bf16.gmra.mrb[0].mxu0 %v8683
      %v8794 = vpop.f32.mrb[0].mxu0
      %v8795 = vadd.f32 %v8650, %v8794
      %v8796 = vpop.f32.mrb[0].mxu0
      %v8797 = vpop.f32.mrb[0].mxu0
      %v8798 = vadd.f32 %v8650, %v8797
      %v8799 = vpop.f32.mrb[0].mxu0
      %8800 = vmatprep.mubr.bf16.mxu0 0
      %8801 = vmatmul.mubr.bf16.gmra.mrb[0].mxu0 %v8686
      %v8802 = vpop.f32.mrb[0].mxu0
      %v8803 = vadd.f32 %v8650, %v8802
      %v8804 = vpop.f32.mrb[0].mxu0
      %v8805 = vpop.f32.mrb[0].mxu0
      %v8806 = vadd.f32 %v8650, %v8805
      %v8807 = vpop.f32.mrb[0].mxu0
      %8808 = vmatprep.mubr.bf16.mxu0 0
      %8809 = vmatmul.mubr.bf16.gmra.mrb[0].mxu0 %v8689
      %v8810 = vpop.f32.mrb[0].mxu0
      %v8811 = vadd.f32 %v8650, %v8810
      %v8812 = vpop.f32.mrb[0].mxu0
      %v8813 = vpop.f32.mrb[0].mxu0
      %v8814 = vadd.f32 %v8650, %v8813
      %v8815 = vpop.f32.mrb[0].mxu0
      %8816 = vmatprep.mubr.bf16.mxu0 0
      %8817 = vmatmul.mubr.bf16.gmra.mrb[0].mxu0 %v8692
      %v8818 = vpop.f32.mrb[0].mxu0
      %v8819 = vadd.f32 %v8650, %v8818
      %v8820 = vpop.f32.mrb[0].mxu0
      %v8821 = vpop.f32.mrb[0].mxu0
      %v8822 = vadd.f32 %v8650, %v8821
      %v8823 = vpop.f32.mrb[0].mxu0
      %8824 = vmatprep.mubr.bf16.mxu0 0
      %8825 = vmatmul.mubr.bf16.gmra.mrb[0].mxu0 %v8695
      %v8826 = vpop.f32.mrb[0].mxu0
      %v8827 = vadd.f32 %v8650, %v8826
      %v8828 = vpop.f32.mrb[0].mxu0
      %v8829 = vpop.f32.mrb[0].mxu0
      %v8830 = vadd.f32 %v8650, %v8829
      %v8831 = vpop.f32.mrb[0].mxu0
      %8832 = vmatprep.mubr.bf16.mxu0 0
      %8833 = vmatmul.mubr.bf16.gmra.mrb[0].mxu0 %v8698
      %v8834 = vpop.f32.mrb[0].mxu0
      %v8835 = vadd.f32 %v8650, %v8834
      %v8836 = vpop.f32.mrb[0].mxu0
      %v8837 = vpop.f32.mrb[0].mxu0
      %v8838 = vadd.f32 %v8650, %v8837
      %v8839 = vpop.f32.mrb[0].mxu0
      %8840 = vmatprep.mubr.bf16.mxu0 0
      %8841 = vmatmul.mubr.bf16.gmra.mrb[0].mxu0 %v8701
      %v8842 = vpop.f32.mrb[0].mxu0
      %v8843 = vadd.f32 %v8650, %v8842
      %v8844 = vpop.f32.mrb[0].mxu0
      %v8845 = vpop.f32.mrb[0].mxu0
      %v8846 = vadd.f32 %v8650, %v8845
      %v8847 = vpop.f32.mrb[0].mxu0
      %8848 = vmatprep.mubr.bf16.mxu0 0
      %8849 = vmatmul.mubr.bf16.gmra.mrb[0].mxu0 %v8704
      %v8850 = vpop.f32.mrb[0].mxu0
      %v8851 = vadd.f32 %v8650, %v8850
      %v8852 = vpop.f32.mrb[0].mxu0
      %v8853 = vpop.f32.mrb[0].mxu0
      %v8854 = vadd.f32 %v8650, %v8853
      %v8855 = vpop.f32.mrb[0].mxu0
      %8856 = vmatprep.mubr.bf16.mxu0 0
      %8857 = vmatmul.mubr.bf16.gmra.mrb[0].mxu0 %v8707
      %v8858 = vpop.f32.mrb[0].mxu0
      %v8859 = vadd.f32 %v8650, %v8858
      %v8860 = vpop.f32.mrb[0].mxu0
      %v8861 = vpop.f32.mrb[0].mxu0
      %v8862 = vadd.f32 %v8650, %v8861
      %v8863 = vpop.f32.mrb[0].mxu0
      %8864 = vmatprep.mubr.bf16.mxu0 0
      %8865 = vmatmul.mubr.bf16.gmra.mrb[0].mxu0 %v8710
      %v8866 = vpop.f32.mrb[0].mxu0
      %v8867 = vadd.f32 %v8650, %v8866
      %v8868 = vpop.f32.mrb[0].mxu0
      %v8869 = vpop.f32.mrb[0].mxu0
      %v8870 = vadd.f32 %v8650, %v8869
      %v8871 = vpop.f32.mrb[0].mxu0
      %8872 = vdwg.mxu0
      %v8873 = vmax.f32 %v8747, -256.0
      %v8874 = vmax.f32 %v8750, -256.0
      %v8875 = vmax.f32 %v8755, -256.0
      %v8876 = vmax.f32 %v8758, -256.0
      %v8877 = vmax.f32 %v8763, -256.0
      %v8878 = vmax.f32 %v8766, -256.0
      %v8879 = vmax.f32 %v8771, -256.0
      %v8880 = vmax.f32 %v8774, -256.0
      %v8881 = vmax.f32 %v8779, -256.0
      %v8882 = vmax.f32 %v8782, -256.0
      %v8883 = vmax.f32 %v8787, -256.0
      %v8884 = vmax.f32 %v8790, -256.0
      %v8885 = vmax.f32 %v8795, -256.0
      %v8886 = vmax.f32 %v8798, -256.0
      %v8887 = vmax.f32 %v8803, -256.0
      %v8888 = vmax.f32 %v8806, -256.0
      %v8889 = vmax.f32 %v8811, -256.0
      %v8890 = vmax.f32 %v8814, -256.0
      %v8891 = vmax.f32 %v8819, -256.0
      %v8892 = vmax.f32 %v8822, -256.0
      %v8893 = vmax.f32 %v8827, -256.0
      %v8894 = vmax.f32 %v8830, -256.0
      %v8895 = vmax.f32 %v8835, -256.0
      %v8896 = vmax.f32 %v8838, -256.0
      %v8897 = vmax.f32 %v8843, -256.0
      %v8898 = vmax.f32 %v8846, -256.0
      %v8899 = vmax.f32 %v8851, -256.0
      %v8900 = vmax.f32 %v8854, -256.0
      %v8901 = vmax.f32 %v8859, -256.0
      %v8902 = vmax.f32 %v8862, -256.0
      %v8903 = vmax.f32 %v8867, -256.0
      %v8904 = vmax.f32 %v8870, -256.0
      %v8905 = vmin.f32 %v8873, 256.0
      %v8906 = vmin.f32 %v8874, 256.0
      %v8907 = vmin.f32 %v8875, 256.0
      %v8908 = vmin.f32 %v8876, 256.0
      %v8909 = vmin.f32 %v8877, 256.0
      %v8910 = vmin.f32 %v8878, 256.0
      %v8911 = vmin.f32 %v8879, 256.0
      %v8912 = vmin.f32 %v8880, 256.0
      %v8913 = vmin.f32 %v8881, 256.0
      %v8914 = vmin.f32 %v8882, 256.0
      %v8915 = vmin.f32 %v8883, 256.0
      %v8916 = vmin.f32 %v8884, 256.0
      %v8917 = vmin.f32 %v8885, 256.0
      %v8918 = vmin.f32 %v8886, 256.0
      %v8919 = vmin.f32 %v8887, 256.0
      %v8920 = vmin.f32 %v8888, 256.0
      %v8921 = vmin.f32 %v8889, 256.0
      %v8922 = vmin.f32 %v8890, 256.0
      %v8923 = vmin.f32 %v8891, 256.0
      %v8924 = vmin.f32 %v8892, 256.0
      %v8925 = vmin.f32 %v8893, 256.0
      %v8926 = vmin.f32 %v8894, 256.0
      %v8927 = vmin.f32 %v8895, 256.0
      %v8928 = vmin.f32 %v8896, 256.0
      %v8929 = vmin.f32 %v8897, 256.0
      %v8930 = vmin.f32 %v8898, 256.0
      %v8931 = vmin.f32 %v8899, 256.0
      %v8932 = vmin.f32 %v8900, 256.0
      %v8933 = vmin.f32 %v8901, 256.0
      %v8934 = vmin.f32 %v8902, 256.0
      %v8935 = vmin.f32 %v8903, 256.0
      %v8936 = vmin.f32 %v8904, 256.0
      %8937 = vmatprep.subr.bf16.mxu0 0
      %8938 = vmatpush1.bf16.msra.mxu0 %v8635
      %8939 = vmatprep.subr.bf16.mxu0 0
      %8940 = vmatpush1.bf16.msra.mxu0 %v8636
      %8941 = vmatprep.subr.bf16.mxu0 0
      %8942 = vmatpush1.bf16.msra.mxu0 %v8637
      %8943 = vmatprep.subr.bf16.mxu0 0
      %8944 = vmatpush1.bf16.msra.mxu0 %v8638
      %8945 = vmatprep.subr.bf16.mxu0 0
      %8946 = vmatpush1.bf16.msra.mxu0 0
      %8947 = vmatprep.subr.bf16.mxu0 0
      %8948 = vmatpush1.bf16.msra.mxu0 0
      %8949 = vmatprep.subr.bf16.mxu0 0
      %8950 = vmatpush1.bf16.msra.mxu0 0
      %8951 = vmatprep.subr.bf16.mxu0 0
      %8952 = vmatpush1.bf16.msra.mxu0 0
      %8953 = vmatprep.subr.bf16.mxu0 0
      %8954 = vmatpush1.bf16.msra.mxu0 0
      %8955 = vmatprep.subr.bf16.mxu0 0
      %8956 = vmatpush1.bf16.msra.mxu0 0
      %8957 = vmatprep.subr.bf16.mxu0 0
      %8958 = vmatpush1.bf16.msra.mxu0 0
      %8959 = vmatprep.subr.bf16.mxu0 0
      %8960 = vmatpush1.bf16.msra.mxu0 0
      %8961 = vmatprep.subr.bf16.mxu0 0
      %8962 = vmatpush1.bf16.msra.mxu0 0
      %8963 = vmatprep.subr.bf16.mxu0 0
      %8964 = vmatpush1.bf16.msra.mxu0 0
      %8965 = vmatprep.subr.bf16.mxu0 0
      %8966 = vmatpush1.bf16.msra.mxu0 0
      %8967 = vmatprep.subr.bf16.mxu0 0
      %8968 = vmatpush1.bf16.msra.mxu0 0
      %8969 = vmatprep.mubr.bf16.mxu0 0
      %8970 = vmatmul.mubr.bf16.gmra.mrb[0].mxu0 %v3655
      %v8971 = vpop.f32.mrb[0].mxu0
      %v8972 = vadd.f32 %v8905, %v8971
      %v8973 = vpop.f32.mrb[0].mxu0
      %v8974 = vpop.f32.mrb[0].mxu0
      %v8975 = vadd.f32 %v8906, %v8974
      %v8976 = vpop.f32.mrb[0].mxu0
      %8977 = vmatprep.mubr.bf16.mxu0 0
      %8978 = vmatmul.mubr.bf16.gmra.mrb[0].mxu0 %v3658
      %v8979 = vpop.f32.mrb[0].mxu0
      %v8980 = vadd.f32 %v8907, %v8979
      %v8981 = vpop.f32.mrb[0].mxu0
      %v8982 = vpop.f32.mrb[0].mxu0
      %v8983 = vadd.f32 %v8908, %v8982
      %v8984 = vpop.f32.mrb[0].mxu0
      %8985 = vmatprep.mubr.bf16.mxu0 0
      %8986 = vmatmul.mubr.bf16.gmra.mrb[0].mxu0 %v3661
      %v8987 = vpop.f32.mrb[0].mxu0
      %v8988 = vadd.f32 %v8909, %v8987
      %v8989 = vpop.f32.mrb[0].mxu0
      %v8990 = vpop.f32.mrb[0].mxu0
      %v8991 = vadd.f32 %v8910, %v8990
      %v8992 = vpop.f32.mrb[0].mxu0
      %8993 = vmatprep.mubr.bf16.mxu0 0
      %8994 = vmatmul.mubr.bf16.gmra.mrb[0].mxu0 %v3664
      %v8995 = vpop.f32.mrb[0].mxu0
      %v8996 = vadd.f32 %v8911, %v8995
      %v8997 = vpop.f32.mrb[0].mxu0
      %v8998 = vpop.f32.mrb[0].mxu0
      %v8999 = vadd.f32 %v8912, %v8998
      %v9000 = vpop.f32.mrb[0].mxu0
      %9001 = vmatprep.mubr.bf16.mxu0 0
      %9002 = vmatmul.mubr.bf16.gmra.mrb[0].mxu0 %v3667
      %v9003 = vpop.f32.mrb[0].mxu0
      %v9004 = vadd.f32 %v8913, %v9003
      %v9005 = vpop.f32.mrb[0].mxu0
      %v9006 = vpop.f32.mrb[0].mxu0
      %v9007 = vadd.f32 %v8914, %v9006
      %v9008 = vpop.f32.mrb[0].mxu0
      %9009 = vmatprep.mubr.bf16.mxu0 0
      %9010 = vmatmul.mubr.bf16.gmra.mrb[0].mxu0 %v3670
      %v9011 = vpop.f32.mrb[0].mxu0
      %v9012 = vadd.f32 %v8915, %v9011
      %v9013 = vpop.f32.mrb[0].mxu0
      %v9014 = vpop.f32.mrb[0].mxu0
      %v9015 = vadd.f32 %v8916, %v9014
      %v9016 = vpop.f32.mrb[0].mxu0
      %9017 = vmatprep.mubr.bf16.mxu0 0
      %9018 = vmatmul.mubr.bf16.gmra.mrb[0].mxu0 %v3673
      %v9019 = vpop.f32.mrb[0].mxu0
      %v9020 = vadd.f32 %v8917, %v9019
      %v9021 = vpop.f32.mrb[0].mxu0
      %v9022 = vpop.f32.mrb[0].mxu0
      %v9023 = vadd.f32 %v8918, %v9022
      %v9024 = vpop.f32.mrb[0].mxu0
      %9025 = vmatprep.mubr.bf16.mxu0 0
      %9026 = vmatmul.mubr.bf16.gmra.mrb[0].mxu0 %v3676
      %v9027 = vpop.f32.mrb[0].mxu0
      %v9028 = vadd.f32 %v8919, %v9027
      %v9029 = vpop.f32.mrb[0].mxu0
      %v9030 = vpop.f32.mrb[0].mxu0
      %v9031 = vadd.f32 %v8920, %v9030
      %v9032 = vpop.f32.mrb[0].mxu0
      %9033 = vmatprep.mubr.bf16.mxu0 0
      %9034 = vmatmul.mubr.bf16.gmra.mrb[0].mxu0 %v3679
      %v9035 = vpop.f32.mrb[0].mxu0
      %v9036 = vadd.f32 %v8921, %v9035
      %v9037 = vpop.f32.mrb[0].mxu0
      %v9038 = vpop.f32.mrb[0].mxu0
      %v9039 = vadd.f32 %v8922, %v9038
      %v9040 = vpop.f32.mrb[0].mxu0
      %9041 = vmatprep.mubr.bf16.mxu0 0
      %9042 = vmatmul.mubr.bf16.gmra.mrb[0].mxu0 %v3682
      %v9043 = vpop.f32.mrb[0].mxu0
      %v9044 = vadd.f32 %v8923, %v9043
      %v9045 = vpop.f32.mrb[0].mxu0
      %v9046 = vpop.f32.mrb[0].mxu0
      %v9047 = vadd.f32 %v8924, %v9046
      %v9048 = vpop.f32.mrb[0].mxu0
      %9049 = vmatprep.mubr.bf16.mxu0 0
      %9050 = vmatmul.mubr.bf16.gmra.mrb[0].mxu0 %v3685
      %v9051 = vpop.f32.mrb[0].mxu0
      %v9052 = vadd.f32 %v8925, %v9051
      %v9053 = vpop.f32.mrb[0].mxu0
      %v9054 = vpop.f32.mrb[0].mxu0
      %v9055 = vadd.f32 %v8926, %v9054
      %v9056 = vpop.f32.mrb[0].mxu0
      %9057 = vmatprep.mubr.bf16.mxu0 0
      %9058 = vmatmul.mubr.bf16.gmra.mrb[0].mxu0 %v3688
      %v9059 = vpop.f32.mrb[0].mxu0
      %v9060 = vadd.f32 %v8927, %v9059
      %v9061 = vpop.f32.mrb[0].mxu0
      %v9062 = vpop.f32.mrb[0].mxu0
      %v9063 = vadd.f32 %v8928, %v9062
      %v9064 = vpop.f32.mrb[0].mxu0
      %9065 = vmatprep.mubr.bf16.mxu0 0
      %9066 = vmatmul.mubr.bf16.gmra.mrb[0].mxu0 %v3691
      %v9067 = vpop.f32.mrb[0].mxu0
      %v9068 = vadd.f32 %v8929, %v9067
      %v9069 = vpop.f32.mrb[0].mxu0
      %v9070 = vpop.f32.mrb[0].mxu0
      %v9071 = vadd.f32 %v8930, %v9070
      %v9072 = vpop.f32.mrb[0].mxu0
      %9073 = vmatprep.mubr.bf16.mxu0 0
      %9074 = vmatmul.mubr.bf16.gmra.mrb[0].mxu0 %v3694
      %v9075 = vpop.f32.mrb[0].mxu0
      %v9076 = vadd.f32 %v8931, %v9075
      %v9077 = vpop.f32.mrb[0].mxu0
      %v9078 = vpop.f32.mrb[0].mxu0
      %v9079 = vadd.f32 %v8932, %v9078
      %v9080 = vpop.f32.mrb[0].mxu0
      %9081 = vmatprep.mubr.bf16.mxu0 0
      %9082 = vmatmul.mubr.bf16.gmra.mrb[0].mxu0 %v3697
      %v9083 = vpop.f32.mrb[0].mxu0
      %v9084 = vadd.f32 %v8933, %v9083
      %v9085 = vpop.f32.mrb[0].mxu0
      %v9086 = vpop.f32.mrb[0].mxu0
      %v9087 = vadd.f32 %v8934, %v9086
      %v9088 = vpop.f32.mrb[0].mxu0
      %9089 = vmatprep.mubr.bf16.mxu0 0
      %9090 = vmatmul.mubr.bf16.gmra.mrb[0].mxu0 %v3700
      %v9091 = vpop.f32.mrb[0].mxu0
      %v9092 = vadd.f32 %v8935, %v9091
      %v9093 = vpop.f32.mrb[0].mxu0
      %v9094 = vpop.f32.mrb[0].mxu0
      %v9095 = vadd.f32 %v8936, %v9094
      %v9096 = vpop.f32.mrb[0].mxu0
      %9097 = vdwg.mxu0
      %vm9098 = vcmask 64512
      %9099 = vst.msk [vmem:[%s298] sm:$0xff] %vm9098, %v8972
      %9100 = vst.msk [vmem:[%s298 + $0x8] sm:$0xff] %vm9098, %v8975
      %9101 = vst.msk [vmem:[%s298 + $0x10] sm:$0xff] %vm9098, %v8980
      %9102 = vst.msk [vmem:[%s298 + $0x18] sm:$0xff] %vm9098, %v8983
      %9103 = vst.msk [vmem:[%s298 + $0x20] sm:$0xff] %vm9098, %v8988
      %9104 = vst.msk [vmem:[%s298 + $0x28] sm:$0xff] %vm9098, %v8991
      %9105 = vst.msk [vmem:[%s298 + $0x30] sm:$0xff] %vm9098, %v8996
      %9106 = vst.msk [vmem:[%s298 + $0x38] sm:$0xff] %vm9098, %v8999
      %9107 = vst.msk [vmem:[%s298 + $0x40] sm:$0xff] %vm9098, %v9004
      %9108 = vst.msk [vmem:[%s298 + $0x48] sm:$0xff] %vm9098, %v9007
      %9109 = vst.msk [vmem:[%s298 + $0x50] sm:$0xff] %vm9098, %v9012
      %9110 = vst.msk [vmem:[%s298 + $0x58] sm:$0xff] %vm9098, %v9015
      %9111 = vst.msk [vmem:[%s298 + $0x60] sm:$0xff] %vm9098, %v9020
      %9112 = vst.msk [vmem:[%s298 + $0x68] sm:$0xff] %vm9098, %v9023
      %9113 = vst.msk [vmem:[%s298 + $0x70] sm:$0xff] %vm9098, %v9028
      %9114 = vst.msk [vmem:[%s298 + $0x78] sm:$0xff] %vm9098, %v9031
      %9115 = vst.msk [vmem:[%s298 + $0x80] sm:$0xff] %vm9098, %v9036
      %9116 = vst.msk [vmem:[%s298 + $0x88] sm:$0xff] %vm9098, %v9039
      %9117 = vst.msk [vmem:[%s298 + $0x90] sm:$0xff] %vm9098, %v9044
      %9118 = vst.msk [vmem:[%s298 + $0x98] sm:$0xff] %vm9098, %v9047
      %9119 = vst.msk [vmem:[%s298 + $0xa0] sm:$0xff] %vm9098, %v9052
      %9120 = vst.msk [vmem:[%s298 + $0xa8] sm:$0xff] %vm9098, %v9055
      %9121 = vst.msk [vmem:[%s298 + $0xb0] sm:$0xff] %vm9098, %v9060
      %9122 = vst.msk [vmem:[%s298 + $0xb8] sm:$0xff] %vm9098, %v9063
      %9123 = vst.msk [vmem:[%s298 + $0xc0] sm:$0xff] %vm9098, %v9068
      %9124 = vst.msk [vmem:[%s298 + $0xc8] sm:$0xff] %vm9098, %v9071
      %9125 = vst.msk [vmem:[%s298 + $0xd0] sm:$0xff] %vm9098, %v9076
      %9126 = vst.msk [vmem:[%s298 + $0xd8] sm:$0xff] %vm9098, %v9079
      %9127 = vst.msk [vmem:[%s298 + $0xe0] sm:$0xff] %vm9098, %v9084
      %9128 = vst.msk [vmem:[%s298 + $0xe8] sm:$0xff] %vm9098, %v9087
      %9129 = vst.msk [vmem:[%s298 + $0xf0] sm:$0xff] %vm9098, %v9092
      %9130 = vst.msk [vmem:[%s298 + $0xf8] sm:$0xff] %vm9098, %v9095
      %p9131 = scmp.lt.s32.totalorder %s18, 1
      %s9132 = scalar_select %p9131, %s18, 1
      %s9133 = smul.addr %s9132, 32
      %s9134 = smul.addr %s9133, 8
      %s9135 = scalar_lea.vmem %s7, %s9134
      // Predicated region
      $region49: #{_lambda_.1} parent=47 // pred_check
        %p9136 = pneg %p193
      $region50: #{_lambda_.1} parent=47 // pred_check_branch
        %9138 = sbr.rel (%p9136) target = $region52
      $region51: #{_lambda_.1} parent=47 // pred_region
        _
      $region52: #{_lambda_.1} parent=47 // pred_fallthru
        _
    $region48: #{_lambda_.1} parent=5 // pred_fallthru
      _
    %p9139 = scmp.le.s32.totalorder 2, %s13
    // Predicated region
    $region53: #{_lambda_.1} parent=5 // pred_check
      %p9140 = pneg %p9139
    $region54: #{_lambda_.1} parent=5 // pred_check_branch
      %9142 = sbr.rel (%p9140) target = $region56
    $region55: #{_lambda_.1} parent=5 // pred_region
      %s9143 = ssub.s32 %s13, 2
      // Predicated region
      $region57: #{_lambda_.1} parent=55 // pred_check
        %p9144 = pneg %p199
      $region58: #{_lambda_.1} parent=55 // pred_check_branch
        %9146 = sbr.rel (%p9144) target = $region60
      $region59: #{_lambda_.1} parent=55 // pred_region
        %p9147 = scmp.lt.s32.totalorder %s19, 1
        %s9148 = scalar_select %p9147, %s19, 1
        %s9149 = smul.addr %s9148, 32
        %s9150 = smul.addr %s9149, 8
        %s9151 = scalar_lea.vmem %s7, %s9150
      $region60: #{_lambda_.1} parent=55 // pred_fallthru
        _
    $region56: #{_lambda_.1} parent=5 // pred_fallthru
      _
  $region6: #{_lambda_.1} parent=0 // loop_footer
    %s17 = sadd.s32 1, %s13
  $region7: #{_lambda_.1} parent=0 // loop_footer_branch
    %12 = sbr.rel target = $region3
  $region8: #{_lambda_.1} parent=0 // loop_exit
    _

</llo_original>
